<compile_context>
chip_gen: v5e
topology: v5e:2x2
jax: 0.10.0
libtpu: 0.0.40
codegen_flags: <defaults>
</compile_context>

<pallas_src>
import jax
import jax.numpy as jnp
import numpy as np
from jax import lax
from jax.experimental import pallas as pl
from jax.experimental.pallas import tpu as pltpu

_EPS = 1e-5


# ------------------------------ kernel -------------------------------------
def _make_kernel(Bt, H1, W1, Cin, Cout, has_sc):
  """Fused (conv3x3 -> BN -> ReLU -> conv3x3 -> BN) + shortcut + ReLU."""
  R = Bt * H1 * W1
  taps = [(dy, dx) for dy in range(3) for dx in range(3)]

  def kernel(p1_ref, xs_ref, w1_ref, s1_ref, b1_ref, w2_ref, s2_ref, b2_ref,
             *rest):
    if has_sc:
      wsc_ref, ssc_ref, bsc_ref, o_ref, pad_ref = rest
    else:
      o_ref, pad_ref = rest

    # ---- conv1: single im2col matmul (K = 9*Cin), bf16 in / f32 acc --------
    p1 = p1_ref[...].reshape(R, 9 * Cin)                       # bf16
    acc1 = jnp.dot(p1, w1_ref[...], preferred_element_type=jnp.float32)
    # BN1 (folded) + ReLU in f32.
    y1 = jnp.maximum(acc1 * s1_ref[...] + b1_ref[...], 0.0)    # (R, Cout) f32

    # ---- stage y1 (bf16) into the zero-haloed VMEM scratch for conv2 -------
    # Zero only the four 1-wide border strips; the interior is overwritten.
    zrow = jnp.zeros((Bt, 1, W1 + 2, Cout), jnp.bfloat16)
    zcol = jnp.zeros((Bt, H1, 1, Cout), jnp.bfloat16)
    pad_ref[:, 0:1, :, :] = zrow
    pad_ref[:, H1 + 1:H1 + 2, :, :] = zrow
    pad_ref[:, 1:H1 + 1, 0:1, :] = zcol
    pad_ref[:, 1:H1 + 1, W1 + 1:W1 + 2, :] = zcol
    pad_ref[:, 1:H1 + 1, 1:W1 + 1, :] = (
        y1.astype(jnp.bfloat16).reshape(Bt, H1, W1, Cout))

    # ---- conv2: single im2col matmul (K = 9*Cout) ---------------------------
    p2 = jnp.concatenate(
        [pad_ref[:, dy:dy + H1, dx:dx + W1, :].reshape(R, Cout)
         for dy, dx in taps], axis=1)                           # (R, 9*Cout) bf16
    acc2 = jnp.dot(p2, w2_ref[...], preferred_element_type=jnp.float32)
    y2 = acc2 * s2_ref[...] + b2_ref[...]                       # BN2 (folded)
    # TODO(synk): nn.Dropout(p=dropout) is identity here (p=0.0 / eval mode);
    #             training-mode random masking is not implemented.

    # ---- shortcut -----------------------------------------------------------
    if has_sc:
      sc = jnp.dot(xs_ref[...].reshape(R, Cin), wsc_ref[...],
                   preferred_element_type=jnp.float32)
      sc = sc * ssc_ref[...] + bsc_ref[...]
    else:
      sc = xs_ref[...].reshape(R, Cin).astype(jnp.float32)

    # ---- add + final ReLU ---------------------------------------------------
    out = jnp.maximum(y2 + sc, 0.0)
    o_ref[...] = out.reshape(Bt, H1 * W1, Cout).astype(o_ref.dtype)

  return kernel


# ----------------------------- wrapper helpers ------------------------------
def _fold_bn(gamma, beta, mean, var):
  scale = gamma / jnp.sqrt(var + _EPS)
  bias = beta - mean * scale
  return (scale.reshape(1, -1).astype(jnp.float32),
          bias.reshape(1, -1).astype(jnp.float32))


def _conv3x3_weight(w_oihw):
  # torch OIHW -> im2col layout (9*I, O); row order (ky, kx, i) matches the
  # (dy, dx, c) patch ordering used below.
  o, i = w_oihw.shape[0], w_oihw.shape[1]
  return jnp.transpose(w_oihw, (2, 3, 1, 0)).reshape(9 * i, o).astype(jnp.bfloat16)


def _im2col_3x3(x_nhwc, stride, H1, W1):
  """(N,H,W,C) -> (N, H1*W1, 9*C) patches for a 3x3, padding=1 conv."""
  N, _, _, C = x_nhwc.shape
  xp = jnp.pad(x_nhwc, ((0, 0), (1, 1), (1, 1), (0, 0)))
  slabs = []
  for dy in range(3):
    for dx in range(3):
      slabs.append(xp[:, dy:dy + stride * (H1 - 1) + 1:stride,
                      dx:dx + stride * (W1 - 1) + 1:stride, :])
  patches = jnp.concatenate(slabs, axis=-1)            # (N, H1, W1, 9*C)
  return patches.reshape(N, H1 * W1, 9 * C)


def _pick_batch_tile(N, per_step_bytes_per_image, budget=4 << 20):
  bt = max(1, min(N, budget // max(per_step_bytes_per_image, 1)))
  while N % bt:
    bt -= 1
  return bt


def basic_block_forward(x_nchw, params, stride):
  """Runs the fused BasicBlock Pallas kernel. Input/output are NCHW f32."""
  N, Cin, H, W = x_nchw.shape
  Cout = params["w1"].shape[0]
  has_sc = (stride != 1) or (Cin != Cout)
  H1 = (H + 2 - 3) // stride + 1
  W1 = (W + 2 - 3) // stride + 1

  x = jnp.transpose(x_nchw, (0, 2, 3, 1)).astype(jnp.float32)       # NHWC

  # conv1 patches: stride + padding handled here -> no strided Ref reads.
  patches1 = _im2col_3x3(x, stride, H1, W1).astype(jnp.bfloat16)

  # Shortcut input: strided 1x1 samples (projection) or identity passthrough.
  if has_sc:
    xs = x[:, ::stride, ::stride, :][:, :H1, :W1, :]
    xs = xs.reshape(N, H1 * W1, Cin).astype(jnp.bfloat16)
  else:
    xs = x.reshape(N, H1 * W1, Cin)                                 # f32

  w1 = _conv3x3_weight(params["w1"])
  s1, b1 = _fold_bn(params["bn1_g"], params["bn1_b"], params["bn1_m"], params["bn1_v"])
  w2 = _conv3x3_weight(params["w2"])
  s2, b2 = _fold_bn(params["bn2_g"], params["bn2_b"], params["bn2_m"], params["bn2_v"])

  # Pick a batch tile per grid step (keeps VMEM modest, amortizes grid cost).
  per_image = (2 * H1 * W1 * 9 * Cin          # patches1 (bf16)
               + xs.dtype.itemsize * H1 * W1 * Cin
               + 4 * H1 * W1 * Cout           # output block (f32)
               + 2 * (H1 + 2) * (W1 + 2) * Cout)  # scratch (bf16)
  Bt = _pick_batch_tile(N, 2 * per_image)     # ~double-buffered footprint

  kernel = _make_kernel(Bt, H1, W1, Cin, Cout, has_sc)

  inputs = [patches1, xs, w1, s1, b1, w2, s2, b2]
  in_specs = [
      pl.BlockSpec((Bt, H1 * W1, 9 * Cin), lambda n: (n, 0, 0)),
      pl.BlockSpec((Bt, H1 * W1, Cin), lambda n: (n, 0, 0)),
      pl.BlockSpec((9 * Cin, Cout), lambda n: (0, 0)),
      pl.BlockSpec((1, Cout), lambda n: (0, 0)),
      pl.BlockSpec((1, Cout), lambda n: (0, 0)),
      pl.BlockSpec((9 * Cout, Cout), lambda n: (0, 0)),
      pl.BlockSpec((1, Cout), lambda n: (0, 0)),
      pl.BlockSpec((1, Cout), lambda n: (0, 0)),
  ]
  if has_sc:
    wsc = jnp.transpose(params["wsc"], (2, 3, 1, 0)).reshape(Cin, Cout)
    wsc = wsc.astype(jnp.bfloat16)
    ssc, bsc = _fold_bn(params["bns_g"], params["bns_b"], params["bns_m"], params["bns_v"])
    inputs += [wsc, ssc, bsc]
    in_specs += [
        pl.BlockSpec((Cin, Cout), lambda n: (0, 0)),
        pl.BlockSpec((1, Cout), lambda n: (0, 0)),
        pl.BlockSpec((1, Cout), lambda n: (0, 0)),
    ]

  flops_per_image = (2 * H1 * W1 * 9 * Cin * Cout
                     + 2 * H1 * W1 * 9 * Cout * Cout
                     + (2 * H1 * W1 * Cin * Cout if has_sc else 0))
  bytes_accessed = sum(int(np.prod(a.shape)) * a.dtype.itemsize for a in inputs)
  bytes_accessed += N * H1 * W1 * Cout * 4
  cost = pl.CostEstimate(flops=N * flops_per_image, transcendentals=0,
                         bytes_accessed=int(bytes_accessed))

  out = pl.pallas_call(
      kernel,
      out_shape=jax.ShapeDtypeStruct((N, H1 * W1, Cout), jnp.float32),
      grid=(N // Bt,),
      in_specs=in_specs,
      out_specs=pl.BlockSpec((Bt, H1 * W1, Cout), lambda n: (n, 0, 0)),
      scratch_shapes=[pltpu.VMEM((Bt, H1 + 2, W1 + 2, Cout), jnp.bfloat16)],
      compiler_params=pltpu.CompilerParams(dimension_semantics=("parallel",)),
      cost_estimate=cost,
  )(*inputs)

  return jnp.transpose(out.reshape(N, H1, W1, Cout), (0, 3, 1, 2))   # NCHW


# ------------------------- pure-JAX reference (NCHW) -------------------------
def reference_forward(x, params, stride):
  def bn(y, g, b, m, v):
    g, b, m, v = (t.reshape(1, -1, 1, 1) for t in (g, b, m, v))
    return (y - m) / jnp.sqrt(v + _EPS) * g + b

  def conv(y, w, s, pad):
    return lax.conv_general_dilated(
        y, w, (s, s), ((pad, pad), (pad, pad)),
        dimension_numbers=("NCHW", "OIHW", "NCHW"))

  r = conv(x, params["w1"], stride, 1)
  r = jnp.maximum(bn(r, params["bn1_g"], params["bn1_b"], params["bn1_m"], params["bn1_v"]), 0.0)
  r = conv(r, params["w2"], 1, 1)
  r = bn(r, params["bn2_g"], params["bn2_b"], params["bn2_m"], params["bn2_v"])

  Cin, Cout = x.shape[1], params["w1"].shape[0]
  if stride != 1 or Cin != Cout:
    sc = conv(x, params["wsc"], stride, 0)
    sc = bn(sc, params["bns_g"], params["bns_b"], params["bns_m"], params["bns_v"])
  else:
    sc = x
  return jnp.maximum(r + sc, 0.0)


def init_params(key, cin, cout, has_shortcut):
  ks = jax.random.split(key, 15)
  p = {
      "w1": 0.2 * jax.random.normal(ks[0], (cout, cin, 3, 3), jnp.float32),
      "bn1_g": 1.0 + 0.1 * jax.random.normal(ks[1], (cout,), jnp.float32),
      "bn1_b": 0.1 * jax.random.normal(ks[2], (cout,), jnp.float32),
      "bn1_m": 0.1 * jax.random.normal(ks[3], (cout,), jnp.float32),
      "bn1_v": jnp.abs(1.0 + 0.1 * jax.random.normal(ks[4], (cout,), jnp.float32)),
      "w2": 0.2 * jax.random.normal(ks[5], (cout, cout, 3, 3), jnp.float32),
      "bn2_g": 1.0 + 0.1 * jax.random.normal(ks[6], (cout,), jnp.float32),
      "bn2_b": 0.1 * jax.random.normal(ks[7], (cout,), jnp.float32),
      "bn2_m": 0.1 * jax.random.normal(ks[8], (cout,), jnp.float32),
      "bn2_v": jnp.abs(1.0 + 0.1 * jax.random.normal(ks[9], (cout,), jnp.float32)),
  }
  if has_shortcut:
    p.update({
        "wsc": 0.2 * jax.random.normal(ks[10], (cout, cin, 1, 1), jnp.float32),
        "bns_g": 1.0 + 0.1 * jax.random.normal(ks[11], (cout,), jnp.float32),
        "bns_b": 0.1 * jax.random.normal(ks[12], (cout,), jnp.float32),
        "bns_m": 0.1 * jax.random.normal(ks[13], (cout,), jnp.float32),
        "bns_v": jnp.abs(1.0 + 0.1 * jax.random.normal(ks[14], (cout,), jnp.float32)),
    })
  return p


if __name__ == "__main__":
  key = jax.random.PRNGKey(0)
  kx, kp1, kp2 = jax.random.split(key, 3)

  x = jax.random.normal(kx, (2, 4, 16, 16), jnp.float32)

  # Case 1: identity shortcut (stride=1, in_channels == out_channels).
  p1 = init_params(kp1, 4, 4, has_shortcut=False)
  out1 = jax.block_until_ready(basic_block_forward(x, p1, stride=1))
  ref1 = reference_forward(x, p1, 1)
  # bf16 MXU operands -> looser tolerance than pure f32.
  np.testing.assert_allclose(np.asarray(out1), np.asarray(ref1), rtol=5e-2, atol=1e-1)

  # Case 2: projection shortcut (stride=2, 4 -> 8 channels).
  p2 = init_params(kp2, 4, 8, has_shortcut=True)
  out2 = jax.block_until_ready(basic_block_forward(x, p2, stride=2))
  ref2 = reference_forward(x, p2, 2)
  np.testing.assert_allclose(np.asarray(out2), np.asarray(ref2), rtol=5e-2, atol=1e-1)

  print("KERNEL_OK")
</pallas_src>

<mosaic_0001>
module attributes {stable_mosaic.version = 11 : i64} {
  func.func @kernel(%arg0: i32, %arg1: memref<2x256x36xbf16, #tpu.memory_space<vmem>>, %arg2: memref<2x256x4xf32, #tpu.memory_space<vmem>>, %arg3: memref<36x4xbf16, #tpu.memory_space<vmem>>, %arg4: memref<1x4xf32, #tpu.memory_space<vmem>>, %arg5: memref<1x4xf32, #tpu.memory_space<vmem>>, %arg6: memref<36x4xbf16, #tpu.memory_space<vmem>>, %arg7: memref<1x4xf32, #tpu.memory_space<vmem>>, %arg8: memref<1x4xf32, #tpu.memory_space<vmem>>, %arg9: memref<2x256x4xf32, #tpu.memory_space<vmem>>, %arg10: memref<2x18x18x4xbf16, #tpu.memory_space<vmem>>) attributes {dimension_semantics = [#tpu.dimension_semantics<parallel>], iteration_bounds = array<i64: 1>, scalar_prefetch = 0 : i64, scratch_operands = 1 : i64, tpu.core_type = #tpu.core_type<tc>, window_params = [{transform_indices = @transform_0, window_bounds = array<i64: 2, 256, 36>}, {transform_indices = @transform_1, window_bounds = array<i64: 2, 256, 4>}, {pipeline_mode = #tpu.pipeline_mode<synchronous>, transform_indices = @transform_2, window_bounds = array<i64: 36, 4>}, {pipeline_mode = #tpu.pipeline_mode<synchronous>, transform_indices = @transform_3, window_bounds = array<i64: 1, 4>}, {pipeline_mode = #tpu.pipeline_mode<synchronous>, transform_indices = @transform_4, window_bounds = array<i64: 1, 4>}, {pipeline_mode = #tpu.pipeline_mode<synchronous>, transform_indices = @transform_5, window_bounds = array<i64: 36, 4>}, {pipeline_mode = #tpu.pipeline_mode<synchronous>, transform_indices = @transform_6, window_bounds = array<i64: 1, 4>}, {pipeline_mode = #tpu.pipeline_mode<synchronous>, transform_indices = @transform_7, window_bounds = array<i64: 1, 4>}, {transform_indices = @transform_8, window_bounds = array<i64: 2, 256, 4>}]} {
    %c0 = arith.constant 0 : index
    %c0_0 = arith.constant 0 : index
    %c0_1 = arith.constant 0 : index
    %0 = vector.load %arg1[%c0, %c0_0, %c0_1] : memref<2x256x36xbf16, #tpu.memory_space<vmem>>, vector<2x256x36xbf16>
    %1 = vector.shape_cast %0 : vector<2x256x36xbf16> to vector<512x36xbf16>
    %c0_2 = arith.constant 0 : index
    %c0_3 = arith.constant 0 : index
    %2 = vector.load %arg3[%c0_2, %c0_3] : memref<36x4xbf16, #tpu.memory_space<vmem>>, vector<36x4xbf16>
    %cst = arith.constant dense<0.000000e+00> : vector<512x4xf32>
    %3 = tpu.matmul %1, %2, %cst {dimension_numbers = #tpu.dot_dimension_numbers<[1], [0], [0], [1], [0, 0, 1, 1], [], []>} : vector<512x36xbf16>, vector<36x4xbf16>, vector<512x4xf32> -> vector<512x4xf32>
    %c0_4 = arith.constant 0 : index
    %c0_5 = arith.constant 0 : index
    %4 = vector.load %arg4[%c0_4, %c0_5] : memref<1x4xf32, #tpu.memory_space<vmem>>, vector<1x4xf32>
    %5 = vector.broadcast %4 : vector<1x4xf32> to vector<512x4xf32>
    %6 = arith.mulf %3, %5 : vector<512x4xf32>
    %c0_6 = arith.constant 0 : index
    %c0_7 = arith.constant 0 : index
    %7 = vector.load %arg5[%c0_6, %c0_7] : memref<1x4xf32, #tpu.memory_space<vmem>>, vector<1x4xf32>
    %8 = vector.broadcast %7 : vector<1x4xf32> to vector<512x4xf32>
    %9 = arith.addf %6, %8 : vector<512x4xf32>
    %cst_8 = arith.constant 0.000000e+00 : f32
    %10 = vector.broadcast %cst_8 : f32 to vector<512x4xf32>
    %11 = arith.maximumf %9, %10 : vector<512x4xf32>
    %cst_9 = arith.constant 0.000000e+00 : bf16
    %12 = vector.broadcast %cst_9 : bf16 to vector<2x1x18x4xbf16>
    %cst_10 = arith.constant 0.000000e+00 : bf16
    %13 = vector.broadcast %cst_10 : bf16 to vector<2x16x1x4xbf16>
    %c0_11 = arith.constant 0 : index
    %c0_12 = arith.constant 0 : index
    %c0_13 = arith.constant 0 : index
    %c0_14 = arith.constant 0 : index
    %14 = vector.load %arg10[%c0_11, %c0_12, %c0_13, %c0_14] : memref<2x18x18x4xbf16, #tpu.memory_space<vmem>>, vector<2x1x18x4xbf16>
    tpu.vector_store %arg10[%c0_11, %c0_12, %c0_13, %c0_14], %12 {strides = array<i32>} : memref<2x18x18x4xbf16, #tpu.memory_space<vmem>>, vector<2x1x18x4xbf16>,
    %c0_15 = arith.constant 0 : index
    %c17 = arith.constant 17 : index
    %c0_16 = arith.constant 0 : index
    %c0_17 = arith.constant 0 : index
    %15 = vector.load %arg10[%c0_15, %c17, %c0_16, %c0_17] : memref<2x18x18x4xbf16, #tpu.memory_space<vmem>>, vector<2x1x18x4xbf16>
    tpu.vector_store %arg10[%c0_15, %c17, %c0_16, %c0_17], %12 {strides = array<i32>} : memref<2x18x18x4xbf16, #tpu.memory_space<vmem>>, vector<2x1x18x4xbf16>,
    %c0_18 = arith.constant 0 : index
    %c1 = arith.constant 1 : index
    %c0_19 = arith.constant 0 : index
    %c0_20 = arith.constant 0 : index
    %16 = vector.load %arg10[%c0_18, %c1, %c0_19, %c0_20] : memref<2x18x18x4xbf16, #tpu.memory_space<vmem>>, vector<2x16x1x4xbf16>
    tpu.vector_store %arg10[%c0_18, %c1, %c0_19, %c0_20], %13 {strides = array<i32>} : memref<2x18x18x4xbf16, #tpu.memory_space<vmem>>, vector<2x16x1x4xbf16>,
    %c0_21 = arith.constant 0 : index
    %c1_22 = arith.constant 1 : index
    %c17_23 = arith.constant 17 : index
    %c0_24 = arith.constant 0 : index
    %17 = vector.load %arg10[%c0_21, %c1_22, %c17_23, %c0_24] : memref<2x18x18x4xbf16, #tpu.memory_space<vmem>>, vector<2x16x1x4xbf16>
    tpu.vector_store %arg10[%c0_21, %c1_22, %c17_23, %c0_24], %13 {strides = array<i32>} : memref<2x18x18x4xbf16, #tpu.memory_space<vmem>>, vector<2x16x1x4xbf16>,
    %18 = arith.truncf %11 : vector<512x4xf32> to vector<512x4xbf16>
    %19 = vector.shape_cast %18 : vector<512x4xbf16> to vector<2x16x16x4xbf16>
    %c0_25 = arith.constant 0 : index
    %c1_26 = arith.constant 1 : index
    %c1_27 = arith.constant 1 : index
    %c0_28 = arith.constant 0 : index
    %20 = vector.load %arg10[%c0_25, %c1_26, %c1_27, %c0_28] : memref<2x18x18x4xbf16, #tpu.memory_space<vmem>>, vector<2x16x16x4xbf16>
    tpu.vector_store %arg10[%c0_25, %c1_26, %c1_27, %c0_28], %19 {strides = array<i32>} : memref<2x18x18x4xbf16, #tpu.memory_space<vmem>>, vector<2x16x16x4xbf16>,
    %c0_29 = arith.constant 0 : index
    %c0_30 = arith.constant 0 : index
    %c0_31 = arith.constant 0 : index
    %c0_32 = arith.constant 0 : index
    %21 = vector.load %arg10[%c0_29, %c0_30, %c0_31, %c0_32] : memref<2x18x18x4xbf16, #tpu.memory_space<vmem>>, vector<2x16x16x4xbf16>
    %22 = vector.shape_cast %21 : vector<2x16x16x4xbf16> to vector<512x4xbf16>
    %c0_33 = arith.constant 0 : index
    %c0_34 = arith.constant 0 : index
    %c1_35 = arith.constant 1 : index
    %c0_36 = arith.constant 0 : index
    %23 = vector.load %arg10[%c0_33, %c0_34, %c1_35, %c0_36] : memref<2x18x18x4xbf16, #tpu.memory_space<vmem>>, vector<2x16x16x4xbf16>
    %24 = vector.shape_cast %23 : vector<2x16x16x4xbf16> to vector<512x4xbf16>
    %c0_37 = arith.constant 0 : index
    %c0_38 = arith.constant 0 : index
    %c2 = arith.constant 2 : index
    %c0_39 = arith.constant 0 : index
    %25 = vector.load %arg10[%c0_37, %c0_38, %c2, %c0_39] : memref<2x18x18x4xbf16, #tpu.memory_space<vmem>>, vector<2x16x16x4xbf16>
    %26 = vector.shape_cast %25 : vector<2x16x16x4xbf16> to vector<512x4xbf16>
    %c0_40 = arith.constant 0 : index
    %c1_41 = arith.constant 1 : index
    %c0_42 = arith.constant 0 : index
    %c0_43 = arith.constant 0 : index
    %27 = vector.load %arg10[%c0_40, %c1_41, %c0_42, %c0_43] : memref<2x18x18x4xbf16, #tpu.memory_space<vmem>>, vector<2x16x16x4xbf16>
    %28 = vector.shape_cast %27 : vector<2x16x16x4xbf16> to vector<512x4xbf16>
    %c0_44 = arith.constant 0 : index
    %c1_45 = arith.constant 1 : index
    %c1_46 = arith.constant 1 : index
    %c0_47 = arith.constant 0 : index
    %29 = vector.load %arg10[%c0_44, %c1_45, %c1_46, %c0_47] : memref<2x18x18x4xbf16, #tpu.memory_space<vmem>>, vector<2x16x16x4xbf16>
    %30 = vector.shape_cast %29 : vector<2x16x16x4xbf16> to vector<512x4xbf16>
    %c0_48 = arith.constant 0 : index
    %c1_49 = arith.constant 1 : index
    %c2_50 = arith.constant 2 : index
    %c0_51 = arith.constant 0 : index
    %31 = vector.load %arg10[%c0_48, %c1_49, %c2_50, %c0_51] : memref<2x18x18x4xbf16, #tpu.memory_space<vmem>>, vector<2x16x16x4xbf16>
    %32 = vector.shape_cast %31 : vector<2x16x16x4xbf16> to vector<512x4xbf16>
    %c0_52 = arith.constant 0 : index
    %c2_53 = arith.constant 2 : index
    %c0_54 = arith.constant 0 : index
    %c0_55 = arith.constant 0 : index
    %33 = vector.load %arg10[%c0_52, %c2_53, %c0_54, %c0_55] : memref<2x18x18x4xbf16, #tpu.memory_space<vmem>>, vector<2x16x16x4xbf16>
    %34 = vector.shape_cast %33 : vector<2x16x16x4xbf16> to vector<512x4xbf16>
    %c0_56 = arith.constant 0 : index
    %c2_57 = arith.constant 2 : index
    %c1_58 = arith.constant 1 : index
    %c0_59 = arith.constant 0 : index
    %35 = vector.load %arg10[%c0_56, %c2_57, %c1_58, %c0_59] : memref<2x18x18x4xbf16, #tpu.memory_space<vmem>>, vector<2x16x16x4xbf16>
    %36 = vector.shape_cast %35 : vector<2x16x16x4xbf16> to vector<512x4xbf16>
    %c0_60 = arith.constant 0 : index
    %c2_61 = arith.constant 2 : index
    %c2_62 = arith.constant 2 : index
    %c0_63 = arith.constant 0 : index
    %37 = vector.load %arg10[%c0_60, %c2_61, %c2_62, %c0_63] : memref<2x18x18x4xbf16, #tpu.memory_space<vmem>>, vector<2x16x16x4xbf16>
    %38 = vector.shape_cast %37 : vector<2x16x16x4xbf16> to vector<512x4xbf16>
    %39 = tpu.concatenate %22, %24, %26, %28, %30, %32, %34, %36, %38 in 1 : vector<512x4xbf16>, vector<512x4xbf16>, vector<512x4xbf16>, vector<512x4xbf16>, vector<512x4xbf16>, vector<512x4xbf16>, vector<512x4xbf16>, vector<512x4xbf16>, vector<512x4xbf16> -> vector<512x36xbf16>
    %c0_64 = arith.constant 0 : index
    %c0_65 = arith.constant 0 : index
    %40 = vector.load %arg6[%c0_64, %c0_65] : memref<36x4xbf16, #tpu.memory_space<vmem>>, vector<36x4xbf16>
    %cst_66 = arith.constant dense<0.000000e+00> : vector<512x4xf32>
    %41 = tpu.matmul %39, %40, %cst_66 {dimension_numbers = #tpu.dot_dimension_numbers<[1], [0], [0], [1], [0, 0, 1, 1], [], []>} : vector<512x36xbf16>, vector<36x4xbf16>, vector<512x4xf32> -> vector<512x4xf32>
    %c0_67 = arith.constant 0 : index
    %c0_68 = arith.constant 0 : index
    %42 = vector.load %arg7[%c0_67, %c0_68] : memref<1x4xf32, #tpu.memory_space<vmem>>, vector<1x4xf32>
    %43 = vector.broadcast %42 : vector<1x4xf32> to vector<512x4xf32>
    %44 = arith.mulf %41, %43 : vector<512x4xf32>
    %c0_69 = arith.constant 0 : index
    %c0_70 = arith.constant 0 : index
    %45 = vector.load %arg8[%c0_69, %c0_70] : memref<1x4xf32, #tpu.memory_space<vmem>>, vector<1x4xf32>
    %46 = vector.broadcast %45 : vector<1x4xf32> to vector<512x4xf32>
    %47 = arith.addf %44, %46 : vector<512x4xf32>
    %c0_71 = arith.constant 0 : index
    %c0_72 = arith.constant 0 : index
    %c0_73 = arith.constant 0 : index
    %48 = vector.load %arg2[%c0_71, %c0_72, %c0_73] : memref<2x256x4xf32, #tpu.memory_space<vmem>>, vector<2x256x4xf32>
    %49 = vector.shape_cast %48 : vector<2x256x4xf32> to vector<512x4xf32>
    %50 = arith.addf %47, %49 : vector<512x4xf32>
    %cst_74 = arith.constant 0.000000e+00 : f32
    %51 = vector.broadcast %cst_74 : f32 to vector<512x4xf32>
    %52 = arith.maximumf %50, %51 : vector<512x4xf32>
    %53 = vector.shape_cast %52 : vector<512x4xf32> to vector<2x256x4xf32>
    %c0_75 = arith.constant 0 : index
    %c0_76 = arith.constant 0 : index
    %c0_77 = arith.constant 0 : index
    %54 = vector.load %arg9[%c0_75, %c0_76, %c0_77] : memref<2x256x4xf32, #tpu.memory_space<vmem>>, vector<2x256x4xf32>
    tpu.vector_store %arg9[%c0_75, %c0_76, %c0_77], %53 {strides = array<i32>} : memref<2x256x4xf32, #tpu.memory_space<vmem>>, vector<2x256x4xf32>,
    return
  }
  func.func @transform_0(%arg0: i32) -> (i32, i32, i32) {
    %c0_i32 = arith.constant 0 : i32
    %c0_i32_0 = arith.constant 0 : i32
    %c0_i32_1 = arith.constant 0 : i32
    return %arg0, %c0_i32, %c0_i32_0 : i32, i32, i32
  }
  func.func @transform_1(%arg0: i32) -> (i32, i32, i32) {
    %c0_i32 = arith.constant 0 : i32
    %c0_i32_0 = arith.constant 0 : i32
    %c0_i32_1 = arith.constant 0 : i32
    return %arg0, %c0_i32, %c0_i32_0 : i32, i32, i32
  }
  func.func @transform_2(%arg0: i32) -> (i32, i32) {
    %c0_i32 = arith.constant 0 : i32
    %c0_i32_0 = arith.constant 0 : i32
    %c0_i32_1 = arith.constant 0 : i32
    return %c0_i32, %c0_i32_0 : i32, i32
  }
  func.func @transform_3(%arg0: i32) -> (i32, i32) {
    %c0_i32 = arith.constant 0 : i32
    %c0_i32_0 = arith.constant 0 : i32
    %c0_i32_1 = arith.constant 0 : i32
    return %c0_i32, %c0_i32_0 : i32, i32
  }
  func.func @transform_4(%arg0: i32) -> (i32, i32) {
    %c0_i32 = arith.constant 0 : i32
    %c0_i32_0 = arith.constant 0 : i32
    %c0_i32_1 = arith.constant 0 : i32
    return %c0_i32, %c0_i32_0 : i32, i32
  }
  func.func @transform_5(%arg0: i32) -> (i32, i32) {
    %c0_i32 = arith.constant 0 : i32
    %c0_i32_0 = arith.constant 0 : i32
    %c0_i32_1 = arith.constant 0 : i32
    return %c0_i32, %c0_i32_0 : i32, i32
  }
  func.func @transform_6(%arg0: i32) -> (i32, i32) {
    %c0_i32 = arith.constant 0 : i32
    %c0_i32_0 = arith.constant 0 : i32
    %c0_i32_1 = arith.constant 0 : i32
    return %c0_i32, %c0_i32_0 : i32, i32
  }
  func.func @transform_7(%arg0: i32) -> (i32, i32) {
    %c0_i32 = arith.constant 0 : i32
    %c0_i32_0 = arith.constant 0 : i32
    %c0_i32_1 = arith.constant 0 : i32
    return %c0_i32, %c0_i32_0 : i32, i32
  }
  func.func @transform_8(%arg0: i32) -> (i32, i32, i32) {
    %c0_i32 = arith.constant 0 : i32
    %c0_i32_0 = arith.constant 0 : i32
    %c0_i32_1 = arith.constant 0 : i32
    return %arg0, %c0_i32, %c0_i32_0 : i32, i32, i32
  }
}

</mosaic_0001>

<llo_original>
// kernel: tpu_custom_call.1
$region0: #{tpu_custom_call.1}
  #allocation0 [shape = 'u32[]', space=smem, size = 0x4, offset = 0x4, fixed_abs, tag = 'smem constant byte address 0x4 - core index']
  #allocation1 [shape = 'u32[72,128]{1,0:T(1,128)}', space=vmem, size = 0x9000, scoped, tag = 'internal scratch']
  #allocation2 [shape = 'bf16[2,18,18,4]{3,2,1,0:T(8,128)(2,1)}', space=vmem, size = 0x36000, scoped, tag = 'scratch operand']
  %s0 = inlined_call_operand.vmem [shape: bf16[2,256,36], index: 0, kind: input, shape index: {}]
  %s1 = inlined_call_operand.vmem [shape: f32[2,256,4], index: 1, kind: input, shape index: {}]
  %s2 = inlined_call_operand.vmem [shape: bf16[36,4], index: 2, kind: input, shape index: {}]
  %s3 = inlined_call_operand.vmem [shape: f32[1,4], index: 3, kind: input, shape index: {}]
  %s4 = inlined_call_operand.vmem [shape: f32[1,4], index: 4, kind: input, shape index: {}]
  %s5 = inlined_call_operand.vmem [shape: bf16[36,4], index: 5, kind: input, shape index: {}]
  %s6 = inlined_call_operand.vmem [shape: f32[1,4], index: 6, kind: input, shape index: {}]
  %s7 = inlined_call_operand.vmem [shape: f32[1,4], index: 7, kind: input, shape index: {}]
  %s8 = inlined_call_operand.vmem [shape: f32[2,256,4], index: 8, kind: output, shape index: {}]
  %s9 = sld [smem:[#allocation0]]
  $region42: #{tpu_custom_call.1} parent=0
    _
  %s11 = ssub.s32 1, %s9
  %s12 = scalar_select 0, %s11, %s9
  // Predicated region
  $region2: #{tpu_custom_call.1} parent=0 // pred_check
    _
  $region3: #{tpu_custom_call.1} parent=0 // pred_check_branch
    %14 = sbr.rel (0) target = $region5
  $region4: #{tpu_custom_call.1} parent=0 // pred_region
    _
  $region5: #{tpu_custom_call.1} parent=0 // pred_fallthru
    _
  // Predicated region
  $region6: #{tpu_custom_call.1} parent=0 // pred_check
    _
  $region7: #{tpu_custom_call.1} parent=0 // pred_check_branch
    %16 = sbr.rel (0) target = $region9
  $region8: #{tpu_custom_call.1} parent=0 // pred_region
    _
  $region9: #{tpu_custom_call.1} parent=0 // pred_fallthru
    _
  // Predicated region
  $region10: #{tpu_custom_call.1} parent=0 // pred_check
    _
  $region11: #{tpu_custom_call.1} parent=0 // pred_check_branch
    %18 = sbr.rel (0) target = $region13
  $region12: #{tpu_custom_call.1} parent=0 // pred_region
    _
  $region13: #{tpu_custom_call.1} parent=0 // pred_fallthru
    _
  // Predicated region
  $region14: #{tpu_custom_call.1} parent=0 // pred_check
    _
  $region15: #{tpu_custom_call.1} parent=0 // pred_check_branch
    %20 = sbr.rel (0) target = $region17
  $region16: #{tpu_custom_call.1} parent=0 // pred_region
    _
  $region17: #{tpu_custom_call.1} parent=0 // pred_fallthru
    _
  // Predicated region
  $region18: #{tpu_custom_call.1} parent=0 // pred_check
    _
  $region19: #{tpu_custom_call.1} parent=0 // pred_check_branch
    %22 = sbr.rel (0) target = $region21
  $region20: #{tpu_custom_call.1} parent=0 // pred_region
    _
  $region21: #{tpu_custom_call.1} parent=0 // pred_fallthru
    _
  // Predicated region
  $region22: #{tpu_custom_call.1} parent=0 // pred_check
    _
  $region23: #{tpu_custom_call.1} parent=0 // pred_check_branch
    %24 = sbr.rel (0) target = $region25
  $region24: #{tpu_custom_call.1} parent=0 // pred_region
    _
  $region25: #{tpu_custom_call.1} parent=0 // pred_fallthru
    _
  // Predicated region
  $region26: #{tpu_custom_call.1} parent=0 // pred_check
    _
  $region27: #{tpu_custom_call.1} parent=0 // pred_check_branch
    %26 = sbr.rel (0) target = $region29
  $region28: #{tpu_custom_call.1} parent=0 // pred_region
    _
  $region29: #{tpu_custom_call.1} parent=0 // pred_fallthru
    _
  // Predicated region
  $region30: #{tpu_custom_call.1} parent=0 // pred_check
    _
  $region31: #{tpu_custom_call.1} parent=0 // pred_check_branch
    %28 = sbr.rel (0) target = $region33
  $region32: #{tpu_custom_call.1} parent=0 // pred_region
    _
  $region33: #{tpu_custom_call.1} parent=0 // pred_fallthru
    _
  %v30 = vld [vmem:[%s0] sm:$0xf]
  %v31 = vld [vmem:[%s0 + $0x4] sm:$0xf]
  %v32 = vld [vmem:[%s0 + $0x8] sm:$0xf]
  %v33 = vld [vmem:[%s0 + $0xc] sm:$0xf]
  %v34 = vld [vmem:[%s0 + $0x10] sm:$0xf]
  %v35 = vld [vmem:[%s0 + $0x14] sm:$0xf]
  %v36 = vld [vmem:[%s0 + $0x18] sm:$0xf]
  %v37 = vld [vmem:[%s0 + $0x1c] sm:$0xf]
  %v38 = vld [vmem:[%s0 + $0x20] sm:$0xf]
  %v39 = vld [vmem:[%s0 + $0x24] sm:$0xf]
  %v40 = vld [vmem:[%s0 + $0x28] sm:$0xf]
  %v41 = vld [vmem:[%s0 + $0x2c] sm:$0xf]
  %v42 = vld [vmem:[%s0 + $0x30] sm:$0xf]
  %v43 = vld [vmem:[%s0 + $0x34] sm:$0xf]
  %v44 = vld [vmem:[%s0 + $0x38] sm:$0xf]
  %v45 = vld [vmem:[%s0 + $0x3c] sm:$0xf]
  %v46 = vld [vmem:[%s0 + $0x40] sm:$0xf]
  %v47 = vld [vmem:[%s0 + $0x44] sm:$0xf]
  %v48 = vld [vmem:[%s0 + $0x48] sm:$0xf]
  %v49 = vld [vmem:[%s0 + $0x4c] sm:$0xf]
  %v50 = vld [vmem:[%s0 + $0x50] sm:$0xf]
  %v51 = vld [vmem:[%s0 + $0x54] sm:$0xf]
  %v52 = vld [vmem:[%s0 + $0x58] sm:$0xf]
  %v53 = vld [vmem:[%s0 + $0x5c] sm:$0xf]
  %v54 = vld [vmem:[%s0 + $0x60] sm:$0xf]
  %v55 = vld [vmem:[%s0 + $0x64] sm:$0xf]
  %v56 = vld [vmem:[%s0 + $0x68] sm:$0xf]
  %v57 = vld [vmem:[%s0 + $0x6c] sm:$0xf]
  %v58 = vld [vmem:[%s0 + $0x70] sm:$0xf]
  %v59 = vld [vmem:[%s0 + $0x74] sm:$0xf]
  %v60 = vld [vmem:[%s0 + $0x78] sm:$0xf]
  %v61 = vld [vmem:[%s0 + $0x7c] sm:$0xf]
  %v62 = vld [vmem:[%s0 + $0x80] sm:$0xf]
  %v63 = vld [vmem:[%s0 + $0x84] sm:$0xf]
  %v64 = vld [vmem:[%s0 + $0x88] sm:$0xf]
  %v65 = vld [vmem:[%s0 + $0x8c] sm:$0xf]
  %v66 = vld [vmem:[%s0 + $0x90] sm:$0xf]
  %v67 = vld [vmem:[%s0 + $0x94] sm:$0xf]
  %v68 = vld [vmem:[%s0 + $0x98] sm:$0xf]
  %v69 = vld [vmem:[%s0 + $0x9c] sm:$0xf]
  %v70 = vld [vmem:[%s0 + $0xa0] sm:$0xf]
  %v71 = vld [vmem:[%s0 + $0xa4] sm:$0xf]
  %v72 = vld [vmem:[%s0 + $0xa8] sm:$0xf]
  %v73 = vld [vmem:[%s0 + $0xac] sm:$0xf]
  %v74 = vld [vmem:[%s0 + $0xb0] sm:$0xf]
  %v75 = vld [vmem:[%s0 + $0xb4] sm:$0xf]
  %v76 = vld [vmem:[%s0 + $0xb8] sm:$0xf]
  %v77 = vld [vmem:[%s0 + $0xbc] sm:$0xf]
  %v78 = vld [vmem:[%s0 + $0xc0] sm:$0xf]
  %v79 = vld [vmem:[%s0 + $0xc4] sm:$0xf]
  %v80 = vld [vmem:[%s0 + $0xc8] sm:$0xf]
  %v81 = vld [vmem:[%s0 + $0xcc] sm:$0xf]
  %v82 = vld [vmem:[%s0 + $0xd0] sm:$0xf]
  %v83 = vld [vmem:[%s0 + $0xd4] sm:$0xf]
  %v84 = vld [vmem:[%s0 + $0xd8] sm:$0xf]
  %v85 = vld [vmem:[%s0 + $0xdc] sm:$0xf]
  %v86 = vld [vmem:[%s0 + $0xe0] sm:$0xf]
  %v87 = vld [vmem:[%s0 + $0xe4] sm:$0xf]
  %v88 = vld [vmem:[%s0 + $0xe8] sm:$0xf]
  %v89 = vld [vmem:[%s0 + $0xec] sm:$0xf]
  %v90 = vld [vmem:[%s0 + $0xf0] sm:$0xf]
  %v91 = vld [vmem:[%s0 + $0xf4] sm:$0xf]
  %v92 = vld [vmem:[%s0 + $0xf8] sm:$0xf]
  %v93 = vld [vmem:[%s0 + $0xfc] sm:$0xf]
  %v94 = vld [vmem:[%s2] sm:$0xf]
  %v95 = vld [vmem:[%s2 + $0x4] sm:$0xf]
  %v96 = vld [vmem:[%s2 + $0x8] sm:$0xf]
  %v97 = vld [vmem:[%s2 + $0xc] sm:$0xf]
  %v98 = vld [vmem:[%s2 + $0x10] sm:$0x3]
  %v163 = vunpack.c.l.b16 %v30
  %v164 = vunpack.c.l.b16 %v31
  %v165 = vunpack.c.l.b16 %v32
  %v166 = vunpack.c.l.b16 %v33
  %v167 = vunpack.c.l.b16 %v34
  %v168 = vunpack.c.l.b16 %v35
  %v169 = vunpack.c.l.b16 %v36
  %v170 = vunpack.c.l.b16 %v37
  %v171 = vunpack.c.l.b16 %v38
  %v172 = vunpack.c.l.b16 %v39
  %v173 = vunpack.c.l.b16 %v40
  %v174 = vunpack.c.l.b16 %v41
  %v175 = vunpack.c.l.b16 %v42
  %v176 = vunpack.c.l.b16 %v43
  %v177 = vunpack.c.l.b16 %v44
  %v178 = vunpack.c.l.b16 %v45
  %v179 = vunpack.c.l.b16 %v46
  %v180 = vunpack.c.l.b16 %v47
  %v181 = vunpack.c.l.b16 %v48
  %v182 = vunpack.c.l.b16 %v49
  %v183 = vunpack.c.l.b16 %v50
  %v184 = vunpack.c.l.b16 %v51
  %v185 = vunpack.c.l.b16 %v52
  %v186 = vunpack.c.l.b16 %v53
  %v187 = vunpack.c.l.b16 %v54
  %v188 = vunpack.c.l.b16 %v55
  %v189 = vunpack.c.l.b16 %v56
  %v190 = vunpack.c.l.b16 %v57
  %v191 = vunpack.c.l.b16 %v58
  %v192 = vunpack.c.l.b16 %v59
  %v193 = vunpack.c.l.b16 %v60
  %v194 = vunpack.c.l.b16 %v61
  %v195 = vunpack.c.l.b16 %v62
  %v196 = vunpack.c.l.b16 %v63
  %v197 = vunpack.c.l.b16 %v64
  %v198 = vunpack.c.l.b16 %v65
  %v199 = vunpack.c.l.b16 %v66
  %v200 = vunpack.c.l.b16 %v67
  %v201 = vunpack.c.l.b16 %v68
  %v202 = vunpack.c.l.b16 %v69
  %v203 = vunpack.c.l.b16 %v70
  %v204 = vunpack.c.l.b16 %v71
  %v205 = vunpack.c.l.b16 %v72
  %v206 = vunpack.c.l.b16 %v73
  %v207 = vunpack.c.l.b16 %v74
  %v208 = vunpack.c.l.b16 %v75
  %v209 = vunpack.c.l.b16 %v76
  %v210 = vunpack.c.l.b16 %v77
  %v211 = vunpack.c.l.b16 %v78
  %v212 = vunpack.c.l.b16 %v79
  %v213 = vunpack.c.l.b16 %v80
  %v214 = vunpack.c.l.b16 %v81
  %v215 = vunpack.c.l.b16 %v82
  %v216 = vunpack.c.l.b16 %v83
  %v217 = vunpack.c.l.b16 %v84
  %v218 = vunpack.c.l.b16 %v85
  %v219 = vunpack.c.l.b16 %v86
  %v220 = vunpack.c.l.b16 %v87
  %v221 = vunpack.c.l.b16 %v88
  %v222 = vunpack.c.l.b16 %v89
  %v223 = vunpack.c.l.b16 %v90
  %v224 = vunpack.c.l.b16 %v91
  %v225 = vunpack.c.l.b16 %v92
  %v226 = vunpack.c.l.b16 %v93
  %v227 = vpack.c.b16 %v164, %v163
  %v228 = vpack.c.b16 %v166, %v165
  %v229 = vpack.c.b16 %v168, %v167
  %v230 = vpack.c.b16 %v170, %v169
  %v231 = vpack.c.b16 %v172, %v171
  %v232 = vpack.c.b16 %v174, %v173
  %v233 = vpack.c.b16 %v176, %v175
  %v234 = vpack.c.b16 %v178, %v177
  %v235 = vpack.c.b16 %v180, %v179
  %v236 = vpack.c.b16 %v182, %v181
  %v237 = vpack.c.b16 %v184, %v183
  %v238 = vpack.c.b16 %v186, %v185
  %v239 = vpack.c.b16 %v188, %v187
  %v240 = vpack.c.b16 %v190, %v189
  %v241 = vpack.c.b16 %v192, %v191
  %v242 = vpack.c.b16 %v194, %v193
  %v243 = vpack.c.b16 %v196, %v195
  %v244 = vpack.c.b16 %v198, %v197
  %v245 = vpack.c.b16 %v200, %v199
  %v246 = vpack.c.b16 %v202, %v201
  %v247 = vpack.c.b16 %v204, %v203
  %v248 = vpack.c.b16 %v206, %v205
  %v249 = vpack.c.b16 %v208, %v207
  %v250 = vpack.c.b16 %v210, %v209
  %v251 = vpack.c.b16 %v212, %v211
  %v252 = vpack.c.b16 %v214, %v213
  %v253 = vpack.c.b16 %v216, %v215
  %v254 = vpack.c.b16 %v218, %v217
  %v255 = vpack.c.b16 %v220, %v219
  %v256 = vpack.c.b16 %v222, %v221
  %v257 = vpack.c.b16 %v224, %v223
  %v258 = vpack.c.b16 %v226, %v225
  %v264 = vunpack.c.l.b16 %v94
  %v265 = vunpack.c.l.b16 %v95
  %v266 = vunpack.c.l.b16 %v96
  %v267 = vunpack.c.l.b16 %v97
  %v268 = vunpack.c.l.b16 %v98
  %v269 = vpack.c.b16 %v265, %v264
  %v270 = vpack.c.b16 %v267, %v266
  %v271 = vpack.c.b16 %v268, %v268
  %vm274 = vcmask 293888
  %v276 = vsel %vm274, %v227, 0
  %v279 = vsel %vm274, %v228, 0
  %v282 = vsel %vm274, %v229, 0
  %v285 = vsel %vm274, %v230, 0
  %v288 = vsel %vm274, %v231, 0
  %v291 = vsel %vm274, %v232, 0
  %v294 = vsel %vm274, %v233, 0
  %v297 = vsel %vm274, %v234, 0
  %v300 = vsel %vm274, %v235, 0
  %v303 = vsel %vm274, %v236, 0
  %v306 = vsel %vm274, %v237, 0
  %v309 = vsel %vm274, %v238, 0
  %v312 = vsel %vm274, %v239, 0
  %v315 = vsel %vm274, %v240, 0
  %v318 = vsel %vm274, %v241, 0
  %v321 = vsel %vm274, %v242, 0
  %v324 = vsel %vm274, %v243, 0
  %v327 = vsel %vm274, %v244, 0
  %v330 = vsel %vm274, %v245, 0
  %v333 = vsel %vm274, %v246, 0
  %v336 = vsel %vm274, %v247, 0
  %v339 = vsel %vm274, %v248, 0
  %v342 = vsel %vm274, %v249, 0
  %v345 = vsel %vm274, %v250, 0
  %v348 = vsel %vm274, %v251, 0
  %v351 = vsel %vm274, %v252, 0
  %v354 = vsel %vm274, %v253, 0
  %v357 = vsel %vm274, %v254, 0
  %v360 = vsel %vm274, %v255, 0
  %v363 = vsel %vm274, %v256, 0
  %v366 = vsel %vm274, %v257, 0
  %v369 = vsel %vm274, %v258, 0
  %vm371 = vcmask 1041408
  %v373 = vsel %vm371, %v271, 0
  %375 = vmatpush.bf16.msra.mxu0 0
  %376 = vmatpush.bf16.msra.mxu0 0
  %377 = vmatpush.bf16.msra.mxu0 0
  %378 = vmatpush.bf16.msra.mxu0 0
  %379 = vmatpush.bf16.msra.mxu0 0
  %380 = vmatpush.bf16.msra.mxu0 %v373
  %381 = vmatpush.bf16.msra.mxu0 %v270
  %382 = vmatpush.bf16.msra.mxu0 %v269
  %383 = vmatmul.bf16.gmra.mxu0 %v276
  %v384 = vpop.f32.mrf.mxu0
  %v385 = vadd.f32 0.0, %v384
  %v386 = vpop.f32.mrf.mxu0
  %v387 = vadd.f32 0.0, %v386
  %388 = vmatmul.bf16.gmra.mxu0 %v279
  %v389 = vpop.f32.mrf.mxu0
  %v390 = vadd.f32 0.0, %v389
  %v391 = vpop.f32.mrf.mxu0
  %v392 = vadd.f32 0.0, %v391
  %393 = vmatmul.bf16.gmra.mxu0 %v282
  %v394 = vpop.f32.mrf.mxu0
  %v395 = vadd.f32 0.0, %v394
  %v396 = vpop.f32.mrf.mxu0
  %v397 = vadd.f32 0.0, %v396
  %398 = vmatmul.bf16.gmra.mxu0 %v285
  %v399 = vpop.f32.mrf.mxu0
  %v400 = vadd.f32 0.0, %v399
  %v401 = vpop.f32.mrf.mxu0
  %v402 = vadd.f32 0.0, %v401
  %403 = vmatmul.bf16.gmra.mxu0 %v288
  %v404 = vpop.f32.mrf.mxu0
  %v405 = vadd.f32 0.0, %v404
  %v406 = vpop.f32.mrf.mxu0
  %v407 = vadd.f32 0.0, %v406
  %408 = vmatmul.bf16.gmra.mxu0 %v291
  %v409 = vpop.f32.mrf.mxu0
  %v410 = vadd.f32 0.0, %v409
  %v411 = vpop.f32.mrf.mxu0
  %v412 = vadd.f32 0.0, %v411
  %413 = vmatmul.bf16.gmra.mxu0 %v294
  %v414 = vpop.f32.mrf.mxu0
  %v415 = vadd.f32 0.0, %v414
  %v416 = vpop.f32.mrf.mxu0
  %v417 = vadd.f32 0.0, %v416
  %418 = vmatmul.bf16.gmra.mxu0 %v297
  %v419 = vpop.f32.mrf.mxu0
  %v420 = vadd.f32 0.0, %v419
  %v421 = vpop.f32.mrf.mxu0
  %v422 = vadd.f32 0.0, %v421
  %423 = vmatmul.bf16.gmra.mxu0 %v300
  %v424 = vpop.f32.mrf.mxu0
  %v425 = vadd.f32 0.0, %v424
  %v426 = vpop.f32.mrf.mxu0
  %v427 = vadd.f32 0.0, %v426
  %428 = vmatmul.bf16.gmra.mxu0 %v303
  %v429 = vpop.f32.mrf.mxu0
  %v430 = vadd.f32 0.0, %v429
  %v431 = vpop.f32.mrf.mxu0
  %v432 = vadd.f32 0.0, %v431
  %433 = vmatmul.bf16.gmra.mxu0 %v306
  %v434 = vpop.f32.mrf.mxu0
  %v435 = vadd.f32 0.0, %v434
  %v436 = vpop.f32.mrf.mxu0
  %v437 = vadd.f32 0.0, %v436
  %438 = vmatmul.bf16.gmra.mxu0 %v309
  %v439 = vpop.f32.mrf.mxu0
  %v440 = vadd.f32 0.0, %v439
  %v441 = vpop.f32.mrf.mxu0
  %v442 = vadd.f32 0.0, %v441
  %443 = vmatmul.bf16.gmra.mxu0 %v312
  %v444 = vpop.f32.mrf.mxu0
  %v445 = vadd.f32 0.0, %v444
  %v446 = vpop.f32.mrf.mxu0
  %v447 = vadd.f32 0.0, %v446
  %448 = vmatmul.bf16.gmra.mxu0 %v315
  %v449 = vpop.f32.mrf.mxu0
  %v450 = vadd.f32 0.0, %v449
  %v451 = vpop.f32.mrf.mxu0
  %v452 = vadd.f32 0.0, %v451
  %453 = vmatmul.bf16.gmra.mxu0 %v318
  %v454 = vpop.f32.mrf.mxu0
  %v455 = vadd.f32 0.0, %v454
  %v456 = vpop.f32.mrf.mxu0
  %v457 = vadd.f32 0.0, %v456
  %458 = vmatmul.bf16.gmra.mxu0 %v321
  %v459 = vpop.f32.mrf.mxu0
  %v460 = vadd.f32 0.0, %v459
  %v461 = vpop.f32.mrf.mxu0
  %v462 = vadd.f32 0.0, %v461
  %463 = vmatmul.bf16.gmra.mxu0 %v324
  %v464 = vpop.f32.mrf.mxu0
  %v465 = vadd.f32 0.0, %v464
  %v466 = vpop.f32.mrf.mxu0
  %v467 = vadd.f32 0.0, %v466
  %468 = vmatmul.bf16.gmra.mxu0 %v327
  %v469 = vpop.f32.mrf.mxu0
  %v470 = vadd.f32 0.0, %v469
  %v471 = vpop.f32.mrf.mxu0
  %v472 = vadd.f32 0.0, %v471
  %473 = vmatmul.bf16.gmra.mxu0 %v330
  %v474 = vpop.f32.mrf.mxu0
  %v475 = vadd.f32 0.0, %v474
  %v476 = vpop.f32.mrf.mxu0
  %v477 = vadd.f32 0.0, %v476
  %478 = vmatmul.bf16.gmra.mxu0 %v333
  %v479 = vpop.f32.mrf.mxu0
  %v480 = vadd.f32 0.0, %v479
  %v481 = vpop.f32.mrf.mxu0
  %v482 = vadd.f32 0.0, %v481
  %483 = vmatmul.bf16.gmra.mxu0 %v336
  %v484 = vpop.f32.mrf.mxu0
  %v485 = vadd.f32 0.0, %v484
  %v486 = vpop.f32.mrf.mxu0
  %v487 = vadd.f32 0.0, %v486
  %488 = vmatmul.bf16.gmra.mxu0 %v339
  %v489 = vpop.f32.mrf.mxu0
  %v490 = vadd.f32 0.0, %v489
  %v491 = vpop.f32.mrf.mxu0
  %v492 = vadd.f32 0.0, %v491
  %493 = vmatmul.bf16.gmra.mxu0 %v342
  %v494 = vpop.f32.mrf.mxu0
  %v495 = vadd.f32 0.0, %v494
  %v496 = vpop.f32.mrf.mxu0
  %v497 = vadd.f32 0.0, %v496
  %498 = vmatmul.bf16.gmra.mxu0 %v345
  %v499 = vpop.f32.mrf.mxu0
  %v500 = vadd.f32 0.0, %v499
  %v501 = vpop.f32.mrf.mxu0
  %v502 = vadd.f32 0.0, %v501
  %503 = vmatmul.bf16.gmra.mxu0 %v348
  %v504 = vpop.f32.mrf.mxu0
  %v505 = vadd.f32 0.0, %v504
  %v506 = vpop.f32.mrf.mxu0
  %v507 = vadd.f32 0.0, %v506
  %508 = vmatmul.bf16.gmra.mxu0 %v351
  %v509 = vpop.f32.mrf.mxu0
  %v510 = vadd.f32 0.0, %v509
  %v511 = vpop.f32.mrf.mxu0
  %v512 = vadd.f32 0.0, %v511
  %513 = vmatmul.bf16.gmra.mxu0 %v354
  %v514 = vpop.f32.mrf.mxu0
  %v515 = vadd.f32 0.0, %v514
  %v516 = vpop.f32.mrf.mxu0
  %v517 = vadd.f32 0.0, %v516
  %518 = vmatmul.bf16.gmra.mxu0 %v357
  %v519 = vpop.f32.mrf.mxu0
  %v520 = vadd.f32 0.0, %v519
  %v521 = vpop.f32.mrf.mxu0
  %v522 = vadd.f32 0.0, %v521
  %523 = vmatmul.bf16.gmra.mxu0 %v360
  %v524 = vpop.f32.mrf.mxu0
  %v525 = vadd.f32 0.0, %v524
  %v526 = vpop.f32.mrf.mxu0
  %v527 = vadd.f32 0.0, %v526
  %528 = vmatmul.bf16.gmra.mxu0 %v363
  %v529 = vpop.f32.mrf.mxu0
  %v530 = vadd.f32 0.0, %v529
  %v531 = vpop.f32.mrf.mxu0
  %v532 = vadd.f32 0.0, %v531
  %533 = vmatmul.bf16.gmra.mxu0 %v366
  %v534 = vpop.f32.mrf.mxu0
  %v535 = vadd.f32 0.0, %v534
  %v536 = vpop.f32.mrf.mxu0
  %v537 = vadd.f32 0.0, %v536
  %538 = vmatmul.bf16.gmra.mxu0 %v369
  %v539 = vpop.f32.mrf.mxu0
  %v540 = vadd.f32 0.0, %v539
  %v541 = vpop.f32.mrf.mxu0
  %v542 = vadd.f32 0.0, %v541
  %543 = vdwg.mxu0
  %v544 = vld [vmem:[%s3] sm:$0x1]
  %v546 = vperm.slane %v544, 0
  %v548 = vmul.f32 %v385, %v546
  %v549 = vmul.f32 %v387, %v546
  %v550 = vmul.f32 %v390, %v546
  %v551 = vmul.f32 %v392, %v546
  %v552 = vmul.f32 %v395, %v546
  %v553 = vmul.f32 %v397, %v546
  %v554 = vmul.f32 %v400, %v546
  %v555 = vmul.f32 %v402, %v546
  %v556 = vmul.f32 %v405, %v546
  %v557 = vmul.f32 %v407, %v546
  %v558 = vmul.f32 %v410, %v546
  %v559 = vmul.f32 %v412, %v546
  %v560 = vmul.f32 %v415, %v546
  %v561 = vmul.f32 %v417, %v546
  %v562 = vmul.f32 %v420, %v546
  %v563 = vmul.f32 %v422, %v546
  %v564 = vmul.f32 %v425, %v546
  %v565 = vmul.f32 %v427, %v546
  %v566 = vmul.f32 %v430, %v546
  %v567 = vmul.f32 %v432, %v546
  %v568 = vmul.f32 %v435, %v546
  %v569 = vmul.f32 %v437, %v546
  %v570 = vmul.f32 %v440, %v546
  %v571 = vmul.f32 %v442, %v546
  %v572 = vmul.f32 %v445, %v546
  %v573 = vmul.f32 %v447, %v546
  %v574 = vmul.f32 %v450, %v546
  %v575 = vmul.f32 %v452, %v546
  %v576 = vmul.f32 %v455, %v546
  %v577 = vmul.f32 %v457, %v546
  %v578 = vmul.f32 %v460, %v546
  %v579 = vmul.f32 %v462, %v546
  %v580 = vmul.f32 %v465, %v546
  %v581 = vmul.f32 %v467, %v546
  %v582 = vmul.f32 %v470, %v546
  %v583 = vmul.f32 %v472, %v546
  %v584 = vmul.f32 %v475, %v546
  %v585 = vmul.f32 %v477, %v546
  %v586 = vmul.f32 %v480, %v546
  %v587 = vmul.f32 %v482, %v546
  %v588 = vmul.f32 %v485, %v546
  %v589 = vmul.f32 %v487, %v546
  %v590 = vmul.f32 %v490, %v546
  %v591 = vmul.f32 %v492, %v546
  %v592 = vmul.f32 %v495, %v546
  %v593 = vmul.f32 %v497, %v546
  %v594 = vmul.f32 %v500, %v546
  %v595 = vmul.f32 %v502, %v546
  %v596 = vmul.f32 %v505, %v546
  %v597 = vmul.f32 %v507, %v546
  %v598 = vmul.f32 %v510, %v546
  %v599 = vmul.f32 %v512, %v546
  %v600 = vmul.f32 %v515, %v546
  %v601 = vmul.f32 %v517, %v546
  %v602 = vmul.f32 %v520, %v546
  %v603 = vmul.f32 %v522, %v546
  %v604 = vmul.f32 %v525, %v546
  %v605 = vmul.f32 %v527, %v546
  %v606 = vmul.f32 %v530, %v546
  %v607 = vmul.f32 %v532, %v546
  %v608 = vmul.f32 %v535, %v546
  %v609 = vmul.f32 %v537, %v546
  %v610 = vmul.f32 %v540, %v546
  %v611 = vmul.f32 %v542, %v546
  %v612 = vld [vmem:[%s4] sm:$0x1]
  %v614 = vperm.slane %v612, 0
  %v616 = vadd.f32 %v548, %v614
  %v617 = vadd.f32 %v549, %v614
  %v618 = vadd.f32 %v550, %v614
  %v619 = vadd.f32 %v551, %v614
  %v620 = vadd.f32 %v552, %v614
  %v621 = vadd.f32 %v553, %v614
  %v622 = vadd.f32 %v554, %v614
  %v623 = vadd.f32 %v555, %v614
  %v624 = vadd.f32 %v556, %v614
  %v625 = vadd.f32 %v557, %v614
  %v626 = vadd.f32 %v558, %v614
  %v627 = vadd.f32 %v559, %v614
  %v628 = vadd.f32 %v560, %v614
  %v629 = vadd.f32 %v561, %v614
  %v630 = vadd.f32 %v562, %v614
  %v631 = vadd.f32 %v563, %v614
  %v632 = vadd.f32 %v564, %v614
  %v633 = vadd.f32 %v565, %v614
  %v634 = vadd.f32 %v566, %v614
  %v635 = vadd.f32 %v567, %v614
  %v636 = vadd.f32 %v568, %v614
  %v637 = vadd.f32 %v569, %v614
  %v638 = vadd.f32 %v570, %v614
  %v639 = vadd.f32 %v571, %v614
  %v640 = vadd.f32 %v572, %v614
  %v641 = vadd.f32 %v573, %v614
  %v642 = vadd.f32 %v574, %v614
  %v643 = vadd.f32 %v575, %v614
  %v644 = vadd.f32 %v576, %v614
  %v645 = vadd.f32 %v577, %v614
  %v646 = vadd.f32 %v578, %v614
  %v647 = vadd.f32 %v579, %v614
  %v648 = vadd.f32 %v580, %v614
  %v649 = vadd.f32 %v581, %v614
  %v650 = vadd.f32 %v582, %v614
  %v651 = vadd.f32 %v583, %v614
  %v652 = vadd.f32 %v584, %v614
  %v653 = vadd.f32 %v585, %v614
  %v654 = vadd.f32 %v586, %v614
  %v655 = vadd.f32 %v587, %v614
  %v656 = vadd.f32 %v588, %v614
  %v657 = vadd.f32 %v589, %v614
  %v658 = vadd.f32 %v590, %v614
  %v659 = vadd.f32 %v591, %v614
  %v660 = vadd.f32 %v592, %v614
  %v661 = vadd.f32 %v593, %v614
  %v662 = vadd.f32 %v594, %v614
  %v663 = vadd.f32 %v595, %v614
  %v664 = vadd.f32 %v596, %v614
  %v665 = vadd.f32 %v597, %v614
  %v666 = vadd.f32 %v598, %v614
  %v667 = vadd.f32 %v599, %v614
  %v668 = vadd.f32 %v600, %v614
  %v669 = vadd.f32 %v601, %v614
  %v670 = vadd.f32 %v602, %v614
  %v671 = vadd.f32 %v603, %v614
  %v672 = vadd.f32 %v604, %v614
  %v673 = vadd.f32 %v605, %v614
  %v674 = vadd.f32 %v606, %v614
  %v675 = vadd.f32 %v607, %v614
  %v676 = vadd.f32 %v608, %v614
  %v677 = vadd.f32 %v609, %v614
  %v678 = vadd.f32 %v610, %v614
  %v679 = vadd.f32 %v611, %v614
  %v680 = vmax.f32 %v616, 0.0
  %v681 = vmax.f32 %v617, 0.0
  %v682 = vmax.f32 %v618, 0.0
  %v683 = vmax.f32 %v619, 0.0
  %v684 = vmax.f32 %v620, 0.0
  %v685 = vmax.f32 %v621, 0.0
  %v686 = vmax.f32 %v622, 0.0
  %v687 = vmax.f32 %v623, 0.0
  %v688 = vmax.f32 %v624, 0.0
  %v689 = vmax.f32 %v625, 0.0
  %v690 = vmax.f32 %v626, 0.0
  %v691 = vmax.f32 %v627, 0.0
  %v692 = vmax.f32 %v628, 0.0
  %v693 = vmax.f32 %v629, 0.0
  %v694 = vmax.f32 %v630, 0.0
  %v695 = vmax.f32 %v631, 0.0
  %v696 = vmax.f32 %v632, 0.0
  %v697 = vmax.f32 %v633, 0.0
  %v698 = vmax.f32 %v634, 0.0
  %v699 = vmax.f32 %v635, 0.0
  %v700 = vmax.f32 %v636, 0.0
  %v701 = vmax.f32 %v637, 0.0
  %v702 = vmax.f32 %v638, 0.0
  %v703 = vmax.f32 %v639, 0.0
  %v704 = vmax.f32 %v640, 0.0
  %v705 = vmax.f32 %v641, 0.0
  %v706 = vmax.f32 %v642, 0.0
  %v707 = vmax.f32 %v643, 0.0
  %v708 = vmax.f32 %v644, 0.0
  %v709 = vmax.f32 %v645, 0.0
  %v710 = vmax.f32 %v646, 0.0
  %v711 = vmax.f32 %v647, 0.0
  %v712 = vmax.f32 %v648, 0.0
  %v713 = vmax.f32 %v649, 0.0
  %v714 = vmax.f32 %v650, 0.0
  %v715 = vmax.f32 %v651, 0.0
  %v716 = vmax.f32 %v652, 0.0
  %v717 = vmax.f32 %v653, 0.0
  %v718 = vmax.f32 %v654, 0.0
  %v719 = vmax.f32 %v655, 0.0
  %v720 = vmax.f32 %v656, 0.0
  %v721 = vmax.f32 %v657, 0.0
  %v722 = vmax.f32 %v658, 0.0
  %v723 = vmax.f32 %v659, 0.0
  %v724 = vmax.f32 %v660, 0.0
  %v725 = vmax.f32 %v661, 0.0
  %v726 = vmax.f32 %v662, 0.0
  %v727 = vmax.f32 %v663, 0.0
  %v728 = vmax.f32 %v664, 0.0
  %v729 = vmax.f32 %v665, 0.0
  %v730 = vmax.f32 %v666, 0.0
  %v731 = vmax.f32 %v667, 0.0
  %v732 = vmax.f32 %v668, 0.0
  %v733 = vmax.f32 %v669, 0.0
  %v734 = vmax.f32 %v670, 0.0
  %v735 = vmax.f32 %v671, 0.0
  %v736 = vmax.f32 %v672, 0.0
  %v737 = vmax.f32 %v673, 0.0
  %v738 = vmax.f32 %v674, 0.0
  %v739 = vmax.f32 %v675, 0.0
  %v740 = vmax.f32 %v676, 0.0
  %v741 = vmax.f32 %v677, 0.0
  %v742 = vmax.f32 %v678, 0.0
  %v743 = vmax.f32 %v679, 0.0
  %vm744 = vcmask 27648
  %745 = vst.msk [vmem:[#allocation2] sm:$0xf] %vm744, 0
  %746 = vst.msk [vmem:[#allocation2 + $0x4] sm:$0xf] %vm744, 0
  %vm747 = vcmask 24576
  %748 = vst.msk [vmem:[#allocation2 + $0x8] sm:$0x1] %vm747, 0
  %749 = vst.msk [vmem:[#allocation2 + $0xd8] sm:$0xf] %vm744, 0
  %750 = vst.msk [vmem:[#allocation2 + $0xdc] sm:$0xf] %vm744, 0
  %751 = vst.msk [vmem:[#allocation2 + $0xe0] sm:$0x1] %vm747, 0
  %s752 = scalar_lea.vmem [#allocation2], 204
  %753 = vst.msk [vmem:[%s752] sm:$0xf] %vm744, 0
  %754 = vst.msk [vmem:[%s752 + $0x4] sm:$0xf] %vm744, 0
  %755 = vst.msk [vmem:[%s752 + $0x8] sm:$0x1] %vm747, 0
  %756 = vst.msk [vmem:[%s752 + $0xd8] sm:$0xf] %vm744, 0
  %757 = vst.msk [vmem:[%s752 + $0xdc] sm:$0xf] %vm744, 0
  %758 = vst.msk [vmem:[%s752 + $0xe0] sm:$0x1] %vm747, 0
  %s759 = scalar_lea.vmem [#allocation2], 12
  %vm760 = vcmask 24576
  %vm761 = vsmask.f32 256
  %vm762 = vmand %vm760, %vm761
  %v763 = vld [vmem:[%s759] sm:$0x1]
  %v764 = vsel %vm762, 0, %v763
  %765 = vst [vmem:[%s759] sm:$0x1] %v764
  %v766 = vld [vmem:[%s759 + $0xc] sm:$0x1]
  %v767 = vsel %vm762, 0, %v766
  %768 = vst [vmem:[%s759 + $0xc] sm:$0x1] %v767
  %v769 = vld [vmem:[%s759 + $0x18] sm:$0x1]
  %v770 = vsel %vm762, 0, %v769
  %771 = vst [vmem:[%s759 + $0x18] sm:$0x1] %v770
  %v772 = vld [vmem:[%s759 + $0x24] sm:$0x1]
  %v773 = vsel %vm762, 0, %v772
  %774 = vst [vmem:[%s759 + $0x24] sm:$0x1] %v773
  %v775 = vld [vmem:[%s759 + $0x30] sm:$0x1]
  %v776 = vsel %vm762, 0, %v775
  %777 = vst [vmem:[%s759 + $0x30] sm:$0x1] %v776
  %v778 = vld [vmem:[%s759 + $0x3c] sm:$0x1]
  %v779 = vsel %vm762, 0, %v778
  %780 = vst [vmem:[%s759 + $0x3c] sm:$0x1] %v779
  %v781 = vld [vmem:[%s759 + $0x48] sm:$0x1]
  %v782 = vsel %vm762, 0, %v781
  %783 = vst [vmem:[%s759 + $0x48] sm:$0x1] %v782
  %v784 = vld [vmem:[%s759 + $0x54] sm:$0x1]
  %v785 = vsel %vm762, 0, %v784
  %786 = vst [vmem:[%s759 + $0x54] sm:$0x1] %v785
  %v787 = vld [vmem:[%s759 + $0x60] sm:$0x1]
  %v788 = vsel %vm762, 0, %v787
  %789 = vst [vmem:[%s759 + $0x60] sm:$0x1] %v788
  %v790 = vld [vmem:[%s759 + $0x6c] sm:$0x1]
  %v791 = vsel %vm762, 0, %v790
  %792 = vst [vmem:[%s759 + $0x6c] sm:$0x1] %v791
  %v793 = vld [vmem:[%s759 + $0x78] sm:$0x1]
  %v794 = vsel %vm762, 0, %v793
  %795 = vst [vmem:[%s759 + $0x78] sm:$0x1] %v794
  %v796 = vld [vmem:[%s759 + $0x84] sm:$0x1]
  %v797 = vsel %vm762, 0, %v796
  %798 = vst [vmem:[%s759 + $0x84] sm:$0x1] %v797
  %v799 = vld [vmem:[%s759 + $0x90] sm:$0x1]
  %v800 = vsel %vm762, 0, %v799
  %801 = vst [vmem:[%s759 + $0x90] sm:$0x1] %v800
  %v802 = vld [vmem:[%s759 + $0x9c] sm:$0x1]
  %v803 = vsel %vm762, 0, %v802
  %804 = vst [vmem:[%s759 + $0x9c] sm:$0x1] %v803
  %v805 = vld [vmem:[%s759 + $0xa8] sm:$0x1]
  %v806 = vsel %vm762, 0, %v805
  %807 = vst [vmem:[%s759 + $0xa8] sm:$0x1] %v806
  %v808 = vld [vmem:[%s759 + $0xb4] sm:$0x1]
  %v809 = vsel %vm762, 0, %v808
  %810 = vst [vmem:[%s759 + $0xb4] sm:$0x1] %v809
  %v811 = vld [vmem:[%s759 + $0xd8] sm:$0x1]
  %v812 = vsel %vm762, 0, %v811
  %813 = vst [vmem:[%s759 + $0xd8] sm:$0x1] %v812
  %v814 = vld [vmem:[%s759 + $0xe4] sm:$0x1]
  %v815 = vsel %vm762, 0, %v814
  %816 = vst [vmem:[%s759 + $0xe4] sm:$0x1] %v815
  %v817 = vld [vmem:[%s759 + $0xf0] sm:$0x1]
  %v818 = vsel %vm762, 0, %v817
  %819 = vst [vmem:[%s759 + $0xf0] sm:$0x1] %v818
  %v820 = vld [vmem:[%s759 + $0xfc] sm:$0x1]
  %v821 = vsel %vm762, 0, %v820
  %822 = vst [vmem:[%s759 + $0xfc] sm:$0x1] %v821
  %v823 = vld [vmem:[%s759 + $0x108] sm:$0x1]
  %v824 = vsel %vm762, 0, %v823
  %825 = vst [vmem:[%s759 + $0x108] sm:$0x1] %v824
  %v826 = vld [vmem:[%s759 + $0x114] sm:$0x1]
  %v827 = vsel %vm762, 0, %v826
  %828 = vst [vmem:[%s759 + $0x114] sm:$0x1] %v827
  %v829 = vld [vmem:[%s759 + $0x120] sm:$0x1]
  %v830 = vsel %vm762, 0, %v829
  %831 = vst [vmem:[%s759 + $0x120] sm:$0x1] %v830
  %v832 = vld [vmem:[%s759 + $0x12c] sm:$0x1]
  %v833 = vsel %vm762, 0, %v832
  %834 = vst [vmem:[%s759 + $0x12c] sm:$0x1] %v833
  %v835 = vld [vmem:[%s759 + $0x138] sm:$0x1]
  %v836 = vsel %vm762, 0, %v835
  %837 = vst [vmem:[%s759 + $0x138] sm:$0x1] %v836
  %v838 = vld [vmem:[%s759 + $0x144] sm:$0x1]
  %v839 = vsel %vm762, 0, %v838
  %840 = vst [vmem:[%s759 + $0x144] sm:$0x1] %v839
  %v841 = vld [vmem:[%s759 + $0x150] sm:$0x1]
  %v842 = vsel %vm762, 0, %v841
  %843 = vst [vmem:[%s759 + $0x150] sm:$0x1] %v842
  %v844 = vld [vmem:[%s759 + $0x15c] sm:$0x1]
  %v845 = vsel %vm762, 0, %v844
  %846 = vst [vmem:[%s759 + $0x15c] sm:$0x1] %v845
  %v847 = vld [vmem:[%s759 + $0x168] sm:$0x1]
  %v848 = vsel %vm762, 0, %v847
  %849 = vst [vmem:[%s759 + $0x168] sm:$0x1] %v848
  %v850 = vld [vmem:[%s759 + $0x174] sm:$0x1]
  %v851 = vsel %vm762, 0, %v850
  %852 = vst [vmem:[%s759 + $0x174] sm:$0x1] %v851
  %v853 = vld [vmem:[%s759 + $0x180] sm:$0x1]
  %v854 = vsel %vm762, 0, %v853
  %855 = vst [vmem:[%s759 + $0x180] sm:$0x1] %v854
  %v856 = vld [vmem:[%s759 + $0x18c] sm:$0x1]
  %v857 = vsel %vm762, 0, %v856
  %858 = vst [vmem:[%s759 + $0x18c] sm:$0x1] %v857
  %vm859 = vsmask.f32 7938
  %vm860 = vmand %vm760, %vm859
  %v861 = vld [vmem:[%s759 + $0x8] sm:$0x1]
  %v862 = vsel %vm860, 0, %v861
  %863 = vst [vmem:[%s759 + $0x8] sm:$0x1] %v862
  %v864 = vld [vmem:[%s759 + $0x14] sm:$0x1]
  %v865 = vsel %vm860, 0, %v864
  %866 = vst [vmem:[%s759 + $0x14] sm:$0x1] %v865
  %v867 = vld [vmem:[%s759 + $0x20] sm:$0x1]
  %v868 = vsel %vm860, 0, %v867
  %869 = vst [vmem:[%s759 + $0x20] sm:$0x1] %v868
  %v870 = vld [vmem:[%s759 + $0x2c] sm:$0x1]
  %v871 = vsel %vm860, 0, %v870
  %872 = vst [vmem:[%s759 + $0x2c] sm:$0x1] %v871
  %v873 = vld [vmem:[%s759 + $0x38] sm:$0x1]
  %v874 = vsel %vm860, 0, %v873
  %875 = vst [vmem:[%s759 + $0x38] sm:$0x1] %v874
  %v876 = vld [vmem:[%s759 + $0x44] sm:$0x1]
  %v877 = vsel %vm860, 0, %v876
  %878 = vst [vmem:[%s759 + $0x44] sm:$0x1] %v877
  %v879 = vld [vmem:[%s759 + $0x50] sm:$0x1]
  %v880 = vsel %vm860, 0, %v879
  %881 = vst [vmem:[%s759 + $0x50] sm:$0x1] %v880
  %v882 = vld [vmem:[%s759 + $0x5c] sm:$0x1]
  %v883 = vsel %vm860, 0, %v882
  %884 = vst [vmem:[%s759 + $0x5c] sm:$0x1] %v883
  %v885 = vld [vmem:[%s759 + $0x68] sm:$0x1]
  %v886 = vsel %vm860, 0, %v885
  %887 = vst [vmem:[%s759 + $0x68] sm:$0x1] %v886
  %v888 = vld [vmem:[%s759 + $0x74] sm:$0x1]
  %v889 = vsel %vm860, 0, %v888
  %890 = vst [vmem:[%s759 + $0x74] sm:$0x1] %v889
  %v891 = vld [vmem:[%s759 + $0x80] sm:$0x1]
  %v892 = vsel %vm860, 0, %v891
  %893 = vst [vmem:[%s759 + $0x80] sm:$0x1] %v892
  %v894 = vld [vmem:[%s759 + $0x8c] sm:$0x1]
  %v895 = vsel %vm860, 0, %v894
  %896 = vst [vmem:[%s759 + $0x8c] sm:$0x1] %v895
  %v897 = vld [vmem:[%s759 + $0x98] sm:$0x1]
  %v898 = vsel %vm860, 0, %v897
  %899 = vst [vmem:[%s759 + $0x98] sm:$0x1] %v898
  %v900 = vld [vmem:[%s759 + $0xa4] sm:$0x1]
  %v901 = vsel %vm860, 0, %v900
  %902 = vst [vmem:[%s759 + $0xa4] sm:$0x1] %v901
  %v903 = vld [vmem:[%s759 + $0xb0] sm:$0x1]
  %v904 = vsel %vm860, 0, %v903
  %905 = vst [vmem:[%s759 + $0xb0] sm:$0x1] %v904
  %v906 = vld [vmem:[%s759 + $0xbc] sm:$0x1]
  %v907 = vsel %vm860, 0, %v906
  %908 = vst [vmem:[%s759 + $0xbc] sm:$0x1] %v907
  %v909 = vld [vmem:[%s759 + $0xe0] sm:$0x1]
  %v910 = vsel %vm860, 0, %v909
  %911 = vst [vmem:[%s759 + $0xe0] sm:$0x1] %v910
  %v912 = vld [vmem:[%s759 + $0xec] sm:$0x1]
  %v913 = vsel %vm860, 0, %v912
  %914 = vst [vmem:[%s759 + $0xec] sm:$0x1] %v913
  %v915 = vld [vmem:[%s759 + $0xf8] sm:$0x1]
  %v916 = vsel %vm860, 0, %v915
  %917 = vst [vmem:[%s759 + $0xf8] sm:$0x1] %v916
  %v918 = vld [vmem:[%s759 + $0x104] sm:$0x1]
  %v919 = vsel %vm860, 0, %v918
  %920 = vst [vmem:[%s759 + $0x104] sm:$0x1] %v919
  %v921 = vld [vmem:[%s759 + $0x110] sm:$0x1]
  %v922 = vsel %vm860, 0, %v921
  %923 = vst [vmem:[%s759 + $0x110] sm:$0x1] %v922
  %v924 = vld [vmem:[%s759 + $0x11c] sm:$0x1]
  %v925 = vsel %vm860, 0, %v924
  %926 = vst [vmem:[%s759 + $0x11c] sm:$0x1] %v925
  %v927 = vld [vmem:[%s759 + $0x128] sm:$0x1]
  %v928 = vsel %vm860, 0, %v927
  %929 = vst [vmem:[%s759 + $0x128] sm:$0x1] %v928
  %v930 = vld [vmem:[%s759 + $0x134] sm:$0x1]
  %v931 = vsel %vm860, 0, %v930
  %932 = vst [vmem:[%s759 + $0x134] sm:$0x1] %v931
  %v933 = vld [vmem:[%s759 + $0x140] sm:$0x1]
  %v934 = vsel %vm860, 0, %v933
  %935 = vst [vmem:[%s759 + $0x140] sm:$0x1] %v934
  %v936 = vld [vmem:[%s759 + $0x14c] sm:$0x1]
  %v937 = vsel %vm860, 0, %v936
  %938 = vst [vmem:[%s759 + $0x14c] sm:$0x1] %v937
  %v939 = vld [vmem:[%s759 + $0x158] sm:$0x1]
  %v940 = vsel %vm860, 0, %v939
  %941 = vst [vmem:[%s759 + $0x158] sm:$0x1] %v940
  %v942 = vld [vmem:[%s759 + $0x164] sm:$0x1]
  %v943 = vsel %vm860, 0, %v942
  %944 = vst [vmem:[%s759 + $0x164] sm:$0x1] %v943
  %v945 = vld [vmem:[%s759 + $0x170] sm:$0x1]
  %v946 = vsel %vm860, 0, %v945
  %947 = vst [vmem:[%s759 + $0x170] sm:$0x1] %v946
  %v948 = vld [vmem:[%s759 + $0x17c] sm:$0x1]
  %v949 = vsel %vm860, 0, %v948
  %950 = vst [vmem:[%s759 + $0x17c] sm:$0x1] %v949
  %v951 = vld [vmem:[%s759 + $0x188] sm:$0x1]
  %v952 = vsel %vm860, 0, %v951
  %953 = vst [vmem:[%s759 + $0x188] sm:$0x1] %v952
  %v954 = vld [vmem:[%s759 + $0x194] sm:$0x1]
  %v955 = vsel %vm860, 0, %v954
  %956 = vst [vmem:[%s759 + $0x194] sm:$0x1] %v955
  %v957 = vpack.c.bf16 %v680, %v680
  %v958 = vpack.c.bf16 %v681, %v681
  %v959 = vpack.c.bf16 %v682, %v682
  %v960 = vpack.c.bf16 %v683, %v683
  %v961 = vpack.c.bf16 %v684, %v684
  %v962 = vpack.c.bf16 %v685, %v685
  %v963 = vpack.c.bf16 %v686, %v686
  %v964 = vpack.c.bf16 %v687, %v687
  %v965 = vpack.c.bf16 %v688, %v688
  %v966 = vpack.c.bf16 %v689, %v689
  %v967 = vpack.c.bf16 %v690, %v690
  %v968 = vpack.c.bf16 %v691, %v691
  %v969 = vpack.c.bf16 %v692, %v692
  %v970 = vpack.c.bf16 %v693, %v693
  %v971 = vpack.c.bf16 %v694, %v694
  %v972 = vpack.c.bf16 %v695, %v695
  %v973 = vpack.c.bf16 %v696, %v696
  %v974 = vpack.c.bf16 %v697, %v697
  %v975 = vpack.c.bf16 %v698, %v698
  %v976 = vpack.c.bf16 %v699, %v699
  %v977 = vpack.c.bf16 %v700, %v700
  %v978 = vpack.c.bf16 %v701, %v701
  %v979 = vpack.c.bf16 %v702, %v702
  %v980 = vpack.c.bf16 %v703, %v703
  %v981 = vpack.c.bf16 %v704, %v704
  %v982 = vpack.c.bf16 %v705, %v705
  %v983 = vpack.c.bf16 %v706, %v706
  %v984 = vpack.c.bf16 %v707, %v707
  %v985 = vpack.c.bf16 %v708, %v708
  %v986 = vpack.c.bf16 %v709, %v709
  %v987 = vpack.c.bf16 %v710, %v710
  %v988 = vpack.c.bf16 %v711, %v711
  %v989 = vpack.c.bf16 %v712, %v712
  %v990 = vpack.c.bf16 %v713, %v713
  %v991 = vpack.c.bf16 %v714, %v714
  %v992 = vpack.c.bf16 %v715, %v715
  %v993 = vpack.c.bf16 %v716, %v716
  %v994 = vpack.c.bf16 %v717, %v717
  %v995 = vpack.c.bf16 %v718, %v718
  %v996 = vpack.c.bf16 %v719, %v719
  %v997 = vpack.c.bf16 %v720, %v720
  %v998 = vpack.c.bf16 %v721, %v721
  %v999 = vpack.c.bf16 %v722, %v722
  %v1000 = vpack.c.bf16 %v723, %v723
  %v1001 = vpack.c.bf16 %v724, %v724
  %v1002 = vpack.c.bf16 %v725, %v725
  %v1003 = vpack.c.bf16 %v726, %v726
  %v1004 = vpack.c.bf16 %v727, %v727
  %v1005 = vpack.c.bf16 %v728, %v728
  %v1006 = vpack.c.bf16 %v729, %v729
  %v1007 = vpack.c.bf16 %v730, %v730
  %v1008 = vpack.c.bf16 %v731, %v731
  %v1009 = vpack.c.bf16 %v732, %v732
  %v1010 = vpack.c.bf16 %v733, %v733
  %v1011 = vpack.c.bf16 %v734, %v734
  %v1012 = vpack.c.bf16 %v735, %v735
  %v1013 = vpack.c.bf16 %v736, %v736
  %v1014 = vpack.c.bf16 %v737, %v737
  %v1015 = vpack.c.bf16 %v738, %v738
  %v1016 = vpack.c.bf16 %v739, %v739
  %v1017 = vpack.c.bf16 %v740, %v740
  %v1018 = vpack.c.bf16 %v741, %v741
  %v1019 = vpack.c.bf16 %v742, %v742
  %v1020 = vpack.c.bf16 %v743, %v743
  %vm1021 = vsmask.f32 4368
  %vm1022 = vmor %vm761, %vm1021
  %v1024 = vshrl.u32 %v957, 16
  %v1026 = vrot.slane %v1024, 7
  %v1027 = vshll.u32 %v957, 16
  %v1029 = vor.u32 %v1026, %v1027
  %v1030 = vrot.slane %v1026, 4
  %v1032 = vshrl.u32 %v958, 16
  %v1034 = vrot.slane %v1032, 7
  %v1035 = vshll.u32 %v958, 16
  %v1037 = vor.u32 %v1034, %v1035
  %v1038 = vsel %vm1022, %v1030, %v1037
  %v1039 = vrot.slane %v1034, 4
  %v1041 = vshrl.u32 %v959, 16
  %v1043 = vrot.slane %v1041, 7
  %v1044 = vshll.u32 %v959, 16
  %v1046 = vor.u32 %v1043, %v1044
  %v1047 = vrot.slane %v1043, 4
  %v1049 = vshrl.u32 %v960, 16
  %v1051 = vrot.slane %v1049, 7
  %v1052 = vshll.u32 %v960, 16
  %v1054 = vor.u32 %v1051, %v1052
  %v1055 = vsel %vm1022, %v1047, %v1054
  %v1056 = vrot.slane %v1051, 4
  %v1058 = vshrl.u32 %v961, 16
  %v1060 = vrot.slane %v1058, 7
  %v1061 = vshll.u32 %v961, 16
  %v1063 = vor.u32 %v1060, %v1061
  %v1064 = vrot.slane %v1060, 4
  %v1066 = vshrl.u32 %v962, 16
  %v1068 = vrot.slane %v1066, 7
  %v1069 = vshll.u32 %v962, 16
  %v1071 = vor.u32 %v1068, %v1069
  %v1072 = vsel %vm1022, %v1064, %v1071
  %v1073 = vrot.slane %v1068, 4
  %v1075 = vshrl.u32 %v963, 16
  %v1077 = vrot.slane %v1075, 7
  %v1078 = vshll.u32 %v963, 16
  %v1080 = vor.u32 %v1077, %v1078
  %v1081 = vrot.slane %v1077, 4
  %v1083 = vshrl.u32 %v964, 16
  %v1085 = vrot.slane %v1083, 7
  %v1086 = vshll.u32 %v964, 16
  %v1088 = vor.u32 %v1085, %v1086
  %v1089 = vsel %vm1022, %v1081, %v1088
  %v1090 = vrot.slane %v1085, 4
  %v1092 = vshrl.u32 %v965, 16
  %v1094 = vrot.slane %v1092, 7
  %v1095 = vshll.u32 %v965, 16
  %v1097 = vor.u32 %v1094, %v1095
  %v1098 = vrot.slane %v1094, 4
  %v1100 = vshrl.u32 %v966, 16
  %v1102 = vrot.slane %v1100, 7
  %v1103 = vshll.u32 %v966, 16
  %v1105 = vor.u32 %v1102, %v1103
  %v1106 = vsel %vm1022, %v1098, %v1105
  %v1107 = vrot.slane %v1102, 4
  %v1109 = vshrl.u32 %v967, 16
  %v1111 = vrot.slane %v1109, 7
  %v1112 = vshll.u32 %v967, 16
  %v1114 = vor.u32 %v1111, %v1112
  %v1115 = vrot.slane %v1111, 4
  %v1117 = vshrl.u32 %v968, 16
  %v1119 = vrot.slane %v1117, 7
  %v1120 = vshll.u32 %v968, 16
  %v1122 = vor.u32 %v1119, %v1120
  %v1123 = vsel %vm1022, %v1115, %v1122
  %v1124 = vrot.slane %v1119, 4
  %v1126 = vshrl.u32 %v969, 16
  %v1128 = vrot.slane %v1126, 7
  %v1129 = vshll.u32 %v969, 16
  %v1131 = vor.u32 %v1128, %v1129
  %v1132 = vrot.slane %v1128, 4
  %v1134 = vshrl.u32 %v970, 16
  %v1136 = vrot.slane %v1134, 7
  %v1137 = vshll.u32 %v970, 16
  %v1139 = vor.u32 %v1136, %v1137
  %v1140 = vsel %vm1022, %v1132, %v1139
  %v1141 = vrot.slane %v1136, 4
  %v1143 = vshrl.u32 %v971, 16
  %v1145 = vrot.slane %v1143, 7
  %v1146 = vshll.u32 %v971, 16
  %v1148 = vor.u32 %v1145, %v1146
  %v1149 = vrot.slane %v1145, 4
  %v1151 = vshrl.u32 %v972, 16
  %v1153 = vrot.slane %v1151, 7
  %v1154 = vshll.u32 %v972, 16
  %v1156 = vor.u32 %v1153, %v1154
  %v1157 = vsel %vm1022, %v1149, %v1156
  %v1158 = vrot.slane %v1153, 4
  %v1160 = vshrl.u32 %v973, 16
  %v1162 = vrot.slane %v1160, 7
  %v1163 = vshll.u32 %v973, 16
  %v1165 = vor.u32 %v1162, %v1163
  %v1166 = vrot.slane %v1162, 4
  %v1168 = vshrl.u32 %v974, 16
  %v1170 = vrot.slane %v1168, 7
  %v1171 = vshll.u32 %v974, 16
  %v1173 = vor.u32 %v1170, %v1171
  %v1174 = vsel %vm1022, %v1166, %v1173
  %v1175 = vrot.slane %v1170, 4
  %v1177 = vshrl.u32 %v975, 16
  %v1179 = vrot.slane %v1177, 7
  %v1180 = vshll.u32 %v975, 16
  %v1182 = vor.u32 %v1179, %v1180
  %v1183 = vrot.slane %v1179, 4
  %v1185 = vshrl.u32 %v976, 16
  %v1187 = vrot.slane %v1185, 7
  %v1188 = vshll.u32 %v976, 16
  %v1190 = vor.u32 %v1187, %v1188
  %v1191 = vsel %vm1022, %v1183, %v1190
  %v1192 = vrot.slane %v1187, 4
  %v1194 = vshrl.u32 %v977, 16
  %v1196 = vrot.slane %v1194, 7
  %v1197 = vshll.u32 %v977, 16
  %v1199 = vor.u32 %v1196, %v1197
  %v1200 = vrot.slane %v1196, 4
  %v1202 = vshrl.u32 %v978, 16
  %v1204 = vrot.slane %v1202, 7
  %v1205 = vshll.u32 %v978, 16
  %v1207 = vor.u32 %v1204, %v1205
  %v1208 = vsel %vm1022, %v1200, %v1207
  %v1209 = vrot.slane %v1204, 4
  %v1211 = vshrl.u32 %v979, 16
  %v1213 = vrot.slane %v1211, 7
  %v1214 = vshll.u32 %v979, 16
  %v1216 = vor.u32 %v1213, %v1214
  %v1217 = vrot.slane %v1213, 4
  %v1219 = vshrl.u32 %v980, 16
  %v1221 = vrot.slane %v1219, 7
  %v1222 = vshll.u32 %v980, 16
  %v1224 = vor.u32 %v1221, %v1222
  %v1225 = vsel %vm1022, %v1217, %v1224
  %v1226 = vrot.slane %v1221, 4
  %v1228 = vshrl.u32 %v981, 16
  %v1230 = vrot.slane %v1228, 7
  %v1231 = vshll.u32 %v981, 16
  %v1233 = vor.u32 %v1230, %v1231
  %v1234 = vrot.slane %v1230, 4
  %v1236 = vshrl.u32 %v982, 16
  %v1238 = vrot.slane %v1236, 7
  %v1239 = vshll.u32 %v982, 16
  %v1241 = vor.u32 %v1238, %v1239
  %v1242 = vsel %vm1022, %v1234, %v1241
  %v1243 = vrot.slane %v1238, 4
  %v1245 = vshrl.u32 %v983, 16
  %v1247 = vrot.slane %v1245, 7
  %v1248 = vshll.u32 %v983, 16
  %v1250 = vor.u32 %v1247, %v1248
  %v1251 = vrot.slane %v1247, 4
  %v1253 = vshrl.u32 %v984, 16
  %v1255 = vrot.slane %v1253, 7
  %v1256 = vshll.u32 %v984, 16
  %v1258 = vor.u32 %v1255, %v1256
  %v1259 = vsel %vm1022, %v1251, %v1258
  %v1260 = vrot.slane %v1255, 4
  %v1262 = vshrl.u32 %v985, 16
  %v1264 = vrot.slane %v1262, 7
  %v1265 = vshll.u32 %v985, 16
  %v1267 = vor.u32 %v1264, %v1265
  %v1268 = vrot.slane %v1264, 4
  %v1270 = vshrl.u32 %v986, 16
  %v1272 = vrot.slane %v1270, 7
  %v1273 = vshll.u32 %v986, 16
  %v1275 = vor.u32 %v1272, %v1273
  %v1276 = vsel %vm1022, %v1268, %v1275
  %v1277 = vrot.slane %v1272, 4
  %v1279 = vshrl.u32 %v987, 16
  %v1281 = vrot.slane %v1279, 7
  %v1282 = vshll.u32 %v987, 16
  %v1284 = vor.u32 %v1281, %v1282
  %v1285 = vrot.slane %v1281, 4
  %v1287 = vshrl.u32 %v988, 16
  %v1289 = vrot.slane %v1287, 7
  %v1290 = vshll.u32 %v988, 16
  %v1292 = vor.u32 %v1289, %v1290
  %v1293 = vsel %vm1022, %v1285, %v1292
  %v1294 = vrot.slane %v1289, 4
  %v1296 = vshrl.u32 %v989, 16
  %v1298 = vrot.slane %v1296, 7
  %v1299 = vshll.u32 %v989, 16
  %v1301 = vor.u32 %v1298, %v1299
  %v1302 = vrot.slane %v1298, 4
  %v1304 = vshrl.u32 %v990, 16
  %v1306 = vrot.slane %v1304, 7
  %v1307 = vshll.u32 %v990, 16
  %v1309 = vor.u32 %v1306, %v1307
  %v1310 = vsel %vm1022, %v1302, %v1309
  %v1311 = vrot.slane %v1306, 4
  %v1313 = vshrl.u32 %v991, 16
  %v1315 = vrot.slane %v1313, 7
  %v1316 = vshll.u32 %v991, 16
  %v1318 = vor.u32 %v1315, %v1316
  %v1319 = vrot.slane %v1315, 4
  %v1321 = vshrl.u32 %v992, 16
  %v1323 = vrot.slane %v1321, 7
  %v1324 = vshll.u32 %v992, 16
  %v1326 = vor.u32 %v1323, %v1324
  %v1327 = vsel %vm1022, %v1319, %v1326
  %v1328 = vrot.slane %v1323, 4
  %v1330 = vshrl.u32 %v993, 16
  %v1332 = vrot.slane %v1330, 7
  %v1333 = vshll.u32 %v993, 16
  %v1335 = vor.u32 %v1332, %v1333
  %v1336 = vrot.slane %v1332, 4
  %v1338 = vshrl.u32 %v994, 16
  %v1340 = vrot.slane %v1338, 7
  %v1341 = vshll.u32 %v994, 16
  %v1343 = vor.u32 %v1340, %v1341
  %v1344 = vsel %vm1022, %v1336, %v1343
  %v1345 = vrot.slane %v1340, 4
  %v1347 = vshrl.u32 %v995, 16
  %v1349 = vrot.slane %v1347, 7
  %v1350 = vshll.u32 %v995, 16
  %v1352 = vor.u32 %v1349, %v1350
  %v1353 = vrot.slane %v1349, 4
  %v1355 = vshrl.u32 %v996, 16
  %v1357 = vrot.slane %v1355, 7
  %v1358 = vshll.u32 %v996, 16
  %v1360 = vor.u32 %v1357, %v1358
  %v1361 = vsel %vm1022, %v1353, %v1360
  %v1362 = vrot.slane %v1357, 4
  %v1364 = vshrl.u32 %v997, 16
  %v1366 = vrot.slane %v1364, 7
  %v1367 = vshll.u32 %v997, 16
  %v1369 = vor.u32 %v1366, %v1367
  %v1370 = vrot.slane %v1366, 4
  %v1372 = vshrl.u32 %v998, 16
  %v1374 = vrot.slane %v1372, 7
  %v1375 = vshll.u32 %v998, 16
  %v1377 = vor.u32 %v1374, %v1375
  %v1378 = vsel %vm1022, %v1370, %v1377
  %v1379 = vrot.slane %v1374, 4
  %v1381 = vshrl.u32 %v999, 16
  %v1383 = vrot.slane %v1381, 7
  %v1384 = vshll.u32 %v999, 16
  %v1386 = vor.u32 %v1383, %v1384
  %v1387 = vrot.slane %v1383, 4
  %v1389 = vshrl.u32 %v1000, 16
  %v1391 = vrot.slane %v1389, 7
  %v1392 = vshll.u32 %v1000, 16
  %v1394 = vor.u32 %v1391, %v1392
  %v1395 = vsel %vm1022, %v1387, %v1394
  %v1396 = vrot.slane %v1391, 4
  %v1398 = vshrl.u32 %v1001, 16
  %v1400 = vrot.slane %v1398, 7
  %v1401 = vshll.u32 %v1001, 16
  %v1403 = vor.u32 %v1400, %v1401
  %v1404 = vrot.slane %v1400, 4
  %v1406 = vshrl.u32 %v1002, 16
  %v1408 = vrot.slane %v1406, 7
  %v1409 = vshll.u32 %v1002, 16
  %v1411 = vor.u32 %v1408, %v1409
  %v1412 = vsel %vm1022, %v1404, %v1411
  %v1413 = vrot.slane %v1408, 4
  %v1415 = vshrl.u32 %v1003, 16
  %v1417 = vrot.slane %v1415, 7
  %v1418 = vshll.u32 %v1003, 16
  %v1420 = vor.u32 %v1417, %v1418
  %v1421 = vrot.slane %v1417, 4
  %v1423 = vshrl.u32 %v1004, 16
  %v1425 = vrot.slane %v1423, 7
  %v1426 = vshll.u32 %v1004, 16
  %v1428 = vor.u32 %v1425, %v1426
  %v1429 = vsel %vm1022, %v1421, %v1428
  %v1430 = vrot.slane %v1425, 4
  %v1432 = vshrl.u32 %v1005, 16
  %v1434 = vrot.slane %v1432, 7
  %v1435 = vshll.u32 %v1005, 16
  %v1437 = vor.u32 %v1434, %v1435
  %v1438 = vrot.slane %v1434, 4
  %v1440 = vshrl.u32 %v1006, 16
  %v1442 = vrot.slane %v1440, 7
  %v1443 = vshll.u32 %v1006, 16
  %v1445 = vor.u32 %v1442, %v1443
  %v1446 = vsel %vm1022, %v1438, %v1445
  %v1447 = vrot.slane %v1442, 4
  %v1449 = vshrl.u32 %v1007, 16
  %v1451 = vrot.slane %v1449, 7
  %v1452 = vshll.u32 %v1007, 16
  %v1454 = vor.u32 %v1451, %v1452
  %v1455 = vrot.slane %v1451, 4
  %v1457 = vshrl.u32 %v1008, 16
  %v1459 = vrot.slane %v1457, 7
  %v1460 = vshll.u32 %v1008, 16
  %v1462 = vor.u32 %v1459, %v1460
  %v1463 = vsel %vm1022, %v1455, %v1462
  %v1464 = vrot.slane %v1459, 4
  %v1466 = vshrl.u32 %v1009, 16
  %v1468 = vrot.slane %v1466, 7
  %v1469 = vshll.u32 %v1009, 16
  %v1471 = vor.u32 %v1468, %v1469
  %v1472 = vrot.slane %v1468, 4
  %v1474 = vshrl.u32 %v1010, 16
  %v1476 = vrot.slane %v1474, 7
  %v1477 = vshll.u32 %v1010, 16
  %v1479 = vor.u32 %v1476, %v1477
  %v1480 = vsel %vm1022, %v1472, %v1479
  %v1481 = vrot.slane %v1476, 4
  %v1483 = vshrl.u32 %v1011, 16
  %v1485 = vrot.slane %v1483, 7
  %v1486 = vshll.u32 %v1011, 16
  %v1488 = vor.u32 %v1485, %v1486
  %v1489 = vrot.slane %v1485, 4
  %v1491 = vshrl.u32 %v1012, 16
  %v1493 = vrot.slane %v1491, 7
  %v1494 = vshll.u32 %v1012, 16
  %v1496 = vor.u32 %v1493, %v1494
  %v1497 = vsel %vm1022, %v1489, %v1496
  %v1498 = vrot.slane %v1493, 4
  %v1500 = vshrl.u32 %v1013, 16
  %v1502 = vrot.slane %v1500, 7
  %v1503 = vshll.u32 %v1013, 16
  %v1505 = vor.u32 %v1502, %v1503
  %v1506 = vrot.slane %v1502, 4
  %v1508 = vshrl.u32 %v1014, 16
  %v1510 = vrot.slane %v1508, 7
  %v1511 = vshll.u32 %v1014, 16
  %v1513 = vor.u32 %v1510, %v1511
  %v1514 = vsel %vm1022, %v1506, %v1513
  %v1515 = vrot.slane %v1510, 4
  %v1517 = vshrl.u32 %v1015, 16
  %v1519 = vrot.slane %v1517, 7
  %v1520 = vshll.u32 %v1015, 16
  %v1522 = vor.u32 %v1519, %v1520
  %v1523 = vrot.slane %v1519, 4
  %v1525 = vshrl.u32 %v1016, 16
  %v1527 = vrot.slane %v1525, 7
  %v1528 = vshll.u32 %v1016, 16
  %v1530 = vor.u32 %v1527, %v1528
  %v1531 = vsel %vm1022, %v1523, %v1530
  %v1532 = vrot.slane %v1527, 4
  %v1534 = vshrl.u32 %v1017, 16
  %v1536 = vrot.slane %v1534, 7
  %v1537 = vshll.u32 %v1017, 16
  %v1539 = vor.u32 %v1536, %v1537
  %v1540 = vrot.slane %v1536, 4
  %v1542 = vshrl.u32 %v1018, 16
  %v1544 = vrot.slane %v1542, 7
  %v1545 = vshll.u32 %v1018, 16
  %v1547 = vor.u32 %v1544, %v1545
  %v1548 = vsel %vm1022, %v1540, %v1547
  %v1549 = vrot.slane %v1544, 4
  %v1551 = vshrl.u32 %v1019, 16
  %v1553 = vrot.slane %v1551, 7
  %v1554 = vshll.u32 %v1019, 16
  %v1556 = vor.u32 %v1553, %v1554
  %v1557 = vrot.slane %v1553, 4
  %v1559 = vshrl.u32 %v1020, 16
  %v1561 = vrot.slane %v1559, 7
  %v1562 = vshll.u32 %v1020, 16
  %v1564 = vor.u32 %v1561, %v1562
  %v1565 = vsel %vm1022, %v1557, %v1564
  %v1566 = vrot.slane %v1561, 4
  %vm1663 = vcmask 27648
  %vm1664 = vmand %vm1663, %vm859
  %v1665 = vld [vmem:[%s759] sm:$0xf]
  %v1666 = vsel %vm1664, %v1029, %v1665
  %1667 = vst [vmem:[%s759] sm:$0xf] %v1666
  %1668 = vst.msk [vmem:[%s759 + $0x4] sm:$0xf] %vm744, %v1038
  %v1669 = vld [vmem:[%s759 + $0x8] sm:$0x1]
  %v1670 = vsel %vm762, %v1039, %v1669
  %1671 = vst [vmem:[%s759 + $0x8] sm:$0x1] %v1670
  %v1672 = vld [vmem:[%s759 + $0xc] sm:$0xf]
  %v1673 = vsel %vm1664, %v1046, %v1672
  %1674 = vst [vmem:[%s759 + $0xc] sm:$0xf] %v1673
  %1675 = vst.msk [vmem:[%s759 + $0x10] sm:$0xf] %vm744, %v1055
  %v1676 = vld [vmem:[%s759 + $0x14] sm:$0x1]
  %v1677 = vsel %vm762, %v1056, %v1676
  %1678 = vst [vmem:[%s759 + $0x14] sm:$0x1] %v1677
  %v1679 = vld [vmem:[%s759 + $0x18] sm:$0xf]
  %v1680 = vsel %vm1664, %v1063, %v1679
  %1681 = vst [vmem:[%s759 + $0x18] sm:$0xf] %v1680
  %1682 = vst.msk [vmem:[%s759 + $0x1c] sm:$0xf] %vm744, %v1072
  %v1683 = vld [vmem:[%s759 + $0x20] sm:$0x1]
  %v1684 = vsel %vm762, %v1073, %v1683
  %1685 = vst [vmem:[%s759 + $0x20] sm:$0x1] %v1684
  %v1686 = vld [vmem:[%s759 + $0x24] sm:$0xf]
  %v1687 = vsel %vm1664, %v1080, %v1686
  %1688 = vst [vmem:[%s759 + $0x24] sm:$0xf] %v1687
  %1689 = vst.msk [vmem:[%s759 + $0x28] sm:$0xf] %vm744, %v1089
  %v1690 = vld [vmem:[%s759 + $0x2c] sm:$0x1]
  %v1691 = vsel %vm762, %v1090, %v1690
  %1692 = vst [vmem:[%s759 + $0x2c] sm:$0x1] %v1691
  %v1693 = vld [vmem:[%s759 + $0x30] sm:$0xf]
  %v1694 = vsel %vm1664, %v1097, %v1693
  %1695 = vst [vmem:[%s759 + $0x30] sm:$0xf] %v1694
  %1696 = vst.msk [vmem:[%s759 + $0x34] sm:$0xf] %vm744, %v1106
  %v1697 = vld [vmem:[%s759 + $0x38] sm:$0x1]
  %v1698 = vsel %vm762, %v1107, %v1697
  %1699 = vst [vmem:[%s759 + $0x38] sm:$0x1] %v1698
  %v1700 = vld [vmem:[%s759 + $0x3c] sm:$0xf]
  %v1701 = vsel %vm1664, %v1114, %v1700
  %1702 = vst [vmem:[%s759 + $0x3c] sm:$0xf] %v1701
  %1703 = vst.msk [vmem:[%s759 + $0x40] sm:$0xf] %vm744, %v1123
  %v1704 = vld [vmem:[%s759 + $0x44] sm:$0x1]
  %v1705 = vsel %vm762, %v1124, %v1704
  %1706 = vst [vmem:[%s759 + $0x44] sm:$0x1] %v1705
  %v1707 = vld [vmem:[%s759 + $0x48] sm:$0xf]
  %v1708 = vsel %vm1664, %v1131, %v1707
  %1709 = vst [vmem:[%s759 + $0x48] sm:$0xf] %v1708
  %1710 = vst.msk [vmem:[%s759 + $0x4c] sm:$0xf] %vm744, %v1140
  %v1711 = vld [vmem:[%s759 + $0x50] sm:$0x1]
  %v1712 = vsel %vm762, %v1141, %v1711
  %1713 = vst [vmem:[%s759 + $0x50] sm:$0x1] %v1712
  %v1714 = vld [vmem:[%s759 + $0x54] sm:$0xf]
  %v1715 = vsel %vm1664, %v1148, %v1714
  %1716 = vst [vmem:[%s759 + $0x54] sm:$0xf] %v1715
  %1717 = vst.msk [vmem:[%s759 + $0x58] sm:$0xf] %vm744, %v1157
  %v1718 = vld [vmem:[%s759 + $0x5c] sm:$0x1]
  %v1719 = vsel %vm762, %v1158, %v1718
  %1720 = vst [vmem:[%s759 + $0x5c] sm:$0x1] %v1719
  %v1721 = vld [vmem:[%s759 + $0x60] sm:$0xf]
  %v1722 = vsel %vm1664, %v1165, %v1721
  %1723 = vst [vmem:[%s759 + $0x60] sm:$0xf] %v1722
  %1724 = vst.msk [vmem:[%s759 + $0x64] sm:$0xf] %vm744, %v1174
  %v1725 = vld [vmem:[%s759 + $0x68] sm:$0x1]
  %v1726 = vsel %vm762, %v1175, %v1725
  %1727 = vst [vmem:[%s759 + $0x68] sm:$0x1] %v1726
  %v1728 = vld [vmem:[%s759 + $0x6c] sm:$0xf]
  %v1729 = vsel %vm1664, %v1182, %v1728
  %1730 = vst [vmem:[%s759 + $0x6c] sm:$0xf] %v1729
  %1731 = vst.msk [vmem:[%s759 + $0x70] sm:$0xf] %vm744, %v1191
  %v1732 = vld [vmem:[%s759 + $0x74] sm:$0x1]
  %v1733 = vsel %vm762, %v1192, %v1732
  %1734 = vst [vmem:[%s759 + $0x74] sm:$0x1] %v1733
  %v1735 = vld [vmem:[%s759 + $0x78] sm:$0xf]
  %v1736 = vsel %vm1664, %v1199, %v1735
  %1737 = vst [vmem:[%s759 + $0x78] sm:$0xf] %v1736
  %1738 = vst.msk [vmem:[%s759 + $0x7c] sm:$0xf] %vm744, %v1208
  %v1739 = vld [vmem:[%s759 + $0x80] sm:$0x1]
  %v1740 = vsel %vm762, %v1209, %v1739
  %1741 = vst [vmem:[%s759 + $0x80] sm:$0x1] %v1740
  %v1742 = vld [vmem:[%s759 + $0x84] sm:$0xf]
  %v1743 = vsel %vm1664, %v1216, %v1742
  %1744 = vst [vmem:[%s759 + $0x84] sm:$0xf] %v1743
  %1745 = vst.msk [vmem:[%s759 + $0x88] sm:$0xf] %vm744, %v1225
  %v1746 = vld [vmem:[%s759 + $0x8c] sm:$0x1]
  %v1747 = vsel %vm762, %v1226, %v1746
  %1748 = vst [vmem:[%s759 + $0x8c] sm:$0x1] %v1747
  %v1749 = vld [vmem:[%s759 + $0x90] sm:$0xf]
  %v1750 = vsel %vm1664, %v1233, %v1749
  %1751 = vst [vmem:[%s759 + $0x90] sm:$0xf] %v1750
  %1752 = vst.msk [vmem:[%s759 + $0x94] sm:$0xf] %vm744, %v1242
  %v1753 = vld [vmem:[%s759 + $0x98] sm:$0x1]
  %v1754 = vsel %vm762, %v1243, %v1753
  %1755 = vst [vmem:[%s759 + $0x98] sm:$0x1] %v1754
  %v1756 = vld [vmem:[%s759 + $0x9c] sm:$0xf]
  %v1757 = vsel %vm1664, %v1250, %v1756
  %1758 = vst [vmem:[%s759 + $0x9c] sm:$0xf] %v1757
  %1759 = vst.msk [vmem:[%s759 + $0xa0] sm:$0xf] %vm744, %v1259
  %v1760 = vld [vmem:[%s759 + $0xa4] sm:$0x1]
  %v1761 = vsel %vm762, %v1260, %v1760
  %1762 = vst [vmem:[%s759 + $0xa4] sm:$0x1] %v1761
  %v1763 = vld [vmem:[%s759 + $0xa8] sm:$0xf]
  %v1764 = vsel %vm1664, %v1267, %v1763
  %1765 = vst [vmem:[%s759 + $0xa8] sm:$0xf] %v1764
  %1766 = vst.msk [vmem:[%s759 + $0xac] sm:$0xf] %vm744, %v1276
  %v1767 = vld [vmem:[%s759 + $0xb0] sm:$0x1]
  %v1768 = vsel %vm762, %v1277, %v1767
  %1769 = vst [vmem:[%s759 + $0xb0] sm:$0x1] %v1768
  %v1770 = vld [vmem:[%s759 + $0xb4] sm:$0xf]
  %v1771 = vsel %vm1664, %v1284, %v1770
  %1772 = vst [vmem:[%s759 + $0xb4] sm:$0xf] %v1771
  %1773 = vst.msk [vmem:[%s759 + $0xb8] sm:$0xf] %vm744, %v1293
  %v1774 = vld [vmem:[%s759 + $0xbc] sm:$0x1]
  %v1775 = vsel %vm762, %v1294, %v1774
  %1776 = vst [vmem:[%s759 + $0xbc] sm:$0x1] %v1775
  %v1777 = vld [vmem:[%s759 + $0xd8] sm:$0xf]
  %v1778 = vsel %vm1664, %v1301, %v1777
  %1779 = vst [vmem:[%s759 + $0xd8] sm:$0xf] %v1778
  %1780 = vst.msk [vmem:[%s759 + $0xdc] sm:$0xf] %vm744, %v1310
  %v1781 = vld [vmem:[%s759 + $0xe0] sm:$0x1]
  %v1782 = vsel %vm762, %v1311, %v1781
  %1783 = vst [vmem:[%s759 + $0xe0] sm:$0x1] %v1782
  %v1784 = vld [vmem:[%s759 + $0xe4] sm:$0xf]
  %v1785 = vsel %vm1664, %v1318, %v1784
  %1786 = vst [vmem:[%s759 + $0xe4] sm:$0xf] %v1785
  %1787 = vst.msk [vmem:[%s759 + $0xe8] sm:$0xf] %vm744, %v1327
  %v1788 = vld [vmem:[%s759 + $0xec] sm:$0x1]
  %v1789 = vsel %vm762, %v1328, %v1788
  %1790 = vst [vmem:[%s759 + $0xec] sm:$0x1] %v1789
  %v1791 = vld [vmem:[%s759 + $0xf0] sm:$0xf]
  %v1792 = vsel %vm1664, %v1335, %v1791
  %1793 = vst [vmem:[%s759 + $0xf0] sm:$0xf] %v1792
  %1794 = vst.msk [vmem:[%s759 + $0xf4] sm:$0xf] %vm744, %v1344
  %v1795 = vld [vmem:[%s759 + $0xf8] sm:$0x1]
  %v1796 = vsel %vm762, %v1345, %v1795
  %1797 = vst [vmem:[%s759 + $0xf8] sm:$0x1] %v1796
  %v1798 = vld [vmem:[%s759 + $0xfc] sm:$0xf]
  %v1799 = vsel %vm1664, %v1352, %v1798
  %1800 = vst [vmem:[%s759 + $0xfc] sm:$0xf] %v1799
  %1801 = vst.msk [vmem:[%s759 + $0x100] sm:$0xf] %vm744, %v1361
  %v1802 = vld [vmem:[%s759 + $0x104] sm:$0x1]
  %v1803 = vsel %vm762, %v1362, %v1802
  %1804 = vst [vmem:[%s759 + $0x104] sm:$0x1] %v1803
  %v1805 = vld [vmem:[%s759 + $0x108] sm:$0xf]
  %v1806 = vsel %vm1664, %v1369, %v1805
  %1807 = vst [vmem:[%s759 + $0x108] sm:$0xf] %v1806
  %1808 = vst.msk [vmem:[%s759 + $0x10c] sm:$0xf] %vm744, %v1378
  %v1809 = vld [vmem:[%s759 + $0x110] sm:$0x1]
  %v1810 = vsel %vm762, %v1379, %v1809
  %1811 = vst [vmem:[%s759 + $0x110] sm:$0x1] %v1810
  %v1812 = vld [vmem:[%s759 + $0x114] sm:$0xf]
  %v1813 = vsel %vm1664, %v1386, %v1812
  %1814 = vst [vmem:[%s759 + $0x114] sm:$0xf] %v1813
  %1815 = vst.msk [vmem:[%s759 + $0x118] sm:$0xf] %vm744, %v1395
  %v1816 = vld [vmem:[%s759 + $0x11c] sm:$0x1]
  %v1817 = vsel %vm762, %v1396, %v1816
  %1818 = vst [vmem:[%s759 + $0x11c] sm:$0x1] %v1817
  %v1819 = vld [vmem:[%s759 + $0x120] sm:$0xf]
  %v1820 = vsel %vm1664, %v1403, %v1819
  %1821 = vst [vmem:[%s759 + $0x120] sm:$0xf] %v1820
  %1822 = vst.msk [vmem:[%s759 + $0x124] sm:$0xf] %vm744, %v1412
  %v1823 = vld [vmem:[%s759 + $0x128] sm:$0x1]
  %v1824 = vsel %vm762, %v1413, %v1823
  %1825 = vst [vmem:[%s759 + $0x128] sm:$0x1] %v1824
  %v1826 = vld [vmem:[%s759 + $0x12c] sm:$0xf]
  %v1827 = vsel %vm1664, %v1420, %v1826
  %1828 = vst [vmem:[%s759 + $0x12c] sm:$0xf] %v1827
  %1829 = vst.msk [vmem:[%s759 + $0x130] sm:$0xf] %vm744, %v1429
  %v1830 = vld [vmem:[%s759 + $0x134] sm:$0x1]
  %v1831 = vsel %vm762, %v1430, %v1830
  %1832 = vst [vmem:[%s759 + $0x134] sm:$0x1] %v1831
  %v1833 = vld [vmem:[%s759 + $0x138] sm:$0xf]
  %v1834 = vsel %vm1664, %v1437, %v1833
  %1835 = vst [vmem:[%s759 + $0x138] sm:$0xf] %v1834
  %1836 = vst.msk [vmem:[%s759 + $0x13c] sm:$0xf] %vm744, %v1446
  %v1837 = vld [vmem:[%s759 + $0x140] sm:$0x1]
  %v1838 = vsel %vm762, %v1447, %v1837
  %1839 = vst [vmem:[%s759 + $0x140] sm:$0x1] %v1838
  %v1840 = vld [vmem:[%s759 + $0x144] sm:$0xf]
  %v1841 = vsel %vm1664, %v1454, %v1840
  %1842 = vst [vmem:[%s759 + $0x144] sm:$0xf] %v1841
  %1843 = vst.msk [vmem:[%s759 + $0x148] sm:$0xf] %vm744, %v1463
  %v1844 = vld [vmem:[%s759 + $0x14c] sm:$0x1]
  %v1845 = vsel %vm762, %v1464, %v1844
  %1846 = vst [vmem:[%s759 + $0x14c] sm:$0x1] %v1845
  %v1847 = vld [vmem:[%s759 + $0x150] sm:$0xf]
  %v1848 = vsel %vm1664, %v1471, %v1847
  %1849 = vst [vmem:[%s759 + $0x150] sm:$0xf] %v1848
  %1850 = vst.msk [vmem:[%s759 + $0x154] sm:$0xf] %vm744, %v1480
  %v1851 = vld [vmem:[%s759 + $0x158] sm:$0x1]
  %v1852 = vsel %vm762, %v1481, %v1851
  %1853 = vst [vmem:[%s759 + $0x158] sm:$0x1] %v1852
  %v1854 = vld [vmem:[%s759 + $0x15c] sm:$0xf]
  %v1855 = vsel %vm1664, %v1488, %v1854
  %1856 = vst [vmem:[%s759 + $0x15c] sm:$0xf] %v1855
  %1857 = vst.msk [vmem:[%s759 + $0x160] sm:$0xf] %vm744, %v1497
  %v1858 = vld [vmem:[%s759 + $0x164] sm:$0x1]
  %v1859 = vsel %vm762, %v1498, %v1858
  %1860 = vst [vmem:[%s759 + $0x164] sm:$0x1] %v1859
  %v1861 = vld [vmem:[%s759 + $0x168] sm:$0xf]
  %v1862 = vsel %vm1664, %v1505, %v1861
  %1863 = vst [vmem:[%s759 + $0x168] sm:$0xf] %v1862
  %1864 = vst.msk [vmem:[%s759 + $0x16c] sm:$0xf] %vm744, %v1514
  %v1865 = vld [vmem:[%s759 + $0x170] sm:$0x1]
  %v1866 = vsel %vm762, %v1515, %v1865
  %1867 = vst [vmem:[%s759 + $0x170] sm:$0x1] %v1866
  %v1868 = vld [vmem:[%s759 + $0x174] sm:$0xf]
  %v1869 = vsel %vm1664, %v1522, %v1868
  %1870 = vst [vmem:[%s759 + $0x174] sm:$0xf] %v1869
  %1871 = vst.msk [vmem:[%s759 + $0x178] sm:$0xf] %vm744, %v1531
  %v1872 = vld [vmem:[%s759 + $0x17c] sm:$0x1]
  %v1873 = vsel %vm762, %v1532, %v1872
  %1874 = vst [vmem:[%s759 + $0x17c] sm:$0x1] %v1873
  %v1875 = vld [vmem:[%s759 + $0x180] sm:$0xf]
  %v1876 = vsel %vm1664, %v1539, %v1875
  %1877 = vst [vmem:[%s759 + $0x180] sm:$0xf] %v1876
  %1878 = vst.msk [vmem:[%s759 + $0x184] sm:$0xf] %vm744, %v1548
  %v1879 = vld [vmem:[%s759 + $0x188] sm:$0x1]
  %v1880 = vsel %vm762, %v1549, %v1879
  %1881 = vst [vmem:[%s759 + $0x188] sm:$0x1] %v1880
  %v1882 = vld [vmem:[%s759 + $0x18c] sm:$0xf]
  %v1883 = vsel %vm1664, %v1556, %v1882
  %1884 = vst [vmem:[%s759 + $0x18c] sm:$0xf] %v1883
  %1885 = vst.msk [vmem:[%s759 + $0x190] sm:$0xf] %vm744, %v1565
  %v1886 = vld [vmem:[%s759 + $0x194] sm:$0x1]
  %v1887 = vsel %vm762, %v1566, %v1886
  %1888 = vst [vmem:[%s759 + $0x194] sm:$0x1] %v1887
  %v1889 = vld [vmem:[#allocation2] sm:$0xf]
  %v1890 = vld [vmem:[#allocation2 + $0x4] sm:$0xf]
  %v1891 = vld [vmem:[#allocation2 + $0xc] sm:$0xf]
  %v1892 = vld [vmem:[#allocation2 + $0x10] sm:$0xf]
  %v1893 = vld [vmem:[#allocation2 + $0x18] sm:$0xf]
  %v1894 = vld [vmem:[#allocation2 + $0x1c] sm:$0xf]
  %v1895 = vld [vmem:[#allocation2 + $0x24] sm:$0xf]
  %v1896 = vld [vmem:[#allocation2 + $0x28] sm:$0xf]
  %v1897 = vld [vmem:[#allocation2 + $0x30] sm:$0xf]
  %v1898 = vld [vmem:[#allocation2 + $0x34] sm:$0xf]
  %v1899 = vld [vmem:[#allocation2 + $0x3c] sm:$0xf]
  %v1900 = vld [vmem:[#allocation2 + $0x40] sm:$0xf]
  %v1901 = vld [vmem:[#allocation2 + $0x48] sm:$0xf]
  %v1902 = vld [vmem:[#allocation2 + $0x4c] sm:$0xf]
  %v1903 = vld [vmem:[#allocation2 + $0x54] sm:$0xf]
  %v1904 = vld [vmem:[#allocation2 + $0x58] sm:$0xf]
  %v1905 = vld [vmem:[#allocation2 + $0x60] sm:$0xf]
  %v1906 = vld [vmem:[#allocation2 + $0x64] sm:$0xf]
  %v1907 = vld [vmem:[#allocation2 + $0x6c] sm:$0xf]
  %v1908 = vld [vmem:[#allocation2 + $0x70] sm:$0xf]
  %v1909 = vld [vmem:[#allocation2 + $0x78] sm:$0xf]
  %v1910 = vld [vmem:[#allocation2 + $0x7c] sm:$0xf]
  %v1911 = vld [vmem:[#allocation2 + $0x84] sm:$0xf]
  %v1912 = vld [vmem:[#allocation2 + $0x88] sm:$0xf]
  %v1913 = vld [vmem:[#allocation2 + $0x90] sm:$0xf]
  %v1914 = vld [vmem:[#allocation2 + $0x94] sm:$0xf]
  %v1915 = vld [vmem:[#allocation2 + $0x9c] sm:$0xf]
  %v1916 = vld [vmem:[#allocation2 + $0xa0] sm:$0xf]
  %v1917 = vld [vmem:[#allocation2 + $0xa8] sm:$0xf]
  %v1918 = vld [vmem:[#allocation2 + $0xac] sm:$0xf]
  %v1919 = vld [vmem:[#allocation2 + $0xb4] sm:$0xf]
  %v1920 = vld [vmem:[#allocation2 + $0xb8] sm:$0xf]
  %v1921 = vld [vmem:[#allocation2 + $0xd8] sm:$0xf]
  %v1922 = vld [vmem:[#allocation2 + $0xdc] sm:$0xf]
  %v1923 = vld [vmem:[#allocation2 + $0xe4] sm:$0xf]
  %v1924 = vld [vmem:[#allocation2 + $0xe8] sm:$0xf]
  %v1925 = vld [vmem:[#allocation2 + $0xf0] sm:$0xf]
  %v1926 = vld [vmem:[#allocation2 + $0xf4] sm:$0xf]
  %v1927 = vld [vmem:[#allocation2 + $0xfc] sm:$0xf]
  %v1928 = vld [vmem:[#allocation2 + $0x100] sm:$0xf]
  %v1929 = vld [vmem:[#allocation2 + $0x108] sm:$0xf]
  %v1930 = vld [vmem:[#allocation2 + $0x10c] sm:$0xf]
  %v1931 = vld [vmem:[#allocation2 + $0x114] sm:$0xf]
  %v1932 = vld [vmem:[#allocation2 + $0x118] sm:$0xf]
  %v1933 = vld [vmem:[#allocation2 + $0x120] sm:$0xf]
  %v1934 = vld [vmem:[#allocation2 + $0x124] sm:$0xf]
  %v1935 = vld [vmem:[#allocation2 + $0x12c] sm:$0xf]
  %v1936 = vld [vmem:[#allocation2 + $0x130] sm:$0xf]
  %v1937 = vld [vmem:[#allocation2 + $0x138] sm:$0xf]
  %v1938 = vld [vmem:[#allocation2 + $0x13c] sm:$0xf]
  %v1939 = vld [vmem:[#allocation2 + $0x144] sm:$0xf]
  %v1940 = vld [vmem:[#allocation2 + $0x148] sm:$0xf]
  %v1941 = vld [vmem:[#allocation2 + $0x150] sm:$0xf]
  %v1942 = vld [vmem:[#allocation2 + $0x154] sm:$0xf]
  %v1943 = vld [vmem:[#allocation2 + $0x15c] sm:$0xf]
  %v1944 = vld [vmem:[#allocation2 + $0x160] sm:$0xf]
  %v1945 = vld [vmem:[#allocation2 + $0x168] sm:$0xf]
  %v1946 = vld [vmem:[#allocation2 + $0x16c] sm:$0xf]
  %v1947 = vld [vmem:[#allocation2 + $0x174] sm:$0xf]
  %v1948 = vld [vmem:[#allocation2 + $0x178] sm:$0xf]
  %v1949 = vld [vmem:[#allocation2 + $0x180] sm:$0xf]
  %v1950 = vld [vmem:[#allocation2 + $0x184] sm:$0xf]
  %v1951 = vld [vmem:[#allocation2 + $0x18c] sm:$0xf]
  %v1952 = vld [vmem:[#allocation2 + $0x190] sm:$0xf]
  %v1953 = vld [vmem:[#allocation2 + $0x8] sm:$0x1]
  %v1954 = vld [vmem:[#allocation2 + $0x14] sm:$0x1]
  %v1955 = vld [vmem:[#allocation2 + $0x20] sm:$0x1]
  %v1956 = vld [vmem:[#allocation2 + $0x2c] sm:$0x1]
  %v1957 = vld [vmem:[#allocation2 + $0x38] sm:$0x1]
  %v1958 = vld [vmem:[#allocation2 + $0x44] sm:$0x1]
  %v1959 = vld [vmem:[#allocation2 + $0x50] sm:$0x1]
  %v1960 = vld [vmem:[#allocation2 + $0x5c] sm:$0x1]
  %v1961 = vld [vmem:[#allocation2 + $0x68] sm:$0x1]
  %v1962 = vld [vmem:[#allocation2 + $0x74] sm:$0x1]
  %v1963 = vld [vmem:[#allocation2 + $0x80] sm:$0x1]
  %v1964 = vld [vmem:[#allocation2 + $0x8c] sm:$0x1]
  %v1965 = vld [vmem:[#allocation2 + $0x98] sm:$0x1]
  %v1966 = vld [vmem:[#allocation2 + $0xa4] sm:$0x1]
  %v1967 = vld [vmem:[#allocation2 + $0xb0] sm:$0x1]
  %v1968 = vld [vmem:[#allocation2 + $0xbc] sm:$0x1]
  %v1969 = vld [vmem:[#allocation2 + $0xe0] sm:$0x1]
  %v1970 = vld [vmem:[#allocation2 + $0xec] sm:$0x1]
  %v1971 = vld [vmem:[#allocation2 + $0xf8] sm:$0x1]
  %v1972 = vld [vmem:[#allocation2 + $0x104] sm:$0x1]
  %v1973 = vld [vmem:[#allocation2 + $0x110] sm:$0x1]
  %v1974 = vld [vmem:[#allocation2 + $0x11c] sm:$0x1]
  %v1975 = vld [vmem:[#allocation2 + $0x128] sm:$0x1]
  %v1976 = vld [vmem:[#allocation2 + $0x134] sm:$0x1]
  %v1977 = vld [vmem:[#allocation2 + $0x140] sm:$0x1]
  %v1978 = vld [vmem:[#allocation2 + $0x14c] sm:$0x1]
  %v1979 = vld [vmem:[#allocation2 + $0x158] sm:$0x1]
  %v1980 = vld [vmem:[#allocation2 + $0x164] sm:$0x1]
  %v1981 = vld [vmem:[#allocation2 + $0x170] sm:$0x1]
  %v1982 = vld [vmem:[#allocation2 + $0x17c] sm:$0x1]
  %v1983 = vld [vmem:[#allocation2 + $0x188] sm:$0x1]
  %v1984 = vld [vmem:[#allocation2 + $0x194] sm:$0x1]
  %vm1985 = vsmask.f32 3328
  %vm1986 = vsmask.f32 7440
  %vm1987 = vmor %vm1985, %vm1986
  %v1989 = vshrl.u32 %v1889, 16
  %v1991 = vrot.slane %v1989, 4
  %v1992 = vshll.u32 %v1889, 16
  %v1994 = vrot.slane %v1992, 5
  %v1995 = vor.u32 %v1991, %v1994
  %v1996 = vrot.slane %v1995, 4
  %v1998 = vshll.u32 %v1890, 16
  %v2000 = vrot.slane %v1998, 5
  %v2001 = vsel %vm1987, %v1996, %v2000
  %v2002 = vshrl.u32 %v1890, 16
  %v2004 = vrot.slane %v2002, 4
  %v2005 = vor.u32 %v2004, %v2000
  %v2006 = vrot.slane %v2005, 4
  %v2008 = vshll.u32 %v1953, 16
  %v2010 = vrot.slane %v2008, 5
  %v2011 = vsel %vm1987, %v2006, %v2010
  %v2013 = vshrl.u32 %v1891, 16
  %v2015 = vrot.slane %v2013, 4
  %v2016 = vshll.u32 %v1891, 16
  %v2018 = vrot.slane %v2016, 5
  %v2019 = vor.u32 %v2015, %v2018
  %v2020 = vrot.slane %v2019, 4
  %v2022 = vshll.u32 %v1892, 16
  %v2024 = vrot.slane %v2022, 5
  %v2025 = vsel %vm1987, %v2020, %v2024
  %v2026 = vshrl.u32 %v1892, 16
  %v2028 = vrot.slane %v2026, 4
  %v2029 = vor.u32 %v2028, %v2024
  %v2030 = vrot.slane %v2029, 4
  %v2032 = vshll.u32 %v1954, 16
  %v2034 = vrot.slane %v2032, 5
  %v2035 = vsel %vm1987, %v2030, %v2034
  %v2037 = vshrl.u32 %v1893, 16
  %v2039 = vrot.slane %v2037, 4
  %v2040 = vshll.u32 %v1893, 16
  %v2042 = vrot.slane %v2040, 5
  %v2043 = vor.u32 %v2039, %v2042
  %v2044 = vrot.slane %v2043, 4
  %v2046 = vshll.u32 %v1894, 16
  %v2048 = vrot.slane %v2046, 5
  %v2049 = vsel %vm1987, %v2044, %v2048
  %v2050 = vshrl.u32 %v1894, 16
  %v2052 = vrot.slane %v2050, 4
  %v2053 = vor.u32 %v2052, %v2048
  %v2054 = vrot.slane %v2053, 4
  %v2056 = vshll.u32 %v1955, 16
  %v2058 = vrot.slane %v2056, 5
  %v2059 = vsel %vm1987, %v2054, %v2058
  %v2061 = vshrl.u32 %v1895, 16
  %v2063 = vrot.slane %v2061, 4
  %v2064 = vshll.u32 %v1895, 16
  %v2066 = vrot.slane %v2064, 5
  %v2067 = vor.u32 %v2063, %v2066
  %v2068 = vrot.slane %v2067, 4
  %v2070 = vshll.u32 %v1896, 16
  %v2072 = vrot.slane %v2070, 5
  %v2073 = vsel %vm1987, %v2068, %v2072
  %v2074 = vshrl.u32 %v1896, 16
  %v2076 = vrot.slane %v2074, 4
  %v2077 = vor.u32 %v2076, %v2072
  %v2078 = vrot.slane %v2077, 4
  %v2080 = vshll.u32 %v1956, 16
  %v2082 = vrot.slane %v2080, 5
  %v2083 = vsel %vm1987, %v2078, %v2082
  %v2085 = vshrl.u32 %v1897, 16
  %v2087 = vrot.slane %v2085, 4
  %v2088 = vshll.u32 %v1897, 16
  %v2090 = vrot.slane %v2088, 5
  %v2091 = vor.u32 %v2087, %v2090
  %v2092 = vrot.slane %v2091, 4
  %v2094 = vshll.u32 %v1898, 16
  %v2096 = vrot.slane %v2094, 5
  %v2097 = vsel %vm1987, %v2092, %v2096
  %v2098 = vshrl.u32 %v1898, 16
  %v2100 = vrot.slane %v2098, 4
  %v2101 = vor.u32 %v2100, %v2096
  %v2102 = vrot.slane %v2101, 4
  %v2104 = vshll.u32 %v1957, 16
  %v2106 = vrot.slane %v2104, 5
  %v2107 = vsel %vm1987, %v2102, %v2106
  %v2109 = vshrl.u32 %v1899, 16
  %v2111 = vrot.slane %v2109, 4
  %v2112 = vshll.u32 %v1899, 16
  %v2114 = vrot.slane %v2112, 5
  %v2115 = vor.u32 %v2111, %v2114
  %v2116 = vrot.slane %v2115, 4
  %v2118 = vshll.u32 %v1900, 16
  %v2120 = vrot.slane %v2118, 5
  %v2121 = vsel %vm1987, %v2116, %v2120
  %v2122 = vshrl.u32 %v1900, 16
  %v2124 = vrot.slane %v2122, 4
  %v2125 = vor.u32 %v2124, %v2120
  %v2126 = vrot.slane %v2125, 4
  %v2128 = vshll.u32 %v1958, 16
  %v2130 = vrot.slane %v2128, 5
  %v2131 = vsel %vm1987, %v2126, %v2130
  %v2133 = vshrl.u32 %v1901, 16
  %v2135 = vrot.slane %v2133, 4
  %v2136 = vshll.u32 %v1901, 16
  %v2138 = vrot.slane %v2136, 5
  %v2139 = vor.u32 %v2135, %v2138
  %v2140 = vrot.slane %v2139, 4
  %v2142 = vshll.u32 %v1902, 16
  %v2144 = vrot.slane %v2142, 5
  %v2145 = vsel %vm1987, %v2140, %v2144
  %v2146 = vshrl.u32 %v1902, 16
  %v2148 = vrot.slane %v2146, 4
  %v2149 = vor.u32 %v2148, %v2144
  %v2150 = vrot.slane %v2149, 4
  %v2152 = vshll.u32 %v1959, 16
  %v2154 = vrot.slane %v2152, 5
  %v2155 = vsel %vm1987, %v2150, %v2154
  %v2157 = vshrl.u32 %v1903, 16
  %v2159 = vrot.slane %v2157, 4
  %v2160 = vshll.u32 %v1903, 16
  %v2162 = vrot.slane %v2160, 5
  %v2163 = vor.u32 %v2159, %v2162
  %v2164 = vrot.slane %v2163, 4
  %v2166 = vshll.u32 %v1904, 16
  %v2168 = vrot.slane %v2166, 5
  %v2169 = vsel %vm1987, %v2164, %v2168
  %v2170 = vshrl.u32 %v1904, 16
  %v2172 = vrot.slane %v2170, 4
  %v2173 = vor.u32 %v2172, %v2168
  %v2174 = vrot.slane %v2173, 4
  %v2176 = vshll.u32 %v1960, 16
  %v2178 = vrot.slane %v2176, 5
  %v2179 = vsel %vm1987, %v2174, %v2178
  %v2181 = vshrl.u32 %v1905, 16
  %v2183 = vrot.slane %v2181, 4
  %v2184 = vshll.u32 %v1905, 16
  %v2186 = vrot.slane %v2184, 5
  %v2187 = vor.u32 %v2183, %v2186
  %v2188 = vrot.slane %v2187, 4
  %v2190 = vshll.u32 %v1906, 16
  %v2192 = vrot.slane %v2190, 5
  %v2193 = vsel %vm1987, %v2188, %v2192
  %v2194 = vshrl.u32 %v1906, 16
  %v2196 = vrot.slane %v2194, 4
  %v2197 = vor.u32 %v2196, %v2192
  %v2198 = vrot.slane %v2197, 4
  %v2200 = vshll.u32 %v1961, 16
  %v2202 = vrot.slane %v2200, 5
  %v2203 = vsel %vm1987, %v2198, %v2202
  %v2205 = vshrl.u32 %v1907, 16
  %v2207 = vrot.slane %v2205, 4
  %v2208 = vshll.u32 %v1907, 16
  %v2210 = vrot.slane %v2208, 5
  %v2211 = vor.u32 %v2207, %v2210
  %v2212 = vrot.slane %v2211, 4
  %v2214 = vshll.u32 %v1908, 16
  %v2216 = vrot.slane %v2214, 5
  %v2217 = vsel %vm1987, %v2212, %v2216
  %v2218 = vshrl.u32 %v1908, 16
  %v2220 = vrot.slane %v2218, 4
  %v2221 = vor.u32 %v2220, %v2216
  %v2222 = vrot.slane %v2221, 4
  %v2224 = vshll.u32 %v1962, 16
  %v2226 = vrot.slane %v2224, 5
  %v2227 = vsel %vm1987, %v2222, %v2226
  %v2229 = vshrl.u32 %v1909, 16
  %v2231 = vrot.slane %v2229, 4
  %v2232 = vshll.u32 %v1909, 16
  %v2234 = vrot.slane %v2232, 5
  %v2235 = vor.u32 %v2231, %v2234
  %v2236 = vrot.slane %v2235, 4
  %v2238 = vshll.u32 %v1910, 16
  %v2240 = vrot.slane %v2238, 5
  %v2241 = vsel %vm1987, %v2236, %v2240
  %v2242 = vshrl.u32 %v1910, 16
  %v2244 = vrot.slane %v2242, 4
  %v2245 = vor.u32 %v2244, %v2240
  %v2246 = vrot.slane %v2245, 4
  %v2248 = vshll.u32 %v1963, 16
  %v2250 = vrot.slane %v2248, 5
  %v2251 = vsel %vm1987, %v2246, %v2250
  %v2253 = vshrl.u32 %v1911, 16
  %v2255 = vrot.slane %v2253, 4
  %v2256 = vshll.u32 %v1911, 16
  %v2258 = vrot.slane %v2256, 5
  %v2259 = vor.u32 %v2255, %v2258
  %v2260 = vrot.slane %v2259, 4
  %v2262 = vshll.u32 %v1912, 16
  %v2264 = vrot.slane %v2262, 5
  %v2265 = vsel %vm1987, %v2260, %v2264
  %v2266 = vshrl.u32 %v1912, 16
  %v2268 = vrot.slane %v2266, 4
  %v2269 = vor.u32 %v2268, %v2264
  %v2270 = vrot.slane %v2269, 4
  %v2272 = vshll.u32 %v1964, 16
  %v2274 = vrot.slane %v2272, 5
  %v2275 = vsel %vm1987, %v2270, %v2274
  %v2277 = vshrl.u32 %v1913, 16
  %v2279 = vrot.slane %v2277, 4
  %v2280 = vshll.u32 %v1913, 16
  %v2282 = vrot.slane %v2280, 5
  %v2283 = vor.u32 %v2279, %v2282
  %v2284 = vrot.slane %v2283, 4
  %v2286 = vshll.u32 %v1914, 16
  %v2288 = vrot.slane %v2286, 5
  %v2289 = vsel %vm1987, %v2284, %v2288
  %v2290 = vshrl.u32 %v1914, 16
  %v2292 = vrot.slane %v2290, 4
  %v2293 = vor.u32 %v2292, %v2288
  %v2294 = vrot.slane %v2293, 4
  %v2296 = vshll.u32 %v1965, 16
  %v2298 = vrot.slane %v2296, 5
  %v2299 = vsel %vm1987, %v2294, %v2298
  %v2301 = vshrl.u32 %v1915, 16
  %v2303 = vrot.slane %v2301, 4
  %v2304 = vshll.u32 %v1915, 16
  %v2306 = vrot.slane %v2304, 5
  %v2307 = vor.u32 %v2303, %v2306
  %v2308 = vrot.slane %v2307, 4
  %v2310 = vshll.u32 %v1916, 16
  %v2312 = vrot.slane %v2310, 5
  %v2313 = vsel %vm1987, %v2308, %v2312
  %v2314 = vshrl.u32 %v1916, 16
  %v2316 = vrot.slane %v2314, 4
  %v2317 = vor.u32 %v2316, %v2312
  %v2318 = vrot.slane %v2317, 4
  %v2320 = vshll.u32 %v1966, 16
  %v2322 = vrot.slane %v2320, 5
  %v2323 = vsel %vm1987, %v2318, %v2322
  %v2325 = vshrl.u32 %v1917, 16
  %v2327 = vrot.slane %v2325, 4
  %v2328 = vshll.u32 %v1917, 16
  %v2330 = vrot.slane %v2328, 5
  %v2331 = vor.u32 %v2327, %v2330
  %v2332 = vrot.slane %v2331, 4
  %v2334 = vshll.u32 %v1918, 16
  %v2336 = vrot.slane %v2334, 5
  %v2337 = vsel %vm1987, %v2332, %v2336
  %v2338 = vshrl.u32 %v1918, 16
  %v2340 = vrot.slane %v2338, 4
  %v2341 = vor.u32 %v2340, %v2336
  %v2342 = vrot.slane %v2341, 4
  %v2344 = vshll.u32 %v1967, 16
  %v2346 = vrot.slane %v2344, 5
  %v2347 = vsel %vm1987, %v2342, %v2346
  %v2349 = vshrl.u32 %v1919, 16
  %v2351 = vrot.slane %v2349, 4
  %v2352 = vshll.u32 %v1919, 16
  %v2354 = vrot.slane %v2352, 5
  %v2355 = vor.u32 %v2351, %v2354
  %v2356 = vrot.slane %v2355, 4
  %v2358 = vshll.u32 %v1920, 16
  %v2360 = vrot.slane %v2358, 5
  %v2361 = vsel %vm1987, %v2356, %v2360
  %v2362 = vshrl.u32 %v1920, 16
  %v2364 = vrot.slane %v2362, 4
  %v2365 = vor.u32 %v2364, %v2360
  %v2366 = vrot.slane %v2365, 4
  %v2368 = vshll.u32 %v1968, 16
  %v2370 = vrot.slane %v2368, 5
  %v2371 = vsel %vm1987, %v2366, %v2370
  %v2373 = vshrl.u32 %v1921, 16
  %v2375 = vrot.slane %v2373, 4
  %v2376 = vshll.u32 %v1921, 16
  %v2378 = vrot.slane %v2376, 5
  %v2379 = vor.u32 %v2375, %v2378
  %v2380 = vrot.slane %v2379, 4
  %v2382 = vshll.u32 %v1922, 16
  %v2384 = vrot.slane %v2382, 5
  %v2385 = vsel %vm1987, %v2380, %v2384
  %v2386 = vshrl.u32 %v1922, 16
  %v2388 = vrot.slane %v2386, 4
  %v2389 = vor.u32 %v2388, %v2384
  %v2390 = vrot.slane %v2389, 4
  %v2392 = vshll.u32 %v1969, 16
  %v2394 = vrot.slane %v2392, 5
  %v2395 = vsel %vm1987, %v2390, %v2394
  %v2397 = vshrl.u32 %v1923, 16
  %v2399 = vrot.slane %v2397, 4
  %v2400 = vshll.u32 %v1923, 16
  %v2402 = vrot.slane %v2400, 5
  %v2403 = vor.u32 %v2399, %v2402
  %v2404 = vrot.slane %v2403, 4
  %v2406 = vshll.u32 %v1924, 16
  %v2408 = vrot.slane %v2406, 5
  %v2409 = vsel %vm1987, %v2404, %v2408
  %v2410 = vshrl.u32 %v1924, 16
  %v2412 = vrot.slane %v2410, 4
  %v2413 = vor.u32 %v2412, %v2408
  %v2414 = vrot.slane %v2413, 4
  %v2416 = vshll.u32 %v1970, 16
  %v2418 = vrot.slane %v2416, 5
  %v2419 = vsel %vm1987, %v2414, %v2418
  %v2421 = vshrl.u32 %v1925, 16
  %v2423 = vrot.slane %v2421, 4
  %v2424 = vshll.u32 %v1925, 16
  %v2426 = vrot.slane %v2424, 5
  %v2427 = vor.u32 %v2423, %v2426
  %v2428 = vrot.slane %v2427, 4
  %v2430 = vshll.u32 %v1926, 16
  %v2432 = vrot.slane %v2430, 5
  %v2433 = vsel %vm1987, %v2428, %v2432
  %v2434 = vshrl.u32 %v1926, 16
  %v2436 = vrot.slane %v2434, 4
  %v2437 = vor.u32 %v2436, %v2432
  %v2438 = vrot.slane %v2437, 4
  %v2440 = vshll.u32 %v1971, 16
  %v2442 = vrot.slane %v2440, 5
  %v2443 = vsel %vm1987, %v2438, %v2442
  %v2445 = vshrl.u32 %v1927, 16
  %v2447 = vrot.slane %v2445, 4
  %v2448 = vshll.u32 %v1927, 16
  %v2450 = vrot.slane %v2448, 5
  %v2451 = vor.u32 %v2447, %v2450
  %v2452 = vrot.slane %v2451, 4
  %v2454 = vshll.u32 %v1928, 16
  %v2456 = vrot.slane %v2454, 5
  %v2457 = vsel %vm1987, %v2452, %v2456
  %v2458 = vshrl.u32 %v1928, 16
  %v2460 = vrot.slane %v2458, 4
  %v2461 = vor.u32 %v2460, %v2456
  %v2462 = vrot.slane %v2461, 4
  %v2464 = vshll.u32 %v1972, 16
  %v2466 = vrot.slane %v2464, 5
  %v2467 = vsel %vm1987, %v2462, %v2466
  %v2469 = vshrl.u32 %v1929, 16
  %v2471 = vrot.slane %v2469, 4
  %v2472 = vshll.u32 %v1929, 16
  %v2474 = vrot.slane %v2472, 5
  %v2475 = vor.u32 %v2471, %v2474
  %v2476 = vrot.slane %v2475, 4
  %v2478 = vshll.u32 %v1930, 16
  %v2480 = vrot.slane %v2478, 5
  %v2481 = vsel %vm1987, %v2476, %v2480
  %v2482 = vshrl.u32 %v1930, 16
  %v2484 = vrot.slane %v2482, 4
  %v2485 = vor.u32 %v2484, %v2480
  %v2486 = vrot.slane %v2485, 4
  %v2488 = vshll.u32 %v1973, 16
  %v2490 = vrot.slane %v2488, 5
  %v2491 = vsel %vm1987, %v2486, %v2490
  %v2493 = vshrl.u32 %v1931, 16
  %v2495 = vrot.slane %v2493, 4
  %v2496 = vshll.u32 %v1931, 16
  %v2498 = vrot.slane %v2496, 5
  %v2499 = vor.u32 %v2495, %v2498
  %v2500 = vrot.slane %v2499, 4
  %v2502 = vshll.u32 %v1932, 16
  %v2504 = vrot.slane %v2502, 5
  %v2505 = vsel %vm1987, %v2500, %v2504
  %v2506 = vshrl.u32 %v1932, 16
  %v2508 = vrot.slane %v2506, 4
  %v2509 = vor.u32 %v2508, %v2504
  %v2510 = vrot.slane %v2509, 4
  %v2512 = vshll.u32 %v1974, 16
  %v2514 = vrot.slane %v2512, 5
  %v2515 = vsel %vm1987, %v2510, %v2514
  %v2517 = vshrl.u32 %v1933, 16
  %v2519 = vrot.slane %v2517, 4
  %v2520 = vshll.u32 %v1933, 16
  %v2522 = vrot.slane %v2520, 5
  %v2523 = vor.u32 %v2519, %v2522
  %v2524 = vrot.slane %v2523, 4
  %v2526 = vshll.u32 %v1934, 16
  %v2528 = vrot.slane %v2526, 5
  %v2529 = vsel %vm1987, %v2524, %v2528
  %v2530 = vshrl.u32 %v1934, 16
  %v2532 = vrot.slane %v2530, 4
  %v2533 = vor.u32 %v2532, %v2528
  %v2534 = vrot.slane %v2533, 4
  %v2536 = vshll.u32 %v1975, 16
  %v2538 = vrot.slane %v2536, 5
  %v2539 = vsel %vm1987, %v2534, %v2538
  %v2541 = vshrl.u32 %v1935, 16
  %v2543 = vrot.slane %v2541, 4
  %v2544 = vshll.u32 %v1935, 16
  %v2546 = vrot.slane %v2544, 5
  %v2547 = vor.u32 %v2543, %v2546
  %v2548 = vrot.slane %v2547, 4
  %v2550 = vshll.u32 %v1936, 16
  %v2552 = vrot.slane %v2550, 5
  %v2553 = vsel %vm1987, %v2548, %v2552
  %v2554 = vshrl.u32 %v1936, 16
  %v2556 = vrot.slane %v2554, 4
  %v2557 = vor.u32 %v2556, %v2552
  %v2558 = vrot.slane %v2557, 4
  %v2560 = vshll.u32 %v1976, 16
  %v2562 = vrot.slane %v2560, 5
  %v2563 = vsel %vm1987, %v2558, %v2562
  %v2565 = vshrl.u32 %v1937, 16
  %v2567 = vrot.slane %v2565, 4
  %v2568 = vshll.u32 %v1937, 16
  %v2570 = vrot.slane %v2568, 5
  %v2571 = vor.u32 %v2567, %v2570
  %v2572 = vrot.slane %v2571, 4
  %v2574 = vshll.u32 %v1938, 16
  %v2576 = vrot.slane %v2574, 5
  %v2577 = vsel %vm1987, %v2572, %v2576
  %v2578 = vshrl.u32 %v1938, 16
  %v2580 = vrot.slane %v2578, 4
  %v2581 = vor.u32 %v2580, %v2576
  %v2582 = vrot.slane %v2581, 4
  %v2584 = vshll.u32 %v1977, 16
  %v2586 = vrot.slane %v2584, 5
  %v2587 = vsel %vm1987, %v2582, %v2586
  %v2589 = vshrl.u32 %v1939, 16
  %v2591 = vrot.slane %v2589, 4
  %v2592 = vshll.u32 %v1939, 16
  %v2594 = vrot.slane %v2592, 5
  %v2595 = vor.u32 %v2591, %v2594
  %v2596 = vrot.slane %v2595, 4
  %v2598 = vshll.u32 %v1940, 16
  %v2600 = vrot.slane %v2598, 5
  %v2601 = vsel %vm1987, %v2596, %v2600
  %v2602 = vshrl.u32 %v1940, 16
  %v2604 = vrot.slane %v2602, 4
  %v2605 = vor.u32 %v2604, %v2600
  %v2606 = vrot.slane %v2605, 4
  %v2608 = vshll.u32 %v1978, 16
  %v2610 = vrot.slane %v2608, 5
  %v2611 = vsel %vm1987, %v2606, %v2610
  %v2613 = vshrl.u32 %v1941, 16
  %v2615 = vrot.slane %v2613, 4
  %v2616 = vshll.u32 %v1941, 16
  %v2618 = vrot.slane %v2616, 5
  %v2619 = vor.u32 %v2615, %v2618
  %v2620 = vrot.slane %v2619, 4
  %v2622 = vshll.u32 %v1942, 16
  %v2624 = vrot.slane %v2622, 5
  %v2625 = vsel %vm1987, %v2620, %v2624
  %v2626 = vshrl.u32 %v1942, 16
  %v2628 = vrot.slane %v2626, 4
  %v2629 = vor.u32 %v2628, %v2624
  %v2630 = vrot.slane %v2629, 4
  %v2632 = vshll.u32 %v1979, 16
  %v2634 = vrot.slane %v2632, 5
  %v2635 = vsel %vm1987, %v2630, %v2634
  %v2637 = vshrl.u32 %v1943, 16
  %v2639 = vrot.slane %v2637, 4
  %v2640 = vshll.u32 %v1943, 16
  %v2642 = vrot.slane %v2640, 5
  %v2643 = vor.u32 %v2639, %v2642
  %v2644 = vrot.slane %v2643, 4
  %v2646 = vshll.u32 %v1944, 16
  %v2648 = vrot.slane %v2646, 5
  %v2649 = vsel %vm1987, %v2644, %v2648
  %v2650 = vshrl.u32 %v1944, 16
  %v2652 = vrot.slane %v2650, 4
  %v2653 = vor.u32 %v2652, %v2648
  %v2654 = vrot.slane %v2653, 4
  %v2656 = vshll.u32 %v1980, 16
  %v2658 = vrot.slane %v2656, 5
  %v2659 = vsel %vm1987, %v2654, %v2658
  %v2661 = vshrl.u32 %v1945, 16
  %v2663 = vrot.slane %v2661, 4
  %v2664 = vshll.u32 %v1945, 16
  %v2666 = vrot.slane %v2664, 5
  %v2667 = vor.u32 %v2663, %v2666
  %v2668 = vrot.slane %v2667, 4
  %v2670 = vshll.u32 %v1946, 16
  %v2672 = vrot.slane %v2670, 5
  %v2673 = vsel %vm1987, %v2668, %v2672
  %v2674 = vshrl.u32 %v1946, 16
  %v2676 = vrot.slane %v2674, 4
  %v2677 = vor.u32 %v2676, %v2672
  %v2678 = vrot.slane %v2677, 4
  %v2680 = vshll.u32 %v1981, 16
  %v2682 = vrot.slane %v2680, 5
  %v2683 = vsel %vm1987, %v2678, %v2682
  %v2685 = vshrl.u32 %v1947, 16
  %v2687 = vrot.slane %v2685, 4
  %v2688 = vshll.u32 %v1947, 16
  %v2690 = vrot.slane %v2688, 5
  %v2691 = vor.u32 %v2687, %v2690
  %v2692 = vrot.slane %v2691, 4
  %v2694 = vshll.u32 %v1948, 16
  %v2696 = vrot.slane %v2694, 5
  %v2697 = vsel %vm1987, %v2692, %v2696
  %v2698 = vshrl.u32 %v1948, 16
  %v2700 = vrot.slane %v2698, 4
  %v2701 = vor.u32 %v2700, %v2696
  %v2702 = vrot.slane %v2701, 4
  %v2704 = vshll.u32 %v1982, 16
  %v2706 = vrot.slane %v2704, 5
  %v2707 = vsel %vm1987, %v2702, %v2706
  %v2709 = vshrl.u32 %v1949, 16
  %v2711 = vrot.slane %v2709, 4
  %v2712 = vshll.u32 %v1949, 16
  %v2714 = vrot.slane %v2712, 5
  %v2715 = vor.u32 %v2711, %v2714
  %v2716 = vrot.slane %v2715, 4
  %v2718 = vshll.u32 %v1950, 16
  %v2720 = vrot.slane %v2718, 5
  %v2721 = vsel %vm1987, %v2716, %v2720
  %v2722 = vshrl.u32 %v1950, 16
  %v2724 = vrot.slane %v2722, 4
  %v2725 = vor.u32 %v2724, %v2720
  %v2726 = vrot.slane %v2725, 4
  %v2728 = vshll.u32 %v1983, 16
  %v2730 = vrot.slane %v2728, 5
  %v2731 = vsel %vm1987, %v2726, %v2730
  %v2733 = vshrl.u32 %v1951, 16
  %v2735 = vrot.slane %v2733, 4
  %v2736 = vshll.u32 %v1951, 16
  %v2738 = vrot.slane %v2736, 5
  %v2739 = vor.u32 %v2735, %v2738
  %v2740 = vrot.slane %v2739, 4
  %v2742 = vshll.u32 %v1952, 16
  %v2744 = vrot.slane %v2742, 5
  %v2745 = vsel %vm1987, %v2740, %v2744
  %v2746 = vshrl.u32 %v1952, 16
  %v2748 = vrot.slane %v2746, 4
  %v2749 = vor.u32 %v2748, %v2744
  %v2750 = vrot.slane %v2749, 4
  %v2752 = vshll.u32 %v1984, 16
  %v2754 = vrot.slane %v2752, 5
  %v2755 = vsel %vm1987, %v2750, %v2754
  %v2756 = vld [vmem:[#allocation2] sm:$0xe]
  %v2757 = vld [vmem:[#allocation2 + $0xc] sm:$0xe]
  %v2758 = vld [vmem:[#allocation2 + $0x18] sm:$0xe]
  %v2759 = vld [vmem:[#allocation2 + $0x24] sm:$0xe]
  %v2760 = vld [vmem:[#allocation2 + $0x30] sm:$0xe]
  %v2761 = vld [vmem:[#allocation2 + $0x3c] sm:$0xe]
  %v2762 = vld [vmem:[#allocation2 + $0x48] sm:$0xe]
  %v2763 = vld [vmem:[#allocation2 + $0x54] sm:$0xe]
  %v2764 = vld [vmem:[#allocation2 + $0x60] sm:$0xe]
  %v2765 = vld [vmem:[#allocation2 + $0x6c] sm:$0xe]
  %v2766 = vld [vmem:[#allocation2 + $0x78] sm:$0xe]
  %v2767 = vld [vmem:[#allocation2 + $0x84] sm:$0xe]
  %v2768 = vld [vmem:[#allocation2 + $0x90] sm:$0xe]
  %v2769 = vld [vmem:[#allocation2 + $0x9c] sm:$0xe]
  %v2770 = vld [vmem:[#allocation2 + $0xa8] sm:$0xe]
  %v2771 = vld [vmem:[#allocation2 + $0xb4] sm:$0xe]
  %v2772 = vld [vmem:[#allocation2 + $0xd8] sm:$0xe]
  %v2773 = vld [vmem:[#allocation2 + $0xe4] sm:$0xe]
  %v2774 = vld [vmem:[#allocation2 + $0xf0] sm:$0xe]
  %v2775 = vld [vmem:[#allocation2 + $0xfc] sm:$0xe]
  %v2776 = vld [vmem:[#allocation2 + $0x108] sm:$0xe]
  %v2777 = vld [vmem:[#allocation2 + $0x114] sm:$0xe]
  %v2778 = vld [vmem:[#allocation2 + $0x120] sm:$0xe]
  %v2779 = vld [vmem:[#allocation2 + $0x12c] sm:$0xe]
  %v2780 = vld [vmem:[#allocation2 + $0x138] sm:$0xe]
  %v2781 = vld [vmem:[#allocation2 + $0x144] sm:$0xe]
  %v2782 = vld [vmem:[#allocation2 + $0x150] sm:$0xe]
  %v2783 = vld [vmem:[#allocation2 + $0x15c] sm:$0xe]
  %v2784 = vld [vmem:[#allocation2 + $0x168] sm:$0xe]
  %v2785 = vld [vmem:[#allocation2 + $0x174] sm:$0xe]
  %v2786 = vld [vmem:[#allocation2 + $0x180] sm:$0xe]
  %v2787 = vld [vmem:[#allocation2 + $0x18c] sm:$0xe]
  %vm2884 = vcmask 1042432
  %vm2885 = vcmask 1046532
  %vm2886 = vmor %vm2884, %vm2885
  %v2887 = vrot.slane %v2756, 5
  %v2888 = vrot.slane %v2887, 4
  %v2889 = vrot.slane %v1890, 5
  %v2890 = vsel %vm2886, %v2888, %v2889
  %v2891 = vrot.slane %v2889, 4
  %v2892 = vrot.slane %v1953, 5
  %v2893 = vsel %vm2886, %v2891, %v2892
  %v2894 = vrot.slane %v2757, 5
  %v2895 = vrot.slane %v2894, 4
  %v2896 = vrot.slane %v1892, 5
  %v2897 = vsel %vm2886, %v2895, %v2896
  %v2898 = vrot.slane %v2896, 4
  %v2899 = vrot.slane %v1954, 5
  %v2900 = vsel %vm2886, %v2898, %v2899
  %v2901 = vrot.slane %v2758, 5
  %v2902 = vrot.slane %v2901, 4
  %v2903 = vrot.slane %v1894, 5
  %v2904 = vsel %vm2886, %v2902, %v2903
  %v2905 = vrot.slane %v2903, 4
  %v2906 = vrot.slane %v1955, 5
  %v2907 = vsel %vm2886, %v2905, %v2906
  %v2908 = vrot.slane %v2759, 5
  %v2909 = vrot.slane %v2908, 4
  %v2910 = vrot.slane %v1896, 5
  %v2911 = vsel %vm2886, %v2909, %v2910
  %v2912 = vrot.slane %v2910, 4
  %v2913 = vrot.slane %v1956, 5
  %v2914 = vsel %vm2886, %v2912, %v2913
  %v2915 = vrot.slane %v2760, 5
  %v2916 = vrot.slane %v2915, 4
  %v2917 = vrot.slane %v1898, 5
  %v2918 = vsel %vm2886, %v2916, %v2917
  %v2919 = vrot.slane %v2917, 4
  %v2920 = vrot.slane %v1957, 5
  %v2921 = vsel %vm2886, %v2919, %v2920
  %v2922 = vrot.slane %v2761, 5
  %v2923 = vrot.slane %v2922, 4
  %v2924 = vrot.slane %v1900, 5
  %v2925 = vsel %vm2886, %v2923, %v2924
  %v2926 = vrot.slane %v2924, 4
  %v2927 = vrot.slane %v1958, 5
  %v2928 = vsel %vm2886, %v2926, %v2927
  %v2929 = vrot.slane %v2762, 5
  %v2930 = vrot.slane %v2929, 4
  %v2931 = vrot.slane %v1902, 5
  %v2932 = vsel %vm2886, %v2930, %v2931
  %v2933 = vrot.slane %v2931, 4
  %v2934 = vrot.slane %v1959, 5
  %v2935 = vsel %vm2886, %v2933, %v2934
  %v2936 = vrot.slane %v2763, 5
  %v2937 = vrot.slane %v2936, 4
  %v2938 = vrot.slane %v1904, 5
  %v2939 = vsel %vm2886, %v2937, %v2938
  %v2940 = vrot.slane %v2938, 4
  %v2941 = vrot.slane %v1960, 5
  %v2942 = vsel %vm2886, %v2940, %v2941
  %v2943 = vrot.slane %v2764, 5
  %v2944 = vrot.slane %v2943, 4
  %v2945 = vrot.slane %v1906, 5
  %v2946 = vsel %vm2886, %v2944, %v2945
  %v2947 = vrot.slane %v2945, 4
  %v2948 = vrot.slane %v1961, 5
  %v2949 = vsel %vm2886, %v2947, %v2948
  %v2950 = vrot.slane %v2765, 5
  %v2951 = vrot.slane %v2950, 4
  %v2952 = vrot.slane %v1908, 5
  %v2953 = vsel %vm2886, %v2951, %v2952
  %v2954 = vrot.slane %v2952, 4
  %v2955 = vrot.slane %v1962, 5
  %v2956 = vsel %vm2886, %v2954, %v2955
  %v2957 = vrot.slane %v2766, 5
  %v2958 = vrot.slane %v2957, 4
  %v2959 = vrot.slane %v1910, 5
  %v2960 = vsel %vm2886, %v2958, %v2959
  %v2961 = vrot.slane %v2959, 4
  %v2962 = vrot.slane %v1963, 5
  %v2963 = vsel %vm2886, %v2961, %v2962
  %v2964 = vrot.slane %v2767, 5
  %v2965 = vrot.slane %v2964, 4
  %v2966 = vrot.slane %v1912, 5
  %v2967 = vsel %vm2886, %v2965, %v2966
  %v2968 = vrot.slane %v2966, 4
  %v2969 = vrot.slane %v1964, 5
  %v2970 = vsel %vm2886, %v2968, %v2969
  %v2971 = vrot.slane %v2768, 5
  %v2972 = vrot.slane %v2971, 4
  %v2973 = vrot.slane %v1914, 5
  %v2974 = vsel %vm2886, %v2972, %v2973
  %v2975 = vrot.slane %v2973, 4
  %v2976 = vrot.slane %v1965, 5
  %v2977 = vsel %vm2886, %v2975, %v2976
  %v2978 = vrot.slane %v2769, 5
  %v2979 = vrot.slane %v2978, 4
  %v2980 = vrot.slane %v1916, 5
  %v2981 = vsel %vm2886, %v2979, %v2980
  %v2982 = vrot.slane %v2980, 4
  %v2983 = vrot.slane %v1966, 5
  %v2984 = vsel %vm2886, %v2982, %v2983
  %v2985 = vrot.slane %v2770, 5
  %v2986 = vrot.slane %v2985, 4
  %v2987 = vrot.slane %v1918, 5
  %v2988 = vsel %vm2886, %v2986, %v2987
  %v2989 = vrot.slane %v2987, 4
  %v2990 = vrot.slane %v1967, 5
  %v2991 = vsel %vm2886, %v2989, %v2990
  %v2992 = vrot.slane %v2771, 5
  %v2993 = vrot.slane %v2992, 4
  %v2994 = vrot.slane %v1920, 5
  %v2995 = vsel %vm2886, %v2993, %v2994
  %v2996 = vrot.slane %v2994, 4
  %v2997 = vrot.slane %v1968, 5
  %v2998 = vsel %vm2886, %v2996, %v2997
  %v2999 = vrot.slane %v2772, 5
  %v3000 = vrot.slane %v2999, 4
  %v3001 = vrot.slane %v1922, 5
  %v3002 = vsel %vm2886, %v3000, %v3001
  %v3003 = vrot.slane %v3001, 4
  %v3004 = vrot.slane %v1969, 5
  %v3005 = vsel %vm2886, %v3003, %v3004
  %v3006 = vrot.slane %v2773, 5
  %v3007 = vrot.slane %v3006, 4
  %v3008 = vrot.slane %v1924, 5
  %v3009 = vsel %vm2886, %v3007, %v3008
  %v3010 = vrot.slane %v3008, 4
  %v3011 = vrot.slane %v1970, 5
  %v3012 = vsel %vm2886, %v3010, %v3011
  %v3013 = vrot.slane %v2774, 5
  %v3014 = vrot.slane %v3013, 4
  %v3015 = vrot.slane %v1926, 5
  %v3016 = vsel %vm2886, %v3014, %v3015
  %v3017 = vrot.slane %v3015, 4
  %v3018 = vrot.slane %v1971, 5
  %v3019 = vsel %vm2886, %v3017, %v3018
  %v3020 = vrot.slane %v2775, 5
  %v3021 = vrot.slane %v3020, 4
  %v3022 = vrot.slane %v1928, 5
  %v3023 = vsel %vm2886, %v3021, %v3022
  %v3024 = vrot.slane %v3022, 4
  %v3025 = vrot.slane %v1972, 5
  %v3026 = vsel %vm2886, %v3024, %v3025
  %v3027 = vrot.slane %v2776, 5
  %v3028 = vrot.slane %v3027, 4
  %v3029 = vrot.slane %v1930, 5
  %v3030 = vsel %vm2886, %v3028, %v3029
  %v3031 = vrot.slane %v3029, 4
  %v3032 = vrot.slane %v1973, 5
  %v3033 = vsel %vm2886, %v3031, %v3032
  %v3034 = vrot.slane %v2777, 5
  %v3035 = vrot.slane %v3034, 4
  %v3036 = vrot.slane %v1932, 5
  %v3037 = vsel %vm2886, %v3035, %v3036
  %v3038 = vrot.slane %v3036, 4
  %v3039 = vrot.slane %v1974, 5
  %v3040 = vsel %vm2886, %v3038, %v3039
  %v3041 = vrot.slane %v2778, 5
  %v3042 = vrot.slane %v3041, 4
  %v3043 = vrot.slane %v1934, 5
  %v3044 = vsel %vm2886, %v3042, %v3043
  %v3045 = vrot.slane %v3043, 4
  %v3046 = vrot.slane %v1975, 5
  %v3047 = vsel %vm2886, %v3045, %v3046
  %v3048 = vrot.slane %v2779, 5
  %v3049 = vrot.slane %v3048, 4
  %v3050 = vrot.slane %v1936, 5
  %v3051 = vsel %vm2886, %v3049, %v3050
  %v3052 = vrot.slane %v3050, 4
  %v3053 = vrot.slane %v1976, 5
  %v3054 = vsel %vm2886, %v3052, %v3053
  %v3055 = vrot.slane %v2780, 5
  %v3056 = vrot.slane %v3055, 4
  %v3057 = vrot.slane %v1938, 5
  %v3058 = vsel %vm2886, %v3056, %v3057
  %v3059 = vrot.slane %v3057, 4
  %v3060 = vrot.slane %v1977, 5
  %v3061 = vsel %vm2886, %v3059, %v3060
  %v3062 = vrot.slane %v2781, 5
  %v3063 = vrot.slane %v3062, 4
  %v3064 = vrot.slane %v1940, 5
  %v3065 = vsel %vm2886, %v3063, %v3064
  %v3066 = vrot.slane %v3064, 4
  %v3067 = vrot.slane %v1978, 5
  %v3068 = vsel %vm2886, %v3066, %v3067
  %v3069 = vrot.slane %v2782, 5
  %v3070 = vrot.slane %v3069, 4
  %v3071 = vrot.slane %v1942, 5
  %v3072 = vsel %vm2886, %v3070, %v3071
  %v3073 = vrot.slane %v3071, 4
  %v3074 = vrot.slane %v1979, 5
  %v3075 = vsel %vm2886, %v3073, %v3074
  %v3076 = vrot.slane %v2783, 5
  %v3077 = vrot.slane %v3076, 4
  %v3078 = vrot.slane %v1944, 5
  %v3079 = vsel %vm2886, %v3077, %v3078
  %v3080 = vrot.slane %v3078, 4
  %v3081 = vrot.slane %v1980, 5
  %v3082 = vsel %vm2886, %v3080, %v3081
  %v3083 = vrot.slane %v2784, 5
  %v3084 = vrot.slane %v3083, 4
  %v3085 = vrot.slane %v1946, 5
  %v3086 = vsel %vm2886, %v3084, %v3085
  %v3087 = vrot.slane %v3085, 4
  %v3088 = vrot.slane %v1981, 5
  %v3089 = vsel %vm2886, %v3087, %v3088
  %v3090 = vrot.slane %v2785, 5
  %v3091 = vrot.slane %v3090, 4
  %v3092 = vrot.slane %v1948, 5
  %v3093 = vsel %vm2886, %v3091, %v3092
  %v3094 = vrot.slane %v3092, 4
  %v3095 = vrot.slane %v1982, 5
  %v3096 = vsel %vm2886, %v3094, %v3095
  %v3097 = vrot.slane %v2786, 5
  %v3098 = vrot.slane %v3097, 4
  %v3099 = vrot.slane %v1950, 5
  %v3100 = vsel %vm2886, %v3098, %v3099
  %v3101 = vrot.slane %v3099, 4
  %v3102 = vrot.slane %v1983, 5
  %v3103 = vsel %vm2886, %v3101, %v3102
  %v3104 = vrot.slane %v2787, 5
  %v3105 = vrot.slane %v3104, 4
  %v3106 = vrot.slane %v1952, 5
  %v3107 = vsel %vm2886, %v3105, %v3106
  %v3108 = vrot.slane %v3106, 4
  %v3109 = vrot.slane %v1984, 5
  %v3110 = vsel %vm2886, %v3108, %v3109
  %v3111 = vld [vmem:[%s759] sm:$0xf]
  %v3112 = vld [vmem:[%s759 + $0x4] sm:$0xf]
  %v3113 = vld [vmem:[%s759 + $0xc] sm:$0xf]
  %v3114 = vld [vmem:[%s759 + $0x10] sm:$0xf]
  %v3115 = vld [vmem:[%s759 + $0x18] sm:$0xf]
  %v3116 = vld [vmem:[%s759 + $0x1c] sm:$0xf]
  %v3117 = vld [vmem:[%s759 + $0x24] sm:$0xf]
  %v3118 = vld [vmem:[%s759 + $0x28] sm:$0xf]
  %v3119 = vld [vmem:[%s759 + $0x30] sm:$0xf]
  %v3120 = vld [vmem:[%s759 + $0x34] sm:$0xf]
  %v3121 = vld [vmem:[%s759 + $0x3c] sm:$0xf]
  %v3122 = vld [vmem:[%s759 + $0x40] sm:$0xf]
  %v3123 = vld [vmem:[%s759 + $0x48] sm:$0xf]
  %v3124 = vld [vmem:[%s759 + $0x4c] sm:$0xf]
  %v3125 = vld [vmem:[%s759 + $0x54] sm:$0xf]
  %v3126 = vld [vmem:[%s759 + $0x58] sm:$0xf]
  %v3127 = vld [vmem:[%s759 + $0x60] sm:$0xf]
  %v3128 = vld [vmem:[%s759 + $0x64] sm:$0xf]
  %v3129 = vld [vmem:[%s759 + $0x6c] sm:$0xf]
  %v3130 = vld [vmem:[%s759 + $0x70] sm:$0xf]
  %v3131 = vld [vmem:[%s759 + $0x78] sm:$0xf]
  %v3132 = vld [vmem:[%s759 + $0x7c] sm:$0xf]
  %v3133 = vld [vmem:[%s759 + $0x84] sm:$0xf]
  %v3134 = vld [vmem:[%s759 + $0x88] sm:$0xf]
  %v3135 = vld [vmem:[%s759 + $0x90] sm:$0xf]
  %v3136 = vld [vmem:[%s759 + $0x94] sm:$0xf]
  %v3137 = vld [vmem:[%s759 + $0x9c] sm:$0xf]
  %v3138 = vld [vmem:[%s759 + $0xa0] sm:$0xf]
  %v3139 = vld [vmem:[%s759 + $0xa8] sm:$0xf]
  %v3140 = vld [vmem:[%s759 + $0xac] sm:$0xf]
  %v3141 = vld [vmem:[%s759 + $0xb4] sm:$0xf]
  %v3142 = vld [vmem:[%s759 + $0xb8] sm:$0xf]
  %v3143 = vld [vmem:[%s759 + $0xd8] sm:$0xf]
  %v3144 = vld [vmem:[%s759 + $0xdc] sm:$0xf]
  %v3145 = vld [vmem:[%s759 + $0xe4] sm:$0xf]
  %v3146 = vld [vmem:[%s759 + $0xe8] sm:$0xf]
  %v3147 = vld [vmem:[%s759 + $0xf0] sm:$0xf]
  %v3148 = vld [vmem:[%s759 + $0xf4] sm:$0xf]
  %v3149 = vld [vmem:[%s759 + $0xfc] sm:$0xf]
  %v3150 = vld [vmem:[%s759 + $0x100] sm:$0xf]
  %v3151 = vld [vmem:[%s759 + $0x108] sm:$0xf]
  %v3152 = vld [vmem:[%s759 + $0x10c] sm:$0xf]
  %v3153 = vld [vmem:[%s759 + $0x114] sm:$0xf]
  %v3154 = vld [vmem:[%s759 + $0x118] sm:$0xf]
  %v3155 = vld [vmem:[%s759 + $0x120] sm:$0xf]
  %v3156 = vld [vmem:[%s759 + $0x124] sm:$0xf]
  %v3157 = vld [vmem:[%s759 + $0x12c] sm:$0xf]
  %v3158 = vld [vmem:[%s759 + $0x130] sm:$0xf]
  %v3159 = vld [vmem:[%s759 + $0x138] sm:$0xf]
  %v3160 = vld [vmem:[%s759 + $0x13c] sm:$0xf]
  %v3161 = vld [vmem:[%s759 + $0x144] sm:$0xf]
  %v3162 = vld [vmem:[%s759 + $0x148] sm:$0xf]
  %v3163 = vld [vmem:[%s759 + $0x150] sm:$0xf]
  %v3164 = vld [vmem:[%s759 + $0x154] sm:$0xf]
  %v3165 = vld [vmem:[%s759 + $0x15c] sm:$0xf]
  %v3166 = vld [vmem:[%s759 + $0x160] sm:$0xf]
  %v3167 = vld [vmem:[%s759 + $0x168] sm:$0xf]
  %v3168 = vld [vmem:[%s759 + $0x16c] sm:$0xf]
  %v3169 = vld [vmem:[%s759 + $0x174] sm:$0xf]
  %v3170 = vld [vmem:[%s759 + $0x178] sm:$0xf]
  %v3171 = vld [vmem:[%s759 + $0x180] sm:$0xf]
  %v3172 = vld [vmem:[%s759 + $0x184] sm:$0xf]
  %v3173 = vld [vmem:[%s759 + $0x18c] sm:$0xf]
  %v3174 = vld [vmem:[%s759 + $0x190] sm:$0xf]
  %v3175 = vld [vmem:[%s759 + $0x8] sm:$0x1]
  %v3176 = vld [vmem:[%s759 + $0x14] sm:$0x1]
  %v3177 = vld [vmem:[%s759 + $0x20] sm:$0x1]
  %v3178 = vld [vmem:[%s759 + $0x2c] sm:$0x1]
  %v3179 = vld [vmem:[%s759 + $0x38] sm:$0x1]
  %v3180 = vld [vmem:[%s759 + $0x44] sm:$0x1]
  %v3181 = vld [vmem:[%s759 + $0x50] sm:$0x1]
  %v3182 = vld [vmem:[%s759 + $0x5c] sm:$0x1]
  %v3183 = vld [vmem:[%s759 + $0x68] sm:$0x1]
  %v3184 = vld [vmem:[%s759 + $0x74] sm:$0x1]
  %v3185 = vld [vmem:[%s759 + $0x80] sm:$0x1]
  %v3186 = vld [vmem:[%s759 + $0x8c] sm:$0x1]
  %v3187 = vld [vmem:[%s759 + $0x98] sm:$0x1]
  %v3188 = vld [vmem:[%s759 + $0xa4] sm:$0x1]
  %v3189 = vld [vmem:[%s759 + $0xb0] sm:$0x1]
  %v3190 = vld [vmem:[%s759 + $0xbc] sm:$0x1]
  %v3191 = vld [vmem:[%s759 + $0xe0] sm:$0x1]
  %v3192 = vld [vmem:[%s759 + $0xec] sm:$0x1]
  %v3193 = vld [vmem:[%s759 + $0xf8] sm:$0x1]
  %v3194 = vld [vmem:[%s759 + $0x104] sm:$0x1]
  %v3195 = vld [vmem:[%s759 + $0x110] sm:$0x1]
  %v3196 = vld [vmem:[%s759 + $0x11c] sm:$0x1]
  %v3197 = vld [vmem:[%s759 + $0x128] sm:$0x1]
  %v3198 = vld [vmem:[%s759 + $0x134] sm:$0x1]
  %v3199 = vld [vmem:[%s759 + $0x140] sm:$0x1]
  %v3200 = vld [vmem:[%s759 + $0x14c] sm:$0x1]
  %v3201 = vld [vmem:[%s759 + $0x158] sm:$0x1]
  %v3202 = vld [vmem:[%s759 + $0x164] sm:$0x1]
  %v3203 = vld [vmem:[%s759 + $0x170] sm:$0x1]
  %v3204 = vld [vmem:[%s759 + $0x17c] sm:$0x1]
  %v3205 = vld [vmem:[%s759 + $0x188] sm:$0x1]
  %v3206 = vld [vmem:[%s759 + $0x194] sm:$0x1]
  %v3208 = vshrl.u32 %v3111, 16
  %v3210 = vrot.slane %v3208, 4
  %v3211 = vshll.u32 %v3111, 16
  %v3213 = vrot.slane %v3211, 5
  %v3214 = vor.u32 %v3210, %v3213
  %v3215 = vrot.slane %v3214, 4
  %v3217 = vshll.u32 %v3112, 16
  %v3219 = vrot.slane %v3217, 5
  %v3220 = vsel %vm1987, %v3215, %v3219
  %v3221 = vshrl.u32 %v3112, 16
  %v3223 = vrot.slane %v3221, 4
  %v3224 = vor.u32 %v3223, %v3219
  %v3225 = vrot.slane %v3224, 4
  %v3227 = vshll.u32 %v3175, 16
  %v3229 = vrot.slane %v3227, 5
  %v3230 = vsel %vm1987, %v3225, %v3229
  %v3232 = vshrl.u32 %v3113, 16
  %v3234 = vrot.slane %v3232, 4
  %v3235 = vshll.u32 %v3113, 16
  %v3237 = vrot.slane %v3235, 5
  %v3238 = vor.u32 %v3234, %v3237
  %v3239 = vrot.slane %v3238, 4
  %v3241 = vshll.u32 %v3114, 16
  %v3243 = vrot.slane %v3241, 5
  %v3244 = vsel %vm1987, %v3239, %v3243
  %v3245 = vshrl.u32 %v3114, 16
  %v3247 = vrot.slane %v3245, 4
  %v3248 = vor.u32 %v3247, %v3243
  %v3249 = vrot.slane %v3248, 4
  %v3251 = vshll.u32 %v3176, 16
  %v3253 = vrot.slane %v3251, 5
  %v3254 = vsel %vm1987, %v3249, %v3253
  %v3256 = vshrl.u32 %v3115, 16
  %v3258 = vrot.slane %v3256, 4
  %v3259 = vshll.u32 %v3115, 16
  %v3261 = vrot.slane %v3259, 5
  %v3262 = vor.u32 %v3258, %v3261
  %v3263 = vrot.slane %v3262, 4
  %v3265 = vshll.u32 %v3116, 16
  %v3267 = vrot.slane %v3265, 5
  %v3268 = vsel %vm1987, %v3263, %v3267
  %v3269 = vshrl.u32 %v3116, 16
  %v3271 = vrot.slane %v3269, 4
  %v3272 = vor.u32 %v3271, %v3267
  %v3273 = vrot.slane %v3272, 4
  %v3275 = vshll.u32 %v3177, 16
  %v3277 = vrot.slane %v3275, 5
  %v3278 = vsel %vm1987, %v3273, %v3277
  %v3280 = vshrl.u32 %v3117, 16
  %v3282 = vrot.slane %v3280, 4
  %v3283 = vshll.u32 %v3117, 16
  %v3285 = vrot.slane %v3283, 5
  %v3286 = vor.u32 %v3282, %v3285
  %v3287 = vrot.slane %v3286, 4
  %v3289 = vshll.u32 %v3118, 16
  %v3291 = vrot.slane %v3289, 5
  %v3292 = vsel %vm1987, %v3287, %v3291
  %v3293 = vshrl.u32 %v3118, 16
  %v3295 = vrot.slane %v3293, 4
  %v3296 = vor.u32 %v3295, %v3291
  %v3297 = vrot.slane %v3296, 4
  %v3299 = vshll.u32 %v3178, 16
  %v3301 = vrot.slane %v3299, 5
  %v3302 = vsel %vm1987, %v3297, %v3301
  %v3304 = vshrl.u32 %v3119, 16
  %v3306 = vrot.slane %v3304, 4
  %v3307 = vshll.u32 %v3119, 16
  %v3309 = vrot.slane %v3307, 5
  %v3310 = vor.u32 %v3306, %v3309
  %v3311 = vrot.slane %v3310, 4
  %v3313 = vshll.u32 %v3120, 16
  %v3315 = vrot.slane %v3313, 5
  %v3316 = vsel %vm1987, %v3311, %v3315
  %v3317 = vshrl.u32 %v3120, 16
  %v3319 = vrot.slane %v3317, 4
  %v3320 = vor.u32 %v3319, %v3315
  %v3321 = vrot.slane %v3320, 4
  %v3323 = vshll.u32 %v3179, 16
  %v3325 = vrot.slane %v3323, 5
  %v3326 = vsel %vm1987, %v3321, %v3325
  %v3328 = vshrl.u32 %v3121, 16
  %v3330 = vrot.slane %v3328, 4
  %v3331 = vshll.u32 %v3121, 16
  %v3333 = vrot.slane %v3331, 5
  %v3334 = vor.u32 %v3330, %v3333
  %v3335 = vrot.slane %v3334, 4
  %v3337 = vshll.u32 %v3122, 16
  %v3339 = vrot.slane %v3337, 5
  %v3340 = vsel %vm1987, %v3335, %v3339
  %v3341 = vshrl.u32 %v3122, 16
  %v3343 = vrot.slane %v3341, 4
  %v3344 = vor.u32 %v3343, %v3339
  %v3345 = vrot.slane %v3344, 4
  %v3347 = vshll.u32 %v3180, 16
  %v3349 = vrot.slane %v3347, 5
  %v3350 = vsel %vm1987, %v3345, %v3349
  %v3352 = vshrl.u32 %v3123, 16
  %v3354 = vrot.slane %v3352, 4
  %v3355 = vshll.u32 %v3123, 16
  %v3357 = vrot.slane %v3355, 5
  %v3358 = vor.u32 %v3354, %v3357
  %v3359 = vrot.slane %v3358, 4
  %v3361 = vshll.u32 %v3124, 16
  %v3363 = vrot.slane %v3361, 5
  %v3364 = vsel %vm1987, %v3359, %v3363
  %v3365 = vshrl.u32 %v3124, 16
  %v3367 = vrot.slane %v3365, 4
  %v3368 = vor.u32 %v3367, %v3363
  %v3369 = vrot.slane %v3368, 4
  %v3371 = vshll.u32 %v3181, 16
  %v3373 = vrot.slane %v3371, 5
  %v3374 = vsel %vm1987, %v3369, %v3373
  %v3376 = vshrl.u32 %v3125, 16
  %v3378 = vrot.slane %v3376, 4
  %v3379 = vshll.u32 %v3125, 16
  %v3381 = vrot.slane %v3379, 5
  %v3382 = vor.u32 %v3378, %v3381
  %v3383 = vrot.slane %v3382, 4
  %v3385 = vshll.u32 %v3126, 16
  %v3387 = vrot.slane %v3385, 5
  %v3388 = vsel %vm1987, %v3383, %v3387
  %v3389 = vshrl.u32 %v3126, 16
  %v3391 = vrot.slane %v3389, 4
  %v3392 = vor.u32 %v3391, %v3387
  %v3393 = vrot.slane %v3392, 4
  %v3395 = vshll.u32 %v3182, 16
  %v3397 = vrot.slane %v3395, 5
  %v3398 = vsel %vm1987, %v3393, %v3397
  %v3400 = vshrl.u32 %v3127, 16
  %v3402 = vrot.slane %v3400, 4
  %v3403 = vshll.u32 %v3127, 16
  %v3405 = vrot.slane %v3403, 5
  %v3406 = vor.u32 %v3402, %v3405
  %v3407 = vrot.slane %v3406, 4
  %v3409 = vshll.u32 %v3128, 16
  %v3411 = vrot.slane %v3409, 5
  %v3412 = vsel %vm1987, %v3407, %v3411
  %v3413 = vshrl.u32 %v3128, 16
  %v3415 = vrot.slane %v3413, 4
  %v3416 = vor.u32 %v3415, %v3411
  %v3417 = vrot.slane %v3416, 4
  %v3419 = vshll.u32 %v3183, 16
  %v3421 = vrot.slane %v3419, 5
  %v3422 = vsel %vm1987, %v3417, %v3421
  %v3424 = vshrl.u32 %v3129, 16
  %v3426 = vrot.slane %v3424, 4
  %v3427 = vshll.u32 %v3129, 16
  %v3429 = vrot.slane %v3427, 5
  %v3430 = vor.u32 %v3426, %v3429
  %v3431 = vrot.slane %v3430, 4
  %v3433 = vshll.u32 %v3130, 16
  %v3435 = vrot.slane %v3433, 5
  %v3436 = vsel %vm1987, %v3431, %v3435
  %v3437 = vshrl.u32 %v3130, 16
  %v3439 = vrot.slane %v3437, 4
  %v3440 = vor.u32 %v3439, %v3435
  %v3441 = vrot.slane %v3440, 4
  %v3443 = vshll.u32 %v3184, 16
  %v3445 = vrot.slane %v3443, 5
  %v3446 = vsel %vm1987, %v3441, %v3445
  %v3448 = vshrl.u32 %v3131, 16
  %v3450 = vrot.slane %v3448, 4
  %v3451 = vshll.u32 %v3131, 16
  %v3453 = vrot.slane %v3451, 5
  %v3454 = vor.u32 %v3450, %v3453
  %v3455 = vrot.slane %v3454, 4
  %v3457 = vshll.u32 %v3132, 16
  %v3459 = vrot.slane %v3457, 5
  %v3460 = vsel %vm1987, %v3455, %v3459
  %v3461 = vshrl.u32 %v3132, 16
  %v3463 = vrot.slane %v3461, 4
  %v3464 = vor.u32 %v3463, %v3459
  %v3465 = vrot.slane %v3464, 4
  %v3467 = vshll.u32 %v3185, 16
  %v3469 = vrot.slane %v3467, 5
  %v3470 = vsel %vm1987, %v3465, %v3469
  %v3472 = vshrl.u32 %v3133, 16
  %v3474 = vrot.slane %v3472, 4
  %v3475 = vshll.u32 %v3133, 16
  %v3477 = vrot.slane %v3475, 5
  %v3478 = vor.u32 %v3474, %v3477
  %v3479 = vrot.slane %v3478, 4
  %v3481 = vshll.u32 %v3134, 16
  %v3483 = vrot.slane %v3481, 5
  %v3484 = vsel %vm1987, %v3479, %v3483
  %v3485 = vshrl.u32 %v3134, 16
  %v3487 = vrot.slane %v3485, 4
  %v3488 = vor.u32 %v3487, %v3483
  %v3489 = vrot.slane %v3488, 4
  %v3491 = vshll.u32 %v3186, 16
  %v3493 = vrot.slane %v3491, 5
  %v3494 = vsel %vm1987, %v3489, %v3493
  %v3496 = vshrl.u32 %v3135, 16
  %v3498 = vrot.slane %v3496, 4
  %v3499 = vshll.u32 %v3135, 16
  %v3501 = vrot.slane %v3499, 5
  %v3502 = vor.u32 %v3498, %v3501
  %v3503 = vrot.slane %v3502, 4
  %v3505 = vshll.u32 %v3136, 16
  %v3507 = vrot.slane %v3505, 5
  %v3508 = vsel %vm1987, %v3503, %v3507
  %v3509 = vshrl.u32 %v3136, 16
  %v3511 = vrot.slane %v3509, 4
  %v3512 = vor.u32 %v3511, %v3507
  %v3513 = vrot.slane %v3512, 4
  %v3515 = vshll.u32 %v3187, 16
  %v3517 = vrot.slane %v3515, 5
  %v3518 = vsel %vm1987, %v3513, %v3517
  %v3520 = vshrl.u32 %v3137, 16
  %v3522 = vrot.slane %v3520, 4
  %v3523 = vshll.u32 %v3137, 16
  %v3525 = vrot.slane %v3523, 5
  %v3526 = vor.u32 %v3522, %v3525
  %v3527 = vrot.slane %v3526, 4
  %v3529 = vshll.u32 %v3138, 16
  %v3531 = vrot.slane %v3529, 5
  %v3532 = vsel %vm1987, %v3527, %v3531
  %v3533 = vshrl.u32 %v3138, 16
  %v3535 = vrot.slane %v3533, 4
  %v3536 = vor.u32 %v3535, %v3531
  %v3537 = vrot.slane %v3536, 4
  %v3539 = vshll.u32 %v3188, 16
  %v3541 = vrot.slane %v3539, 5
  %v3542 = vsel %vm1987, %v3537, %v3541
  %v3544 = vshrl.u32 %v3139, 16
  %v3546 = vrot.slane %v3544, 4
  %v3547 = vshll.u32 %v3139, 16
  %v3549 = vrot.slane %v3547, 5
  %v3550 = vor.u32 %v3546, %v3549
  %v3551 = vrot.slane %v3550, 4
  %v3553 = vshll.u32 %v3140, 16
  %v3555 = vrot.slane %v3553, 5
  %v3556 = vsel %vm1987, %v3551, %v3555
  %v3557 = vshrl.u32 %v3140, 16
  %v3559 = vrot.slane %v3557, 4
  %v3560 = vor.u32 %v3559, %v3555
  %v3561 = vrot.slane %v3560, 4
  %v3563 = vshll.u32 %v3189, 16
  %v3565 = vrot.slane %v3563, 5
  %v3566 = vsel %vm1987, %v3561, %v3565
  %v3568 = vshrl.u32 %v3141, 16
  %v3570 = vrot.slane %v3568, 4
  %v3571 = vshll.u32 %v3141, 16
  %v3573 = vrot.slane %v3571, 5
  %v3574 = vor.u32 %v3570, %v3573
  %v3575 = vrot.slane %v3574, 4
  %v3577 = vshll.u32 %v3142, 16
  %v3579 = vrot.slane %v3577, 5
  %v3580 = vsel %vm1987, %v3575, %v3579
  %v3581 = vshrl.u32 %v3142, 16
  %v3583 = vrot.slane %v3581, 4
  %v3584 = vor.u32 %v3583, %v3579
  %v3585 = vrot.slane %v3584, 4
  %v3587 = vshll.u32 %v3190, 16
  %v3589 = vrot.slane %v3587, 5
  %v3590 = vsel %vm1987, %v3585, %v3589
  %v3592 = vshrl.u32 %v3143, 16
  %v3594 = vrot.slane %v3592, 4
  %v3595 = vshll.u32 %v3143, 16
  %v3597 = vrot.slane %v3595, 5
  %v3598 = vor.u32 %v3594, %v3597
  %v3599 = vrot.slane %v3598, 4
  %v3601 = vshll.u32 %v3144, 16
  %v3603 = vrot.slane %v3601, 5
  %v3604 = vsel %vm1987, %v3599, %v3603
  %v3605 = vshrl.u32 %v3144, 16
  %v3607 = vrot.slane %v3605, 4
  %v3608 = vor.u32 %v3607, %v3603
  %v3609 = vrot.slane %v3608, 4
  %v3611 = vshll.u32 %v3191, 16
  %v3613 = vrot.slane %v3611, 5
  %v3614 = vsel %vm1987, %v3609, %v3613
  %v3616 = vshrl.u32 %v3145, 16
  %v3618 = vrot.slane %v3616, 4
  %v3619 = vshll.u32 %v3145, 16
  %v3621 = vrot.slane %v3619, 5
  %v3622 = vor.u32 %v3618, %v3621
  %v3623 = vrot.slane %v3622, 4
  %v3625 = vshll.u32 %v3146, 16
  %v3627 = vrot.slane %v3625, 5
  %v3628 = vsel %vm1987, %v3623, %v3627
  %v3629 = vshrl.u32 %v3146, 16
  %v3631 = vrot.slane %v3629, 4
  %v3632 = vor.u32 %v3631, %v3627
  %v3633 = vrot.slane %v3632, 4
  %v3635 = vshll.u32 %v3192, 16
  %v3637 = vrot.slane %v3635, 5
  %v3638 = vsel %vm1987, %v3633, %v3637
  %v3640 = vshrl.u32 %v3147, 16
  %v3642 = vrot.slane %v3640, 4
  %v3643 = vshll.u32 %v3147, 16
  %v3645 = vrot.slane %v3643, 5
  %v3646 = vor.u32 %v3642, %v3645
  %v3647 = vrot.slane %v3646, 4
  %v3649 = vshll.u32 %v3148, 16
  %v3651 = vrot.slane %v3649, 5
  %v3652 = vsel %vm1987, %v3647, %v3651
  %v3653 = vshrl.u32 %v3148, 16
  %v3655 = vrot.slane %v3653, 4
  %v3656 = vor.u32 %v3655, %v3651
  %v3657 = vrot.slane %v3656, 4
  %v3659 = vshll.u32 %v3193, 16
  %v3661 = vrot.slane %v3659, 5
  %v3662 = vsel %vm1987, %v3657, %v3661
  %v3664 = vshrl.u32 %v3149, 16
  %v3666 = vrot.slane %v3664, 4
  %v3667 = vshll.u32 %v3149, 16
  %v3669 = vrot.slane %v3667, 5
  %v3670 = vor.u32 %v3666, %v3669
  %v3671 = vrot.slane %v3670, 4
  %v3673 = vshll.u32 %v3150, 16
  %v3675 = vrot.slane %v3673, 5
  %v3676 = vsel %vm1987, %v3671, %v3675
  %v3677 = vshrl.u32 %v3150, 16
  %v3679 = vrot.slane %v3677, 4
  %v3680 = vor.u32 %v3679, %v3675
  %v3681 = vrot.slane %v3680, 4
  %v3683 = vshll.u32 %v3194, 16
  %v3685 = vrot.slane %v3683, 5
  %v3686 = vsel %vm1987, %v3681, %v3685
  %v3688 = vshrl.u32 %v3151, 16
  %v3690 = vrot.slane %v3688, 4
  %v3691 = vshll.u32 %v3151, 16
  %v3693 = vrot.slane %v3691, 5
  %v3694 = vor.u32 %v3690, %v3693
  %v3695 = vrot.slane %v3694, 4
  %v3697 = vshll.u32 %v3152, 16
  %v3699 = vrot.slane %v3697, 5
  %v3700 = vsel %vm1987, %v3695, %v3699
  %v3701 = vshrl.u32 %v3152, 16
  %v3703 = vrot.slane %v3701, 4
  %v3704 = vor.u32 %v3703, %v3699
  %v3705 = vrot.slane %v3704, 4
  %v3707 = vshll.u32 %v3195, 16
  %v3709 = vrot.slane %v3707, 5
  %v3710 = vsel %vm1987, %v3705, %v3709
  %v3712 = vshrl.u32 %v3153, 16
  %v3714 = vrot.slane %v3712, 4
  %v3715 = vshll.u32 %v3153, 16
  %v3717 = vrot.slane %v3715, 5
  %v3718 = vor.u32 %v3714, %v3717
  %v3719 = vrot.slane %v3718, 4
  %v3721 = vshll.u32 %v3154, 16
  %v3723 = vrot.slane %v3721, 5
  %v3724 = vsel %vm1987, %v3719, %v3723
  %v3725 = vshrl.u32 %v3154, 16
  %v3727 = vrot.slane %v3725, 4
  %v3728 = vor.u32 %v3727, %v3723
  %v3729 = vrot.slane %v3728, 4
  %v3731 = vshll.u32 %v3196, 16
  %v3733 = vrot.slane %v3731, 5
  %v3734 = vsel %vm1987, %v3729, %v3733
  %v3736 = vshrl.u32 %v3155, 16
  %v3738 = vrot.slane %v3736, 4
  %v3739 = vshll.u32 %v3155, 16
  %v3741 = vrot.slane %v3739, 5
  %v3742 = vor.u32 %v3738, %v3741
  %v3743 = vrot.slane %v3742, 4
  %v3745 = vshll.u32 %v3156, 16
  %v3747 = vrot.slane %v3745, 5
  %v3748 = vsel %vm1987, %v3743, %v3747
  %v3749 = vshrl.u32 %v3156, 16
  %v3751 = vrot.slane %v3749, 4
  %v3752 = vor.u32 %v3751, %v3747
  %v3753 = vrot.slane %v3752, 4
  %v3755 = vshll.u32 %v3197, 16
  %v3757 = vrot.slane %v3755, 5
  %v3758 = vsel %vm1987, %v3753, %v3757
  %v3760 = vshrl.u32 %v3157, 16
  %v3762 = vrot.slane %v3760, 4
  %v3763 = vshll.u32 %v3157, 16
  %v3765 = vrot.slane %v3763, 5
  %v3766 = vor.u32 %v3762, %v3765
  %v3767 = vrot.slane %v3766, 4
  %v3769 = vshll.u32 %v3158, 16
  %v3771 = vrot.slane %v3769, 5
  %v3772 = vsel %vm1987, %v3767, %v3771
  %v3773 = vshrl.u32 %v3158, 16
  %v3775 = vrot.slane %v3773, 4
  %v3776 = vor.u32 %v3775, %v3771
  %v3777 = vrot.slane %v3776, 4
  %v3779 = vshll.u32 %v3198, 16
  %v3781 = vrot.slane %v3779, 5
  %v3782 = vsel %vm1987, %v3777, %v3781
  %v3784 = vshrl.u32 %v3159, 16
  %v3786 = vrot.slane %v3784, 4
  %v3787 = vshll.u32 %v3159, 16
  %v3789 = vrot.slane %v3787, 5
  %v3790 = vor.u32 %v3786, %v3789
  %v3791 = vrot.slane %v3790, 4
  %v3793 = vshll.u32 %v3160, 16
  %v3795 = vrot.slane %v3793, 5
  %v3796 = vsel %vm1987, %v3791, %v3795
  %v3797 = vshrl.u32 %v3160, 16
  %v3799 = vrot.slane %v3797, 4
  %v3800 = vor.u32 %v3799, %v3795
  %v3801 = vrot.slane %v3800, 4
  %v3803 = vshll.u32 %v3199, 16
  %v3805 = vrot.slane %v3803, 5
  %v3806 = vsel %vm1987, %v3801, %v3805
  %v3808 = vshrl.u32 %v3161, 16
  %v3810 = vrot.slane %v3808, 4
  %v3811 = vshll.u32 %v3161, 16
  %v3813 = vrot.slane %v3811, 5
  %v3814 = vor.u32 %v3810, %v3813
  %v3815 = vrot.slane %v3814, 4
  %v3817 = vshll.u32 %v3162, 16
  %v3819 = vrot.slane %v3817, 5
  %v3820 = vsel %vm1987, %v3815, %v3819
  %v3821 = vshrl.u32 %v3162, 16
  %v3823 = vrot.slane %v3821, 4
  %v3824 = vor.u32 %v3823, %v3819
  %v3825 = vrot.slane %v3824, 4
  %v3827 = vshll.u32 %v3200, 16
  %v3829 = vrot.slane %v3827, 5
  %v3830 = vsel %vm1987, %v3825, %v3829
  %v3832 = vshrl.u32 %v3163, 16
  %v3834 = vrot.slane %v3832, 4
  %v3835 = vshll.u32 %v3163, 16
  %v3837 = vrot.slane %v3835, 5
  %v3838 = vor.u32 %v3834, %v3837
  %v3839 = vrot.slane %v3838, 4
  %v3841 = vshll.u32 %v3164, 16
  %v3843 = vrot.slane %v3841, 5
  %v3844 = vsel %vm1987, %v3839, %v3843
  %v3845 = vshrl.u32 %v3164, 16
  %v3847 = vrot.slane %v3845, 4
  %v3848 = vor.u32 %v3847, %v3843
  %v3849 = vrot.slane %v3848, 4
  %v3851 = vshll.u32 %v3201, 16
  %v3853 = vrot.slane %v3851, 5
  %v3854 = vsel %vm1987, %v3849, %v3853
  %v3856 = vshrl.u32 %v3165, 16
  %v3858 = vrot.slane %v3856, 4
  %v3859 = vshll.u32 %v3165, 16
  %v3861 = vrot.slane %v3859, 5
  %v3862 = vor.u32 %v3858, %v3861
  %v3863 = vrot.slane %v3862, 4
  %v3865 = vshll.u32 %v3166, 16
  %v3867 = vrot.slane %v3865, 5
  %v3868 = vsel %vm1987, %v3863, %v3867
  %v3869 = vshrl.u32 %v3166, 16
  %v3871 = vrot.slane %v3869, 4
  %v3872 = vor.u32 %v3871, %v3867
  %v3873 = vrot.slane %v3872, 4
  %v3875 = vshll.u32 %v3202, 16
  %v3877 = vrot.slane %v3875, 5
  %v3878 = vsel %vm1987, %v3873, %v3877
  %v3880 = vshrl.u32 %v3167, 16
  %v3882 = vrot.slane %v3880, 4
  %v3883 = vshll.u32 %v3167, 16
  %v3885 = vrot.slane %v3883, 5
  %v3886 = vor.u32 %v3882, %v3885
  %v3887 = vrot.slane %v3886, 4
  %v3889 = vshll.u32 %v3168, 16
  %v3891 = vrot.slane %v3889, 5
  %v3892 = vsel %vm1987, %v3887, %v3891
  %v3893 = vshrl.u32 %v3168, 16
  %v3895 = vrot.slane %v3893, 4
  %v3896 = vor.u32 %v3895, %v3891
  %v3897 = vrot.slane %v3896, 4
  %v3899 = vshll.u32 %v3203, 16
  %v3901 = vrot.slane %v3899, 5
  %v3902 = vsel %vm1987, %v3897, %v3901
  %v3904 = vshrl.u32 %v3169, 16
  %v3906 = vrot.slane %v3904, 4
  %v3907 = vshll.u32 %v3169, 16
  %v3909 = vrot.slane %v3907, 5
  %v3910 = vor.u32 %v3906, %v3909
  %v3911 = vrot.slane %v3910, 4
  %v3913 = vshll.u32 %v3170, 16
  %v3915 = vrot.slane %v3913, 5
  %v3916 = vsel %vm1987, %v3911, %v3915
  %v3917 = vshrl.u32 %v3170, 16
  %v3919 = vrot.slane %v3917, 4
  %v3920 = vor.u32 %v3919, %v3915
  %v3921 = vrot.slane %v3920, 4
  %v3923 = vshll.u32 %v3204, 16
  %v3925 = vrot.slane %v3923, 5
  %v3926 = vsel %vm1987, %v3921, %v3925
  %v3928 = vshrl.u32 %v3171, 16
  %v3930 = vrot.slane %v3928, 4
  %v3931 = vshll.u32 %v3171, 16
  %v3933 = vrot.slane %v3931, 5
  %v3934 = vor.u32 %v3930, %v3933
  %v3935 = vrot.slane %v3934, 4
  %v3937 = vshll.u32 %v3172, 16
  %v3939 = vrot.slane %v3937, 5
  %v3940 = vsel %vm1987, %v3935, %v3939
  %v3941 = vshrl.u32 %v3172, 16
  %v3943 = vrot.slane %v3941, 4
  %v3944 = vor.u32 %v3943, %v3939
  %v3945 = vrot.slane %v3944, 4
  %v3947 = vshll.u32 %v3205, 16
  %v3949 = vrot.slane %v3947, 5
  %v3950 = vsel %vm1987, %v3945, %v3949
  %v3952 = vshrl.u32 %v3173, 16
  %v3954 = vrot.slane %v3952, 4
  %v3955 = vshll.u32 %v3173, 16
  %v3957 = vrot.slane %v3955, 5
  %v3958 = vor.u32 %v3954, %v3957
  %v3959 = vrot.slane %v3958, 4
  %v3961 = vshll.u32 %v3174, 16
  %v3963 = vrot.slane %v3961, 5
  %v3964 = vsel %vm1987, %v3959, %v3963
  %v3965 = vshrl.u32 %v3174, 16
  %v3967 = vrot.slane %v3965, 4
  %v3968 = vor.u32 %v3967, %v3963
  %v3969 = vrot.slane %v3968, 4
  %v3971 = vshll.u32 %v3206, 16
  %v3973 = vrot.slane %v3971, 5
  %v3974 = vsel %vm1987, %v3969, %v3973
  %v3975 = vld [vmem:[%s759] sm:$0xe]
  %v3976 = vld [vmem:[%s759 + $0xc] sm:$0xe]
  %v3977 = vld [vmem:[%s759 + $0x18] sm:$0xe]
  %v3978 = vld [vmem:[%s759 + $0x24] sm:$0xe]
  %v3979 = vld [vmem:[%s759 + $0x30] sm:$0xe]
  %v3980 = vld [vmem:[%s759 + $0x3c] sm:$0xe]
  %v3981 = vld [vmem:[%s759 + $0x48] sm:$0xe]
  %v3982 = vld [vmem:[%s759 + $0x54] sm:$0xe]
  %v3983 = vld [vmem:[%s759 + $0x60] sm:$0xe]
  %v3984 = vld [vmem:[%s759 + $0x6c] sm:$0xe]
  %v3985 = vld [vmem:[%s759 + $0x78] sm:$0xe]
  %v3986 = vld [vmem:[%s759 + $0x84] sm:$0xe]
  %v3987 = vld [vmem:[%s759 + $0x90] sm:$0xe]
  %v3988 = vld [vmem:[%s759 + $0x9c] sm:$0xe]
  %v3989 = vld [vmem:[%s759 + $0xa8] sm:$0xe]
  %v3990 = vld [vmem:[%s759 + $0xb4] sm:$0xe]
  %v3991 = vld [vmem:[%s759 + $0xd8] sm:$0xe]
  %v3992 = vld [vmem:[%s759 + $0xe4] sm:$0xe]
  %v3993 = vld [vmem:[%s759 + $0xf0] sm:$0xe]
  %v3994 = vld [vmem:[%s759 + $0xfc] sm:$0xe]
  %v3995 = vld [vmem:[%s759 + $0x108] sm:$0xe]
  %v3996 = vld [vmem:[%s759 + $0x114] sm:$0xe]
  %v3997 = vld [vmem:[%s759 + $0x120] sm:$0xe]
  %v3998 = vld [vmem:[%s759 + $0x12c] sm:$0xe]
  %v3999 = vld [vmem:[%s759 + $0x138] sm:$0xe]
  %v4000 = vld [vmem:[%s759 + $0x144] sm:$0xe]
  %v4001 = vld [vmem:[%s759 + $0x150] sm:$0xe]
  %v4002 = vld [vmem:[%s759 + $0x15c] sm:$0xe]
  %v4003 = vld [vmem:[%s759 + $0x168] sm:$0xe]
  %v4004 = vld [vmem:[%s759 + $0x174] sm:$0xe]
  %v4005 = vld [vmem:[%s759 + $0x180] sm:$0xe]
  %v4006 = vld [vmem:[%s759 + $0x18c] sm:$0xe]
  %v4103 = vrot.slane %v3975, 5
  %v4104 = vrot.slane %v4103, 4
  %v4105 = vrot.slane %v3112, 5
  %v4106 = vsel %vm2886, %v4104, %v4105
  %v4107 = vrot.slane %v4105, 4
  %v4108 = vrot.slane %v3175, 5
  %v4109 = vsel %vm2886, %v4107, %v4108
  %v4110 = vrot.slane %v3976, 5
  %v4111 = vrot.slane %v4110, 4
  %v4112 = vrot.slane %v3114, 5
  %v4113 = vsel %vm2886, %v4111, %v4112
  %v4114 = vrot.slane %v4112, 4
  %v4115 = vrot.slane %v3176, 5
  %v4116 = vsel %vm2886, %v4114, %v4115
  %v4117 = vrot.slane %v3977, 5
  %v4118 = vrot.slane %v4117, 4
  %v4119 = vrot.slane %v3116, 5
  %v4120 = vsel %vm2886, %v4118, %v4119
  %v4121 = vrot.slane %v4119, 4
  %v4122 = vrot.slane %v3177, 5
  %v4123 = vsel %vm2886, %v4121, %v4122
  %v4124 = vrot.slane %v3978, 5
  %v4125 = vrot.slane %v4124, 4
  %v4126 = vrot.slane %v3118, 5
  %v4127 = vsel %vm2886, %v4125, %v4126
  %v4128 = vrot.slane %v4126, 4
  %v4129 = vrot.slane %v3178, 5
  %v4130 = vsel %vm2886, %v4128, %v4129
  %v4131 = vrot.slane %v3979, 5
  %v4132 = vrot.slane %v4131, 4
  %v4133 = vrot.slane %v3120, 5
  %v4134 = vsel %vm2886, %v4132, %v4133
  %v4135 = vrot.slane %v4133, 4
  %v4136 = vrot.slane %v3179, 5
  %v4137 = vsel %vm2886, %v4135, %v4136
  %v4138 = vrot.slane %v3980, 5
  %v4139 = vrot.slane %v4138, 4
  %v4140 = vrot.slane %v3122, 5
  %v4141 = vsel %vm2886, %v4139, %v4140
  %v4142 = vrot.slane %v4140, 4
  %v4143 = vrot.slane %v3180, 5
  %v4144 = vsel %vm2886, %v4142, %v4143
  %v4145 = vrot.slane %v3981, 5
  %v4146 = vrot.slane %v4145, 4
  %v4147 = vrot.slane %v3124, 5
  %v4148 = vsel %vm2886, %v4146, %v4147
  %v4149 = vrot.slane %v4147, 4
  %v4150 = vrot.slane %v3181, 5
  %v4151 = vsel %vm2886, %v4149, %v4150
  %v4152 = vrot.slane %v3982, 5
  %v4153 = vrot.slane %v4152, 4
  %v4154 = vrot.slane %v3126, 5
  %v4155 = vsel %vm2886, %v4153, %v4154
  %v4156 = vrot.slane %v4154, 4
  %v4157 = vrot.slane %v3182, 5
  %v4158 = vsel %vm2886, %v4156, %v4157
  %v4159 = vrot.slane %v3983, 5
  %v4160 = vrot.slane %v4159, 4
  %v4161 = vrot.slane %v3128, 5
  %v4162 = vsel %vm2886, %v4160, %v4161
  %v4163 = vrot.slane %v4161, 4
  %v4164 = vrot.slane %v3183, 5
  %v4165 = vsel %vm2886, %v4163, %v4164
  %v4166 = vrot.slane %v3984, 5
  %v4167 = vrot.slane %v4166, 4
  %v4168 = vrot.slane %v3130, 5
  %v4169 = vsel %vm2886, %v4167, %v4168
  %v4170 = vrot.slane %v4168, 4
  %v4171 = vrot.slane %v3184, 5
  %v4172 = vsel %vm2886, %v4170, %v4171
  %v4173 = vrot.slane %v3985, 5
  %v4174 = vrot.slane %v4173, 4
  %v4175 = vrot.slane %v3132, 5
  %v4176 = vsel %vm2886, %v4174, %v4175
  %v4177 = vrot.slane %v4175, 4
  %v4178 = vrot.slane %v3185, 5
  %v4179 = vsel %vm2886, %v4177, %v4178
  %v4180 = vrot.slane %v3986, 5
  %v4181 = vrot.slane %v4180, 4
  %v4182 = vrot.slane %v3134, 5
  %v4183 = vsel %vm2886, %v4181, %v4182
  %v4184 = vrot.slane %v4182, 4
  %v4185 = vrot.slane %v3186, 5
  %v4186 = vsel %vm2886, %v4184, %v4185
  %v4187 = vrot.slane %v3987, 5
  %v4188 = vrot.slane %v4187, 4
  %v4189 = vrot.slane %v3136, 5
  %v4190 = vsel %vm2886, %v4188, %v4189
  %v4191 = vrot.slane %v4189, 4
  %v4192 = vrot.slane %v3187, 5
  %v4193 = vsel %vm2886, %v4191, %v4192
  %v4194 = vrot.slane %v3988, 5
  %v4195 = vrot.slane %v4194, 4
  %v4196 = vrot.slane %v3138, 5
  %v4197 = vsel %vm2886, %v4195, %v4196
  %v4198 = vrot.slane %v4196, 4
  %v4199 = vrot.slane %v3188, 5
  %v4200 = vsel %vm2886, %v4198, %v4199
  %v4201 = vrot.slane %v3989, 5
  %v4202 = vrot.slane %v4201, 4
  %v4203 = vrot.slane %v3140, 5
  %v4204 = vsel %vm2886, %v4202, %v4203
  %v4205 = vrot.slane %v4203, 4
  %v4206 = vrot.slane %v3189, 5
  %v4207 = vsel %vm2886, %v4205, %v4206
  %v4208 = vrot.slane %v3990, 5
  %v4209 = vrot.slane %v4208, 4
  %v4210 = vrot.slane %v3142, 5
  %v4211 = vsel %vm2886, %v4209, %v4210
  %v4212 = vrot.slane %v4210, 4
  %v4213 = vrot.slane %v3190, 5
  %v4214 = vsel %vm2886, %v4212, %v4213
  %v4215 = vrot.slane %v3991, 5
  %v4216 = vrot.slane %v4215, 4
  %v4217 = vrot.slane %v3144, 5
  %v4218 = vsel %vm2886, %v4216, %v4217
  %v4219 = vrot.slane %v4217, 4
  %v4220 = vrot.slane %v3191, 5
  %v4221 = vsel %vm2886, %v4219, %v4220
  %v4222 = vrot.slane %v3992, 5
  %v4223 = vrot.slane %v4222, 4
  %v4224 = vrot.slane %v3146, 5
  %v4225 = vsel %vm2886, %v4223, %v4224
  %v4226 = vrot.slane %v4224, 4
  %v4227 = vrot.slane %v3192, 5
  %v4228 = vsel %vm2886, %v4226, %v4227
  %v4229 = vrot.slane %v3993, 5
  %v4230 = vrot.slane %v4229, 4
  %v4231 = vrot.slane %v3148, 5
  %v4232 = vsel %vm2886, %v4230, %v4231
  %v4233 = vrot.slane %v4231, 4
  %v4234 = vrot.slane %v3193, 5
  %v4235 = vsel %vm2886, %v4233, %v4234
  %v4236 = vrot.slane %v3994, 5
  %v4237 = vrot.slane %v4236, 4
  %v4238 = vrot.slane %v3150, 5
  %v4239 = vsel %vm2886, %v4237, %v4238
  %v4240 = vrot.slane %v4238, 4
  %v4241 = vrot.slane %v3194, 5
  %v4242 = vsel %vm2886, %v4240, %v4241
  %v4243 = vrot.slane %v3995, 5
  %v4244 = vrot.slane %v4243, 4
  %v4245 = vrot.slane %v3152, 5
  %v4246 = vsel %vm2886, %v4244, %v4245
  %v4247 = vrot.slane %v4245, 4
  %v4248 = vrot.slane %v3195, 5
  %v4249 = vsel %vm2886, %v4247, %v4248
  %v4250 = vrot.slane %v3996, 5
  %v4251 = vrot.slane %v4250, 4
  %v4252 = vrot.slane %v3154, 5
  %v4253 = vsel %vm2886, %v4251, %v4252
  %v4254 = vrot.slane %v4252, 4
  %v4255 = vrot.slane %v3196, 5
  %v4256 = vsel %vm2886, %v4254, %v4255
  %v4257 = vrot.slane %v3997, 5
  %v4258 = vrot.slane %v4257, 4
  %v4259 = vrot.slane %v3156, 5
  %v4260 = vsel %vm2886, %v4258, %v4259
  %v4261 = vrot.slane %v4259, 4
  %v4262 = vrot.slane %v3197, 5
  %v4263 = vsel %vm2886, %v4261, %v4262
  %v4264 = vrot.slane %v3998, 5
  %v4265 = vrot.slane %v4264, 4
  %v4266 = vrot.slane %v3158, 5
  %v4267 = vsel %vm2886, %v4265, %v4266
  %v4268 = vrot.slane %v4266, 4
  %v4269 = vrot.slane %v3198, 5
  %v4270 = vsel %vm2886, %v4268, %v4269
  %v4271 = vrot.slane %v3999, 5
  %v4272 = vrot.slane %v4271, 4
  %v4273 = vrot.slane %v3160, 5
  %v4274 = vsel %vm2886, %v4272, %v4273
  %v4275 = vrot.slane %v4273, 4
  %v4276 = vrot.slane %v3199, 5
  %v4277 = vsel %vm2886, %v4275, %v4276
  %v4278 = vrot.slane %v4000, 5
  %v4279 = vrot.slane %v4278, 4
  %v4280 = vrot.slane %v3162, 5
  %v4281 = vsel %vm2886, %v4279, %v4280
  %v4282 = vrot.slane %v4280, 4
  %v4283 = vrot.slane %v3200, 5
  %v4284 = vsel %vm2886, %v4282, %v4283
  %v4285 = vrot.slane %v4001, 5
  %v4286 = vrot.slane %v4285, 4
  %v4287 = vrot.slane %v3164, 5
  %v4288 = vsel %vm2886, %v4286, %v4287
  %v4289 = vrot.slane %v4287, 4
  %v4290 = vrot.slane %v3201, 5
  %v4291 = vsel %vm2886, %v4289, %v4290
  %v4292 = vrot.slane %v4002, 5
  %v4293 = vrot.slane %v4292, 4
  %v4294 = vrot.slane %v3166, 5
  %v4295 = vsel %vm2886, %v4293, %v4294
  %v4296 = vrot.slane %v4294, 4
  %v4297 = vrot.slane %v3202, 5
  %v4298 = vsel %vm2886, %v4296, %v4297
  %v4299 = vrot.slane %v4003, 5
  %v4300 = vrot.slane %v4299, 4
  %v4301 = vrot.slane %v3168, 5
  %v4302 = vsel %vm2886, %v4300, %v4301
  %v4303 = vrot.slane %v4301, 4
  %v4304 = vrot.slane %v3203, 5
  %v4305 = vsel %vm2886, %v4303, %v4304
  %v4306 = vrot.slane %v4004, 5
  %v4307 = vrot.slane %v4306, 4
  %v4308 = vrot.slane %v3170, 5
  %v4309 = vsel %vm2886, %v4307, %v4308
  %v4310 = vrot.slane %v4308, 4
  %v4311 = vrot.slane %v3204, 5
  %v4312 = vsel %vm2886, %v4310, %v4311
  %v4313 = vrot.slane %v4005, 5
  %v4314 = vrot.slane %v4313, 4
  %v4315 = vrot.slane %v3172, 5
  %v4316 = vsel %vm2886, %v4314, %v4315
  %v4317 = vrot.slane %v4315, 4
  %v4318 = vrot.slane %v3205, 5
  %v4319 = vsel %vm2886, %v4317, %v4318
  %v4320 = vrot.slane %v4006, 5
  %v4321 = vrot.slane %v4320, 4
  %v4322 = vrot.slane %v3174, 5
  %v4323 = vsel %vm2886, %v4321, %v4322
  %v4324 = vrot.slane %v4322, 4
  %v4325 = vrot.slane %v3206, 5
  %v4326 = vsel %vm2886, %v4324, %v4325
  %s4327 = scalar_lea.vmem [#allocation2], 24
  %v4328 = vld [vmem:[%s4327] sm:$0xf]
  %v4329 = vld [vmem:[%s4327 + $0x4] sm:$0xf]
  %v4330 = vld [vmem:[%s4327 + $0xc] sm:$0xf]
  %v4331 = vld [vmem:[%s4327 + $0x10] sm:$0xf]
  %v4332 = vld [vmem:[%s4327 + $0x18] sm:$0xf]
  %v4333 = vld [vmem:[%s4327 + $0x1c] sm:$0xf]
  %v4334 = vld [vmem:[%s4327 + $0x24] sm:$0xf]
  %v4335 = vld [vmem:[%s4327 + $0x28] sm:$0xf]
  %v4336 = vld [vmem:[%s4327 + $0x30] sm:$0xf]
  %v4337 = vld [vmem:[%s4327 + $0x34] sm:$0xf]
  %v4338 = vld [vmem:[%s4327 + $0x3c] sm:$0xf]
  %v4339 = vld [vmem:[%s4327 + $0x40] sm:$0xf]
  %v4340 = vld [vmem:[%s4327 + $0x48] sm:$0xf]
  %v4341 = vld [vmem:[%s4327 + $0x4c] sm:$0xf]
  %v4342 = vld [vmem:[%s4327 + $0x54] sm:$0xf]
  %v4343 = vld [vmem:[%s4327 + $0x58] sm:$0xf]
  %v4344 = vld [vmem:[%s4327 + $0x60] sm:$0xf]
  %v4345 = vld [vmem:[%s4327 + $0x64] sm:$0xf]
  %v4346 = vld [vmem:[%s4327 + $0x6c] sm:$0xf]
  %v4347 = vld [vmem:[%s4327 + $0x70] sm:$0xf]
  %v4348 = vld [vmem:[%s4327 + $0x78] sm:$0xf]
  %v4349 = vld [vmem:[%s4327 + $0x7c] sm:$0xf]
  %v4350 = vld [vmem:[%s4327 + $0x84] sm:$0xf]
  %v4351 = vld [vmem:[%s4327 + $0x88] sm:$0xf]
  %v4352 = vld [vmem:[%s4327 + $0x90] sm:$0xf]
  %v4353 = vld [vmem:[%s4327 + $0x94] sm:$0xf]
  %v4354 = vld [vmem:[%s4327 + $0x9c] sm:$0xf]
  %v4355 = vld [vmem:[%s4327 + $0xa0] sm:$0xf]
  %v4356 = vld [vmem:[%s4327 + $0xa8] sm:$0xf]
  %v4357 = vld [vmem:[%s4327 + $0xac] sm:$0xf]
  %v4358 = vld [vmem:[%s4327 + $0xb4] sm:$0xf]
  %v4359 = vld [vmem:[%s4327 + $0xb8] sm:$0xf]
  %v4360 = vld [vmem:[%s4327 + $0xd8] sm:$0xf]
  %v4361 = vld [vmem:[%s4327 + $0xdc] sm:$0xf]
  %v4362 = vld [vmem:[%s4327 + $0xe4] sm:$0xf]
  %v4363 = vld [vmem:[%s4327 + $0xe8] sm:$0xf]
  %v4364 = vld [vmem:[%s4327 + $0xf0] sm:$0xf]
  %v4365 = vld [vmem:[%s4327 + $0xf4] sm:$0xf]
  %v4366 = vld [vmem:[%s4327 + $0xfc] sm:$0xf]
  %v4367 = vld [vmem:[%s4327 + $0x100] sm:$0xf]
  %v4368 = vld [vmem:[%s4327 + $0x108] sm:$0xf]
  %v4369 = vld [vmem:[%s4327 + $0x10c] sm:$0xf]
  %v4370 = vld [vmem:[%s4327 + $0x114] sm:$0xf]
  %v4371 = vld [vmem:[%s4327 + $0x118] sm:$0xf]
  %v4372 = vld [vmem:[%s4327 + $0x120] sm:$0xf]
  %v4373 = vld [vmem:[%s4327 + $0x124] sm:$0xf]
  %v4374 = vld [vmem:[%s4327 + $0x12c] sm:$0xf]
  %v4375 = vld [vmem:[%s4327 + $0x130] sm:$0xf]
  %v4376 = vld [vmem:[%s4327 + $0x138] sm:$0xf]
  %v4377 = vld [vmem:[%s4327 + $0x13c] sm:$0xf]
  %v4378 = vld [vmem:[%s4327 + $0x144] sm:$0xf]
  %v4379 = vld [vmem:[%s4327 + $0x148] sm:$0xf]
  %v4380 = vld [vmem:[%s4327 + $0x150] sm:$0xf]
  %v4381 = vld [vmem:[%s4327 + $0x154] sm:$0xf]
  %v4382 = vld [vmem:[%s4327 + $0x15c] sm:$0xf]
  %v4383 = vld [vmem:[%s4327 + $0x160] sm:$0xf]
  %v4384 = vld [vmem:[%s4327 + $0x168] sm:$0xf]
  %v4385 = vld [vmem:[%s4327 + $0x16c] sm:$0xf]
  %v4386 = vld [vmem:[%s4327 + $0x174] sm:$0xf]
  %v4387 = vld [vmem:[%s4327 + $0x178] sm:$0xf]
  %v4388 = vld [vmem:[%s4327 + $0x180] sm:$0xf]
  %v4389 = vld [vmem:[%s4327 + $0x184] sm:$0xf]
  %v4390 = vld [vmem:[%s4327 + $0x18c] sm:$0xf]
  %v4391 = vld [vmem:[%s4327 + $0x190] sm:$0xf]
  %v4392 = vld [vmem:[%s4327 + $0x8] sm:$0x1]
  %v4393 = vld [vmem:[%s4327 + $0x14] sm:$0x1]
  %v4394 = vld [vmem:[%s4327 + $0x20] sm:$0x1]
  %v4395 = vld [vmem:[%s4327 + $0x2c] sm:$0x1]
  %v4396 = vld [vmem:[%s4327 + $0x38] sm:$0x1]
  %v4397 = vld [vmem:[%s4327 + $0x44] sm:$0x1]
  %v4398 = vld [vmem:[%s4327 + $0x50] sm:$0x1]
  %v4399 = vld [vmem:[%s4327 + $0x5c] sm:$0x1]
  %v4400 = vld [vmem:[%s4327 + $0x68] sm:$0x1]
  %v4401 = vld [vmem:[%s4327 + $0x74] sm:$0x1]
  %v4402 = vld [vmem:[%s4327 + $0x80] sm:$0x1]
  %v4403 = vld [vmem:[%s4327 + $0x8c] sm:$0x1]
  %v4404 = vld [vmem:[%s4327 + $0x98] sm:$0x1]
  %v4405 = vld [vmem:[%s4327 + $0xa4] sm:$0x1]
  %v4406 = vld [vmem:[%s4327 + $0xb0] sm:$0x1]
  %v4407 = vld [vmem:[%s4327 + $0xbc] sm:$0x1]
  %v4408 = vld [vmem:[%s4327 + $0xe0] sm:$0x1]
  %v4409 = vld [vmem:[%s4327 + $0xec] sm:$0x1]
  %v4410 = vld [vmem:[%s4327 + $0xf8] sm:$0x1]
  %v4411 = vld [vmem:[%s4327 + $0x104] sm:$0x1]
  %v4412 = vld [vmem:[%s4327 + $0x110] sm:$0x1]
  %v4413 = vld [vmem:[%s4327 + $0x11c] sm:$0x1]
  %v4414 = vld [vmem:[%s4327 + $0x128] sm:$0x1]
  %v4415 = vld [vmem:[%s4327 + $0x134] sm:$0x1]
  %v4416 = vld [vmem:[%s4327 + $0x140] sm:$0x1]
  %v4417 = vld [vmem:[%s4327 + $0x14c] sm:$0x1]
  %v4418 = vld [vmem:[%s4327 + $0x158] sm:$0x1]
  %v4419 = vld [vmem:[%s4327 + $0x164] sm:$0x1]
  %v4420 = vld [vmem:[%s4327 + $0x170] sm:$0x1]
  %v4421 = vld [vmem:[%s4327 + $0x17c] sm:$0x1]
  %v4422 = vld [vmem:[%s4327 + $0x188] sm:$0x1]
  %v4423 = vld [vmem:[%s4327 + $0x194] sm:$0x1]
  %v4425 = vshrl.u32 %v4328, 16
  %v4427 = vrot.slane %v4425, 4
  %v4428 = vshll.u32 %v4328, 16
  %v4430 = vrot.slane %v4428, 5
  %v4431 = vor.u32 %v4427, %v4430
  %v4432 = vrot.slane %v4431, 4
  %v4434 = vshll.u32 %v4329, 16
  %v4436 = vrot.slane %v4434, 5
  %v4437 = vsel %vm1987, %v4432, %v4436
  %v4438 = vshrl.u32 %v4329, 16
  %v4440 = vrot.slane %v4438, 4
  %v4441 = vor.u32 %v4440, %v4436
  %v4442 = vrot.slane %v4441, 4
  %v4444 = vshll.u32 %v4392, 16
  %v4446 = vrot.slane %v4444, 5
  %v4447 = vsel %vm1987, %v4442, %v4446
  %v4449 = vshrl.u32 %v4330, 16
  %v4451 = vrot.slane %v4449, 4
  %v4452 = vshll.u32 %v4330, 16
  %v4454 = vrot.slane %v4452, 5
  %v4455 = vor.u32 %v4451, %v4454
  %v4456 = vrot.slane %v4455, 4
  %v4458 = vshll.u32 %v4331, 16
  %v4460 = vrot.slane %v4458, 5
  %v4461 = vsel %vm1987, %v4456, %v4460
  %v4462 = vshrl.u32 %v4331, 16
  %v4464 = vrot.slane %v4462, 4
  %v4465 = vor.u32 %v4464, %v4460
  %v4466 = vrot.slane %v4465, 4
  %v4468 = vshll.u32 %v4393, 16
  %v4470 = vrot.slane %v4468, 5
  %v4471 = vsel %vm1987, %v4466, %v4470
  %v4473 = vshrl.u32 %v4332, 16
  %v4475 = vrot.slane %v4473, 4
  %v4476 = vshll.u32 %v4332, 16
  %v4478 = vrot.slane %v4476, 5
  %v4479 = vor.u32 %v4475, %v4478
  %v4480 = vrot.slane %v4479, 4
  %v4482 = vshll.u32 %v4333, 16
  %v4484 = vrot.slane %v4482, 5
  %v4485 = vsel %vm1987, %v4480, %v4484
  %v4486 = vshrl.u32 %v4333, 16
  %v4488 = vrot.slane %v4486, 4
  %v4489 = vor.u32 %v4488, %v4484
  %v4490 = vrot.slane %v4489, 4
  %v4492 = vshll.u32 %v4394, 16
  %v4494 = vrot.slane %v4492, 5
  %v4495 = vsel %vm1987, %v4490, %v4494
  %v4497 = vshrl.u32 %v4334, 16
  %v4499 = vrot.slane %v4497, 4
  %v4500 = vshll.u32 %v4334, 16
  %v4502 = vrot.slane %v4500, 5
  %v4503 = vor.u32 %v4499, %v4502
  %v4504 = vrot.slane %v4503, 4
  %v4506 = vshll.u32 %v4335, 16
  %v4508 = vrot.slane %v4506, 5
  %v4509 = vsel %vm1987, %v4504, %v4508
  %v4510 = vshrl.u32 %v4335, 16
  %v4512 = vrot.slane %v4510, 4
  %v4513 = vor.u32 %v4512, %v4508
  %v4514 = vrot.slane %v4513, 4
  %v4516 = vshll.u32 %v4395, 16
  %v4518 = vrot.slane %v4516, 5
  %v4519 = vsel %vm1987, %v4514, %v4518
  %v4521 = vshrl.u32 %v4336, 16
  %v4523 = vrot.slane %v4521, 4
  %v4524 = vshll.u32 %v4336, 16
  %v4526 = vrot.slane %v4524, 5
  %v4527 = vor.u32 %v4523, %v4526
  %v4528 = vrot.slane %v4527, 4
  %v4530 = vshll.u32 %v4337, 16
  %v4532 = vrot.slane %v4530, 5
  %v4533 = vsel %vm1987, %v4528, %v4532
  %v4534 = vshrl.u32 %v4337, 16
  %v4536 = vrot.slane %v4534, 4
  %v4537 = vor.u32 %v4536, %v4532
  %v4538 = vrot.slane %v4537, 4
  %v4540 = vshll.u32 %v4396, 16
  %v4542 = vrot.slane %v4540, 5
  %v4543 = vsel %vm1987, %v4538, %v4542
  %v4545 = vshrl.u32 %v4338, 16
  %v4547 = vrot.slane %v4545, 4
  %v4548 = vshll.u32 %v4338, 16
  %v4550 = vrot.slane %v4548, 5
  %v4551 = vor.u32 %v4547, %v4550
  %v4552 = vrot.slane %v4551, 4
  %v4554 = vshll.u32 %v4339, 16
  %v4556 = vrot.slane %v4554, 5
  %v4557 = vsel %vm1987, %v4552, %v4556
  %v4558 = vshrl.u32 %v4339, 16
  %v4560 = vrot.slane %v4558, 4
  %v4561 = vor.u32 %v4560, %v4556
  %v4562 = vrot.slane %v4561, 4
  %v4564 = vshll.u32 %v4397, 16
  %v4566 = vrot.slane %v4564, 5
  %v4567 = vsel %vm1987, %v4562, %v4566
  %v4569 = vshrl.u32 %v4340, 16
  %v4571 = vrot.slane %v4569, 4
  %v4572 = vshll.u32 %v4340, 16
  %v4574 = vrot.slane %v4572, 5
  %v4575 = vor.u32 %v4571, %v4574
  %v4576 = vrot.slane %v4575, 4
  %v4578 = vshll.u32 %v4341, 16
  %v4580 = vrot.slane %v4578, 5
  %v4581 = vsel %vm1987, %v4576, %v4580
  %v4582 = vshrl.u32 %v4341, 16
  %v4584 = vrot.slane %v4582, 4
  %v4585 = vor.u32 %v4584, %v4580
  %v4586 = vrot.slane %v4585, 4
  %v4588 = vshll.u32 %v4398, 16
  %v4590 = vrot.slane %v4588, 5
  %v4591 = vsel %vm1987, %v4586, %v4590
  %v4593 = vshrl.u32 %v4342, 16
  %v4595 = vrot.slane %v4593, 4
  %v4596 = vshll.u32 %v4342, 16
  %v4598 = vrot.slane %v4596, 5
  %v4599 = vor.u32 %v4595, %v4598
  %v4600 = vrot.slane %v4599, 4
  %v4602 = vshll.u32 %v4343, 16
  %v4604 = vrot.slane %v4602, 5
  %v4605 = vsel %vm1987, %v4600, %v4604
  %v4606 = vshrl.u32 %v4343, 16
  %v4608 = vrot.slane %v4606, 4
  %v4609 = vor.u32 %v4608, %v4604
  %v4610 = vrot.slane %v4609, 4
  %v4612 = vshll.u32 %v4399, 16
  %v4614 = vrot.slane %v4612, 5
  %v4615 = vsel %vm1987, %v4610, %v4614
  %v4617 = vshrl.u32 %v4344, 16
  %v4619 = vrot.slane %v4617, 4
  %v4620 = vshll.u32 %v4344, 16
  %v4622 = vrot.slane %v4620, 5
  %v4623 = vor.u32 %v4619, %v4622
  %v4624 = vrot.slane %v4623, 4
  %v4626 = vshll.u32 %v4345, 16
  %v4628 = vrot.slane %v4626, 5
  %v4629 = vsel %vm1987, %v4624, %v4628
  %v4630 = vshrl.u32 %v4345, 16
  %v4632 = vrot.slane %v4630, 4
  %v4633 = vor.u32 %v4632, %v4628
  %v4634 = vrot.slane %v4633, 4
  %v4636 = vshll.u32 %v4400, 16
  %v4638 = vrot.slane %v4636, 5
  %v4639 = vsel %vm1987, %v4634, %v4638
  %v4641 = vshrl.u32 %v4346, 16
  %v4643 = vrot.slane %v4641, 4
  %v4644 = vshll.u32 %v4346, 16
  %v4646 = vrot.slane %v4644, 5
  %v4647 = vor.u32 %v4643, %v4646
  %v4648 = vrot.slane %v4647, 4
  %v4650 = vshll.u32 %v4347, 16
  %v4652 = vrot.slane %v4650, 5
  %v4653 = vsel %vm1987, %v4648, %v4652
  %v4654 = vshrl.u32 %v4347, 16
  %v4656 = vrot.slane %v4654, 4
  %v4657 = vor.u32 %v4656, %v4652
  %v4658 = vrot.slane %v4657, 4
  %v4660 = vshll.u32 %v4401, 16
  %v4662 = vrot.slane %v4660, 5
  %v4663 = vsel %vm1987, %v4658, %v4662
  %v4665 = vshrl.u32 %v4348, 16
  %v4667 = vrot.slane %v4665, 4
  %v4668 = vshll.u32 %v4348, 16
  %v4670 = vrot.slane %v4668, 5
  %v4671 = vor.u32 %v4667, %v4670
  %v4672 = vrot.slane %v4671, 4
  %v4674 = vshll.u32 %v4349, 16
  %v4676 = vrot.slane %v4674, 5
  %v4677 = vsel %vm1987, %v4672, %v4676
  %v4678 = vshrl.u32 %v4349, 16
  %v4680 = vrot.slane %v4678, 4
  %v4681 = vor.u32 %v4680, %v4676
  %v4682 = vrot.slane %v4681, 4
  %v4684 = vshll.u32 %v4402, 16
  %v4686 = vrot.slane %v4684, 5
  %v4687 = vsel %vm1987, %v4682, %v4686
  %v4689 = vshrl.u32 %v4350, 16
  %v4691 = vrot.slane %v4689, 4
  %v4692 = vshll.u32 %v4350, 16
  %v4694 = vrot.slane %v4692, 5
  %v4695 = vor.u32 %v4691, %v4694
  %v4696 = vrot.slane %v4695, 4
  %v4698 = vshll.u32 %v4351, 16
  %v4700 = vrot.slane %v4698, 5
  %v4701 = vsel %vm1987, %v4696, %v4700
  %v4702 = vshrl.u32 %v4351, 16
  %v4704 = vrot.slane %v4702, 4
  %v4705 = vor.u32 %v4704, %v4700
  %v4706 = vrot.slane %v4705, 4
  %v4708 = vshll.u32 %v4403, 16
  %v4710 = vrot.slane %v4708, 5
  %v4711 = vsel %vm1987, %v4706, %v4710
  %v4713 = vshrl.u32 %v4352, 16
  %v4715 = vrot.slane %v4713, 4
  %v4716 = vshll.u32 %v4352, 16
  %v4718 = vrot.slane %v4716, 5
  %v4719 = vor.u32 %v4715, %v4718
  %v4720 = vrot.slane %v4719, 4
  %v4722 = vshll.u32 %v4353, 16
  %v4724 = vrot.slane %v4722, 5
  %v4725 = vsel %vm1987, %v4720, %v4724
  %v4726 = vshrl.u32 %v4353, 16
  %v4728 = vrot.slane %v4726, 4
  %v4729 = vor.u32 %v4728, %v4724
  %v4730 = vrot.slane %v4729, 4
  %v4732 = vshll.u32 %v4404, 16
  %v4734 = vrot.slane %v4732, 5
  %v4735 = vsel %vm1987, %v4730, %v4734
  %v4737 = vshrl.u32 %v4354, 16
  %v4739 = vrot.slane %v4737, 4
  %v4740 = vshll.u32 %v4354, 16
  %v4742 = vrot.slane %v4740, 5
  %v4743 = vor.u32 %v4739, %v4742
  %v4744 = vrot.slane %v4743, 4
  %v4746 = vshll.u32 %v4355, 16
  %v4748 = vrot.slane %v4746, 5
  %v4749 = vsel %vm1987, %v4744, %v4748
  %v4750 = vshrl.u32 %v4355, 16
  %v4752 = vrot.slane %v4750, 4
  %v4753 = vor.u32 %v4752, %v4748
  %v4754 = vrot.slane %v4753, 4
  %v4756 = vshll.u32 %v4405, 16
  %v4758 = vrot.slane %v4756, 5
  %v4759 = vsel %vm1987, %v4754, %v4758
  %v4761 = vshrl.u32 %v4356, 16
  %v4763 = vrot.slane %v4761, 4
  %v4764 = vshll.u32 %v4356, 16
  %v4766 = vrot.slane %v4764, 5
  %v4767 = vor.u32 %v4763, %v4766
  %v4768 = vrot.slane %v4767, 4
  %v4770 = vshll.u32 %v4357, 16
  %v4772 = vrot.slane %v4770, 5
  %v4773 = vsel %vm1987, %v4768, %v4772
  %v4774 = vshrl.u32 %v4357, 16
  %v4776 = vrot.slane %v4774, 4
  %v4777 = vor.u32 %v4776, %v4772
  %v4778 = vrot.slane %v4777, 4
  %v4780 = vshll.u32 %v4406, 16
  %v4782 = vrot.slane %v4780, 5
  %v4783 = vsel %vm1987, %v4778, %v4782
  %v4785 = vshrl.u32 %v4358, 16
  %v4787 = vrot.slane %v4785, 4
  %v4788 = vshll.u32 %v4358, 16
  %v4790 = vrot.slane %v4788, 5
  %v4791 = vor.u32 %v4787, %v4790
  %v4792 = vrot.slane %v4791, 4
  %v4794 = vshll.u32 %v4359, 16
  %v4796 = vrot.slane %v4794, 5
  %v4797 = vsel %vm1987, %v4792, %v4796
  %v4798 = vshrl.u32 %v4359, 16
  %v4800 = vrot.slane %v4798, 4
  %v4801 = vor.u32 %v4800, %v4796
  %v4802 = vrot.slane %v4801, 4
  %v4804 = vshll.u32 %v4407, 16
  %v4806 = vrot.slane %v4804, 5
  %v4807 = vsel %vm1987, %v4802, %v4806
  %v4809 = vshrl.u32 %v4360, 16
  %v4811 = vrot.slane %v4809, 4
  %v4812 = vshll.u32 %v4360, 16
  %v4814 = vrot.slane %v4812, 5
  %v4815 = vor.u32 %v4811, %v4814
  %v4816 = vrot.slane %v4815, 4
  %v4818 = vshll.u32 %v4361, 16
  %v4820 = vrot.slane %v4818, 5
  %v4821 = vsel %vm1987, %v4816, %v4820
  %v4822 = vshrl.u32 %v4361, 16
  %v4824 = vrot.slane %v4822, 4
  %v4825 = vor.u32 %v4824, %v4820
  %v4826 = vrot.slane %v4825, 4
  %v4828 = vshll.u32 %v4408, 16
  %v4830 = vrot.slane %v4828, 5
  %v4831 = vsel %vm1987, %v4826, %v4830
  %v4833 = vshrl.u32 %v4362, 16
  %v4835 = vrot.slane %v4833, 4
  %v4836 = vshll.u32 %v4362, 16
  %v4838 = vrot.slane %v4836, 5
  %v4839 = vor.u32 %v4835, %v4838
  %v4840 = vrot.slane %v4839, 4
  %v4842 = vshll.u32 %v4363, 16
  %v4844 = vrot.slane %v4842, 5
  %v4845 = vsel %vm1987, %v4840, %v4844
  %v4846 = vshrl.u32 %v4363, 16
  %v4848 = vrot.slane %v4846, 4
  %v4849 = vor.u32 %v4848, %v4844
  %v4850 = vrot.slane %v4849, 4
  %v4852 = vshll.u32 %v4409, 16
  %v4854 = vrot.slane %v4852, 5
  %v4855 = vsel %vm1987, %v4850, %v4854
  %v4857 = vshrl.u32 %v4364, 16
  %v4859 = vrot.slane %v4857, 4
  %v4860 = vshll.u32 %v4364, 16
  %v4862 = vrot.slane %v4860, 5
  %v4863 = vor.u32 %v4859, %v4862
  %v4864 = vrot.slane %v4863, 4
  %v4866 = vshll.u32 %v4365, 16
  %v4868 = vrot.slane %v4866, 5
  %v4869 = vsel %vm1987, %v4864, %v4868
  %v4870 = vshrl.u32 %v4365, 16
  %v4872 = vrot.slane %v4870, 4
  %v4873 = vor.u32 %v4872, %v4868
  %v4874 = vrot.slane %v4873, 4
  %v4876 = vshll.u32 %v4410, 16
  %v4878 = vrot.slane %v4876, 5
  %v4879 = vsel %vm1987, %v4874, %v4878
  %v4881 = vshrl.u32 %v4366, 16
  %v4883 = vrot.slane %v4881, 4
  %v4884 = vshll.u32 %v4366, 16
  %v4886 = vrot.slane %v4884, 5
  %v4887 = vor.u32 %v4883, %v4886
  %v4888 = vrot.slane %v4887, 4
  %v4890 = vshll.u32 %v4367, 16
  %v4892 = vrot.slane %v4890, 5
  %v4893 = vsel %vm1987, %v4888, %v4892
  %v4894 = vshrl.u32 %v4367, 16
  %v4896 = vrot.slane %v4894, 4
  %v4897 = vor.u32 %v4896, %v4892
  %v4898 = vrot.slane %v4897, 4
  %v4900 = vshll.u32 %v4411, 16
  %v4902 = vrot.slane %v4900, 5
  %v4903 = vsel %vm1987, %v4898, %v4902
  %v4905 = vshrl.u32 %v4368, 16
  %v4907 = vrot.slane %v4905, 4
  %v4908 = vshll.u32 %v4368, 16
  %v4910 = vrot.slane %v4908, 5
  %v4911 = vor.u32 %v4907, %v4910
  %v4912 = vrot.slane %v4911, 4
  %v4914 = vshll.u32 %v4369, 16
  %v4916 = vrot.slane %v4914, 5
  %v4917 = vsel %vm1987, %v4912, %v4916
  %v4918 = vshrl.u32 %v4369, 16
  %v4920 = vrot.slane %v4918, 4
  %v4921 = vor.u32 %v4920, %v4916
  %v4922 = vrot.slane %v4921, 4
  %v4924 = vshll.u32 %v4412, 16
  %v4926 = vrot.slane %v4924, 5
  %v4927 = vsel %vm1987, %v4922, %v4926
  %v4929 = vshrl.u32 %v4370, 16
  %v4931 = vrot.slane %v4929, 4
  %v4932 = vshll.u32 %v4370, 16
  %v4934 = vrot.slane %v4932, 5
  %v4935 = vor.u32 %v4931, %v4934
  %v4936 = vrot.slane %v4935, 4
  %v4938 = vshll.u32 %v4371, 16
  %v4940 = vrot.slane %v4938, 5
  %v4941 = vsel %vm1987, %v4936, %v4940
  %v4942 = vshrl.u32 %v4371, 16
  %v4944 = vrot.slane %v4942, 4
  %v4945 = vor.u32 %v4944, %v4940
  %v4946 = vrot.slane %v4945, 4
  %v4948 = vshll.u32 %v4413, 16
  %v4950 = vrot.slane %v4948, 5
  %v4951 = vsel %vm1987, %v4946, %v4950
  %v4953 = vshrl.u32 %v4372, 16
  %v4955 = vrot.slane %v4953, 4
  %v4956 = vshll.u32 %v4372, 16
  %v4958 = vrot.slane %v4956, 5
  %v4959 = vor.u32 %v4955, %v4958
  %v4960 = vrot.slane %v4959, 4
  %v4962 = vshll.u32 %v4373, 16
  %v4964 = vrot.slane %v4962, 5
  %v4965 = vsel %vm1987, %v4960, %v4964
  %v4966 = vshrl.u32 %v4373, 16
  %v4968 = vrot.slane %v4966, 4
  %v4969 = vor.u32 %v4968, %v4964
  %v4970 = vrot.slane %v4969, 4
  %v4972 = vshll.u32 %v4414, 16
  %v4974 = vrot.slane %v4972, 5
  %v4975 = vsel %vm1987, %v4970, %v4974
  %v4977 = vshrl.u32 %v4374, 16
  %v4979 = vrot.slane %v4977, 4
  %v4980 = vshll.u32 %v4374, 16
  %v4982 = vrot.slane %v4980, 5
  %v4983 = vor.u32 %v4979, %v4982
  %v4984 = vrot.slane %v4983, 4
  %v4986 = vshll.u32 %v4375, 16
  %v4988 = vrot.slane %v4986, 5
  %v4989 = vsel %vm1987, %v4984, %v4988
  %v4990 = vshrl.u32 %v4375, 16
  %v4992 = vrot.slane %v4990, 4
  %v4993 = vor.u32 %v4992, %v4988
  %v4994 = vrot.slane %v4993, 4
  %v4996 = vshll.u32 %v4415, 16
  %v4998 = vrot.slane %v4996, 5
  %v4999 = vsel %vm1987, %v4994, %v4998
  %v5001 = vshrl.u32 %v4376, 16
  %v5003 = vrot.slane %v5001, 4
  %v5004 = vshll.u32 %v4376, 16
  %v5006 = vrot.slane %v5004, 5
  %v5007 = vor.u32 %v5003, %v5006
  %v5008 = vrot.slane %v5007, 4
  %v5010 = vshll.u32 %v4377, 16
  %v5012 = vrot.slane %v5010, 5
  %v5013 = vsel %vm1987, %v5008, %v5012
  %v5014 = vshrl.u32 %v4377, 16
  %v5016 = vrot.slane %v5014, 4
  %v5017 = vor.u32 %v5016, %v5012
  %v5018 = vrot.slane %v5017, 4
  %v5020 = vshll.u32 %v4416, 16
  %v5022 = vrot.slane %v5020, 5
  %v5023 = vsel %vm1987, %v5018, %v5022
  %v5025 = vshrl.u32 %v4378, 16
  %v5027 = vrot.slane %v5025, 4
  %v5028 = vshll.u32 %v4378, 16
  %v5030 = vrot.slane %v5028, 5
  %v5031 = vor.u32 %v5027, %v5030
  %v5032 = vrot.slane %v5031, 4
  %v5034 = vshll.u32 %v4379, 16
  %v5036 = vrot.slane %v5034, 5
  %v5037 = vsel %vm1987, %v5032, %v5036
  %v5038 = vshrl.u32 %v4379, 16
  %v5040 = vrot.slane %v5038, 4
  %v5041 = vor.u32 %v5040, %v5036
  %v5042 = vrot.slane %v5041, 4
  %v5044 = vshll.u32 %v4417, 16
  %v5046 = vrot.slane %v5044, 5
  %v5047 = vsel %vm1987, %v5042, %v5046
  %v5049 = vshrl.u32 %v4380, 16
  %v5051 = vrot.slane %v5049, 4
  %v5052 = vshll.u32 %v4380, 16
  %v5054 = vrot.slane %v5052, 5
  %v5055 = vor.u32 %v5051, %v5054
  %v5056 = vrot.slane %v5055, 4
  %v5058 = vshll.u32 %v4381, 16
  %v5060 = vrot.slane %v5058, 5
  %v5061 = vsel %vm1987, %v5056, %v5060
  %v5062 = vshrl.u32 %v4381, 16
  %v5064 = vrot.slane %v5062, 4
  %v5065 = vor.u32 %v5064, %v5060
  %v5066 = vrot.slane %v5065, 4
  %v5068 = vshll.u32 %v4418, 16
  %v5070 = vrot.slane %v5068, 5
  %v5071 = vsel %vm1987, %v5066, %v5070
  %v5073 = vshrl.u32 %v4382, 16
  %v5075 = vrot.slane %v5073, 4
  %v5076 = vshll.u32 %v4382, 16
  %v5078 = vrot.slane %v5076, 5
  %v5079 = vor.u32 %v5075, %v5078
  %v5080 = vrot.slane %v5079, 4
  %v5082 = vshll.u32 %v4383, 16
  %v5084 = vrot.slane %v5082, 5
  %v5085 = vsel %vm1987, %v5080, %v5084
  %v5086 = vshrl.u32 %v4383, 16
  %v5088 = vrot.slane %v5086, 4
  %v5089 = vor.u32 %v5088, %v5084
  %v5090 = vrot.slane %v5089, 4
  %v5092 = vshll.u32 %v4419, 16
  %v5094 = vrot.slane %v5092, 5
  %v5095 = vsel %vm1987, %v5090, %v5094
  %v5097 = vshrl.u32 %v4384, 16
  %v5099 = vrot.slane %v5097, 4
  %v5100 = vshll.u32 %v4384, 16
  %v5102 = vrot.slane %v5100, 5
  %v5103 = vor.u32 %v5099, %v5102
  %v5104 = vrot.slane %v5103, 4
  %v5106 = vshll.u32 %v4385, 16
  %v5108 = vrot.slane %v5106, 5
  %v5109 = vsel %vm1987, %v5104, %v5108
  %v5110 = vshrl.u32 %v4385, 16
  %v5112 = vrot.slane %v5110, 4
  %v5113 = vor.u32 %v5112, %v5108
  %v5114 = vrot.slane %v5113, 4
  %v5116 = vshll.u32 %v4420, 16
  %v5118 = vrot.slane %v5116, 5
  %v5119 = vsel %vm1987, %v5114, %v5118
  %v5121 = vshrl.u32 %v4386, 16
  %v5123 = vrot.slane %v5121, 4
  %v5124 = vshll.u32 %v4386, 16
  %v5126 = vrot.slane %v5124, 5
  %v5127 = vor.u32 %v5123, %v5126
  %v5128 = vrot.slane %v5127, 4
  %v5130 = vshll.u32 %v4387, 16
  %v5132 = vrot.slane %v5130, 5
  %v5133 = vsel %vm1987, %v5128, %v5132
  %v5134 = vshrl.u32 %v4387, 16
  %v5136 = vrot.slane %v5134, 4
  %v5137 = vor.u32 %v5136, %v5132
  %v5138 = vrot.slane %v5137, 4
  %v5140 = vshll.u32 %v4421, 16
  %v5142 = vrot.slane %v5140, 5
  %v5143 = vsel %vm1987, %v5138, %v5142
  %v5145 = vshrl.u32 %v4388, 16
  %v5147 = vrot.slane %v5145, 4
  %v5148 = vshll.u32 %v4388, 16
  %v5150 = vrot.slane %v5148, 5
  %v5151 = vor.u32 %v5147, %v5150
  %v5152 = vrot.slane %v5151, 4
  %v5154 = vshll.u32 %v4389, 16
  %v5156 = vrot.slane %v5154, 5
  %v5157 = vsel %vm1987, %v5152, %v5156
  %v5158 = vshrl.u32 %v4389, 16
  %v5160 = vrot.slane %v5158, 4
  %v5161 = vor.u32 %v5160, %v5156
  %v5162 = vrot.slane %v5161, 4
  %v5164 = vshll.u32 %v4422, 16
  %v5166 = vrot.slane %v5164, 5
  %v5167 = vsel %vm1987, %v5162, %v5166
  %v5169 = vshrl.u32 %v4390, 16
  %v5171 = vrot.slane %v5169, 4
  %v5172 = vshll.u32 %v4390, 16
  %v5174 = vrot.slane %v5172, 5
  %v5175 = vor.u32 %v5171, %v5174
  %v5176 = vrot.slane %v5175, 4
  %v5178 = vshll.u32 %v4391, 16
  %v5180 = vrot.slane %v5178, 5
  %v5181 = vsel %vm1987, %v5176, %v5180
  %v5182 = vshrl.u32 %v4391, 16
  %v5184 = vrot.slane %v5182, 4
  %v5185 = vor.u32 %v5184, %v5180
  %v5186 = vrot.slane %v5185, 4
  %v5188 = vshll.u32 %v4423, 16
  %v5190 = vrot.slane %v5188, 5
  %v5191 = vsel %vm1987, %v5186, %v5190
  %v5192 = vld [vmem:[%s4327] sm:$0xe]
  %v5193 = vld [vmem:[%s4327 + $0xc] sm:$0xe]
  %v5194 = vld [vmem:[%s4327 + $0x18] sm:$0xe]
  %v5195 = vld [vmem:[%s4327 + $0x24] sm:$0xe]
  %v5196 = vld [vmem:[%s4327 + $0x30] sm:$0xe]
  %v5197 = vld [vmem:[%s4327 + $0x3c] sm:$0xe]
  %v5198 = vld [vmem:[%s4327 + $0x48] sm:$0xe]
  %v5199 = vld [vmem:[%s4327 + $0x54] sm:$0xe]
  %v5200 = vld [vmem:[%s4327 + $0x60] sm:$0xe]
  %v5201 = vld [vmem:[%s4327 + $0x6c] sm:$0xe]
  %v5202 = vld [vmem:[%s4327 + $0x78] sm:$0xe]
  %v5203 = vld [vmem:[%s4327 + $0x84] sm:$0xe]
  %v5204 = vld [vmem:[%s4327 + $0x90] sm:$0xe]
  %v5205 = vld [vmem:[%s4327 + $0x9c] sm:$0xe]
  %v5206 = vld [vmem:[%s4327 + $0xa8] sm:$0xe]
  %v5207 = vld [vmem:[%s4327 + $0xb4] sm:$0xe]
  %v5208 = vld [vmem:[%s4327 + $0xd8] sm:$0xe]
  %v5209 = vld [vmem:[%s4327 + $0xe4] sm:$0xe]
  %v5210 = vld [vmem:[%s4327 + $0xf0] sm:$0xe]
  %v5211 = vld [vmem:[%s4327 + $0xfc] sm:$0xe]
  %v5212 = vld [vmem:[%s4327 + $0x108] sm:$0xe]
  %v5213 = vld [vmem:[%s4327 + $0x114] sm:$0xe]
  %v5214 = vld [vmem:[%s4327 + $0x120] sm:$0xe]
  %v5215 = vld [vmem:[%s4327 + $0x12c] sm:$0xe]
  %v5216 = vld [vmem:[%s4327 + $0x138] sm:$0xe]
  %v5217 = vld [vmem:[%s4327 + $0x144] sm:$0xe]
  %v5218 = vld [vmem:[%s4327 + $0x150] sm:$0xe]
  %v5219 = vld [vmem:[%s4327 + $0x15c] sm:$0xe]
  %v5220 = vld [vmem:[%s4327 + $0x168] sm:$0xe]
  %v5221 = vld [vmem:[%s4327 + $0x174] sm:$0xe]
  %v5222 = vld [vmem:[%s4327 + $0x180] sm:$0xe]
  %v5223 = vld [vmem:[%s4327 + $0x18c] sm:$0xe]
  %v5320 = vrot.slane %v5192, 5
  %v5321 = vrot.slane %v5320, 4
  %v5322 = vrot.slane %v4329, 5
  %v5323 = vsel %vm2886, %v5321, %v5322
  %v5324 = vrot.slane %v5322, 4
  %v5325 = vrot.slane %v4392, 5
  %v5326 = vsel %vm2886, %v5324, %v5325
  %v5327 = vrot.slane %v5193, 5
  %v5328 = vrot.slane %v5327, 4
  %v5329 = vrot.slane %v4331, 5
  %v5330 = vsel %vm2886, %v5328, %v5329
  %v5331 = vrot.slane %v5329, 4
  %v5332 = vrot.slane %v4393, 5
  %v5333 = vsel %vm2886, %v5331, %v5332
  %v5334 = vrot.slane %v5194, 5
  %v5335 = vrot.slane %v5334, 4
  %v5336 = vrot.slane %v4333, 5
  %v5337 = vsel %vm2886, %v5335, %v5336
  %v5338 = vrot.slane %v5336, 4
  %v5339 = vrot.slane %v4394, 5
  %v5340 = vsel %vm2886, %v5338, %v5339
  %v5341 = vrot.slane %v5195, 5
  %v5342 = vrot.slane %v5341, 4
  %v5343 = vrot.slane %v4335, 5
  %v5344 = vsel %vm2886, %v5342, %v5343
  %v5345 = vrot.slane %v5343, 4
  %v5346 = vrot.slane %v4395, 5
  %v5347 = vsel %vm2886, %v5345, %v5346
  %v5348 = vrot.slane %v5196, 5
  %v5349 = vrot.slane %v5348, 4
  %v5350 = vrot.slane %v4337, 5
  %v5351 = vsel %vm2886, %v5349, %v5350
  %v5352 = vrot.slane %v5350, 4
  %v5353 = vrot.slane %v4396, 5
  %v5354 = vsel %vm2886, %v5352, %v5353
  %v5355 = vrot.slane %v5197, 5
  %v5356 = vrot.slane %v5355, 4
  %v5357 = vrot.slane %v4339, 5
  %v5358 = vsel %vm2886, %v5356, %v5357
  %v5359 = vrot.slane %v5357, 4
  %v5360 = vrot.slane %v4397, 5
  %v5361 = vsel %vm2886, %v5359, %v5360
  %v5362 = vrot.slane %v5198, 5
  %v5363 = vrot.slane %v5362, 4
  %v5364 = vrot.slane %v4341, 5
  %v5365 = vsel %vm2886, %v5363, %v5364
  %v5366 = vrot.slane %v5364, 4
  %v5367 = vrot.slane %v4398, 5
  %v5368 = vsel %vm2886, %v5366, %v5367
  %v5369 = vrot.slane %v5199, 5
  %v5370 = vrot.slane %v5369, 4
  %v5371 = vrot.slane %v4343, 5
  %v5372 = vsel %vm2886, %v5370, %v5371
  %v5373 = vrot.slane %v5371, 4
  %v5374 = vrot.slane %v4399, 5
  %v5375 = vsel %vm2886, %v5373, %v5374
  %v5376 = vrot.slane %v5200, 5
  %v5377 = vrot.slane %v5376, 4
  %v5378 = vrot.slane %v4345, 5
  %v5379 = vsel %vm2886, %v5377, %v5378
  %v5380 = vrot.slane %v5378, 4
  %v5381 = vrot.slane %v4400, 5
  %v5382 = vsel %vm2886, %v5380, %v5381
  %v5383 = vrot.slane %v5201, 5
  %v5384 = vrot.slane %v5383, 4
  %v5385 = vrot.slane %v4347, 5
  %v5386 = vsel %vm2886, %v5384, %v5385
  %v5387 = vrot.slane %v5385, 4
  %v5388 = vrot.slane %v4401, 5
  %v5389 = vsel %vm2886, %v5387, %v5388
  %v5390 = vrot.slane %v5202, 5
  %v5391 = vrot.slane %v5390, 4
  %v5392 = vrot.slane %v4349, 5
  %v5393 = vsel %vm2886, %v5391, %v5392
  %v5394 = vrot.slane %v5392, 4
  %v5395 = vrot.slane %v4402, 5
  %v5396 = vsel %vm2886, %v5394, %v5395
  %v5397 = vrot.slane %v5203, 5
  %v5398 = vrot.slane %v5397, 4
  %v5399 = vrot.slane %v4351, 5
  %v5400 = vsel %vm2886, %v5398, %v5399
  %v5401 = vrot.slane %v5399, 4
  %v5402 = vrot.slane %v4403, 5
  %v5403 = vsel %vm2886, %v5401, %v5402
  %v5404 = vrot.slane %v5204, 5
  %v5405 = vrot.slane %v5404, 4
  %v5406 = vrot.slane %v4353, 5
  %v5407 = vsel %vm2886, %v5405, %v5406
  %v5408 = vrot.slane %v5406, 4
  %v5409 = vrot.slane %v4404, 5
  %v5410 = vsel %vm2886, %v5408, %v5409
  %v5411 = vrot.slane %v5205, 5
  %v5412 = vrot.slane %v5411, 4
  %v5413 = vrot.slane %v4355, 5
  %v5414 = vsel %vm2886, %v5412, %v5413
  %v5415 = vrot.slane %v5413, 4
  %v5416 = vrot.slane %v4405, 5
  %v5417 = vsel %vm2886, %v5415, %v5416
  %v5418 = vrot.slane %v5206, 5
  %v5419 = vrot.slane %v5418, 4
  %v5420 = vrot.slane %v4357, 5
  %v5421 = vsel %vm2886, %v5419, %v5420
  %v5422 = vrot.slane %v5420, 4
  %v5423 = vrot.slane %v4406, 5
  %v5424 = vsel %vm2886, %v5422, %v5423
  %v5425 = vrot.slane %v5207, 5
  %v5426 = vrot.slane %v5425, 4
  %v5427 = vrot.slane %v4359, 5
  %v5428 = vsel %vm2886, %v5426, %v5427
  %v5429 = vrot.slane %v5427, 4
  %v5430 = vrot.slane %v4407, 5
  %v5431 = vsel %vm2886, %v5429, %v5430
  %v5432 = vrot.slane %v5208, 5
  %v5433 = vrot.slane %v5432, 4
  %v5434 = vrot.slane %v4361, 5
  %v5435 = vsel %vm2886, %v5433, %v5434
  %v5436 = vrot.slane %v5434, 4
  %v5437 = vrot.slane %v4408, 5
  %v5438 = vsel %vm2886, %v5436, %v5437
  %v5439 = vrot.slane %v5209, 5
  %v5440 = vrot.slane %v5439, 4
  %v5441 = vrot.slane %v4363, 5
  %v5442 = vsel %vm2886, %v5440, %v5441
  %v5443 = vrot.slane %v5441, 4
  %v5444 = vrot.slane %v4409, 5
  %v5445 = vsel %vm2886, %v5443, %v5444
  %v5446 = vrot.slane %v5210, 5
  %v5447 = vrot.slane %v5446, 4
  %v5448 = vrot.slane %v4365, 5
  %v5449 = vsel %vm2886, %v5447, %v5448
  %v5450 = vrot.slane %v5448, 4
  %v5451 = vrot.slane %v4410, 5
  %v5452 = vsel %vm2886, %v5450, %v5451
  %v5453 = vrot.slane %v5211, 5
  %v5454 = vrot.slane %v5453, 4
  %v5455 = vrot.slane %v4367, 5
  %v5456 = vsel %vm2886, %v5454, %v5455
  %v5457 = vrot.slane %v5455, 4
  %v5458 = vrot.slane %v4411, 5
  %v5459 = vsel %vm2886, %v5457, %v5458
  %v5460 = vrot.slane %v5212, 5
  %v5461 = vrot.slane %v5460, 4
  %v5462 = vrot.slane %v4369, 5
  %v5463 = vsel %vm2886, %v5461, %v5462
  %v5464 = vrot.slane %v5462, 4
  %v5465 = vrot.slane %v4412, 5
  %v5466 = vsel %vm2886, %v5464, %v5465
  %v5467 = vrot.slane %v5213, 5
  %v5468 = vrot.slane %v5467, 4
  %v5469 = vrot.slane %v4371, 5
  %v5470 = vsel %vm2886, %v5468, %v5469
  %v5471 = vrot.slane %v5469, 4
  %v5472 = vrot.slane %v4413, 5
  %v5473 = vsel %vm2886, %v5471, %v5472
  %v5474 = vrot.slane %v5214, 5
  %v5475 = vrot.slane %v5474, 4
  %v5476 = vrot.slane %v4373, 5
  %v5477 = vsel %vm2886, %v5475, %v5476
  %v5478 = vrot.slane %v5476, 4
  %v5479 = vrot.slane %v4414, 5
  %v5480 = vsel %vm2886, %v5478, %v5479
  %v5481 = vrot.slane %v5215, 5
  %v5482 = vrot.slane %v5481, 4
  %v5483 = vrot.slane %v4375, 5
  %v5484 = vsel %vm2886, %v5482, %v5483
  %v5485 = vrot.slane %v5483, 4
  %v5486 = vrot.slane %v4415, 5
  %v5487 = vsel %vm2886, %v5485, %v5486
  %v5488 = vrot.slane %v5216, 5
  %v5489 = vrot.slane %v5488, 4
  %v5490 = vrot.slane %v4377, 5
  %v5491 = vsel %vm2886, %v5489, %v5490
  %v5492 = vrot.slane %v5490, 4
  %v5493 = vrot.slane %v4416, 5
  %v5494 = vsel %vm2886, %v5492, %v5493
  %v5495 = vrot.slane %v5217, 5
  %v5496 = vrot.slane %v5495, 4
  %v5497 = vrot.slane %v4379, 5
  %v5498 = vsel %vm2886, %v5496, %v5497
  %v5499 = vrot.slane %v5497, 4
  %v5500 = vrot.slane %v4417, 5
  %v5501 = vsel %vm2886, %v5499, %v5500
  %v5502 = vrot.slane %v5218, 5
  %v5503 = vrot.slane %v5502, 4
  %v5504 = vrot.slane %v4381, 5
  %v5505 = vsel %vm2886, %v5503, %v5504
  %v5506 = vrot.slane %v5504, 4
  %v5507 = vrot.slane %v4418, 5
  %v5508 = vsel %vm2886, %v5506, %v5507
  %v5509 = vrot.slane %v5219, 5
  %v5510 = vrot.slane %v5509, 4
  %v5511 = vrot.slane %v4383, 5
  %v5512 = vsel %vm2886, %v5510, %v5511
  %v5513 = vrot.slane %v5511, 4
  %v5514 = vrot.slane %v4419, 5
  %v5515 = vsel %vm2886, %v5513, %v5514
  %v5516 = vrot.slane %v5220, 5
  %v5517 = vrot.slane %v5516, 4
  %v5518 = vrot.slane %v4385, 5
  %v5519 = vsel %vm2886, %v5517, %v5518
  %v5520 = vrot.slane %v5518, 4
  %v5521 = vrot.slane %v4420, 5
  %v5522 = vsel %vm2886, %v5520, %v5521
  %v5523 = vrot.slane %v5221, 5
  %v5524 = vrot.slane %v5523, 4
  %v5525 = vrot.slane %v4387, 5
  %v5526 = vsel %vm2886, %v5524, %v5525
  %v5527 = vrot.slane %v5525, 4
  %v5528 = vrot.slane %v4421, 5
  %v5529 = vsel %vm2886, %v5527, %v5528
  %v5530 = vrot.slane %v5222, 5
  %v5531 = vrot.slane %v5530, 4
  %v5532 = vrot.slane %v4389, 5
  %v5533 = vsel %vm2886, %v5531, %v5532
  %v5534 = vrot.slane %v5532, 4
  %v5535 = vrot.slane %v4422, 5
  %v5536 = vsel %vm2886, %v5534, %v5535
  %v5537 = vrot.slane %v5223, 5
  %v5538 = vrot.slane %v5537, 4
  %v5539 = vrot.slane %v4391, 5
  %v5540 = vsel %vm2886, %v5538, %v5539
  %v5541 = vrot.slane %v5539, 4
  %v5542 = vrot.slane %v4423, 5
  %v5543 = vsel %vm2886, %v5541, %v5542
  %v5576 = vunpack.c.l.b16 %v1889
  %v5577 = vunpack.c.l.b16 %v1890
  %v5578 = vunpack.c.l.b16 %v1891
  %v5579 = vunpack.c.l.b16 %v1892
  %v5580 = vunpack.c.l.b16 %v1893
  %v5581 = vunpack.c.l.b16 %v1894
  %v5582 = vunpack.c.l.b16 %v1895
  %v5583 = vunpack.c.l.b16 %v1896
  %v5584 = vunpack.c.l.b16 %v1897
  %v5585 = vunpack.c.l.b16 %v1898
  %v5586 = vunpack.c.l.b16 %v1899
  %v5587 = vunpack.c.l.b16 %v1900
  %v5588 = vunpack.c.l.b16 %v1901
  %v5589 = vunpack.c.l.b16 %v1902
  %v5590 = vunpack.c.l.b16 %v1903
  %v5591 = vunpack.c.l.b16 %v1904
  %v5592 = vunpack.c.l.b16 %v1905
  %v5593 = vunpack.c.l.b16 %v1906
  %v5594 = vunpack.c.l.b16 %v1907
  %v5595 = vunpack.c.l.b16 %v1908
  %v5596 = vunpack.c.l.b16 %v1909
  %v5597 = vunpack.c.l.b16 %v1910
  %v5598 = vunpack.c.l.b16 %v1911
  %v5599 = vunpack.c.l.b16 %v1912
  %v5600 = vunpack.c.l.b16 %v1913
  %v5601 = vunpack.c.l.b16 %v1914
  %v5602 = vunpack.c.l.b16 %v1915
  %v5603 = vunpack.c.l.b16 %v1916
  %v5604 = vunpack.c.l.b16 %v1917
  %v5605 = vunpack.c.l.b16 %v1918
  %v5606 = vunpack.c.l.b16 %v1919
  %v5607 = vunpack.c.l.b16 %v1920
  %v5608 = vunpack.c.l.b16 %v1921
  %v5609 = vunpack.c.l.b16 %v1922
  %v5610 = vunpack.c.l.b16 %v1923
  %v5611 = vunpack.c.l.b16 %v1924
  %v5612 = vunpack.c.l.b16 %v1925
  %v5613 = vunpack.c.l.b16 %v1926
  %v5614 = vunpack.c.l.b16 %v1927
  %v5615 = vunpack.c.l.b16 %v1928
  %v5616 = vunpack.c.l.b16 %v1929
  %v5617 = vunpack.c.l.b16 %v1930
  %v5618 = vunpack.c.l.b16 %v1931
  %v5619 = vunpack.c.l.b16 %v1932
  %v5620 = vunpack.c.l.b16 %v1933
  %v5621 = vunpack.c.l.b16 %v1934
  %v5622 = vunpack.c.l.b16 %v1935
  %v5623 = vunpack.c.l.b16 %v1936
  %v5624 = vunpack.c.l.b16 %v1937
  %v5625 = vunpack.c.l.b16 %v1938
  %v5626 = vunpack.c.l.b16 %v1939
  %v5627 = vunpack.c.l.b16 %v1940
  %v5628 = vunpack.c.l.b16 %v1941
  %v5629 = vunpack.c.l.b16 %v1942
  %v5630 = vunpack.c.l.b16 %v1943
  %v5631 = vunpack.c.l.b16 %v1944
  %v5632 = vunpack.c.l.b16 %v1945
  %v5633 = vunpack.c.l.b16 %v1946
  %v5634 = vunpack.c.l.b16 %v1947
  %v5635 = vunpack.c.l.b16 %v1948
  %v5636 = vunpack.c.l.b16 %v1949
  %v5637 = vunpack.c.l.b16 %v1950
  %v5638 = vunpack.c.l.b16 %v1951
  %v5639 = vunpack.c.l.b16 %v1952
  %v5640 = vpack.c.b16 %v5577, %v5576
  %v5641 = vpack.c.b16 %v5579, %v5578
  %v5642 = vpack.c.b16 %v5581, %v5580
  %v5643 = vpack.c.b16 %v5583, %v5582
  %v5644 = vpack.c.b16 %v5585, %v5584
  %v5645 = vpack.c.b16 %v5587, %v5586
  %v5646 = vpack.c.b16 %v5589, %v5588
  %v5647 = vpack.c.b16 %v5591, %v5590
  %v5648 = vpack.c.b16 %v5593, %v5592
  %v5649 = vpack.c.b16 %v5595, %v5594
  %v5650 = vpack.c.b16 %v5597, %v5596
  %v5651 = vpack.c.b16 %v5599, %v5598
  %v5652 = vpack.c.b16 %v5601, %v5600
  %v5653 = vpack.c.b16 %v5603, %v5602
  %v5654 = vpack.c.b16 %v5605, %v5604
  %v5655 = vpack.c.b16 %v5607, %v5606
  %v5656 = vpack.c.b16 %v5609, %v5608
  %v5657 = vpack.c.b16 %v5611, %v5610
  %v5658 = vpack.c.b16 %v5613, %v5612
  %v5659 = vpack.c.b16 %v5615, %v5614
  %v5660 = vpack.c.b16 %v5617, %v5616
  %v5661 = vpack.c.b16 %v5619, %v5618
  %v5662 = vpack.c.b16 %v5621, %v5620
  %v5663 = vpack.c.b16 %v5623, %v5622
  %v5664 = vpack.c.b16 %v5625, %v5624
  %v5665 = vpack.c.b16 %v5627, %v5626
  %v5666 = vpack.c.b16 %v5629, %v5628
  %v5667 = vpack.c.b16 %v5631, %v5630
  %v5668 = vpack.c.b16 %v5633, %v5632
  %v5669 = vpack.c.b16 %v5635, %v5634
  %v5670 = vpack.c.b16 %v5637, %v5636
  %v5671 = vpack.c.b16 %v5639, %v5638
  %v5672 = vunpack.c.l.b16 %v2001
  %v5673 = vunpack.c.l.b16 %v2011
  %v5674 = vunpack.c.l.b16 %v2025
  %v5675 = vunpack.c.l.b16 %v2035
  %v5676 = vunpack.c.l.b16 %v2049
  %v5677 = vunpack.c.l.b16 %v2059
  %v5678 = vunpack.c.l.b16 %v2073
  %v5679 = vunpack.c.l.b16 %v2083
  %v5680 = vunpack.c.l.b16 %v2097
  %v5681 = vunpack.c.l.b16 %v2107
  %v5682 = vunpack.c.l.b16 %v2121
  %v5683 = vunpack.c.l.b16 %v2131
  %v5684 = vunpack.c.l.b16 %v2145
  %v5685 = vunpack.c.l.b16 %v2155
  %v5686 = vunpack.c.l.b16 %v2169
  %v5687 = vunpack.c.l.b16 %v2179
  %v5688 = vunpack.c.l.b16 %v2193
  %v5689 = vunpack.c.l.b16 %v2203
  %v5690 = vunpack.c.l.b16 %v2217
  %v5691 = vunpack.c.l.b16 %v2227
  %v5692 = vunpack.c.l.b16 %v2241
  %v5693 = vunpack.c.l.b16 %v2251
  %v5694 = vunpack.c.l.b16 %v2265
  %v5695 = vunpack.c.l.b16 %v2275
  %v5696 = vunpack.c.l.b16 %v2289
  %v5697 = vunpack.c.l.b16 %v2299
  %v5698 = vunpack.c.l.b16 %v2313
  %v5699 = vunpack.c.l.b16 %v2323
  %v5700 = vunpack.c.l.b16 %v2337
  %v5701 = vunpack.c.l.b16 %v2347
  %v5702 = vunpack.c.l.b16 %v2361
  %v5703 = vunpack.c.l.b16 %v2371
  %v5704 = vunpack.c.l.b16 %v2385
  %v5705 = vunpack.c.l.b16 %v2395
  %v5706 = vunpack.c.l.b16 %v2409
  %v5707 = vunpack.c.l.b16 %v2419
  %v5708 = vunpack.c.l.b16 %v2433
  %v5709 = vunpack.c.l.b16 %v2443
  %v5710 = vunpack.c.l.b16 %v2457
  %v5711 = vunpack.c.l.b16 %v2467
  %v5712 = vunpack.c.l.b16 %v2481
  %v5713 = vunpack.c.l.b16 %v2491
  %v5714 = vunpack.c.l.b16 %v2505
  %v5715 = vunpack.c.l.b16 %v2515
  %v5716 = vunpack.c.l.b16 %v2529
  %v5717 = vunpack.c.l.b16 %v2539
  %v5718 = vunpack.c.l.b16 %v2553
  %v5719 = vunpack.c.l.b16 %v2563
  %v5720 = vunpack.c.l.b16 %v2577
  %v5721 = vunpack.c.l.b16 %v2587
  %v5722 = vunpack.c.l.b16 %v2601
  %v5723 = vunpack.c.l.b16 %v2611
  %v5724 = vunpack.c.l.b16 %v2625
  %v5725 = vunpack.c.l.b16 %v2635
  %v5726 = vunpack.c.l.b16 %v2649
  %v5727 = vunpack.c.l.b16 %v2659
  %v5728 = vunpack.c.l.b16 %v2673
  %v5729 = vunpack.c.l.b16 %v2683
  %v5730 = vunpack.c.l.b16 %v2697
  %v5731 = vunpack.c.l.b16 %v2707
  %v5732 = vunpack.c.l.b16 %v2721
  %v5733 = vunpack.c.l.b16 %v2731
  %v5734 = vunpack.c.l.b16 %v2745
  %v5735 = vunpack.c.l.b16 %v2755
  %v5736 = vpack.c.b16 %v5673, %v5672
  %v5737 = vpack.c.b16 %v5675, %v5674
  %v5738 = vpack.c.b16 %v5677, %v5676
  %v5739 = vpack.c.b16 %v5679, %v5678
  %v5740 = vpack.c.b16 %v5681, %v5680
  %v5741 = vpack.c.b16 %v5683, %v5682
  %v5742 = vpack.c.b16 %v5685, %v5684
  %v5743 = vpack.c.b16 %v5687, %v5686
  %v5744 = vpack.c.b16 %v5689, %v5688
  %v5745 = vpack.c.b16 %v5691, %v5690
  %v5746 = vpack.c.b16 %v5693, %v5692
  %v5747 = vpack.c.b16 %v5695, %v5694
  %v5748 = vpack.c.b16 %v5697, %v5696
  %v5749 = vpack.c.b16 %v5699, %v5698
  %v5750 = vpack.c.b16 %v5701, %v5700
  %v5751 = vpack.c.b16 %v5703, %v5702
  %v5752 = vpack.c.b16 %v5705, %v5704
  %v5753 = vpack.c.b16 %v5707, %v5706
  %v5754 = vpack.c.b16 %v5709, %v5708
  %v5755 = vpack.c.b16 %v5711, %v5710
  %v5756 = vpack.c.b16 %v5713, %v5712
  %v5757 = vpack.c.b16 %v5715, %v5714
  %v5758 = vpack.c.b16 %v5717, %v5716
  %v5759 = vpack.c.b16 %v5719, %v5718
  %v5760 = vpack.c.b16 %v5721, %v5720
  %v5761 = vpack.c.b16 %v5723, %v5722
  %v5762 = vpack.c.b16 %v5725, %v5724
  %v5763 = vpack.c.b16 %v5727, %v5726
  %v5764 = vpack.c.b16 %v5729, %v5728
  %v5765 = vpack.c.b16 %v5731, %v5730
  %v5766 = vpack.c.b16 %v5733, %v5732
  %v5767 = vpack.c.b16 %v5735, %v5734
  %5768 = vrot.lane.b32.xlu0 %v5736, 4
  %v5769 = vpop.permute.xlu0 %5768
  %5770 = vrot.lane.b32.xlu0 %v5737, 4
  %v5771 = vpop.permute.xlu0 %5770
  %5772 = vrot.lane.b32.xlu0 %v5738, 4
  %v5773 = vpop.permute.xlu0 %5772
  %5774 = vrot.lane.b32.xlu0 %v5739, 4
  %v5775 = vpop.permute.xlu0 %5774
  %5776 = vrot.lane.b32.xlu0 %v5740, 4
  %v5777 = vpop.permute.xlu0 %5776
  %5778 = vrot.lane.b32.xlu0 %v5741, 4
  %v5779 = vpop.permute.xlu0 %5778
  %5780 = vrot.lane.b32.xlu0 %v5742, 4
  %v5781 = vpop.permute.xlu0 %5780
  %5782 = vrot.lane.b32.xlu0 %v5743, 4
  %v5783 = vpop.permute.xlu0 %5782
  %5784 = vrot.lane.b32.xlu0 %v5744, 4
  %v5785 = vpop.permute.xlu0 %5784
  %5786 = vrot.lane.b32.xlu0 %v5745, 4
  %v5787 = vpop.permute.xlu0 %5786
  %5788 = vrot.lane.b32.xlu0 %v5746, 4
  %v5789 = vpop.permute.xlu0 %5788
  %5790 = vrot.lane.b32.xlu0 %v5747, 4
  %v5791 = vpop.permute.xlu0 %5790
  %5792 = vrot.lane.b32.xlu0 %v5748, 4
  %v5793 = vpop.permute.xlu0 %5792
  %5794 = vrot.lane.b32.xlu0 %v5749, 4
  %v5795 = vpop.permute.xlu0 %5794
  %5796 = vrot.lane.b32.xlu0 %v5750, 4
  %v5797 = vpop.permute.xlu0 %5796
  %5798 = vrot.lane.b32.xlu0 %v5751, 4
  %v5799 = vpop.permute.xlu0 %5798
  %5800 = vrot.lane.b32.xlu0 %v5752, 4
  %v5801 = vpop.permute.xlu0 %5800
  %5802 = vrot.lane.b32.xlu0 %v5753, 4
  %v5803 = vpop.permute.xlu0 %5802
  %5804 = vrot.lane.b32.xlu0 %v5754, 4
  %v5805 = vpop.permute.xlu0 %5804
  %5806 = vrot.lane.b32.xlu0 %v5755, 4
  %v5807 = vpop.permute.xlu0 %5806
  %5808 = vrot.lane.b32.xlu0 %v5756, 4
  %v5809 = vpop.permute.xlu0 %5808
  %5810 = vrot.lane.b32.xlu0 %v5757, 4
  %v5811 = vpop.permute.xlu0 %5810
  %5812 = vrot.lane.b32.xlu0 %v5758, 4
  %v5813 = vpop.permute.xlu0 %5812
  %5814 = vrot.lane.b32.xlu0 %v5759, 4
  %v5815 = vpop.permute.xlu0 %5814
  %5816 = vrot.lane.b32.xlu0 %v5760, 4
  %v5817 = vpop.permute.xlu0 %5816
  %5818 = vrot.lane.b32.xlu0 %v5761, 4
  %v5819 = vpop.permute.xlu0 %5818
  %5820 = vrot.lane.b32.xlu0 %v5762, 4
  %v5821 = vpop.permute.xlu0 %5820
  %5822 = vrot.lane.b32.xlu0 %v5763, 4
  %v5823 = vpop.permute.xlu0 %5822
  %5824 = vrot.lane.b32.xlu0 %v5764, 4
  %v5825 = vpop.permute.xlu0 %5824
  %5826 = vrot.lane.b32.xlu0 %v5765, 4
  %v5827 = vpop.permute.xlu0 %5826
  %5828 = vrot.lane.b32.xlu0 %v5766, 4
  %v5829 = vpop.permute.xlu0 %5828
  %5830 = vrot.lane.b32.xlu0 %v5767, 4
  %v5831 = vpop.permute.xlu0 %5830
  %v5832 = vunpack.c.l.b16 %v2890
  %v5833 = vunpack.c.l.b16 %v2893
  %v5834 = vunpack.c.l.b16 %v2897
  %v5835 = vunpack.c.l.b16 %v2900
  %v5836 = vunpack.c.l.b16 %v2904
  %v5837 = vunpack.c.l.b16 %v2907
  %v5838 = vunpack.c.l.b16 %v2911
  %v5839 = vunpack.c.l.b16 %v2914
  %v5840 = vunpack.c.l.b16 %v2918
  %v5841 = vunpack.c.l.b16 %v2921
  %v5842 = vunpack.c.l.b16 %v2925
  %v5843 = vunpack.c.l.b16 %v2928
  %v5844 = vunpack.c.l.b16 %v2932
  %v5845 = vunpack.c.l.b16 %v2935
  %v5846 = vunpack.c.l.b16 %v2939
  %v5847 = vunpack.c.l.b16 %v2942
  %v5848 = vunpack.c.l.b16 %v2946
  %v5849 = vunpack.c.l.b16 %v2949
  %v5850 = vunpack.c.l.b16 %v2953
  %v5851 = vunpack.c.l.b16 %v2956
  %v5852 = vunpack.c.l.b16 %v2960
  %v5853 = vunpack.c.l.b16 %v2963
  %v5854 = vunpack.c.l.b16 %v2967
  %v5855 = vunpack.c.l.b16 %v2970
  %v5856 = vunpack.c.l.b16 %v2974
  %v5857 = vunpack.c.l.b16 %v2977
  %v5858 = vunpack.c.l.b16 %v2981
  %v5859 = vunpack.c.l.b16 %v2984
  %v5860 = vunpack.c.l.b16 %v2988
  %v5861 = vunpack.c.l.b16 %v2991
  %v5862 = vunpack.c.l.b16 %v2995
  %v5863 = vunpack.c.l.b16 %v2998
  %v5864 = vunpack.c.l.b16 %v3002
  %v5865 = vunpack.c.l.b16 %v3005
  %v5866 = vunpack.c.l.b16 %v3009
  %v5867 = vunpack.c.l.b16 %v3012
  %v5868 = vunpack.c.l.b16 %v3016
  %v5869 = vunpack.c.l.b16 %v3019
  %v5870 = vunpack.c.l.b16 %v3023
  %v5871 = vunpack.c.l.b16 %v3026
  %v5872 = vunpack.c.l.b16 %v3030
  %v5873 = vunpack.c.l.b16 %v3033
  %v5874 = vunpack.c.l.b16 %v3037
  %v5875 = vunpack.c.l.b16 %v3040
  %v5876 = vunpack.c.l.b16 %v3044
  %v5877 = vunpack.c.l.b16 %v3047
  %v5878 = vunpack.c.l.b16 %v3051
  %v5879 = vunpack.c.l.b16 %v3054
  %v5880 = vunpack.c.l.b16 %v3058
  %v5881 = vunpack.c.l.b16 %v3061
  %v5882 = vunpack.c.l.b16 %v3065
  %v5883 = vunpack.c.l.b16 %v3068
  %v5884 = vunpack.c.l.b16 %v3072
  %v5885 = vunpack.c.l.b16 %v3075
  %v5886 = vunpack.c.l.b16 %v3079
  %v5887 = vunpack.c.l.b16 %v3082
  %v5888 = vunpack.c.l.b16 %v3086
  %v5889 = vunpack.c.l.b16 %v3089
  %v5890 = vunpack.c.l.b16 %v3093
  %v5891 = vunpack.c.l.b16 %v3096
  %v5892 = vunpack.c.l.b16 %v3100
  %v5893 = vunpack.c.l.b16 %v3103
  %v5894 = vunpack.c.l.b16 %v3107
  %v5895 = vunpack.c.l.b16 %v3110
  %v5896 = vpack.c.b16 %v5833, %v5832
  %v5897 = vpack.c.b16 %v5835, %v5834
  %v5898 = vpack.c.b16 %v5837, %v5836
  %v5899 = vpack.c.b16 %v5839, %v5838
  %v5900 = vpack.c.b16 %v5841, %v5840
  %v5901 = vpack.c.b16 %v5843, %v5842
  %v5902 = vpack.c.b16 %v5845, %v5844
  %v5903 = vpack.c.b16 %v5847, %v5846
  %v5904 = vpack.c.b16 %v5849, %v5848
  %v5905 = vpack.c.b16 %v5851, %v5850
  %v5906 = vpack.c.b16 %v5853, %v5852
  %v5907 = vpack.c.b16 %v5855, %v5854
  %v5908 = vpack.c.b16 %v5857, %v5856
  %v5909 = vpack.c.b16 %v5859, %v5858
  %v5910 = vpack.c.b16 %v5861, %v5860
  %v5911 = vpack.c.b16 %v5863, %v5862
  %v5912 = vpack.c.b16 %v5865, %v5864
  %v5913 = vpack.c.b16 %v5867, %v5866
  %v5914 = vpack.c.b16 %v5869, %v5868
  %v5915 = vpack.c.b16 %v5871, %v5870
  %v5916 = vpack.c.b16 %v5873, %v5872
  %v5917 = vpack.c.b16 %v5875, %v5874
  %v5918 = vpack.c.b16 %v5877, %v5876
  %v5919 = vpack.c.b16 %v5879, %v5878
  %v5920 = vpack.c.b16 %v5881, %v5880
  %v5921 = vpack.c.b16 %v5883, %v5882
  %v5922 = vpack.c.b16 %v5885, %v5884
  %v5923 = vpack.c.b16 %v5887, %v5886
  %v5924 = vpack.c.b16 %v5889, %v5888
  %v5925 = vpack.c.b16 %v5891, %v5890
  %v5926 = vpack.c.b16 %v5893, %v5892
  %v5927 = vpack.c.b16 %v5895, %v5894
  %5928 = vrot.lane.b32.xlu0 %v5896, 8
  %v5929 = vpop.permute.xlu0 %5928
  %5930 = vrot.lane.b32.xlu0 %v5897, 8
  %v5931 = vpop.permute.xlu0 %5930
  %5932 = vrot.lane.b32.xlu0 %v5898, 8
  %v5933 = vpop.permute.xlu0 %5932
  %5934 = vrot.lane.b32.xlu0 %v5899, 8
  %v5935 = vpop.permute.xlu0 %5934
  %5936 = vrot.lane.b32.xlu0 %v5900, 8
  %v5937 = vpop.permute.xlu0 %5936
  %5938 = vrot.lane.b32.xlu0 %v5901, 8
  %v5939 = vpop.permute.xlu0 %5938
  %5940 = vrot.lane.b32.xlu0 %v5902, 8
  %v5941 = vpop.permute.xlu0 %5940
  %5942 = vrot.lane.b32.xlu0 %v5903, 8
  %v5943 = vpop.permute.xlu0 %5942
  %5944 = vrot.lane.b32.xlu0 %v5904, 8
  %v5945 = vpop.permute.xlu0 %5944
  %5946 = vrot.lane.b32.xlu0 %v5905, 8
  %v5947 = vpop.permute.xlu0 %5946
  %5948 = vrot.lane.b32.xlu0 %v5906, 8
  %v5949 = vpop.permute.xlu0 %5948
  %5950 = vrot.lane.b32.xlu0 %v5907, 8
  %v5951 = vpop.permute.xlu0 %5950
  %5952 = vrot.lane.b32.xlu0 %v5908, 8
  %v5953 = vpop.permute.xlu0 %5952
  %5954 = vrot.lane.b32.xlu0 %v5909, 8
  %v5955 = vpop.permute.xlu0 %5954
  %5956 = vrot.lane.b32.xlu0 %v5910, 8
  %v5957 = vpop.permute.xlu0 %5956
  %5958 = vrot.lane.b32.xlu0 %v5911, 8
  %v5959 = vpop.permute.xlu0 %5958
  %5960 = vrot.lane.b32.xlu0 %v5912, 8
  %v5961 = vpop.permute.xlu0 %5960
  %5962 = vrot.lane.b32.xlu0 %v5913, 8
  %v5963 = vpop.permute.xlu0 %5962
  %5964 = vrot.lane.b32.xlu0 %v5914, 8
  %v5965 = vpop.permute.xlu0 %5964
  %5966 = vrot.lane.b32.xlu0 %v5915, 8
  %v5967 = vpop.permute.xlu0 %5966
  %5968 = vrot.lane.b32.xlu0 %v5916, 8
  %v5969 = vpop.permute.xlu0 %5968
  %5970 = vrot.lane.b32.xlu0 %v5917, 8
  %v5971 = vpop.permute.xlu0 %5970
  %5972 = vrot.lane.b32.xlu0 %v5918, 8
  %v5973 = vpop.permute.xlu0 %5972
  %5974 = vrot.lane.b32.xlu0 %v5919, 8
  %v5975 = vpop.permute.xlu0 %5974
  %5976 = vrot.lane.b32.xlu0 %v5920, 8
  %v5977 = vpop.permute.xlu0 %5976
  %5978 = vrot.lane.b32.xlu0 %v5921, 8
  %v5979 = vpop.permute.xlu0 %5978
  %5980 = vrot.lane.b32.xlu0 %v5922, 8
  %v5981 = vpop.permute.xlu0 %5980
  %5982 = vrot.lane.b32.xlu0 %v5923, 8
  %v5983 = vpop.permute.xlu0 %5982
  %5984 = vrot.lane.b32.xlu0 %v5924, 8
  %v5985 = vpop.permute.xlu0 %5984
  %5986 = vrot.lane.b32.xlu0 %v5925, 8
  %v5987 = vpop.permute.xlu0 %5986
  %5988 = vrot.lane.b32.xlu0 %v5926, 8
  %v5989 = vpop.permute.xlu0 %5988
  %5990 = vrot.lane.b32.xlu0 %v5927, 8
  %v5991 = vpop.permute.xlu0 %5990
  %v6024 = vunpack.c.l.b16 %v3111
  %v6025 = vunpack.c.l.b16 %v3112
  %v6026 = vunpack.c.l.b16 %v3113
  %v6027 = vunpack.c.l.b16 %v3114
  %v6028 = vunpack.c.l.b16 %v3115
  %v6029 = vunpack.c.l.b16 %v3116
  %v6030 = vunpack.c.l.b16 %v3117
  %v6031 = vunpack.c.l.b16 %v3118
  %v6032 = vunpack.c.l.b16 %v3119
  %v6033 = vunpack.c.l.b16 %v3120
  %v6034 = vunpack.c.l.b16 %v3121
  %v6035 = vunpack.c.l.b16 %v3122
  %v6036 = vunpack.c.l.b16 %v3123
  %v6037 = vunpack.c.l.b16 %v3124
  %v6038 = vunpack.c.l.b16 %v3125
  %v6039 = vunpack.c.l.b16 %v3126
  %v6040 = vunpack.c.l.b16 %v3127
  %v6041 = vunpack.c.l.b16 %v3128
  %v6042 = vunpack.c.l.b16 %v3129
  %v6043 = vunpack.c.l.b16 %v3130
  %v6044 = vunpack.c.l.b16 %v3131
  %v6045 = vunpack.c.l.b16 %v3132
  %v6046 = vunpack.c.l.b16 %v3133
  %v6047 = vunpack.c.l.b16 %v3134
  %v6048 = vunpack.c.l.b16 %v3135
  %v6049 = vunpack.c.l.b16 %v3136
  %v6050 = vunpack.c.l.b16 %v3137
  %v6051 = vunpack.c.l.b16 %v3138
  %v6052 = vunpack.c.l.b16 %v3139
  %v6053 = vunpack.c.l.b16 %v3140
  %v6054 = vunpack.c.l.b16 %v3141
  %v6055 = vunpack.c.l.b16 %v3142
  %v6056 = vunpack.c.l.b16 %v3143
  %v6057 = vunpack.c.l.b16 %v3144
  %v6058 = vunpack.c.l.b16 %v3145
  %v6059 = vunpack.c.l.b16 %v3146
  %v6060 = vunpack.c.l.b16 %v3147
  %v6061 = vunpack.c.l.b16 %v3148
  %v6062 = vunpack.c.l.b16 %v3149
  %v6063 = vunpack.c.l.b16 %v3150
  %v6064 = vunpack.c.l.b16 %v3151
  %v6065 = vunpack.c.l.b16 %v3152
  %v6066 = vunpack.c.l.b16 %v3153
  %v6067 = vunpack.c.l.b16 %v3154
  %v6068 = vunpack.c.l.b16 %v3155
  %v6069 = vunpack.c.l.b16 %v3156
  %v6070 = vunpack.c.l.b16 %v3157
  %v6071 = vunpack.c.l.b16 %v3158
  %v6072 = vunpack.c.l.b16 %v3159
  %v6073 = vunpack.c.l.b16 %v3160
  %v6074 = vunpack.c.l.b16 %v3161
  %v6075 = vunpack.c.l.b16 %v3162
  %v6076 = vunpack.c.l.b16 %v3163
  %v6077 = vunpack.c.l.b16 %v3164
  %v6078 = vunpack.c.l.b16 %v3165
  %v6079 = vunpack.c.l.b16 %v3166
  %v6080 = vunpack.c.l.b16 %v3167
  %v6081 = vunpack.c.l.b16 %v3168
  %v6082 = vunpack.c.l.b16 %v3169
  %v6083 = vunpack.c.l.b16 %v3170
  %v6084 = vunpack.c.l.b16 %v3171
  %v6085 = vunpack.c.l.b16 %v3172
  %v6086 = vunpack.c.l.b16 %v3173
  %v6087 = vunpack.c.l.b16 %v3174
  %v6088 = vpack.c.b16 %v6025, %v6024
  %v6089 = vpack.c.b16 %v6027, %v6026
  %v6090 = vpack.c.b16 %v6029, %v6028
  %v6091 = vpack.c.b16 %v6031, %v6030
  %v6092 = vpack.c.b16 %v6033, %v6032
  %v6093 = vpack.c.b16 %v6035, %v6034
  %v6094 = vpack.c.b16 %v6037, %v6036
  %v6095 = vpack.c.b16 %v6039, %v6038
  %v6096 = vpack.c.b16 %v6041, %v6040
  %v6097 = vpack.c.b16 %v6043, %v6042
  %v6098 = vpack.c.b16 %v6045, %v6044
  %v6099 = vpack.c.b16 %v6047, %v6046
  %v6100 = vpack.c.b16 %v6049, %v6048
  %v6101 = vpack.c.b16 %v6051, %v6050
  %v6102 = vpack.c.b16 %v6053, %v6052
  %v6103 = vpack.c.b16 %v6055, %v6054
  %v6104 = vpack.c.b16 %v6057, %v6056
  %v6105 = vpack.c.b16 %v6059, %v6058
  %v6106 = vpack.c.b16 %v6061, %v6060
  %v6107 = vpack.c.b16 %v6063, %v6062
  %v6108 = vpack.c.b16 %v6065, %v6064
  %v6109 = vpack.c.b16 %v6067, %v6066
  %v6110 = vpack.c.b16 %v6069, %v6068
  %v6111 = vpack.c.b16 %v6071, %v6070
  %v6112 = vpack.c.b16 %v6073, %v6072
  %v6113 = vpack.c.b16 %v6075, %v6074
  %v6114 = vpack.c.b16 %v6077, %v6076
  %v6115 = vpack.c.b16 %v6079, %v6078
  %v6116 = vpack.c.b16 %v6081, %v6080
  %v6117 = vpack.c.b16 %v6083, %v6082
  %v6118 = vpack.c.b16 %v6085, %v6084
  %v6119 = vpack.c.b16 %v6087, %v6086
  %6120 = vrot.lane.b32.xlu0 %v6088, 12
  %v6121 = vpop.permute.xlu0 %6120
  %6122 = vrot.lane.b32.xlu0 %v6089, 12
  %v6123 = vpop.permute.xlu0 %6122
  %6124 = vrot.lane.b32.xlu0 %v6090, 12
  %v6125 = vpop.permute.xlu0 %6124
  %6126 = vrot.lane.b32.xlu0 %v6091, 12
  %v6127 = vpop.permute.xlu0 %6126
  %6128 = vrot.lane.b32.xlu0 %v6092, 12
  %v6129 = vpop.permute.xlu0 %6128
  %6130 = vrot.lane.b32.xlu0 %v6093, 12
  %v6131 = vpop.permute.xlu0 %6130
  %6132 = vrot.lane.b32.xlu0 %v6094, 12
  %v6133 = vpop.permute.xlu0 %6132
  %6134 = vrot.lane.b32.xlu0 %v6095, 12
  %v6135 = vpop.permute.xlu0 %6134
  %6136 = vrot.lane.b32.xlu0 %v6096, 12
  %v6137 = vpop.permute.xlu0 %6136
  %6138 = vrot.lane.b32.xlu0 %v6097, 12
  %v6139 = vpop.permute.xlu0 %6138
  %6140 = vrot.lane.b32.xlu0 %v6098, 12
  %v6141 = vpop.permute.xlu0 %6140
  %6142 = vrot.lane.b32.xlu0 %v6099, 12
  %v6143 = vpop.permute.xlu0 %6142
  %6144 = vrot.lane.b32.xlu0 %v6100, 12
  %v6145 = vpop.permute.xlu0 %6144
  %6146 = vrot.lane.b32.xlu0 %v6101, 12
  %v6147 = vpop.permute.xlu0 %6146
  %6148 = vrot.lane.b32.xlu0 %v6102, 12
  %v6149 = vpop.permute.xlu0 %6148
  %6150 = vrot.lane.b32.xlu0 %v6103, 12
  %v6151 = vpop.permute.xlu0 %6150
  %6152 = vrot.lane.b32.xlu0 %v6104, 12
  %v6153 = vpop.permute.xlu0 %6152
  %6154 = vrot.lane.b32.xlu0 %v6105, 12
  %v6155 = vpop.permute.xlu0 %6154
  %6156 = vrot.lane.b32.xlu0 %v6106, 12
  %v6157 = vpop.permute.xlu0 %6156
  %6158 = vrot.lane.b32.xlu0 %v6107, 12
  %v6159 = vpop.permute.xlu0 %6158
  %6160 = vrot.lane.b32.xlu0 %v6108, 12
  %v6161 = vpop.permute.xlu0 %6160
  %6162 = vrot.lane.b32.xlu0 %v6109, 12
  %v6163 = vpop.permute.xlu0 %6162
  %6164 = vrot.lane.b32.xlu0 %v6110, 12
  %v6165 = vpop.permute.xlu0 %6164
  %6166 = vrot.lane.b32.xlu0 %v6111, 12
  %v6167 = vpop.permute.xlu0 %6166
  %6168 = vrot.lane.b32.xlu0 %v6112, 12
  %v6169 = vpop.permute.xlu0 %6168
  %6170 = vrot.lane.b32.xlu0 %v6113, 12
  %v6171 = vpop.permute.xlu0 %6170
  %6172 = vrot.lane.b32.xlu0 %v6114, 12
  %v6173 = vpop.permute.xlu0 %6172
  %6174 = vrot.lane.b32.xlu0 %v6115, 12
  %v6175 = vpop.permute.xlu0 %6174
  %6176 = vrot.lane.b32.xlu0 %v6116, 12
  %v6177 = vpop.permute.xlu0 %6176
  %6178 = vrot.lane.b32.xlu0 %v6117, 12
  %v6179 = vpop.permute.xlu0 %6178
  %6180 = vrot.lane.b32.xlu0 %v6118, 12
  %v6181 = vpop.permute.xlu0 %6180
  %6182 = vrot.lane.b32.xlu0 %v6119, 12
  %v6183 = vpop.permute.xlu0 %6182
  %v6184 = vunpack.c.l.b16 %v3220
  %v6185 = vunpack.c.l.b16 %v3230
  %v6186 = vunpack.c.l.b16 %v3244
  %v6187 = vunpack.c.l.b16 %v3254
  %v6188 = vunpack.c.l.b16 %v3268
  %v6189 = vunpack.c.l.b16 %v3278
  %v6190 = vunpack.c.l.b16 %v3292
  %v6191 = vunpack.c.l.b16 %v3302
  %v6192 = vunpack.c.l.b16 %v3316
  %v6193 = vunpack.c.l.b16 %v3326
  %v6194 = vunpack.c.l.b16 %v3340
  %v6195 = vunpack.c.l.b16 %v3350
  %v6196 = vunpack.c.l.b16 %v3364
  %v6197 = vunpack.c.l.b16 %v3374
  %v6198 = vunpack.c.l.b16 %v3388
  %v6199 = vunpack.c.l.b16 %v3398
  %v6200 = vunpack.c.l.b16 %v3412
  %v6201 = vunpack.c.l.b16 %v3422
  %v6202 = vunpack.c.l.b16 %v3436
  %v6203 = vunpack.c.l.b16 %v3446
  %v6204 = vunpack.c.l.b16 %v3460
  %v6205 = vunpack.c.l.b16 %v3470
  %v6206 = vunpack.c.l.b16 %v3484
  %v6207 = vunpack.c.l.b16 %v3494
  %v6208 = vunpack.c.l.b16 %v3508
  %v6209 = vunpack.c.l.b16 %v3518
  %v6210 = vunpack.c.l.b16 %v3532
  %v6211 = vunpack.c.l.b16 %v3542
  %v6212 = vunpack.c.l.b16 %v3556
  %v6213 = vunpack.c.l.b16 %v3566
  %v6214 = vunpack.c.l.b16 %v3580
  %v6215 = vunpack.c.l.b16 %v3590
  %v6216 = vunpack.c.l.b16 %v3604
  %v6217 = vunpack.c.l.b16 %v3614
  %v6218 = vunpack.c.l.b16 %v3628
  %v6219 = vunpack.c.l.b16 %v3638
  %v6220 = vunpack.c.l.b16 %v3652
  %v6221 = vunpack.c.l.b16 %v3662
  %v6222 = vunpack.c.l.b16 %v3676
  %v6223 = vunpack.c.l.b16 %v3686
  %v6224 = vunpack.c.l.b16 %v3700
  %v6225 = vunpack.c.l.b16 %v3710
  %v6226 = vunpack.c.l.b16 %v3724
  %v6227 = vunpack.c.l.b16 %v3734
  %v6228 = vunpack.c.l.b16 %v3748
  %v6229 = vunpack.c.l.b16 %v3758
  %v6230 = vunpack.c.l.b16 %v3772
  %v6231 = vunpack.c.l.b16 %v3782
  %v6232 = vunpack.c.l.b16 %v3796
  %v6233 = vunpack.c.l.b16 %v3806
  %v6234 = vunpack.c.l.b16 %v3820
  %v6235 = vunpack.c.l.b16 %v3830
  %v6236 = vunpack.c.l.b16 %v3844
  %v6237 = vunpack.c.l.b16 %v3854
  %v6238 = vunpack.c.l.b16 %v3868
  %v6239 = vunpack.c.l.b16 %v3878
  %v6240 = vunpack.c.l.b16 %v3892
  %v6241 = vunpack.c.l.b16 %v3902
  %v6242 = vunpack.c.l.b16 %v3916
  %v6243 = vunpack.c.l.b16 %v3926
  %v6244 = vunpack.c.l.b16 %v3940
  %v6245 = vunpack.c.l.b16 %v3950
  %v6246 = vunpack.c.l.b16 %v3964
  %v6247 = vunpack.c.l.b16 %v3974
  %v6248 = vpack.c.b16 %v6185, %v6184
  %v6249 = vpack.c.b16 %v6187, %v6186
  %v6250 = vpack.c.b16 %v6189, %v6188
  %v6251 = vpack.c.b16 %v6191, %v6190
  %v6252 = vpack.c.b16 %v6193, %v6192
  %v6253 = vpack.c.b16 %v6195, %v6194
  %v6254 = vpack.c.b16 %v6197, %v6196
  %v6255 = vpack.c.b16 %v6199, %v6198
  %v6256 = vpack.c.b16 %v6201, %v6200
  %v6257 = vpack.c.b16 %v6203, %v6202
  %v6258 = vpack.c.b16 %v6205, %v6204
  %v6259 = vpack.c.b16 %v6207, %v6206
  %v6260 = vpack.c.b16 %v6209, %v6208
  %v6261 = vpack.c.b16 %v6211, %v6210
  %v6262 = vpack.c.b16 %v6213, %v6212
  %v6263 = vpack.c.b16 %v6215, %v6214
  %v6264 = vpack.c.b16 %v6217, %v6216
  %v6265 = vpack.c.b16 %v6219, %v6218
  %v6266 = vpack.c.b16 %v6221, %v6220
  %v6267 = vpack.c.b16 %v6223, %v6222
  %v6268 = vpack.c.b16 %v6225, %v6224
  %v6269 = vpack.c.b16 %v6227, %v6226
  %v6270 = vpack.c.b16 %v6229, %v6228
  %v6271 = vpack.c.b16 %v6231, %v6230
  %v6272 = vpack.c.b16 %v6233, %v6232
  %v6273 = vpack.c.b16 %v6235, %v6234
  %v6274 = vpack.c.b16 %v6237, %v6236
  %v6275 = vpack.c.b16 %v6239, %v6238
  %v6276 = vpack.c.b16 %v6241, %v6240
  %v6277 = vpack.c.b16 %v6243, %v6242
  %v6278 = vpack.c.b16 %v6245, %v6244
  %v6279 = vpack.c.b16 %v6247, %v6246
  %6280 = vrot.lane.b32.xlu0 %v6248, 16
  %v6281 = vpop.permute.xlu0 %6280
  %6282 = vrot.lane.b32.xlu0 %v6249, 16
  %v6283 = vpop.permute.xlu0 %6282
  %6284 = vrot.lane.b32.xlu0 %v6250, 16
  %v6285 = vpop.permute.xlu0 %6284
  %6286 = vrot.lane.b32.xlu0 %v6251, 16
  %v6287 = vpop.permute.xlu0 %6286
  %6288 = vrot.lane.b32.xlu0 %v6252, 16
  %v6289 = vpop.permute.xlu0 %6288
  %6290 = vrot.lane.b32.xlu0 %v6253, 16
  %v6291 = vpop.permute.xlu0 %6290
  %6292 = vrot.lane.b32.xlu0 %v6254, 16
  %v6293 = vpop.permute.xlu0 %6292
  %6294 = vrot.lane.b32.xlu0 %v6255, 16
  %v6295 = vpop.permute.xlu0 %6294
  %6296 = vrot.lane.b32.xlu0 %v6256, 16
  %v6297 = vpop.permute.xlu0 %6296
  %6298 = vrot.lane.b32.xlu0 %v6257, 16
  %v6299 = vpop.permute.xlu0 %6298
  %6300 = vrot.lane.b32.xlu0 %v6258, 16
  %v6301 = vpop.permute.xlu0 %6300
  %6302 = vrot.lane.b32.xlu0 %v6259, 16
  %v6303 = vpop.permute.xlu0 %6302
  %6304 = vrot.lane.b32.xlu0 %v6260, 16
  %v6305 = vpop.permute.xlu0 %6304
  %6306 = vrot.lane.b32.xlu0 %v6261, 16
  %v6307 = vpop.permute.xlu0 %6306
  %6308 = vrot.lane.b32.xlu0 %v6262, 16
  %v6309 = vpop.permute.xlu0 %6308
  %6310 = vrot.lane.b32.xlu0 %v6263, 16
  %v6311 = vpop.permute.xlu0 %6310
  %6312 = vrot.lane.b32.xlu0 %v6264, 16
  %v6313 = vpop.permute.xlu0 %6312
  %6314 = vrot.lane.b32.xlu0 %v6265, 16
  %v6315 = vpop.permute.xlu0 %6314
  %6316 = vrot.lane.b32.xlu0 %v6266, 16
  %v6317 = vpop.permute.xlu0 %6316
  %6318 = vrot.lane.b32.xlu0 %v6267, 16
  %v6319 = vpop.permute.xlu0 %6318
  %6320 = vrot.lane.b32.xlu0 %v6268, 16
  %v6321 = vpop.permute.xlu0 %6320
  %6322 = vrot.lane.b32.xlu0 %v6269, 16
  %v6323 = vpop.permute.xlu0 %6322
  %6324 = vrot.lane.b32.xlu0 %v6270, 16
  %v6325 = vpop.permute.xlu0 %6324
  %6326 = vrot.lane.b32.xlu0 %v6271, 16
  %v6327 = vpop.permute.xlu0 %6326
  %6328 = vrot.lane.b32.xlu0 %v6272, 16
  %v6329 = vpop.permute.xlu0 %6328
  %6330 = vrot.lane.b32.xlu0 %v6273, 16
  %v6331 = vpop.permute.xlu0 %6330
  %6332 = vrot.lane.b32.xlu0 %v6274, 16
  %v6333 = vpop.permute.xlu0 %6332
  %6334 = vrot.lane.b32.xlu0 %v6275, 16
  %v6335 = vpop.permute.xlu0 %6334
  %6336 = vrot.lane.b32.xlu0 %v6276, 16
  %v6337 = vpop.permute.xlu0 %6336
  %6338 = vrot.lane.b32.xlu0 %v6277, 16
  %v6339 = vpop.permute.xlu0 %6338
  %6340 = vrot.lane.b32.xlu0 %v6278, 16
  %v6341 = vpop.permute.xlu0 %6340
  %6342 = vrot.lane.b32.xlu0 %v6279, 16
  %v6343 = vpop.permute.xlu0 %6342
  %v6344 = vunpack.c.l.b16 %v4106
  %v6345 = vunpack.c.l.b16 %v4109
  %v6346 = vunpack.c.l.b16 %v4113
  %v6347 = vunpack.c.l.b16 %v4116
  %v6348 = vunpack.c.l.b16 %v4120
  %v6349 = vunpack.c.l.b16 %v4123
  %v6350 = vunpack.c.l.b16 %v4127
  %v6351 = vunpack.c.l.b16 %v4130
  %v6352 = vunpack.c.l.b16 %v4134
  %v6353 = vunpack.c.l.b16 %v4137
  %v6354 = vunpack.c.l.b16 %v4141
  %v6355 = vunpack.c.l.b16 %v4144
  %v6356 = vunpack.c.l.b16 %v4148
  %v6357 = vunpack.c.l.b16 %v4151
  %v6358 = vunpack.c.l.b16 %v4155
  %v6359 = vunpack.c.l.b16 %v4158
  %v6360 = vunpack.c.l.b16 %v4162
  %v6361 = vunpack.c.l.b16 %v4165
  %v6362 = vunpack.c.l.b16 %v4169
  %v6363 = vunpack.c.l.b16 %v4172
  %v6364 = vunpack.c.l.b16 %v4176
  %v6365 = vunpack.c.l.b16 %v4179
  %v6366 = vunpack.c.l.b16 %v4183
  %v6367 = vunpack.c.l.b16 %v4186
  %v6368 = vunpack.c.l.b16 %v4190
  %v6369 = vunpack.c.l.b16 %v4193
  %v6370 = vunpack.c.l.b16 %v4197
  %v6371 = vunpack.c.l.b16 %v4200
  %v6372 = vunpack.c.l.b16 %v4204
  %v6373 = vunpack.c.l.b16 %v4207
  %v6374 = vunpack.c.l.b16 %v4211
  %v6375 = vunpack.c.l.b16 %v4214
  %v6376 = vunpack.c.l.b16 %v4218
  %v6377 = vunpack.c.l.b16 %v4221
  %v6378 = vunpack.c.l.b16 %v4225
  %v6379 = vunpack.c.l.b16 %v4228
  %v6380 = vunpack.c.l.b16 %v4232
  %v6381 = vunpack.c.l.b16 %v4235
  %v6382 = vunpack.c.l.b16 %v4239
  %v6383 = vunpack.c.l.b16 %v4242
  %v6384 = vunpack.c.l.b16 %v4246
  %v6385 = vunpack.c.l.b16 %v4249
  %v6386 = vunpack.c.l.b16 %v4253
  %v6387 = vunpack.c.l.b16 %v4256
  %v6388 = vunpack.c.l.b16 %v4260
  %v6389 = vunpack.c.l.b16 %v4263
  %v6390 = vunpack.c.l.b16 %v4267
  %v6391 = vunpack.c.l.b16 %v4270
  %v6392 = vunpack.c.l.b16 %v4274
  %v6393 = vunpack.c.l.b16 %v4277
  %v6394 = vunpack.c.l.b16 %v4281
  %v6395 = vunpack.c.l.b16 %v4284
  %v6396 = vunpack.c.l.b16 %v4288
  %v6397 = vunpack.c.l.b16 %v4291
  %v6398 = vunpack.c.l.b16 %v4295
  %v6399 = vunpack.c.l.b16 %v4298
  %v6400 = vunpack.c.l.b16 %v4302
  %v6401 = vunpack.c.l.b16 %v4305
  %v6402 = vunpack.c.l.b16 %v4309
  %v6403 = vunpack.c.l.b16 %v4312
  %v6404 = vunpack.c.l.b16 %v4316
  %v6405 = vunpack.c.l.b16 %v4319
  %v6406 = vunpack.c.l.b16 %v4323
  %v6407 = vunpack.c.l.b16 %v4326
  %v6408 = vpack.c.b16 %v6345, %v6344
  %v6409 = vpack.c.b16 %v6347, %v6346
  %v6410 = vpack.c.b16 %v6349, %v6348
  %v6411 = vpack.c.b16 %v6351, %v6350
  %v6412 = vpack.c.b16 %v6353, %v6352
  %v6413 = vpack.c.b16 %v6355, %v6354
  %v6414 = vpack.c.b16 %v6357, %v6356
  %v6415 = vpack.c.b16 %v6359, %v6358
  %v6416 = vpack.c.b16 %v6361, %v6360
  %v6417 = vpack.c.b16 %v6363, %v6362
  %v6418 = vpack.c.b16 %v6365, %v6364
  %v6419 = vpack.c.b16 %v6367, %v6366
  %v6420 = vpack.c.b16 %v6369, %v6368
  %v6421 = vpack.c.b16 %v6371, %v6370
  %v6422 = vpack.c.b16 %v6373, %v6372
  %v6423 = vpack.c.b16 %v6375, %v6374
  %v6424 = vpack.c.b16 %v6377, %v6376
  %v6425 = vpack.c.b16 %v6379, %v6378
  %v6426 = vpack.c.b16 %v6381, %v6380
  %v6427 = vpack.c.b16 %v6383, %v6382
  %v6428 = vpack.c.b16 %v6385, %v6384
  %v6429 = vpack.c.b16 %v6387, %v6386
  %v6430 = vpack.c.b16 %v6389, %v6388
  %v6431 = vpack.c.b16 %v6391, %v6390
  %v6432 = vpack.c.b16 %v6393, %v6392
  %v6433 = vpack.c.b16 %v6395, %v6394
  %v6434 = vpack.c.b16 %v6397, %v6396
  %v6435 = vpack.c.b16 %v6399, %v6398
  %v6436 = vpack.c.b16 %v6401, %v6400
  %v6437 = vpack.c.b16 %v6403, %v6402
  %v6438 = vpack.c.b16 %v6405, %v6404
  %v6439 = vpack.c.b16 %v6407, %v6406
  %6440 = vrot.lane.b32.xlu0 %v6408, 20
  %v6441 = vpop.permute.xlu0 %6440
  %6442 = vrot.lane.b32.xlu0 %v6409, 20
  %v6443 = vpop.permute.xlu0 %6442
  %6444 = vrot.lane.b32.xlu0 %v6410, 20
  %v6445 = vpop.permute.xlu0 %6444
  %6446 = vrot.lane.b32.xlu0 %v6411, 20
  %v6447 = vpop.permute.xlu0 %6446
  %6448 = vrot.lane.b32.xlu0 %v6412, 20
  %v6449 = vpop.permute.xlu0 %6448
  %6450 = vrot.lane.b32.xlu0 %v6413, 20
  %v6451 = vpop.permute.xlu0 %6450
  %6452 = vrot.lane.b32.xlu0 %v6414, 20
  %v6453 = vpop.permute.xlu0 %6452
  %6454 = vrot.lane.b32.xlu0 %v6415, 20
  %v6455 = vpop.permute.xlu0 %6454
  %6456 = vrot.lane.b32.xlu0 %v6416, 20
  %v6457 = vpop.permute.xlu0 %6456
  %6458 = vrot.lane.b32.xlu0 %v6417, 20
  %v6459 = vpop.permute.xlu0 %6458
  %6460 = vrot.lane.b32.xlu0 %v6418, 20
  %v6461 = vpop.permute.xlu0 %6460
  %6462 = vrot.lane.b32.xlu0 %v6419, 20
  %v6463 = vpop.permute.xlu0 %6462
  %6464 = vrot.lane.b32.xlu0 %v6420, 20
  %v6465 = vpop.permute.xlu0 %6464
  %6466 = vrot.lane.b32.xlu0 %v6421, 20
  %v6467 = vpop.permute.xlu0 %6466
  %6468 = vrot.lane.b32.xlu0 %v6422, 20
  %v6469 = vpop.permute.xlu0 %6468
  %6470 = vrot.lane.b32.xlu0 %v6423, 20
  %v6471 = vpop.permute.xlu0 %6470
  %6472 = vrot.lane.b32.xlu0 %v6424, 20
  %v6473 = vpop.permute.xlu0 %6472
  %6474 = vrot.lane.b32.xlu0 %v6425, 20
  %v6475 = vpop.permute.xlu0 %6474
  %6476 = vrot.lane.b32.xlu0 %v6426, 20
  %v6477 = vpop.permute.xlu0 %6476
  %6478 = vrot.lane.b32.xlu0 %v6427, 20
  %v6479 = vpop.permute.xlu0 %6478
  %6480 = vrot.lane.b32.xlu0 %v6428, 20
  %v6481 = vpop.permute.xlu0 %6480
  %6482 = vrot.lane.b32.xlu0 %v6429, 20
  %v6483 = vpop.permute.xlu0 %6482
  %6484 = vrot.lane.b32.xlu0 %v6430, 20
  %v6485 = vpop.permute.xlu0 %6484
  %6486 = vrot.lane.b32.xlu0 %v6431, 20
  %v6487 = vpop.permute.xlu0 %6486
  %6488 = vrot.lane.b32.xlu0 %v6432, 20
  %v6489 = vpop.permute.xlu0 %6488
  %6490 = vrot.lane.b32.xlu0 %v6433, 20
  %v6491 = vpop.permute.xlu0 %6490
  %6492 = vrot.lane.b32.xlu0 %v6434, 20
  %v6493 = vpop.permute.xlu0 %6492
  %6494 = vrot.lane.b32.xlu0 %v6435, 20
  %v6495 = vpop.permute.xlu0 %6494
  %6496 = vrot.lane.b32.xlu0 %v6436, 20
  %v6497 = vpop.permute.xlu0 %6496
  %6498 = vrot.lane.b32.xlu0 %v6437, 20
  %v6499 = vpop.permute.xlu0 %6498
  %6500 = vrot.lane.b32.xlu0 %v6438, 20
  %v6501 = vpop.permute.xlu0 %6500
  %6502 = vrot.lane.b32.xlu0 %v6439, 20
  %v6503 = vpop.permute.xlu0 %6502
  %v6536 = vunpack.c.l.b16 %v4328
  %v6537 = vunpack.c.l.b16 %v4329
  %v6538 = vunpack.c.l.b16 %v4330
  %v6539 = vunpack.c.l.b16 %v4331
  %v6540 = vunpack.c.l.b16 %v4332
  %v6541 = vunpack.c.l.b16 %v4333
  %v6542 = vunpack.c.l.b16 %v4334
  %v6543 = vunpack.c.l.b16 %v4335
  %v6544 = vunpack.c.l.b16 %v4336
  %v6545 = vunpack.c.l.b16 %v4337
  %v6546 = vunpack.c.l.b16 %v4338
  %v6547 = vunpack.c.l.b16 %v4339
  %v6548 = vunpack.c.l.b16 %v4340
  %v6549 = vunpack.c.l.b16 %v4341
  %v6550 = vunpack.c.l.b16 %v4342
  %v6551 = vunpack.c.l.b16 %v4343
  %v6552 = vunpack.c.l.b16 %v4344
  %v6553 = vunpack.c.l.b16 %v4345
  %v6554 = vunpack.c.l.b16 %v4346
  %v6555 = vunpack.c.l.b16 %v4347
  %v6556 = vunpack.c.l.b16 %v4348
  %v6557 = vunpack.c.l.b16 %v4349
  %v6558 = vunpack.c.l.b16 %v4350
  %v6559 = vunpack.c.l.b16 %v4351
  %v6560 = vunpack.c.l.b16 %v4352
  %v6561 = vunpack.c.l.b16 %v4353
  %v6562 = vunpack.c.l.b16 %v4354
  %v6563 = vunpack.c.l.b16 %v4355
  %v6564 = vunpack.c.l.b16 %v4356
  %v6565 = vunpack.c.l.b16 %v4357
  %v6566 = vunpack.c.l.b16 %v4358
  %v6567 = vunpack.c.l.b16 %v4359
  %v6568 = vunpack.c.l.b16 %v4360
  %v6569 = vunpack.c.l.b16 %v4361
  %v6570 = vunpack.c.l.b16 %v4362
  %v6571 = vunpack.c.l.b16 %v4363
  %v6572 = vunpack.c.l.b16 %v4364
  %v6573 = vunpack.c.l.b16 %v4365
  %v6574 = vunpack.c.l.b16 %v4366
  %v6575 = vunpack.c.l.b16 %v4367
  %v6576 = vunpack.c.l.b16 %v4368
  %v6577 = vunpack.c.l.b16 %v4369
  %v6578 = vunpack.c.l.b16 %v4370
  %v6579 = vunpack.c.l.b16 %v4371
  %v6580 = vunpack.c.l.b16 %v4372
  %v6581 = vunpack.c.l.b16 %v4373
  %v6582 = vunpack.c.l.b16 %v4374
  %v6583 = vunpack.c.l.b16 %v4375
  %v6584 = vunpack.c.l.b16 %v4376
  %v6585 = vunpack.c.l.b16 %v4377
  %v6586 = vunpack.c.l.b16 %v4378
  %v6587 = vunpack.c.l.b16 %v4379
  %v6588 = vunpack.c.l.b16 %v4380
  %v6589 = vunpack.c.l.b16 %v4381
  %v6590 = vunpack.c.l.b16 %v4382
  %v6591 = vunpack.c.l.b16 %v4383
  %v6592 = vunpack.c.l.b16 %v4384
  %v6593 = vunpack.c.l.b16 %v4385
  %v6594 = vunpack.c.l.b16 %v4386
  %v6595 = vunpack.c.l.b16 %v4387
  %v6596 = vunpack.c.l.b16 %v4388
  %v6597 = vunpack.c.l.b16 %v4389
  %v6598 = vunpack.c.l.b16 %v4390
  %v6599 = vunpack.c.l.b16 %v4391
  %v6600 = vpack.c.b16 %v6537, %v6536
  %v6601 = vpack.c.b16 %v6539, %v6538
  %v6602 = vpack.c.b16 %v6541, %v6540
  %v6603 = vpack.c.b16 %v6543, %v6542
  %v6604 = vpack.c.b16 %v6545, %v6544
  %v6605 = vpack.c.b16 %v6547, %v6546
  %v6606 = vpack.c.b16 %v6549, %v6548
  %v6607 = vpack.c.b16 %v6551, %v6550
  %v6608 = vpack.c.b16 %v6553, %v6552
  %v6609 = vpack.c.b16 %v6555, %v6554
  %v6610 = vpack.c.b16 %v6557, %v6556
  %v6611 = vpack.c.b16 %v6559, %v6558
  %v6612 = vpack.c.b16 %v6561, %v6560
  %v6613 = vpack.c.b16 %v6563, %v6562
  %v6614 = vpack.c.b16 %v6565, %v6564
  %v6615 = vpack.c.b16 %v6567, %v6566
  %v6616 = vpack.c.b16 %v6569, %v6568
  %v6617 = vpack.c.b16 %v6571, %v6570
  %v6618 = vpack.c.b16 %v6573, %v6572
  %v6619 = vpack.c.b16 %v6575, %v6574
  %v6620 = vpack.c.b16 %v6577, %v6576
  %v6621 = vpack.c.b16 %v6579, %v6578
  %v6622 = vpack.c.b16 %v6581, %v6580
  %v6623 = vpack.c.b16 %v6583, %v6582
  %v6624 = vpack.c.b16 %v6585, %v6584
  %v6625 = vpack.c.b16 %v6587, %v6586
  %v6626 = vpack.c.b16 %v6589, %v6588
  %v6627 = vpack.c.b16 %v6591, %v6590
  %v6628 = vpack.c.b16 %v6593, %v6592
  %v6629 = vpack.c.b16 %v6595, %v6594
  %v6630 = vpack.c.b16 %v6597, %v6596
  %v6631 = vpack.c.b16 %v6599, %v6598
  %6632 = vrot.lane.b32.xlu0 %v6600, 24
  %v6633 = vpop.permute.xlu0 %6632
  %6634 = vrot.lane.b32.xlu0 %v6601, 24
  %v6635 = vpop.permute.xlu0 %6634
  %6636 = vrot.lane.b32.xlu0 %v6602, 24
  %v6637 = vpop.permute.xlu0 %6636
  %6638 = vrot.lane.b32.xlu0 %v6603, 24
  %v6639 = vpop.permute.xlu0 %6638
  %6640 = vrot.lane.b32.xlu0 %v6604, 24
  %v6641 = vpop.permute.xlu0 %6640
  %6642 = vrot.lane.b32.xlu0 %v6605, 24
  %v6643 = vpop.permute.xlu0 %6642
  %6644 = vrot.lane.b32.xlu0 %v6606, 24
  %v6645 = vpop.permute.xlu0 %6644
  %6646 = vrot.lane.b32.xlu0 %v6607, 24
  %v6647 = vpop.permute.xlu0 %6646
  %6648 = vrot.lane.b32.xlu0 %v6608, 24
  %v6649 = vpop.permute.xlu0 %6648
  %6650 = vrot.lane.b32.xlu0 %v6609, 24
  %v6651 = vpop.permute.xlu0 %6650
  %6652 = vrot.lane.b32.xlu0 %v6610, 24
  %v6653 = vpop.permute.xlu0 %6652
  %6654 = vrot.lane.b32.xlu0 %v6611, 24
  %v6655 = vpop.permute.xlu0 %6654
  %6656 = vrot.lane.b32.xlu0 %v6612, 24
  %v6657 = vpop.permute.xlu0 %6656
  %6658 = vrot.lane.b32.xlu0 %v6613, 24
  %v6659 = vpop.permute.xlu0 %6658
  %6660 = vrot.lane.b32.xlu0 %v6614, 24
  %v6661 = vpop.permute.xlu0 %6660
  %6662 = vrot.lane.b32.xlu0 %v6615, 24
  %v6663 = vpop.permute.xlu0 %6662
  %6664 = vrot.lane.b32.xlu0 %v6616, 24
  %v6665 = vpop.permute.xlu0 %6664
  %6666 = vrot.lane.b32.xlu0 %v6617, 24
  %v6667 = vpop.permute.xlu0 %6666
  %6668 = vrot.lane.b32.xlu0 %v6618, 24
  %v6669 = vpop.permute.xlu0 %6668
  %6670 = vrot.lane.b32.xlu0 %v6619, 24
  %v6671 = vpop.permute.xlu0 %6670
  %6672 = vrot.lane.b32.xlu0 %v6620, 24
  %v6673 = vpop.permute.xlu0 %6672
  %6674 = vrot.lane.b32.xlu0 %v6621, 24
  %v6675 = vpop.permute.xlu0 %6674
  %6676 = vrot.lane.b32.xlu0 %v6622, 24
  %v6677 = vpop.permute.xlu0 %6676
  %6678 = vrot.lane.b32.xlu0 %v6623, 24
  %v6679 = vpop.permute.xlu0 %6678
  %6680 = vrot.lane.b32.xlu0 %v6624, 24
  %v6681 = vpop.permute.xlu0 %6680
  %6682 = vrot.lane.b32.xlu0 %v6625, 24
  %v6683 = vpop.permute.xlu0 %6682
  %6684 = vrot.lane.b32.xlu0 %v6626, 24
  %v6685 = vpop.permute.xlu0 %6684
  %6686 = vrot.lane.b32.xlu0 %v6627, 24
  %v6687 = vpop.permute.xlu0 %6686
  %6688 = vrot.lane.b32.xlu0 %v6628, 24
  %v6689 = vpop.permute.xlu0 %6688
  %6690 = vrot.lane.b32.xlu0 %v6629, 24
  %v6691 = vpop.permute.xlu0 %6690
  %6692 = vrot.lane.b32.xlu0 %v6630, 24
  %v6693 = vpop.permute.xlu0 %6692
  %6694 = vrot.lane.b32.xlu0 %v6631, 24
  %v6695 = vpop.permute.xlu0 %6694
  %v6696 = vunpack.c.l.b16 %v4437
  %v6697 = vunpack.c.l.b16 %v4447
  %v6698 = vunpack.c.l.b16 %v4461
  %v6699 = vunpack.c.l.b16 %v4471
  %v6700 = vunpack.c.l.b16 %v4485
  %v6701 = vunpack.c.l.b16 %v4495
  %v6702 = vunpack.c.l.b16 %v4509
  %v6703 = vunpack.c.l.b16 %v4519
  %v6704 = vunpack.c.l.b16 %v4533
  %v6705 = vunpack.c.l.b16 %v4543
  %v6706 = vunpack.c.l.b16 %v4557
  %v6707 = vunpack.c.l.b16 %v4567
  %v6708 = vunpack.c.l.b16 %v4581
  %v6709 = vunpack.c.l.b16 %v4591
  %v6710 = vunpack.c.l.b16 %v4605
  %v6711 = vunpack.c.l.b16 %v4615
  %v6712 = vunpack.c.l.b16 %v4629
  %v6713 = vunpack.c.l.b16 %v4639
  %v6714 = vunpack.c.l.b16 %v4653
  %v6715 = vunpack.c.l.b16 %v4663
  %v6716 = vunpack.c.l.b16 %v4677
  %v6717 = vunpack.c.l.b16 %v4687
  %v6718 = vunpack.c.l.b16 %v4701
  %v6719 = vunpack.c.l.b16 %v4711
  %v6720 = vunpack.c.l.b16 %v4725
  %v6721 = vunpack.c.l.b16 %v4735
  %v6722 = vunpack.c.l.b16 %v4749
  %v6723 = vunpack.c.l.b16 %v4759
  %v6724 = vunpack.c.l.b16 %v4773
  %v6725 = vunpack.c.l.b16 %v4783
  %v6726 = vunpack.c.l.b16 %v4797
  %v6727 = vunpack.c.l.b16 %v4807
  %v6728 = vunpack.c.l.b16 %v4821
  %v6729 = vunpack.c.l.b16 %v4831
  %v6730 = vunpack.c.l.b16 %v4845
  %v6731 = vunpack.c.l.b16 %v4855
  %v6732 = vunpack.c.l.b16 %v4869
  %v6733 = vunpack.c.l.b16 %v4879
  %v6734 = vunpack.c.l.b16 %v4893
  %v6735 = vunpack.c.l.b16 %v4903
  %v6736 = vunpack.c.l.b16 %v4917
  %v6737 = vunpack.c.l.b16 %v4927
  %v6738 = vunpack.c.l.b16 %v4941
  %v6739 = vunpack.c.l.b16 %v4951
  %v6740 = vunpack.c.l.b16 %v4965
  %v6741 = vunpack.c.l.b16 %v4975
  %v6742 = vunpack.c.l.b16 %v4989
  %v6743 = vunpack.c.l.b16 %v4999
  %v6744 = vunpack.c.l.b16 %v5013
  %v6745 = vunpack.c.l.b16 %v5023
  %v6746 = vunpack.c.l.b16 %v5037
  %v6747 = vunpack.c.l.b16 %v5047
  %v6748 = vunpack.c.l.b16 %v5061
  %v6749 = vunpack.c.l.b16 %v5071
  %v6750 = vunpack.c.l.b16 %v5085
  %v6751 = vunpack.c.l.b16 %v5095
  %v6752 = vunpack.c.l.b16 %v5109
  %v6753 = vunpack.c.l.b16 %v5119
  %v6754 = vunpack.c.l.b16 %v5133
  %v6755 = vunpack.c.l.b16 %v5143
  %v6756 = vunpack.c.l.b16 %v5157
  %v6757 = vunpack.c.l.b16 %v5167
  %v6758 = vunpack.c.l.b16 %v5181
  %v6759 = vunpack.c.l.b16 %v5191
  %v6760 = vpack.c.b16 %v6697, %v6696
  %v6761 = vpack.c.b16 %v6699, %v6698
  %v6762 = vpack.c.b16 %v6701, %v6700
  %v6763 = vpack.c.b16 %v6703, %v6702
  %v6764 = vpack.c.b16 %v6705, %v6704
  %v6765 = vpack.c.b16 %v6707, %v6706
  %v6766 = vpack.c.b16 %v6709, %v6708
  %v6767 = vpack.c.b16 %v6711, %v6710
  %v6768 = vpack.c.b16 %v6713, %v6712
  %v6769 = vpack.c.b16 %v6715, %v6714
  %v6770 = vpack.c.b16 %v6717, %v6716
  %v6771 = vpack.c.b16 %v6719, %v6718
  %v6772 = vpack.c.b16 %v6721, %v6720
  %v6773 = vpack.c.b16 %v6723, %v6722
  %v6774 = vpack.c.b16 %v6725, %v6724
  %v6775 = vpack.c.b16 %v6727, %v6726
  %v6776 = vpack.c.b16 %v6729, %v6728
  %v6777 = vpack.c.b16 %v6731, %v6730
  %v6778 = vpack.c.b16 %v6733, %v6732
  %v6779 = vpack.c.b16 %v6735, %v6734
  %v6780 = vpack.c.b16 %v6737, %v6736
  %v6781 = vpack.c.b16 %v6739, %v6738
  %v6782 = vpack.c.b16 %v6741, %v6740
  %v6783 = vpack.c.b16 %v6743, %v6742
  %v6784 = vpack.c.b16 %v6745, %v6744
  %v6785 = vpack.c.b16 %v6747, %v6746
  %v6786 = vpack.c.b16 %v6749, %v6748
  %v6787 = vpack.c.b16 %v6751, %v6750
  %v6788 = vpack.c.b16 %v6753, %v6752
  %v6789 = vpack.c.b16 %v6755, %v6754
  %v6790 = vpack.c.b16 %v6757, %v6756
  %v6791 = vpack.c.b16 %v6759, %v6758
  %6792 = vrot.lane.b32.xlu0 %v6760, 28
  %v6793 = vpop.permute.xlu0 %6792
  %6794 = vrot.lane.b32.xlu0 %v6761, 28
  %v6795 = vpop.permute.xlu0 %6794
  %6796 = vrot.lane.b32.xlu0 %v6762, 28
  %v6797 = vpop.permute.xlu0 %6796
  %6798 = vrot.lane.b32.xlu0 %v6763, 28
  %v6799 = vpop.permute.xlu0 %6798
  %6800 = vrot.lane.b32.xlu0 %v6764, 28
  %v6801 = vpop.permute.xlu0 %6800
  %6802 = vrot.lane.b32.xlu0 %v6765, 28
  %v6803 = vpop.permute.xlu0 %6802
  %6804 = vrot.lane.b32.xlu0 %v6766, 28
  %v6805 = vpop.permute.xlu0 %6804
  %6806 = vrot.lane.b32.xlu0 %v6767, 28
  %v6807 = vpop.permute.xlu0 %6806
  %6808 = vrot.lane.b32.xlu0 %v6768, 28
  %v6809 = vpop.permute.xlu0 %6808
  %6810 = vrot.lane.b32.xlu0 %v6769, 28
  %v6811 = vpop.permute.xlu0 %6810
  %6812 = vrot.lane.b32.xlu0 %v6770, 28
  %v6813 = vpop.permute.xlu0 %6812
  %6814 = vrot.lane.b32.xlu0 %v6771, 28
  %v6815 = vpop.permute.xlu0 %6814
  %6816 = vrot.lane.b32.xlu0 %v6772, 28
  %v6817 = vpop.permute.xlu0 %6816
  %6818 = vrot.lane.b32.xlu0 %v6773, 28
  %v6819 = vpop.permute.xlu0 %6818
  %6820 = vrot.lane.b32.xlu0 %v6774, 28
  %v6821 = vpop.permute.xlu0 %6820
  %6822 = vrot.lane.b32.xlu0 %v6775, 28
  %v6823 = vpop.permute.xlu0 %6822
  %6824 = vrot.lane.b32.xlu0 %v6776, 28
  %v6825 = vpop.permute.xlu0 %6824
  %6826 = vrot.lane.b32.xlu0 %v6777, 28
  %v6827 = vpop.permute.xlu0 %6826
  %6828 = vrot.lane.b32.xlu0 %v6778, 28
  %v6829 = vpop.permute.xlu0 %6828
  %6830 = vrot.lane.b32.xlu0 %v6779, 28
  %v6831 = vpop.permute.xlu0 %6830
  %6832 = vrot.lane.b32.xlu0 %v6780, 28
  %v6833 = vpop.permute.xlu0 %6832
  %6834 = vrot.lane.b32.xlu0 %v6781, 28
  %v6835 = vpop.permute.xlu0 %6834
  %6836 = vrot.lane.b32.xlu0 %v6782, 28
  %v6837 = vpop.permute.xlu0 %6836
  %6838 = vrot.lane.b32.xlu0 %v6783, 28
  %v6839 = vpop.permute.xlu0 %6838
  %6840 = vrot.lane.b32.xlu0 %v6784, 28
  %v6841 = vpop.permute.xlu0 %6840
  %6842 = vrot.lane.b32.xlu0 %v6785, 28
  %v6843 = vpop.permute.xlu0 %6842
  %6844 = vrot.lane.b32.xlu0 %v6786, 28
  %v6845 = vpop.permute.xlu0 %6844
  %6846 = vrot.lane.b32.xlu0 %v6787, 28
  %v6847 = vpop.permute.xlu0 %6846
  %6848 = vrot.lane.b32.xlu0 %v6788, 28
  %v6849 = vpop.permute.xlu0 %6848
  %6850 = vrot.lane.b32.xlu0 %v6789, 28
  %v6851 = vpop.permute.xlu0 %6850
  %6852 = vrot.lane.b32.xlu0 %v6790, 28
  %v6853 = vpop.permute.xlu0 %6852
  %6854 = vrot.lane.b32.xlu0 %v6791, 28
  %v6855 = vpop.permute.xlu0 %6854
  %v6856 = vunpack.c.l.b16 %v5323
  %v6857 = vunpack.c.l.b16 %v5326
  %v6858 = vunpack.c.l.b16 %v5330
  %v6859 = vunpack.c.l.b16 %v5333
  %v6860 = vunpack.c.l.b16 %v5337
  %v6861 = vunpack.c.l.b16 %v5340
  %v6862 = vunpack.c.l.b16 %v5344
  %v6863 = vunpack.c.l.b16 %v5347
  %v6864 = vunpack.c.l.b16 %v5351
  %v6865 = vunpack.c.l.b16 %v5354
  %v6866 = vunpack.c.l.b16 %v5358
  %v6867 = vunpack.c.l.b16 %v5361
  %v6868 = vunpack.c.l.b16 %v5365
  %v6869 = vunpack.c.l.b16 %v5368
  %v6870 = vunpack.c.l.b16 %v5372
  %v6871 = vunpack.c.l.b16 %v5375
  %v6872 = vunpack.c.l.b16 %v5379
  %v6873 = vunpack.c.l.b16 %v5382
  %v6874 = vunpack.c.l.b16 %v5386
  %v6875 = vunpack.c.l.b16 %v5389
  %v6876 = vunpack.c.l.b16 %v5393
  %v6877 = vunpack.c.l.b16 %v5396
  %v6878 = vunpack.c.l.b16 %v5400
  %v6879 = vunpack.c.l.b16 %v5403
  %v6880 = vunpack.c.l.b16 %v5407
  %v6881 = vunpack.c.l.b16 %v5410
  %v6882 = vunpack.c.l.b16 %v5414
  %v6883 = vunpack.c.l.b16 %v5417
  %v6884 = vunpack.c.l.b16 %v5421
  %v6885 = vunpack.c.l.b16 %v5424
  %v6886 = vunpack.c.l.b16 %v5428
  %v6887 = vunpack.c.l.b16 %v5431
  %v6888 = vunpack.c.l.b16 %v5435
  %v6889 = vunpack.c.l.b16 %v5438
  %v6890 = vunpack.c.l.b16 %v5442
  %v6891 = vunpack.c.l.b16 %v5445
  %v6892 = vunpack.c.l.b16 %v5449
  %v6893 = vunpack.c.l.b16 %v5452
  %v6894 = vunpack.c.l.b16 %v5456
  %v6895 = vunpack.c.l.b16 %v5459
  %v6896 = vunpack.c.l.b16 %v5463
  %v6897 = vunpack.c.l.b16 %v5466
  %v6898 = vunpack.c.l.b16 %v5470
  %v6899 = vunpack.c.l.b16 %v5473
  %v6900 = vunpack.c.l.b16 %v5477
  %v6901 = vunpack.c.l.b16 %v5480
  %v6902 = vunpack.c.l.b16 %v5484
  %v6903 = vunpack.c.l.b16 %v5487
  %v6904 = vunpack.c.l.b16 %v5491
  %v6905 = vunpack.c.l.b16 %v5494
  %v6906 = vunpack.c.l.b16 %v5498
  %v6907 = vunpack.c.l.b16 %v5501
  %v6908 = vunpack.c.l.b16 %v5505
  %v6909 = vunpack.c.l.b16 %v5508
  %v6910 = vunpack.c.l.b16 %v5512
  %v6911 = vunpack.c.l.b16 %v5515
  %v6912 = vunpack.c.l.b16 %v5519
  %v6913 = vunpack.c.l.b16 %v5522
  %v6914 = vunpack.c.l.b16 %v5526
  %v6915 = vunpack.c.l.b16 %v5529
  %v6916 = vunpack.c.l.b16 %v5533
  %v6917 = vunpack.c.l.b16 %v5536
  %v6918 = vunpack.c.l.b16 %v5540
  %v6919 = vunpack.c.l.b16 %v5543
  %v6920 = vpack.c.b16 %v6857, %v6856
  %v6921 = vpack.c.b16 %v6859, %v6858
  %v6922 = vpack.c.b16 %v6861, %v6860
  %v6923 = vpack.c.b16 %v6863, %v6862
  %v6924 = vpack.c.b16 %v6865, %v6864
  %v6925 = vpack.c.b16 %v6867, %v6866
  %v6926 = vpack.c.b16 %v6869, %v6868
  %v6927 = vpack.c.b16 %v6871, %v6870
  %v6928 = vpack.c.b16 %v6873, %v6872
  %v6929 = vpack.c.b16 %v6875, %v6874
  %v6930 = vpack.c.b16 %v6877, %v6876
  %v6931 = vpack.c.b16 %v6879, %v6878
  %v6932 = vpack.c.b16 %v6881, %v6880
  %v6933 = vpack.c.b16 %v6883, %v6882
  %v6934 = vpack.c.b16 %v6885, %v6884
  %v6935 = vpack.c.b16 %v6887, %v6886
  %v6936 = vpack.c.b16 %v6889, %v6888
  %v6937 = vpack.c.b16 %v6891, %v6890
  %v6938 = vpack.c.b16 %v6893, %v6892
  %v6939 = vpack.c.b16 %v6895, %v6894
  %v6940 = vpack.c.b16 %v6897, %v6896
  %v6941 = vpack.c.b16 %v6899, %v6898
  %v6942 = vpack.c.b16 %v6901, %v6900
  %v6943 = vpack.c.b16 %v6903, %v6902
  %v6944 = vpack.c.b16 %v6905, %v6904
  %v6945 = vpack.c.b16 %v6907, %v6906
  %v6946 = vpack.c.b16 %v6909, %v6908
  %v6947 = vpack.c.b16 %v6911, %v6910
  %v6948 = vpack.c.b16 %v6913, %v6912
  %v6949 = vpack.c.b16 %v6915, %v6914
  %v6950 = vpack.c.b16 %v6917, %v6916
  %v6951 = vpack.c.b16 %v6919, %v6918
  %6952 = vrot.lane.b32.xlu0 %v6920, 32
  %v6953 = vpop.permute.xlu0 %6952
  %6954 = vrot.lane.b32.xlu0 %v6921, 32
  %v6955 = vpop.permute.xlu0 %6954
  %6956 = vrot.lane.b32.xlu0 %v6922, 32
  %v6957 = vpop.permute.xlu0 %6956
  %6958 = vrot.lane.b32.xlu0 %v6923, 32
  %v6959 = vpop.permute.xlu0 %6958
  %6960 = vrot.lane.b32.xlu0 %v6924, 32
  %v6961 = vpop.permute.xlu0 %6960
  %6962 = vrot.lane.b32.xlu0 %v6925, 32
  %v6963 = vpop.permute.xlu0 %6962
  %6964 = vrot.lane.b32.xlu0 %v6926, 32
  %v6965 = vpop.permute.xlu0 %6964
  %6966 = vrot.lane.b32.xlu0 %v6927, 32
  %v6967 = vpop.permute.xlu0 %6966
  %6968 = vrot.lane.b32.xlu0 %v6928, 32
  %v6969 = vpop.permute.xlu0 %6968
  %6970 = vrot.lane.b32.xlu0 %v6929, 32
  %v6971 = vpop.permute.xlu0 %6970
  %6972 = vrot.lane.b32.xlu0 %v6930, 32
  %v6973 = vpop.permute.xlu0 %6972
  %6974 = vrot.lane.b32.xlu0 %v6931, 32
  %v6975 = vpop.permute.xlu0 %6974
  %6976 = vrot.lane.b32.xlu0 %v6932, 32
  %v6977 = vpop.permute.xlu0 %6976
  %6978 = vrot.lane.b32.xlu0 %v6933, 32
  %v6979 = vpop.permute.xlu0 %6978
  %6980 = vrot.lane.b32.xlu0 %v6934, 32
  %v6981 = vpop.permute.xlu0 %6980
  %6982 = vrot.lane.b32.xlu0 %v6935, 32
  %v6983 = vpop.permute.xlu0 %6982
  %6984 = vrot.lane.b32.xlu0 %v6936, 32
  %v6985 = vpop.permute.xlu0 %6984
  %6986 = vrot.lane.b32.xlu0 %v6937, 32
  %v6987 = vpop.permute.xlu0 %6986
  %6988 = vrot.lane.b32.xlu0 %v6938, 32
  %v6989 = vpop.permute.xlu0 %6988
  %6990 = vrot.lane.b32.xlu0 %v6939, 32
  %v6991 = vpop.permute.xlu0 %6990
  %6992 = vrot.lane.b32.xlu0 %v6940, 32
  %v6993 = vpop.permute.xlu0 %6992
  %6994 = vrot.lane.b32.xlu0 %v6941, 32
  %v6995 = vpop.permute.xlu0 %6994
  %6996 = vrot.lane.b32.xlu0 %v6942, 32
  %v6997 = vpop.permute.xlu0 %6996
  %6998 = vrot.lane.b32.xlu0 %v6943, 32
  %v6999 = vpop.permute.xlu0 %6998
  %7000 = vrot.lane.b32.xlu0 %v6944, 32
  %v7001 = vpop.permute.xlu0 %7000
  %7002 = vrot.lane.b32.xlu0 %v6945, 32
  %v7003 = vpop.permute.xlu0 %7002
  %7004 = vrot.lane.b32.xlu0 %v6946, 32
  %v7005 = vpop.permute.xlu0 %7004
  %7006 = vrot.lane.b32.xlu0 %v6947, 32
  %v7007 = vpop.permute.xlu0 %7006
  %7008 = vrot.lane.b32.xlu0 %v6948, 32
  %v7009 = vpop.permute.xlu0 %7008
  %7010 = vrot.lane.b32.xlu0 %v6949, 32
  %v7011 = vpop.permute.xlu0 %7010
  %7012 = vrot.lane.b32.xlu0 %v6950, 32
  %v7013 = vpop.permute.xlu0 %7012
  %7014 = vrot.lane.b32.xlu0 %v6951, 32
  %v7015 = vpop.permute.xlu0 %7014
  %vm7016 = vcmask 31744
  %v7019 = vsel %vm7016, %v5640, %v5769
  %v7022 = vsel %vm7016, %v5641, %v5771
  %v7025 = vsel %vm7016, %v5642, %v5773
  %v7028 = vsel %vm7016, %v5643, %v5775
  %v7031 = vsel %vm7016, %v5644, %v5777
  %v7034 = vsel %vm7016, %v5645, %v5779
  %v7037 = vsel %vm7016, %v5646, %v5781
  %v7040 = vsel %vm7016, %v5647, %v5783
  %v7043 = vsel %vm7016, %v5648, %v5785
  %v7046 = vsel %vm7016, %v5649, %v5787
  %v7049 = vsel %vm7016, %v5650, %v5789
  %v7052 = vsel %vm7016, %v5651, %v5791
  %v7055 = vsel %vm7016, %v5652, %v5793
  %v7058 = vsel %vm7016, %v5653, %v5795
  %v7061 = vsel %vm7016, %v5654, %v5797
  %v7064 = vsel %vm7016, %v5655, %v5799
  %v7067 = vsel %vm7016, %v5656, %v5801
  %v7070 = vsel %vm7016, %v5657, %v5803
  %v7073 = vsel %vm7016, %v5658, %v5805
  %v7076 = vsel %vm7016, %v5659, %v5807
  %v7079 = vsel %vm7016, %v5660, %v5809
  %v7082 = vsel %vm7016, %v5661, %v5811
  %v7085 = vsel %vm7016, %v5662, %v5813
  %v7088 = vsel %vm7016, %v5663, %v5815
  %v7091 = vsel %vm7016, %v5664, %v5817
  %v7094 = vsel %vm7016, %v5665, %v5819
  %v7097 = vsel %vm7016, %v5666, %v5821
  %v7100 = vsel %vm7016, %v5667, %v5823
  %v7103 = vsel %vm7016, %v5668, %v5825
  %v7106 = vsel %vm7016, %v5669, %v5827
  %v7109 = vsel %vm7016, %v5670, %v5829
  %v7112 = vsel %vm7016, %v5671, %v5831
  %vm7113 = vcmask 64512
  %v7115 = vsel %vm7113, %v7019, %v5929
  %v7117 = vsel %vm7113, %v7022, %v5931
  %v7119 = vsel %vm7113, %v7025, %v5933
  %v7121 = vsel %vm7113, %v7028, %v5935
  %v7123 = vsel %vm7113, %v7031, %v5937
  %v7125 = vsel %vm7113, %v7034, %v5939
  %v7127 = vsel %vm7113, %v7037, %v5941
  %v7129 = vsel %vm7113, %v7040, %v5943
  %v7131 = vsel %vm7113, %v7043, %v5945
  %v7133 = vsel %vm7113, %v7046, %v5947
  %v7135 = vsel %vm7113, %v7049, %v5949
  %v7137 = vsel %vm7113, %v7052, %v5951
  %v7139 = vsel %vm7113, %v7055, %v5953
  %v7141 = vsel %vm7113, %v7058, %v5955
  %v7143 = vsel %vm7113, %v7061, %v5957
  %v7145 = vsel %vm7113, %v7064, %v5959
  %v7147 = vsel %vm7113, %v7067, %v5961
  %v7149 = vsel %vm7113, %v7070, %v5963
  %v7151 = vsel %vm7113, %v7073, %v5965
  %v7153 = vsel %vm7113, %v7076, %v5967
  %v7155 = vsel %vm7113, %v7079, %v5969
  %v7157 = vsel %vm7113, %v7082, %v5971
  %v7159 = vsel %vm7113, %v7085, %v5973
  %v7161 = vsel %vm7113, %v7088, %v5975
  %v7163 = vsel %vm7113, %v7091, %v5977
  %v7165 = vsel %vm7113, %v7094, %v5979
  %v7167 = vsel %vm7113, %v7097, %v5981
  %v7169 = vsel %vm7113, %v7100, %v5983
  %v7171 = vsel %vm7113, %v7103, %v5985
  %v7173 = vsel %vm7113, %v7106, %v5987
  %v7175 = vsel %vm7113, %v7109, %v5989
  %v7177 = vsel %vm7113, %v7112, %v5991
  %vm7178 = vcmask 97280
  %v7180 = vsel %vm7178, %v7115, %v6121
  %v7182 = vsel %vm7178, %v7117, %v6123
  %v7184 = vsel %vm7178, %v7119, %v6125
  %v7186 = vsel %vm7178, %v7121, %v6127
  %v7188 = vsel %vm7178, %v7123, %v6129
  %v7190 = vsel %vm7178, %v7125, %v6131
  %v7192 = vsel %vm7178, %v7127, %v6133
  %v7194 = vsel %vm7178, %v7129, %v6135
  %v7196 = vsel %vm7178, %v7131, %v6137
  %v7198 = vsel %vm7178, %v7133, %v6139
  %v7200 = vsel %vm7178, %v7135, %v6141
  %v7202 = vsel %vm7178, %v7137, %v6143
  %v7204 = vsel %vm7178, %v7139, %v6145
  %v7206 = vsel %vm7178, %v7141, %v6147
  %v7208 = vsel %vm7178, %v7143, %v6149
  %v7210 = vsel %vm7178, %v7145, %v6151
  %v7212 = vsel %vm7178, %v7147, %v6153
  %v7214 = vsel %vm7178, %v7149, %v6155
  %v7216 = vsel %vm7178, %v7151, %v6157
  %v7218 = vsel %vm7178, %v7153, %v6159
  %v7220 = vsel %vm7178, %v7155, %v6161
  %v7222 = vsel %vm7178, %v7157, %v6163
  %v7224 = vsel %vm7178, %v7159, %v6165
  %v7226 = vsel %vm7178, %v7161, %v6167
  %v7228 = vsel %vm7178, %v7163, %v6169
  %v7230 = vsel %vm7178, %v7165, %v6171
  %v7232 = vsel %vm7178, %v7167, %v6173
  %v7234 = vsel %vm7178, %v7169, %v6175
  %v7236 = vsel %vm7178, %v7171, %v6177
  %v7238 = vsel %vm7178, %v7173, %v6179
  %v7240 = vsel %vm7178, %v7175, %v6181
  %v7242 = vsel %vm7178, %v7177, %v6183
  %vm7243 = vcmask 130048
  %v7245 = vsel %vm7243, %v7180, %v6281
  %v7247 = vsel %vm7243, %v7182, %v6283
  %v7249 = vsel %vm7243, %v7184, %v6285
  %v7251 = vsel %vm7243, %v7186, %v6287
  %v7253 = vsel %vm7243, %v7188, %v6289
  %v7255 = vsel %vm7243, %v7190, %v6291
  %v7257 = vsel %vm7243, %v7192, %v6293
  %v7259 = vsel %vm7243, %v7194, %v6295
  %v7261 = vsel %vm7243, %v7196, %v6297
  %v7263 = vsel %vm7243, %v7198, %v6299
  %v7265 = vsel %vm7243, %v7200, %v6301
  %v7267 = vsel %vm7243, %v7202, %v6303
  %v7269 = vsel %vm7243, %v7204, %v6305
  %v7271 = vsel %vm7243, %v7206, %v6307
  %v7273 = vsel %vm7243, %v7208, %v6309
  %v7275 = vsel %vm7243, %v7210, %v6311
  %v7277 = vsel %vm7243, %v7212, %v6313
  %v7279 = vsel %vm7243, %v7214, %v6315
  %v7281 = vsel %vm7243, %v7216, %v6317
  %v7283 = vsel %vm7243, %v7218, %v6319
  %v7285 = vsel %vm7243, %v7220, %v6321
  %v7287 = vsel %vm7243, %v7222, %v6323
  %v7289 = vsel %vm7243, %v7224, %v6325
  %v7291 = vsel %vm7243, %v7226, %v6327
  %v7293 = vsel %vm7243, %v7228, %v6329
  %v7295 = vsel %vm7243, %v7230, %v6331
  %v7297 = vsel %vm7243, %v7232, %v6333
  %v7299 = vsel %vm7243, %v7234, %v6335
  %v7301 = vsel %vm7243, %v7236, %v6337
  %v7303 = vsel %vm7243, %v7238, %v6339
  %v7305 = vsel %vm7243, %v7240, %v6341
  %v7307 = vsel %vm7243, %v7242, %v6343
  %vm7308 = vcmask 162816
  %v7310 = vsel %vm7308, %v7245, %v6441
  %v7312 = vsel %vm7308, %v7247, %v6443
  %v7314 = vsel %vm7308, %v7249, %v6445
  %v7316 = vsel %vm7308, %v7251, %v6447
  %v7318 = vsel %vm7308, %v7253, %v6449
  %v7320 = vsel %vm7308, %v7255, %v6451
  %v7322 = vsel %vm7308, %v7257, %v6453
  %v7324 = vsel %vm7308, %v7259, %v6455
  %v7326 = vsel %vm7308, %v7261, %v6457
  %v7328 = vsel %vm7308, %v7263, %v6459
  %v7330 = vsel %vm7308, %v7265, %v6461
  %v7332 = vsel %vm7308, %v7267, %v6463
  %v7334 = vsel %vm7308, %v7269, %v6465
  %v7336 = vsel %vm7308, %v7271, %v6467
  %v7338 = vsel %vm7308, %v7273, %v6469
  %v7340 = vsel %vm7308, %v7275, %v6471
  %v7342 = vsel %vm7308, %v7277, %v6473
  %v7344 = vsel %vm7308, %v7279, %v6475
  %v7346 = vsel %vm7308, %v7281, %v6477
  %v7348 = vsel %vm7308, %v7283, %v6479
  %v7350 = vsel %vm7308, %v7285, %v6481
  %v7352 = vsel %vm7308, %v7287, %v6483
  %v7354 = vsel %vm7308, %v7289, %v6485
  %v7356 = vsel %vm7308, %v7291, %v6487
  %v7358 = vsel %vm7308, %v7293, %v6489
  %v7360 = vsel %vm7308, %v7295, %v6491
  %v7362 = vsel %vm7308, %v7297, %v6493
  %v7364 = vsel %vm7308, %v7299, %v6495
  %v7366 = vsel %vm7308, %v7301, %v6497
  %v7368 = vsel %vm7308, %v7303, %v6499
  %v7370 = vsel %vm7308, %v7305, %v6501
  %v7372 = vsel %vm7308, %v7307, %v6503
  %vm7373 = vcmask 195584
  %v7375 = vsel %vm7373, %v7310, %v6633
  %v7377 = vsel %vm7373, %v7312, %v6635
  %v7379 = vsel %vm7373, %v7314, %v6637
  %v7381 = vsel %vm7373, %v7316, %v6639
  %v7383 = vsel %vm7373, %v7318, %v6641
  %v7385 = vsel %vm7373, %v7320, %v6643
  %v7387 = vsel %vm7373, %v7322, %v6645
  %v7389 = vsel %vm7373, %v7324, %v6647
  %v7391 = vsel %vm7373, %v7326, %v6649
  %v7393 = vsel %vm7373, %v7328, %v6651
  %v7395 = vsel %vm7373, %v7330, %v6653
  %v7397 = vsel %vm7373, %v7332, %v6655
  %v7399 = vsel %vm7373, %v7334, %v6657
  %v7401 = vsel %vm7373, %v7336, %v6659
  %v7403 = vsel %vm7373, %v7338, %v6661
  %v7405 = vsel %vm7373, %v7340, %v6663
  %v7407 = vsel %vm7373, %v7342, %v6665
  %v7409 = vsel %vm7373, %v7344, %v6667
  %v7411 = vsel %vm7373, %v7346, %v6669
  %v7413 = vsel %vm7373, %v7348, %v6671
  %v7415 = vsel %vm7373, %v7350, %v6673
  %v7417 = vsel %vm7373, %v7352, %v6675
  %v7419 = vsel %vm7373, %v7354, %v6677
  %v7421 = vsel %vm7373, %v7356, %v6679
  %v7423 = vsel %vm7373, %v7358, %v6681
  %v7425 = vsel %vm7373, %v7360, %v6683
  %v7427 = vsel %vm7373, %v7362, %v6685
  %v7429 = vsel %vm7373, %v7364, %v6687
  %v7431 = vsel %vm7373, %v7366, %v6689
  %v7433 = vsel %vm7373, %v7368, %v6691
  %v7435 = vsel %vm7373, %v7370, %v6693
  %v7437 = vsel %vm7373, %v7372, %v6695
  %vm7438 = vcmask 228352
  %v7440 = vsel %vm7438, %v7375, %v6793
  %v7442 = vsel %vm7438, %v7377, %v6795
  %v7444 = vsel %vm7438, %v7379, %v6797
  %v7446 = vsel %vm7438, %v7381, %v6799
  %v7448 = vsel %vm7438, %v7383, %v6801
  %v7450 = vsel %vm7438, %v7385, %v6803
  %v7452 = vsel %vm7438, %v7387, %v6805
  %v7454 = vsel %vm7438, %v7389, %v6807
  %v7456 = vsel %vm7438, %v7391, %v6809
  %v7458 = vsel %vm7438, %v7393, %v6811
  %v7460 = vsel %vm7438, %v7395, %v6813
  %v7462 = vsel %vm7438, %v7397, %v6815
  %v7464 = vsel %vm7438, %v7399, %v6817
  %v7466 = vsel %vm7438, %v7401, %v6819
  %v7468 = vsel %vm7438, %v7403, %v6821
  %v7470 = vsel %vm7438, %v7405, %v6823
  %v7472 = vsel %vm7438, %v7407, %v6825
  %v7474 = vsel %vm7438, %v7409, %v6827
  %v7476 = vsel %vm7438, %v7411, %v6829
  %v7478 = vsel %vm7438, %v7413, %v6831
  %v7480 = vsel %vm7438, %v7415, %v6833
  %v7482 = vsel %vm7438, %v7417, %v6835
  %v7484 = vsel %vm7438, %v7419, %v6837
  %v7486 = vsel %vm7438, %v7421, %v6839
  %v7488 = vsel %vm7438, %v7423, %v6841
  %v7490 = vsel %vm7438, %v7425, %v6843
  %v7492 = vsel %vm7438, %v7427, %v6845
  %v7494 = vsel %vm7438, %v7429, %v6847
  %v7496 = vsel %vm7438, %v7431, %v6849
  %v7498 = vsel %vm7438, %v7433, %v6851
  %v7500 = vsel %vm7438, %v7435, %v6853
  %v7502 = vsel %vm7438, %v7437, %v6855
  %vm7503 = vcmask 261120
  %v7505 = vsel %vm7503, %v7440, %v6953
  %v7507 = vsel %vm7503, %v7442, %v6955
  %v7509 = vsel %vm7503, %v7444, %v6957
  %v7511 = vsel %vm7503, %v7446, %v6959
  %v7513 = vsel %vm7503, %v7448, %v6961
  %v7515 = vsel %vm7503, %v7450, %v6963
  %v7517 = vsel %vm7503, %v7452, %v6965
  %v7519 = vsel %vm7503, %v7454, %v6967
  %v7521 = vsel %vm7503, %v7456, %v6969
  %v7523 = vsel %vm7503, %v7458, %v6971
  %v7525 = vsel %vm7503, %v7460, %v6973
  %v7527 = vsel %vm7503, %v7462, %v6975
  %v7529 = vsel %vm7503, %v7464, %v6977
  %v7531 = vsel %vm7503, %v7466, %v6979
  %v7533 = vsel %vm7503, %v7468, %v6981
  %v7535 = vsel %vm7503, %v7470, %v6983
  %v7537 = vsel %vm7503, %v7472, %v6985
  %v7539 = vsel %vm7503, %v7474, %v6987
  %v7541 = vsel %vm7503, %v7476, %v6989
  %v7543 = vsel %vm7503, %v7478, %v6991
  %v7545 = vsel %vm7503, %v7480, %v6993
  %v7547 = vsel %vm7503, %v7482, %v6995
  %v7549 = vsel %vm7503, %v7484, %v6997
  %v7551 = vsel %vm7503, %v7486, %v6999
  %v7553 = vsel %vm7503, %v7488, %v7001
  %v7555 = vsel %vm7503, %v7490, %v7003
  %v7557 = vsel %vm7503, %v7492, %v7005
  %v7559 = vsel %vm7503, %v7494, %v7007
  %v7561 = vsel %vm7503, %v7496, %v7009
  %v7563 = vsel %vm7503, %v7498, %v7011
  %v7565 = vsel %vm7503, %v7500, %v7013
  %v7567 = vsel %vm7503, %v7502, %v7015
  %v7568 = vld [vmem:[%s5] sm:$0xf]
  %v7569 = vld [vmem:[%s5 + $0x4] sm:$0xf]
  %v7570 = vld [vmem:[%s5 + $0x8] sm:$0xf]
  %v7571 = vld [vmem:[%s5 + $0xc] sm:$0xf]
  %v7572 = vld [vmem:[%s5 + $0x10] sm:$0x3]
  %v7578 = vunpack.c.l.b16 %v7568
  %v7579 = vunpack.c.l.b16 %v7569
  %v7580 = vunpack.c.l.b16 %v7570
  %v7581 = vunpack.c.l.b16 %v7571
  %v7582 = vunpack.c.l.b16 %v7572
  %v7583 = vpack.c.b16 %v7579, %v7578
  %v7584 = vpack.c.b16 %v7581, %v7580
  %v7585 = vpack.c.b16 %v7582, %v7582
  %v7588 = vsel %vm274, %v7505, 0
  %v7590 = vsel %vm274, %v7507, 0
  %v7592 = vsel %vm274, %v7509, 0
  %v7594 = vsel %vm274, %v7511, 0
  %v7596 = vsel %vm274, %v7513, 0
  %v7598 = vsel %vm274, %v7515, 0
  %v7600 = vsel %vm274, %v7517, 0
  %v7602 = vsel %vm274, %v7519, 0
  %v7604 = vsel %vm274, %v7521, 0
  %v7606 = vsel %vm274, %v7523, 0
  %v7608 = vsel %vm274, %v7525, 0
  %v7610 = vsel %vm274, %v7527, 0
  %v7612 = vsel %vm274, %v7529, 0
  %v7614 = vsel %vm274, %v7531, 0
  %v7616 = vsel %vm274, %v7533, 0
  %v7618 = vsel %vm274, %v7535, 0
  %v7620 = vsel %vm274, %v7537, 0
  %v7622 = vsel %vm274, %v7539, 0
  %v7624 = vsel %vm274, %v7541, 0
  %v7626 = vsel %vm274, %v7543, 0
  %v7628 = vsel %vm274, %v7545, 0
  %v7630 = vsel %vm274, %v7547, 0
  %v7632 = vsel %vm274, %v7549, 0
  %v7634 = vsel %vm274, %v7551, 0
  %v7636 = vsel %vm274, %v7553, 0
  %v7638 = vsel %vm274, %v7555, 0
  %v7640 = vsel %vm274, %v7557, 0
  %v7642 = vsel %vm274, %v7559, 0
  %v7644 = vsel %vm274, %v7561, 0
  %v7646 = vsel %vm274, %v7563, 0
  %v7648 = vsel %vm274, %v7565, 0
  %v7650 = vsel %vm274, %v7567, 0
  %v7653 = vsel %vm371, %v7585, 0
  %7655 = vmatpush.bf16.msra.mxu0 0
  %7656 = vmatpush.bf16.msra.mxu0 0
  %7657 = vmatpush.bf16.msra.mxu0 0
  %7658 = vmatpush.bf16.msra.mxu0 0
  %7659 = vmatpush.bf16.msra.mxu0 0
  %7660 = vmatpush.bf16.msra.mxu0 %v7653
  %7661 = vmatpush.bf16.msra.mxu0 %v7584
  %7662 = vmatpush.bf16.msra.mxu0 %v7583
  %7663 = vmatmul.bf16.gmra.mxu0 %v7588
  %v7664 = vpop.f32.mrf.mxu0
  %v7665 = vadd.f32 0.0, %v7664
  %v7666 = vpop.f32.mrf.mxu0
  %v7667 = vadd.f32 0.0, %v7666
  %7668 = vmatmul.bf16.gmra.mxu0 %v7590
  %v7669 = vpop.f32.mrf.mxu0
  %v7670 = vadd.f32 0.0, %v7669
  %v7671 = vpop.f32.mrf.mxu0
  %v7672 = vadd.f32 0.0, %v7671
  %7673 = vmatmul.bf16.gmra.mxu0 %v7592
  %v7674 = vpop.f32.mrf.mxu0
  %v7675 = vadd.f32 0.0, %v7674
  %v7676 = vpop.f32.mrf.mxu0
  %v7677 = vadd.f32 0.0, %v7676
  %7678 = vmatmul.bf16.gmra.mxu0 %v7594
  %v7679 = vpop.f32.mrf.mxu0
  %v7680 = vadd.f32 0.0, %v7679
  %v7681 = vpop.f32.mrf.mxu0
  %v7682 = vadd.f32 0.0, %v7681
  %7683 = vmatmul.bf16.gmra.mxu0 %v7596
  %v7684 = vpop.f32.mrf.mxu0
  %v7685 = vadd.f32 0.0, %v7684
  %v7686 = vpop.f32.mrf.mxu0
  %v7687 = vadd.f32 0.0, %v7686
  %7688 = vmatmul.bf16.gmra.mxu0 %v7598
  %v7689 = vpop.f32.mrf.mxu0
  %v7690 = vadd.f32 0.0, %v7689
  %v7691 = vpop.f32.mrf.mxu0
  %v7692 = vadd.f32 0.0, %v7691
  %7693 = vmatmul.bf16.gmra.mxu0 %v7600
  %v7694 = vpop.f32.mrf.mxu0
  %v7695 = vadd.f32 0.0, %v7694
  %v7696 = vpop.f32.mrf.mxu0
  %v7697 = vadd.f32 0.0, %v7696
  %7698 = vmatmul.bf16.gmra.mxu0 %v7602
  %v7699 = vpop.f32.mrf.mxu0
  %v7700 = vadd.f32 0.0, %v7699
  %v7701 = vpop.f32.mrf.mxu0
  %v7702 = vadd.f32 0.0, %v7701
  %7703 = vmatmul.bf16.gmra.mxu0 %v7604
  %v7704 = vpop.f32.mrf.mxu0
  %v7705 = vadd.f32 0.0, %v7704
  %v7706 = vpop.f32.mrf.mxu0
  %v7707 = vadd.f32 0.0, %v7706
  %7708 = vmatmul.bf16.gmra.mxu0 %v7606
  %v7709 = vpop.f32.mrf.mxu0
  %v7710 = vadd.f32 0.0, %v7709
  %v7711 = vpop.f32.mrf.mxu0
  %v7712 = vadd.f32 0.0, %v7711
  %7713 = vmatmul.bf16.gmra.mxu0 %v7608
  %v7714 = vpop.f32.mrf.mxu0
  %v7715 = vadd.f32 0.0, %v7714
  %v7716 = vpop.f32.mrf.mxu0
  %v7717 = vadd.f32 0.0, %v7716
  %7718 = vmatmul.bf16.gmra.mxu0 %v7610
  %v7719 = vpop.f32.mrf.mxu0
  %v7720 = vadd.f32 0.0, %v7719
  %v7721 = vpop.f32.mrf.mxu0
  %v7722 = vadd.f32 0.0, %v7721
  %7723 = vmatmul.bf16.gmra.mxu0 %v7612
  %v7724 = vpop.f32.mrf.mxu0
  %v7725 = vadd.f32 0.0, %v7724
  %v7726 = vpop.f32.mrf.mxu0
  %v7727 = vadd.f32 0.0, %v7726
  %7728 = vmatmul.bf16.gmra.mxu0 %v7614
  %v7729 = vpop.f32.mrf.mxu0
  %v7730 = vadd.f32 0.0, %v7729
  %v7731 = vpop.f32.mrf.mxu0
  %v7732 = vadd.f32 0.0, %v7731
  %7733 = vmatmul.bf16.gmra.mxu0 %v7616
  %v7734 = vpop.f32.mrf.mxu0
  %v7735 = vadd.f32 0.0, %v7734
  %v7736 = vpop.f32.mrf.mxu0
  %v7737 = vadd.f32 0.0, %v7736
  %7738 = vmatmul.bf16.gmra.mxu0 %v7618
  %v7739 = vpop.f32.mrf.mxu0
  %v7740 = vadd.f32 0.0, %v7739
  %v7741 = vpop.f32.mrf.mxu0
  %v7742 = vadd.f32 0.0, %v7741
  %7743 = vmatmul.bf16.gmra.mxu0 %v7620
  %v7744 = vpop.f32.mrf.mxu0
  %v7745 = vadd.f32 0.0, %v7744
  %v7746 = vpop.f32.mrf.mxu0
  %v7747 = vadd.f32 0.0, %v7746
  %7748 = vmatmul.bf16.gmra.mxu0 %v7622
  %v7749 = vpop.f32.mrf.mxu0
  %v7750 = vadd.f32 0.0, %v7749
  %v7751 = vpop.f32.mrf.mxu0
  %v7752 = vadd.f32 0.0, %v7751
  %7753 = vmatmul.bf16.gmra.mxu0 %v7624
  %v7754 = vpop.f32.mrf.mxu0
  %v7755 = vadd.f32 0.0, %v7754
  %v7756 = vpop.f32.mrf.mxu0
  %v7757 = vadd.f32 0.0, %v7756
  %7758 = vmatmul.bf16.gmra.mxu0 %v7626
  %v7759 = vpop.f32.mrf.mxu0
  %v7760 = vadd.f32 0.0, %v7759
  %v7761 = vpop.f32.mrf.mxu0
  %v7762 = vadd.f32 0.0, %v7761
  %7763 = vmatmul.bf16.gmra.mxu0 %v7628
  %v7764 = vpop.f32.mrf.mxu0
  %v7765 = vadd.f32 0.0, %v7764
  %v7766 = vpop.f32.mrf.mxu0
  %v7767 = vadd.f32 0.0, %v7766
  %7768 = vmatmul.bf16.gmra.mxu0 %v7630
  %v7769 = vpop.f32.mrf.mxu0
  %v7770 = vadd.f32 0.0, %v7769
  %v7771 = vpop.f32.mrf.mxu0
  %v7772 = vadd.f32 0.0, %v7771
  %7773 = vmatmul.bf16.gmra.mxu0 %v7632
  %v7774 = vpop.f32.mrf.mxu0
  %v7775 = vadd.f32 0.0, %v7774
  %v7776 = vpop.f32.mrf.mxu0
  %v7777 = vadd.f32 0.0, %v7776
  %7778 = vmatmul.bf16.gmra.mxu0 %v7634
  %v7779 = vpop.f32.mrf.mxu0
  %v7780 = vadd.f32 0.0, %v7779
  %v7781 = vpop.f32.mrf.mxu0
  %v7782 = vadd.f32 0.0, %v7781
  %7783 = vmatmul.bf16.gmra.mxu0 %v7636
  %v7784 = vpop.f32.mrf.mxu0
  %v7785 = vadd.f32 0.0, %v7784
  %v7786 = vpop.f32.mrf.mxu0
  %v7787 = vadd.f32 0.0, %v7786
  %7788 = vmatmul.bf16.gmra.mxu0 %v7638
  %v7789 = vpop.f32.mrf.mxu0
  %v7790 = vadd.f32 0.0, %v7789
  %v7791 = vpop.f32.mrf.mxu0
  %v7792 = vadd.f32 0.0, %v7791
  %7793 = vmatmul.bf16.gmra.mxu0 %v7640
  %v7794 = vpop.f32.mrf.mxu0
  %v7795 = vadd.f32 0.0, %v7794
  %v7796 = vpop.f32.mrf.mxu0
  %v7797 = vadd.f32 0.0, %v7796
  %7798 = vmatmul.bf16.gmra.mxu0 %v7642
  %v7799 = vpop.f32.mrf.mxu0
  %v7800 = vadd.f32 0.0, %v7799
  %v7801 = vpop.f32.mrf.mxu0
  %v7802 = vadd.f32 0.0, %v7801
  %7803 = vmatmul.bf16.gmra.mxu0 %v7644
  %v7804 = vpop.f32.mrf.mxu0
  %v7805 = vadd.f32 0.0, %v7804
  %v7806 = vpop.f32.mrf.mxu0
  %v7807 = vadd.f32 0.0, %v7806
  %7808 = vmatmul.bf16.gmra.mxu0 %v7646
  %v7809 = vpop.f32.mrf.mxu0
  %v7810 = vadd.f32 0.0, %v7809
  %v7811 = vpop.f32.mrf.mxu0
  %v7812 = vadd.f32 0.0, %v7811
  %7813 = vmatmul.bf16.gmra.mxu0 %v7648
  %v7814 = vpop.f32.mrf.mxu0
  %v7815 = vadd.f32 0.0, %v7814
  %v7816 = vpop.f32.mrf.mxu0
  %v7817 = vadd.f32 0.0, %v7816
  %7818 = vmatmul.bf16.gmra.mxu0 %v7650
  %v7819 = vpop.f32.mrf.mxu0
  %v7820 = vadd.f32 0.0, %v7819
  %v7821 = vpop.f32.mrf.mxu0
  %v7822 = vadd.f32 0.0, %v7821
  %7823 = vdwg.mxu0
  %v7824 = vld [vmem:[%s6] sm:$0x1]
  %v7826 = vperm.slane %v7824, 0
  %v7828 = vmul.f32 %v7665, %v7826
  %v7829 = vmul.f32 %v7667, %v7826
  %v7830 = vmul.f32 %v7670, %v7826
  %v7831 = vmul.f32 %v7672, %v7826
  %v7832 = vmul.f32 %v7675, %v7826
  %v7833 = vmul.f32 %v7677, %v7826
  %v7834 = vmul.f32 %v7680, %v7826
  %v7835 = vmul.f32 %v7682, %v7826
  %v7836 = vmul.f32 %v7685, %v7826
  %v7837 = vmul.f32 %v7687, %v7826
  %v7838 = vmul.f32 %v7690, %v7826
  %v7839 = vmul.f32 %v7692, %v7826
  %v7840 = vmul.f32 %v7695, %v7826
  %v7841 = vmul.f32 %v7697, %v7826
  %v7842 = vmul.f32 %v7700, %v7826
  %v7843 = vmul.f32 %v7702, %v7826
  %v7844 = vmul.f32 %v7705, %v7826
  %v7845 = vmul.f32 %v7707, %v7826
  %v7846 = vmul.f32 %v7710, %v7826
  %v7847 = vmul.f32 %v7712, %v7826
  %v7848 = vmul.f32 %v7715, %v7826
  %v7849 = vmul.f32 %v7717, %v7826
  %v7850 = vmul.f32 %v7720, %v7826
  %v7851 = vmul.f32 %v7722, %v7826
  %v7852 = vmul.f32 %v7725, %v7826
  %v7853 = vmul.f32 %v7727, %v7826
  %v7854 = vmul.f32 %v7730, %v7826
  %v7855 = vmul.f32 %v7732, %v7826
  %v7856 = vmul.f32 %v7735, %v7826
  %v7857 = vmul.f32 %v7737, %v7826
  %v7858 = vmul.f32 %v7740, %v7826
  %v7859 = vmul.f32 %v7742, %v7826
  %v7860 = vmul.f32 %v7745, %v7826
  %v7861 = vmul.f32 %v7747, %v7826
  %v7862 = vmul.f32 %v7750, %v7826
  %v7863 = vmul.f32 %v7752, %v7826
  %v7864 = vmul.f32 %v7755, %v7826
  %v7865 = vmul.f32 %v7757, %v7826
  %v7866 = vmul.f32 %v7760, %v7826
  %v7867 = vmul.f32 %v7762, %v7826
  %v7868 = vmul.f32 %v7765, %v7826
  %v7869 = vmul.f32 %v7767, %v7826
  %v7870 = vmul.f32 %v7770, %v7826
  %v7871 = vmul.f32 %v7772, %v7826
  %v7872 = vmul.f32 %v7775, %v7826
  %v7873 = vmul.f32 %v7777, %v7826
  %v7874 = vmul.f32 %v7780, %v7826
  %v7875 = vmul.f32 %v7782, %v7826
  %v7876 = vmul.f32 %v7785, %v7826
  %v7877 = vmul.f32 %v7787, %v7826
  %v7878 = vmul.f32 %v7790, %v7826
  %v7879 = vmul.f32 %v7792, %v7826
  %v7880 = vmul.f32 %v7795, %v7826
  %v7881 = vmul.f32 %v7797, %v7826
  %v7882 = vmul.f32 %v7800, %v7826
  %v7883 = vmul.f32 %v7802, %v7826
  %v7884 = vmul.f32 %v7805, %v7826
  %v7885 = vmul.f32 %v7807, %v7826
  %v7886 = vmul.f32 %v7810, %v7826
  %v7887 = vmul.f32 %v7812, %v7826
  %v7888 = vmul.f32 %v7815, %v7826
  %v7889 = vmul.f32 %v7817, %v7826
  %v7890 = vmul.f32 %v7820, %v7826
  %v7891 = vmul.f32 %v7822, %v7826
  %v7892 = vld [vmem:[%s7] sm:$0x1]
  %v7894 = vperm.slane %v7892, 0
  %v7896 = vadd.f32 %v7828, %v7894
  %v7897 = vadd.f32 %v7829, %v7894
  %v7898 = vadd.f32 %v7830, %v7894
  %v7899 = vadd.f32 %v7831, %v7894
  %v7900 = vadd.f32 %v7832, %v7894
  %v7901 = vadd.f32 %v7833, %v7894
  %v7902 = vadd.f32 %v7834, %v7894
  %v7903 = vadd.f32 %v7835, %v7894
  %v7904 = vadd.f32 %v7836, %v7894
  %v7905 = vadd.f32 %v7837, %v7894
  %v7906 = vadd.f32 %v7838, %v7894
  %v7907 = vadd.f32 %v7839, %v7894
  %v7908 = vadd.f32 %v7840, %v7894
  %v7909 = vadd.f32 %v7841, %v7894
  %v7910 = vadd.f32 %v7842, %v7894
  %v7911 = vadd.f32 %v7843, %v7894
  %v7912 = vadd.f32 %v7844, %v7894
  %v7913 = vadd.f32 %v7845, %v7894
  %v7914 = vadd.f32 %v7846, %v7894
  %v7915 = vadd.f32 %v7847, %v7894
  %v7916 = vadd.f32 %v7848, %v7894
  %v7917 = vadd.f32 %v7849, %v7894
  %v7918 = vadd.f32 %v7850, %v7894
  %v7919 = vadd.f32 %v7851, %v7894
  %v7920 = vadd.f32 %v7852, %v7894
  %v7921 = vadd.f32 %v7853, %v7894
  %v7922 = vadd.f32 %v7854, %v7894
  %v7923 = vadd.f32 %v7855, %v7894
  %v7924 = vadd.f32 %v7856, %v7894
  %v7925 = vadd.f32 %v7857, %v7894
  %v7926 = vadd.f32 %v7858, %v7894
  %v7927 = vadd.f32 %v7859, %v7894
  %v7928 = vadd.f32 %v7860, %v7894
  %v7929 = vadd.f32 %v7861, %v7894
  %v7930 = vadd.f32 %v7862, %v7894
  %v7931 = vadd.f32 %v7863, %v7894
  %v7932 = vadd.f32 %v7864, %v7894
  %v7933 = vadd.f32 %v7865, %v7894
  %v7934 = vadd.f32 %v7866, %v7894
  %v7935 = vadd.f32 %v7867, %v7894
  %v7936 = vadd.f32 %v7868, %v7894
  %v7937 = vadd.f32 %v7869, %v7894
  %v7938 = vadd.f32 %v7870, %v7894
  %v7939 = vadd.f32 %v7871, %v7894
  %v7940 = vadd.f32 %v7872, %v7894
  %v7941 = vadd.f32 %v7873, %v7894
  %v7942 = vadd.f32 %v7874, %v7894
  %v7943 = vadd.f32 %v7875, %v7894
  %v7944 = vadd.f32 %v7876, %v7894
  %v7945 = vadd.f32 %v7877, %v7894
  %v7946 = vadd.f32 %v7878, %v7894
  %v7947 = vadd.f32 %v7879, %v7894
  %v7948 = vadd.f32 %v7880, %v7894
  %v7949 = vadd.f32 %v7881, %v7894
  %v7950 = vadd.f32 %v7882, %v7894
  %v7951 = vadd.f32 %v7883, %v7894
  %v7952 = vadd.f32 %v7884, %v7894
  %v7953 = vadd.f32 %v7885, %v7894
  %v7954 = vadd.f32 %v7886, %v7894
  %v7955 = vadd.f32 %v7887, %v7894
  %v7956 = vadd.f32 %v7888, %v7894
  %v7957 = vadd.f32 %v7889, %v7894
  %v7958 = vadd.f32 %v7890, %v7894
  %v7959 = vadd.f32 %v7891, %v7894
  %v7960 = vld [vmem:[%s1] sm:$0xff]
  %v7961 = vld [vmem:[%s1 + $0x8] sm:$0xff]
  %v7962 = vld [vmem:[%s1 + $0x10] sm:$0xff]
  %v7963 = vld [vmem:[%s1 + $0x18] sm:$0xff]
  %v7964 = vld [vmem:[%s1 + $0x20] sm:$0xff]
  %v7965 = vld [vmem:[%s1 + $0x28] sm:$0xff]
  %v7966 = vld [vmem:[%s1 + $0x30] sm:$0xff]
  %v7967 = vld [vmem:[%s1 + $0x38] sm:$0xff]
  %v7968 = vld [vmem:[%s1 + $0x40] sm:$0xff]
  %v7969 = vld [vmem:[%s1 + $0x48] sm:$0xff]
  %v7970 = vld [vmem:[%s1 + $0x50] sm:$0xff]
  %v7971 = vld [vmem:[%s1 + $0x58] sm:$0xff]
  %v7972 = vld [vmem:[%s1 + $0x60] sm:$0xff]
  %v7973 = vld [vmem:[%s1 + $0x68] sm:$0xff]
  %v7974 = vld [vmem:[%s1 + $0x70] sm:$0xff]
  %v7975 = vld [vmem:[%s1 + $0x78] sm:$0xff]
  %v7976 = vld [vmem:[%s1 + $0x80] sm:$0xff]
  %v7977 = vld [vmem:[%s1 + $0x88] sm:$0xff]
  %v7978 = vld [vmem:[%s1 + $0x90] sm:$0xff]
  %v7979 = vld [vmem:[%s1 + $0x98] sm:$0xff]
  %v7980 = vld [vmem:[%s1 + $0xa0] sm:$0xff]
  %v7981 = vld [vmem:[%s1 + $0xa8] sm:$0xff]
  %v7982 = vld [vmem:[%s1 + $0xb0] sm:$0xff]
  %v7983 = vld [vmem:[%s1 + $0xb8] sm:$0xff]
  %v7984 = vld [vmem:[%s1 + $0xc0] sm:$0xff]
  %v7985 = vld [vmem:[%s1 + $0xc8] sm:$0xff]
  %v7986 = vld [vmem:[%s1 + $0xd0] sm:$0xff]
  %v7987 = vld [vmem:[%s1 + $0xd8] sm:$0xff]
  %v7988 = vld [vmem:[%s1 + $0xe0] sm:$0xff]
  %v7989 = vld [vmem:[%s1 + $0xe8] sm:$0xff]
  %v7990 = vld [vmem:[%s1 + $0xf0] sm:$0xff]
  %v7991 = vld [vmem:[%s1 + $0xf8] sm:$0xff]
  %v7992 = vld [vmem:[%s1 + $0x100] sm:$0xff]
  %v7993 = vld [vmem:[%s1 + $0x108] sm:$0xff]
  %v7994 = vld [vmem:[%s1 + $0x110] sm:$0xff]
  %v7995 = vld [vmem:[%s1 + $0x118] sm:$0xff]
  %v7996 = vld [vmem:[%s1 + $0x120] sm:$0xff]
  %v7997 = vld [vmem:[%s1 + $0x128] sm:$0xff]
  %v7998 = vld [vmem:[%s1 + $0x130] sm:$0xff]
  %v7999 = vld [vmem:[%s1 + $0x138] sm:$0xff]
  %v8000 = vld [vmem:[%s1 + $0x140] sm:$0xff]
  %v8001 = vld [vmem:[%s1 + $0x148] sm:$0xff]
  %v8002 = vld [vmem:[%s1 + $0x150] sm:$0xff]
  %v8003 = vld [vmem:[%s1 + $0x158] sm:$0xff]
  %v8004 = vld [vmem:[%s1 + $0x160] sm:$0xff]
  %v8005 = vld [vmem:[%s1 + $0x168] sm:$0xff]
  %v8006 = vld [vmem:[%s1 + $0x170] sm:$0xff]
  %v8007 = vld [vmem:[%s1 + $0x178] sm:$0xff]
  %v8008 = vld [vmem:[%s1 + $0x180] sm:$0xff]
  %v8009 = vld [vmem:[%s1 + $0x188] sm:$0xff]
  %v8010 = vld [vmem:[%s1 + $0x190] sm:$0xff]
  %v8011 = vld [vmem:[%s1 + $0x198] sm:$0xff]
  %v8012 = vld [vmem:[%s1 + $0x1a0] sm:$0xff]
  %v8013 = vld [vmem:[%s1 + $0x1a8] sm:$0xff]
  %v8014 = vld [vmem:[%s1 + $0x1b0] sm:$0xff]
  %v8015 = vld [vmem:[%s1 + $0x1b8] sm:$0xff]
  %v8016 = vld [vmem:[%s1 + $0x1c0] sm:$0xff]
  %v8017 = vld [vmem:[%s1 + $0x1c8] sm:$0xff]
  %v8018 = vld [vmem:[%s1 + $0x1d0] sm:$0xff]
  %v8019 = vld [vmem:[%s1 + $0x1d8] sm:$0xff]
  %v8020 = vld [vmem:[%s1 + $0x1e0] sm:$0xff]
  %v8021 = vld [vmem:[%s1 + $0x1e8] sm:$0xff]
  %v8022 = vld [vmem:[%s1 + $0x1f0] sm:$0xff]
  %v8023 = vld [vmem:[%s1 + $0x1f8] sm:$0xff]
  %v8024 = vadd.f32 %v7896, %v7960
  %v8025 = vadd.f32 %v7897, %v7961
  %v8026 = vadd.f32 %v7898, %v7962
  %v8027 = vadd.f32 %v7899, %v7963
  %v8028 = vadd.f32 %v7900, %v7964
  %v8029 = vadd.f32 %v7901, %v7965
  %v8030 = vadd.f32 %v7902, %v7966
  %v8031 = vadd.f32 %v7903, %v7967
  %v8032 = vadd.f32 %v7904, %v7968
  %v8033 = vadd.f32 %v7905, %v7969
  %v8034 = vadd.f32 %v7906, %v7970
  %v8035 = vadd.f32 %v7907, %v7971
  %v8036 = vadd.f32 %v7908, %v7972
  %v8037 = vadd.f32 %v7909, %v7973
  %v8038 = vadd.f32 %v7910, %v7974
  %v8039 = vadd.f32 %v7911, %v7975
  %v8040 = vadd.f32 %v7912, %v7976
  %v8041 = vadd.f32 %v7913, %v7977
  %v8042 = vadd.f32 %v7914, %v7978
  %v8043 = vadd.f32 %v7915, %v7979
  %v8044 = vadd.f32 %v7916, %v7980
  %v8045 = vadd.f32 %v7917, %v7981
  %v8046 = vadd.f32 %v7918, %v7982
  %v8047 = vadd.f32 %v7919, %v7983
  %v8048 = vadd.f32 %v7920, %v7984
  %v8049 = vadd.f32 %v7921, %v7985
  %v8050 = vadd.f32 %v7922, %v7986
  %v8051 = vadd.f32 %v7923, %v7987
  %v8052 = vadd.f32 %v7924, %v7988
  %v8053 = vadd.f32 %v7925, %v7989
  %v8054 = vadd.f32 %v7926, %v7990
  %v8055 = vadd.f32 %v7927, %v7991
  %v8056 = vadd.f32 %v7928, %v7992
  %v8057 = vadd.f32 %v7929, %v7993
  %v8058 = vadd.f32 %v7930, %v7994
  %v8059 = vadd.f32 %v7931, %v7995
  %v8060 = vadd.f32 %v7932, %v7996
  %v8061 = vadd.f32 %v7933, %v7997
  %v8062 = vadd.f32 %v7934, %v7998
  %v8063 = vadd.f32 %v7935, %v7999
  %v8064 = vadd.f32 %v7936, %v8000
  %v8065 = vadd.f32 %v7937, %v8001
  %v8066 = vadd.f32 %v7938, %v8002
  %v8067 = vadd.f32 %v7939, %v8003
  %v8068 = vadd.f32 %v7940, %v8004
  %v8069 = vadd.f32 %v7941, %v8005
  %v8070 = vadd.f32 %v7942, %v8006
  %v8071 = vadd.f32 %v7943, %v8007
  %v8072 = vadd.f32 %v7944, %v8008
  %v8073 = vadd.f32 %v7945, %v8009
  %v8074 = vadd.f32 %v7946, %v8010
  %v8075 = vadd.f32 %v7947, %v8011
  %v8076 = vadd.f32 %v7948, %v8012
  %v8077 = vadd.f32 %v7949, %v8013
  %v8078 = vadd.f32 %v7950, %v8014
  %v8079 = vadd.f32 %v7951, %v8015
  %v8080 = vadd.f32 %v7952, %v8016
  %v8081 = vadd.f32 %v7953, %v8017
  %v8082 = vadd.f32 %v7954, %v8018
  %v8083 = vadd.f32 %v7955, %v8019
  %v8084 = vadd.f32 %v7956, %v8020
  %v8085 = vadd.f32 %v7957, %v8021
  %v8086 = vadd.f32 %v7958, %v8022
  %v8087 = vadd.f32 %v7959, %v8023
  %v8088 = vmax.f32 %v8024, 0.0
  %v8089 = vmax.f32 %v8025, 0.0
  %v8090 = vmax.f32 %v8026, 0.0
  %v8091 = vmax.f32 %v8027, 0.0
  %v8092 = vmax.f32 %v8028, 0.0
  %v8093 = vmax.f32 %v8029, 0.0
  %v8094 = vmax.f32 %v8030, 0.0
  %v8095 = vmax.f32 %v8031, 0.0
  %v8096 = vmax.f32 %v8032, 0.0
  %v8097 = vmax.f32 %v8033, 0.0
  %v8098 = vmax.f32 %v8034, 0.0
  %v8099 = vmax.f32 %v8035, 0.0
  %v8100 = vmax.f32 %v8036, 0.0
  %v8101 = vmax.f32 %v8037, 0.0
  %v8102 = vmax.f32 %v8038, 0.0
  %v8103 = vmax.f32 %v8039, 0.0
  %v8104 = vmax.f32 %v8040, 0.0
  %v8105 = vmax.f32 %v8041, 0.0
  %v8106 = vmax.f32 %v8042, 0.0
  %v8107 = vmax.f32 %v8043, 0.0
  %v8108 = vmax.f32 %v8044, 0.0
  %v8109 = vmax.f32 %v8045, 0.0
  %v8110 = vmax.f32 %v8046, 0.0
  %v8111 = vmax.f32 %v8047, 0.0
  %v8112 = vmax.f32 %v8048, 0.0
  %v8113 = vmax.f32 %v8049, 0.0
  %v8114 = vmax.f32 %v8050, 0.0
  %v8115 = vmax.f32 %v8051, 0.0
  %v8116 = vmax.f32 %v8052, 0.0
  %v8117 = vmax.f32 %v8053, 0.0
  %v8118 = vmax.f32 %v8054, 0.0
  %v8119 = vmax.f32 %v8055, 0.0
  %v8120 = vmax.f32 %v8056, 0.0
  %v8121 = vmax.f32 %v8057, 0.0
  %v8122 = vmax.f32 %v8058, 0.0
  %v8123 = vmax.f32 %v8059, 0.0
  %v8124 = vmax.f32 %v8060, 0.0
  %v8125 = vmax.f32 %v8061, 0.0
  %v8126 = vmax.f32 %v8062, 0.0
  %v8127 = vmax.f32 %v8063, 0.0
  %v8128 = vmax.f32 %v8064, 0.0
  %v8129 = vmax.f32 %v8065, 0.0
  %v8130 = vmax.f32 %v8066, 0.0
  %v8131 = vmax.f32 %v8067, 0.0
  %v8132 = vmax.f32 %v8068, 0.0
  %v8133 = vmax.f32 %v8069, 0.0
  %v8134 = vmax.f32 %v8070, 0.0
  %v8135 = vmax.f32 %v8071, 0.0
  %v8136 = vmax.f32 %v8072, 0.0
  %v8137 = vmax.f32 %v8073, 0.0
  %v8138 = vmax.f32 %v8074, 0.0
  %v8139 = vmax.f32 %v8075, 0.0
  %v8140 = vmax.f32 %v8076, 0.0
  %v8141 = vmax.f32 %v8077, 0.0
  %v8142 = vmax.f32 %v8078, 0.0
  %v8143 = vmax.f32 %v8079, 0.0
  %v8144 = vmax.f32 %v8080, 0.0
  %v8145 = vmax.f32 %v8081, 0.0
  %v8146 = vmax.f32 %v8082, 0.0
  %v8147 = vmax.f32 %v8083, 0.0
  %v8148 = vmax.f32 %v8084, 0.0
  %v8149 = vmax.f32 %v8085, 0.0
  %v8150 = vmax.f32 %v8086, 0.0
  %v8151 = vmax.f32 %v8087, 0.0
  %8152 = vst.msk [vmem:[%s8] sm:$0xff] %vm7016, %v8088
  %8153 = vst.msk [vmem:[%s8 + $0x8] sm:$0xff] %vm7016, %v8089
  %8154 = vst.msk [vmem:[%s8 + $0x10] sm:$0xff] %vm7016, %v8090
  %8155 = vst.msk [vmem:[%s8 + $0x18] sm:$0xff] %vm7016, %v8091
  %8156 = vst.msk [vmem:[%s8 + $0x20] sm:$0xff] %vm7016, %v8092
  %8157 = vst.msk [vmem:[%s8 + $0x28] sm:$0xff] %vm7016, %v8093
  %8158 = vst.msk [vmem:[%s8 + $0x30] sm:$0xff] %vm7016, %v8094
  %8159 = vst.msk [vmem:[%s8 + $0x38] sm:$0xff] %vm7016, %v8095
  %8160 = vst.msk [vmem:[%s8 + $0x40] sm:$0xff] %vm7016, %v8096
  %8161 = vst.msk [vmem:[%s8 + $0x48] sm:$0xff] %vm7016, %v8097
  %8162 = vst.msk [vmem:[%s8 + $0x50] sm:$0xff] %vm7016, %v8098
  %8163 = vst.msk [vmem:[%s8 + $0x58] sm:$0xff] %vm7016, %v8099
  %8164 = vst.msk [vmem:[%s8 + $0x60] sm:$0xff] %vm7016, %v8100
  %8165 = vst.msk [vmem:[%s8 + $0x68] sm:$0xff] %vm7016, %v8101
  %8166 = vst.msk [vmem:[%s8 + $0x70] sm:$0xff] %vm7016, %v8102
  %8167 = vst.msk [vmem:[%s8 + $0x78] sm:$0xff] %vm7016, %v8103
  %8168 = vst.msk [vmem:[%s8 + $0x80] sm:$0xff] %vm7016, %v8104
  %8169 = vst.msk [vmem:[%s8 + $0x88] sm:$0xff] %vm7016, %v8105
  %8170 = vst.msk [vmem:[%s8 + $0x90] sm:$0xff] %vm7016, %v8106
  %8171 = vst.msk [vmem:[%s8 + $0x98] sm:$0xff] %vm7016, %v8107
  %8172 = vst.msk [vmem:[%s8 + $0xa0] sm:$0xff] %vm7016, %v8108
  %8173 = vst.msk [vmem:[%s8 + $0xa8] sm:$0xff] %vm7016, %v8109
  %8174 = vst.msk [vmem:[%s8 + $0xb0] sm:$0xff] %vm7016, %v8110
  %8175 = vst.msk [vmem:[%s8 + $0xb8] sm:$0xff] %vm7016, %v8111
  %8176 = vst.msk [vmem:[%s8 + $0xc0] sm:$0xff] %vm7016, %v8112
  %8177 = vst.msk [vmem:[%s8 + $0xc8] sm:$0xff] %vm7016, %v8113
  %8178 = vst.msk [vmem:[%s8 + $0xd0] sm:$0xff] %vm7016, %v8114
  %8179 = vst.msk [vmem:[%s8 + $0xd8] sm:$0xff] %vm7016, %v8115
  %8180 = vst.msk [vmem:[%s8 + $0xe0] sm:$0xff] %vm7016, %v8116
  %8181 = vst.msk [vmem:[%s8 + $0xe8] sm:$0xff] %vm7016, %v8117
  %8182 = vst.msk [vmem:[%s8 + $0xf0] sm:$0xff] %vm7016, %v8118
  %8183 = vst.msk [vmem:[%s8 + $0xf8] sm:$0xff] %vm7016, %v8119
  %8184 = vst.msk [vmem:[%s8 + $0x100] sm:$0xff] %vm7016, %v8120
  %8185 = vst.msk [vmem:[%s8 + $0x108] sm:$0xff] %vm7016, %v8121
  %8186 = vst.msk [vmem:[%s8 + $0x110] sm:$0xff] %vm7016, %v8122
  %8187 = vst.msk [vmem:[%s8 + $0x118] sm:$0xff] %vm7016, %v8123
  %8188 = vst.msk [vmem:[%s8 + $0x120] sm:$0xff] %vm7016, %v8124
  %8189 = vst.msk [vmem:[%s8 + $0x128] sm:$0xff] %vm7016, %v8125
  %8190 = vst.msk [vmem:[%s8 + $0x130] sm:$0xff] %vm7016, %v8126
  %8191 = vst.msk [vmem:[%s8 + $0x138] sm:$0xff] %vm7016, %v8127
  %8192 = vst.msk [vmem:[%s8 + $0x140] sm:$0xff] %vm7016, %v8128
  %8193 = vst.msk [vmem:[%s8 + $0x148] sm:$0xff] %vm7016, %v8129
  %8194 = vst.msk [vmem:[%s8 + $0x150] sm:$0xff] %vm7016, %v8130
  %8195 = vst.msk [vmem:[%s8 + $0x158] sm:$0xff] %vm7016, %v8131
  %8196 = vst.msk [vmem:[%s8 + $0x160] sm:$0xff] %vm7016, %v8132
  %8197 = vst.msk [vmem:[%s8 + $0x168] sm:$0xff] %vm7016, %v8133
  %8198 = vst.msk [vmem:[%s8 + $0x170] sm:$0xff] %vm7016, %v8134
  %8199 = vst.msk [vmem:[%s8 + $0x178] sm:$0xff] %vm7016, %v8135
  %8200 = vst.msk [vmem:[%s8 + $0x180] sm:$0xff] %vm7016, %v8136
  %8201 = vst.msk [vmem:[%s8 + $0x188] sm:$0xff] %vm7016, %v8137
  %8202 = vst.msk [vmem:[%s8 + $0x190] sm:$0xff] %vm7016, %v8138
  %8203 = vst.msk [vmem:[%s8 + $0x198] sm:$0xff] %vm7016, %v8139
  %8204 = vst.msk [vmem:[%s8 + $0x1a0] sm:$0xff] %vm7016, %v8140
  %8205 = vst.msk [vmem:[%s8 + $0x1a8] sm:$0xff] %vm7016, %v8141
  %8206 = vst.msk [vmem:[%s8 + $0x1b0] sm:$0xff] %vm7016, %v8142
  %8207 = vst.msk [vmem:[%s8 + $0x1b8] sm:$0xff] %vm7016, %v8143
  %8208 = vst.msk [vmem:[%s8 + $0x1c0] sm:$0xff] %vm7016, %v8144
  %8209 = vst.msk [vmem:[%s8 + $0x1c8] sm:$0xff] %vm7016, %v8145
  %8210 = vst.msk [vmem:[%s8 + $0x1d0] sm:$0xff] %vm7016, %v8146
  %8211 = vst.msk [vmem:[%s8 + $0x1d8] sm:$0xff] %vm7016, %v8147
  %8212 = vst.msk [vmem:[%s8 + $0x1e0] sm:$0xff] %vm7016, %v8148
  %8213 = vst.msk [vmem:[%s8 + $0x1e8] sm:$0xff] %vm7016, %v8149
  %8214 = vst.msk [vmem:[%s8 + $0x1f0] sm:$0xff] %vm7016, %v8150
  %8215 = vst.msk [vmem:[%s8 + $0x1f8] sm:$0xff] %vm7016, %v8151
  // Predicated region
  $region34: #{tpu_custom_call.1} parent=0 // pred_check
    _
  $region35: #{tpu_custom_call.1} parent=0 // pred_check_branch
    %8217 = sbr.rel (0) target = $region37
  $region36: #{tpu_custom_call.1} parent=0 // pred_region
    _
  $region37: #{tpu_custom_call.1} parent=0 // pred_fallthru
    _
  // Predicated region
  $region38: #{tpu_custom_call.1} parent=0 // pred_check
    _
  $region39: #{tpu_custom_call.1} parent=0 // pred_check_branch
    %8219 = sbr.rel (0) target = $region41
  $region40: #{tpu_custom_call.1} parent=0 // pred_region
    _
  $region41: #{tpu_custom_call.1} parent=0 // pred_fallthru
    _

</llo_original>
